<compile_context>
chip_gen: v6e
topology: v6e:2x2x1
jax: 0.10.0
libtpu: 0.0.40
codegen_flags: <defaults>
</compile_context>

<pallas_src>
import math
from functools import partial

import jax
import jax.numpy as jnp
from jax import lax
from jax.experimental import pallas as pl
from jax.experimental.pallas import tpu as pltpu

BN_EPS = 1e-5


def _pick_tile(n, cap):
    """Largest divisor of n that is <= cap (keeps grid blocks exact, no padded rows in stats)."""
    if n <= cap:
        return n
    for t in range(cap, 0, -1):
        if n % t == 0:
            return t
    return n


# ---------------- fused 1x1 conv (matmul + bias) + BN-stats kernel ----------------

def _mm_stats_kernel(x_ref, w_ref, b_ref, z_ref, sum_ref, sq_ref):
    # grid = (B, M_tiles); stats block is per-batch, accumulated over the M axis.
    @pl.when(pl.program_id(1) == 0)
    def _():
        sum_ref[...] = jnp.zeros_like(sum_ref)
        sq_ref[...] = jnp.zeros_like(sq_ref)

    z = jnp.dot(x_ref[0], w_ref[...],
                preferred_element_type=jnp.float32) + b_ref[...]
    z_ref[0] = z
    sum_ref[0] = sum_ref[0] + jnp.sum(z, axis=0, keepdims=True)
    sq_ref[0] = sq_ref[0] + jnp.sum(z * z, axis=0, keepdims=True)


def matmul_stats(x, w, b, *, tile_m=512):
    """(B, L, K) @ (K, N) + b.  Returns (pre-BN z, per-batch channel sums, sum-of-squares)."""
    B, L, K = x.shape
    Kw, N = w.shape
    assert K == Kw
    tm = _pick_tile(L, tile_m)
    grid = (B, L // tm)
    return pl.pallas_call(
        _mm_stats_kernel,
        out_shape=(jax.ShapeDtypeStruct((B, L, N), jnp.float32),
                   jax.ShapeDtypeStruct((B, 1, N), jnp.float32),
                   jax.ShapeDtypeStruct((B, 1, N), jnp.float32)),
        grid_spec=pltpu.PrefetchScalarGridSpec(
            num_scalar_prefetch=0,
            grid=grid,
            in_specs=[
                pl.BlockSpec((1, tm, K), lambda bi, mi: (bi, mi, 0)),
                pl.BlockSpec((K, N), lambda bi, mi: (0, 0)),
                pl.BlockSpec((1, N), lambda bi, mi: (0, 0)),
            ],
            out_specs=[
                pl.BlockSpec((1, tm, N), lambda bi, mi: (bi, mi, 0)),
                pl.BlockSpec((1, 1, N), lambda bi, mi: (bi, 0, 0)),
                pl.BlockSpec((1, 1, N), lambda bi, mi: (bi, 0, 0)),
            ],
        ),
        compiler_params=pltpu.CompilerParams(
            dimension_semantics=("parallel", "arbitrary")),
    )(x.astype(jnp.bfloat16), w.astype(jnp.bfloat16),
      b.reshape(1, N).astype(jnp.float32))


# -------------------------- in-kernel 3x3 conv + BN-stats --------------------------

def _conv3x3_kernel(x0_ref, x1_ref, x2_ref, w_ref, b_ref,
                    z_ref, sum_ref, sq_ref, *, W, HW):
    # x{kx}_ref: (1, (H+2)*W, Cin) width-shifted slab (shift = kx); the row (ky) shifts
    # are aligned 2-D slices taken in-kernel -> 9 accumulating MXU dots, no HBM im2col.
    cout = z_ref.shape[-1]
    acc = jnp.zeros((HW, cout), jnp.float32)
    slabs = (x0_ref[0], x1_ref[0], x2_ref[0])
    for kx in range(3):
        xf = slabs[kx]
        for ky in range(3):
            acc = acc + jnp.dot(xf[ky * W:ky * W + HW, :], w_ref[3 * ky + kx],
                                preferred_element_type=jnp.float32)
    z = acc + b_ref[...]
    z_ref[0] = z
    sum_ref[0] = jnp.sum(z, axis=0, keepdims=True)
    sq_ref[0] = jnp.sum(z * z, axis=0, keepdims=True)


def conv3x3_stats(x_nhwc, w9, b):
    """3x3 'same' conv (zero pad 1).  w9: (9, Cin, Cout), taps in (ky, kx) row-major order.
    Returns flat (B, H*W, Cout) pre-BN output + per-batch channel sums / sum-of-squares.
    One image per grid step (fits VMEM easily at these sizes; tile rows for big images)."""
    B, H, W, Cin = x_nhwc.shape
    Cout = w9.shape[-1]
    Hp = H + 2
    xp = jnp.pad(x_nhwc, ((0, 0), (1, 1), (1, 1), (0, 0)))
    xs = [xp[:, :, kx:kx + W, :].reshape(B, Hp * W, Cin).astype(jnp.bfloat16)
          for kx in range(3)]
    kernel = partial(_conv3x3_kernel, W=W, HW=H * W)
    return pl.pallas_call(
        kernel,
        out_shape=(jax.ShapeDtypeStruct((B, H * W, Cout), jnp.float32),
                   jax.ShapeDtypeStruct((B, 1, Cout), jnp.float32),
                   jax.ShapeDtypeStruct((B, 1, Cout), jnp.float32)),
        grid_spec=pltpu.PrefetchScalarGridSpec(
            num_scalar_prefetch=0,
            grid=(B,),
            in_specs=[
                pl.BlockSpec((1, Hp * W, Cin), lambda bi: (bi, 0, 0)),
                pl.BlockSpec((1, Hp * W, Cin), lambda bi: (bi, 0, 0)),
                pl.BlockSpec((1, Hp * W, Cin), lambda bi: (bi, 0, 0)),
                pl.BlockSpec((9, Cin, Cout), lambda bi: (0, 0, 0)),
                pl.BlockSpec((1, Cout), lambda bi: (0, 0)),
            ],
            out_specs=[
                pl.BlockSpec((1, H * W, Cout), lambda bi: (bi, 0, 0)),
                pl.BlockSpec((1, 1, Cout), lambda bi: (bi, 0, 0)),
                pl.BlockSpec((1, 1, Cout), lambda bi: (bi, 0, 0)),
            ],
        ),
        compiler_params=pltpu.CompilerParams(
            dimension_semantics=("parallel",)),
    )(*xs, w9.astype(jnp.bfloat16), b.reshape(1, Cout).astype(jnp.float32))


# ------------------- fused cross-attention (+ post-conv epilogue) -------------------

def _attn_fused_kernel(y1p_ref, s1p_ref, ysc_ref, ysh_ref, ssc_ref, ssh_ref,
                       wqk_ref, wv_ref, wc_ref, bc_ref,
                       z_ref, sum_ref, sq_ref, *, scale, C):
    # BN+ReLU prologue (Yconv / Sconv batch stats folded into scale/shift on the host).
    y1 = jnp.maximum(y1p_ref[0] * ysc_ref[...] + ysh_ref[...], 0.0)   # (L, C) f32
    s1 = jnp.maximum(s1p_ref[0] * ssc_ref[...] + ssh_ref[...], 0.0)   # (L, C) f32
    qk = jnp.dot(y1.astype(jnp.bfloat16), wqk_ref[...],
                 preferred_element_type=jnp.float32)                  # (L, 2C)
    q = qk[:, :C]
    k = qk[:, C:]
    v = jnp.dot(s1.astype(jnp.bfloat16), wv_ref[...],
                preferred_element_type=jnp.float32)                   # (L, C)
    # Q @ K^T without materializing a transposed copy of K (contract last axes).
    logits = lax.dot_general(q.astype(jnp.bfloat16), k.astype(jnp.bfloat16),
                             dimension_numbers=(((1,), (1,)), ((), ())),
                             preferred_element_type=jnp.float32) * scale
    # torch softmax(dim=1) on (B, Lq, Lk): normalize over the QUERY axis (axis 0 here).
    # NOTE: for large L this should be tiled over the query axis with running max/sum
    # (v7x 64 MiB VMEM); at L = Yh*Yw here the full (L, L) tile is tiny.
    m = jnp.max(logits, axis=0, keepdims=True)
    e = jnp.exp(logits - m)
    a = e * pl.reciprocal(jnp.sum(e, axis=0, keepdims=True), approx=True)
    att = jnp.dot(a.astype(jnp.bfloat16), v.astype(jnp.bfloat16),
                  preferred_element_type=jnp.float32)                 # (L, C)
    # Post-attention 1x1 conv epilogue (pre-BN) + its BN batch-stat accumulation.
    z = jnp.dot(att.astype(jnp.bfloat16), wc_ref[...],
                preferred_element_type=jnp.float32) + bc_ref[...]
    z_ref[0] = z
    sum_ref[0] = jnp.sum(z, axis=0, keepdims=True)
    sq_ref[0] = jnp.sum(z * z, axis=0, keepdims=True)


def mhca_attention_fused(y1_pre, s1_pre, y_scale, y_shift, s_scale, s_shift,
                         wqk, wv, wc, bc):
    B, L, C = y1_pre.shape
    kernel = partial(_attn_fused_kernel, scale=1.0 / math.sqrt(C), C=C)
    cvec = lambda a: a.reshape(1, C).astype(jnp.float32)
    small = pl.BlockSpec((1, C), lambda bi: (0, 0))
    return pl.pallas_call(
        kernel,
        out_shape=(jax.ShapeDtypeStruct((B, L, C), jnp.float32),
                   jax.ShapeDtypeStruct((B, 1, C), jnp.float32),
                   jax.ShapeDtypeStruct((B, 1, C), jnp.float32)),
        grid_spec=pltpu.PrefetchScalarGridSpec(
            num_scalar_prefetch=0,
            grid=(B,),
            in_specs=[
                pl.BlockSpec((1, L, C), lambda bi: (bi, 0, 0)),
                pl.BlockSpec((1, L, C), lambda bi: (bi, 0, 0)),
                small, small, small, small,
                pl.BlockSpec((C, 2 * C), lambda bi: (0, 0)),
                pl.BlockSpec((C, C), lambda bi: (0, 0)),
                pl.BlockSpec((C, C), lambda bi: (0, 0)),
                small,
            ],
            out_specs=[
                pl.BlockSpec((1, L, C), lambda bi: (bi, 0, 0)),
                pl.BlockSpec((1, 1, C), lambda bi: (bi, 0, 0)),
                pl.BlockSpec((1, 1, C), lambda bi: (bi, 0, 0)),
            ],
        ),
        compiler_params=pltpu.CompilerParams(
            dimension_semantics=("parallel",)),
    )(y1_pre.astype(jnp.float32), s1_pre.astype(jnp.float32),
      cvec(y_scale), cvec(y_shift), cvec(s_scale), cvec(s_shift),
      wqk.astype(jnp.bfloat16), wv.astype(jnp.bfloat16),
      wc.astype(jnp.bfloat16), bc.reshape(1, C).astype(jnp.float32))


# ----------------------------------- JAX glue -----------------------------------

def bn_finalize(ssum, ssq, count, gamma, beta, eps=BN_EPS):
    """Fold biased batch stats (training-mode BatchNorm2d) into per-channel scale/shift."""
    mean = jnp.sum(ssum, axis=(0, 1)) / count
    var = jnp.maximum(jnp.sum(ssq, axis=(0, 1)) / count - mean * mean, 0.0)
    inv = gamma / jnp.sqrt(var + eps)
    return inv, beta - mean * inv


def bn_relu(z, scale, shift):
    # Tiny elementwise affine; XLA fuses it with the adjacent pad/upsample/concat.
    return jnp.maximum(z * scale + shift, 0.0)


def pos_enc_2d_nhwc(H, W, C, dtype=jnp.float32):
    # Matches PositionalEncodingPermute2D(C) applied to an NCHW tensor (C % 4 == 0).
    half = int(math.ceil(C / 2))
    inv_freq = 1.0 / (10000.0 ** (jnp.arange(0, half, 2, dtype=dtype) / half))
    sin_h = jnp.arange(H, dtype=dtype)[:, None] * inv_freq[None, :]
    sin_w = jnp.arange(W, dtype=dtype)[:, None] * inv_freq[None, :]
    emb_h = jnp.concatenate([jnp.sin(sin_h), jnp.cos(sin_h)], axis=-1)   # (H, half)
    emb_w = jnp.concatenate([jnp.sin(sin_w), jnp.cos(sin_w)], axis=-1)   # (W, half)
    emb = jnp.zeros((H, W, 2 * half), dtype=dtype)
    emb = emb.at[:, :, :half].set(emb_h[:, None, :])
    emb = emb.at[:, :, half:2 * half].set(emb_w[None, :, :])
    return emb[:, :, :C]


def maxpool2_nhwc(x):
    B, H, W, C = x.shape
    return x.reshape(B, H // 2, 2, W // 2, 2, C).max(axis=(2, 4))


def _interp_matrix(n_in, n_out, dtype=jnp.float32):
    # align_corners=True bilinear resampling weights as a dense (n_out, n_in) tent
    # matrix -- no XLA gathers, lowers to a small matmul.
    if n_out == 1:
        src = jnp.zeros((1,), dtype)
    else:
        src = jnp.arange(n_out, dtype=dtype) * ((n_in - 1) / (n_out - 1))
    grid = jnp.arange(n_in, dtype=dtype)
    return jnp.maximum(1.0 - jnp.abs(src[:, None] - grid[None, :]), 0.0)


def upsample2_bilinear_align_corners(x):
    # nn.Upsample(scale_factor=2, mode='bilinear', align_corners=True) on NHWC.
    B, H, W, C = x.shape
    Mh = _interp_matrix(H, 2 * H, x.dtype)
    Mw = _interp_matrix(W, 2 * W, x.dtype)
    y = jnp.einsum('hH,bHWc->bhWc', Mh, x)
    return jnp.einsum('wW,bhWc->bhwc', Mw, y)


def init_params(key, Yc, Sc):
    ks = jax.random.split(key, 17)

    def u(k, shape, fan_in):
        bound = 1.0 / math.sqrt(fan_in)
        return jax.random.uniform(k, shape, jnp.float32, -bound, bound)

    p = {}
    # MHCA.Sconv: Conv1x1(Sc->Sc) + BN(Sc)
    p['Sconv_w'] = u(ks[0], (Sc, Sc), Sc);   p['Sconv_b'] = u(ks[1], (Sc,), Sc)
    p['Sconv_g'] = jnp.ones((Sc,));          p['Sconv_be'] = jnp.zeros((Sc,))
    # MHCA.Yconv: Conv1x1(Yc->Sc) + BN(Sc)
    p['Yconv_w'] = u(ks[2], (Yc, Sc), Yc);   p['Yconv_b'] = u(ks[3], (Sc,), Yc)
    p['Yconv_g'] = jnp.ones((Sc,));          p['Yconv_be'] = jnp.zeros((Sc,))
    # MultiHeadDense query / key / value: (Sc, Sc), no bias
    p['Wq'] = u(ks[4], (Sc, Sc), Sc)
    p['Wk'] = u(ks[5], (Sc, Sc), Sc)
    p['Wv'] = u(ks[6], (Sc, Sc), Sc)
    # MHCA.conv: Conv1x1(Sc->Sc) + BN(Sc)
    p['conv_w'] = u(ks[7], (Sc, Sc), Sc);    p['conv_b'] = u(ks[8], (Sc,), Sc)
    p['conv_g'] = jnp.ones((Sc,));           p['conv_be'] = jnp.zeros((Sc,))
    # MHCA.Yconv2: Conv3x3(Yc->Yc) + Conv1x1(Yc->Sc) + BN(Sc); 3x3 taps in (ky,kx) order
    p['Yconv2_w3'] = u(ks[9], (9, Yc, Yc), 9 * Yc)
    p['Yconv2_b3'] = u(ks[10], (Yc,), 9 * Yc)
    p['Yconv2_w1'] = u(ks[11], (Yc, Sc), Yc)
    p['Yconv2_b1'] = u(ks[12], (Sc,), Yc)
    p['Yconv2_g'] = jnp.ones((Sc,));         p['Yconv2_be'] = jnp.zeros((Sc,))
    # TransformerUp.conv: Conv3x3(Yc->Sc)+BN, Conv3x3(Sc->Sc)+BN  (needs Yc == 2*Sc)
    p['tc1_w'] = u(ks[13], (9, Yc, Sc), 9 * Yc); p['tc1_b'] = u(ks[14], (Sc,), 9 * Yc)
    p['tc1_g'] = jnp.ones((Sc,));                p['tc1_be'] = jnp.zeros((Sc,))
    p['tc2_w'] = u(ks[15], (9, Sc, Sc), 9 * Sc); p['tc2_b'] = u(ks[16], (Sc,), 9 * Sc)
    p['tc2_g'] = jnp.ones((Sc,));                p['tc2_be'] = jnp.zeros((Sc,))
    return p


def transformer_up_forward(params, Y_nchw, S_nchw):
    Y = jnp.transpose(Y_nchw, (0, 2, 3, 1)).astype(jnp.float32)   # (B, Yh, Yw, Yc)
    S = jnp.transpose(S_nchw, (0, 2, 3, 1)).astype(jnp.float32)   # (B, Sh, Sw, Sc)
    B, Yh, Yw, Yc = Y.shape
    _, Sh, Sw, Sc = S.shape
    Ly = Yh * Yw
    Ls = Sh * Sw

    # 2D positional encodings
    S = S + pos_enc_2d_nhwc(Sh, Sw, Sc)[None]
    Y = Y + pos_enc_2d_nhwc(Yh, Yw, Yc)[None]

    # --- MHCA.Sconv: MaxPool2d(2) -> 1x1 conv (BN stats emitted in-kernel) ---
    Sp = maxpool2_nhwc(S).reshape(B, Ly, Sc)
    s1_pre, s_sum, s_sq = matmul_stats(Sp, params['Sconv_w'], params['Sconv_b'])
    s_scale, s_shift = bn_finalize(s_sum, s_sq, B * Ly,
                                   params['Sconv_g'], params['Sconv_be'])

    # --- MHCA.Yconv: 1x1 conv (BN stats emitted in-kernel) ---
    y1_pre, y_sum, y_sq = matmul_stats(Y.reshape(B, Ly, Yc),
                                       params['Yconv_w'], params['Yconv_b'])
    y_scale, y_shift = bn_finalize(y_sum, y_sq, B * Ly,
                                   params['Yconv_g'], params['Yconv_be'])

    # --- MHCA.Yconv2: upsample -> (3x3 conv o 1x1 conv, folded) -> BN -> ReLU ---
    Yu = upsample2_bilinear_align_corners(Y)                      # (B, Sh, Sw, Yc)
    w_y2 = jnp.einsum('kio,oj->kij', params['Yconv2_w3'], params['Yconv2_w1'])
    b_y2 = params['Yconv2_b3'] @ params['Yconv2_w1'] + params['Yconv2_b1']
    y2_pre, y2_sum, y2_sq = conv3x3_stats(Yu, w_y2, b_y2)         # (B, Ls, Sc)
    y2_scale, y2_shift = bn_finalize(y2_sum, y2_sq, B * Ls,
                                     params['Yconv2_g'], params['Yconv2_be'])
    Y2 = bn_relu(y2_pre, y2_scale, y2_shift).reshape(B, Sh, Sw, Sc)

    # --- fused cross attention: BN+ReLU prologue on Y1/S1, Q/K/V, softmax over the
    #     query axis (torch dim=1), A@V, post-attention 1x1 conv epilogue + BN stats ---
    wqk = jnp.concatenate([params['Wq'], params['Wk']], axis=1)   # (Sc, 2*Sc)
    zc_pre, c_sum, c_sq = mhca_attention_fused(
        y1_pre, s1_pre, y_scale, y_shift, s_scale, s_shift,
        wqk, params['Wv'], params['conv_w'], params['conv_b'])
    c_scale, c_shift = bn_finalize(c_sum, c_sq, B * Ly,
                                   params['conv_g'], params['conv_be'])
    Zc = bn_relu(zc_pre, c_scale, c_shift).reshape(B, Yh, Yw, Sc)

    Z = upsample2_bilinear_align_corners(Zc) * S                  # gate with S
    Z = jnp.concatenate([Z, Y2], axis=-1)                         # (B, Sh, Sw, 2*Sc)

    # --- TransformerUp.conv: two (3x3 conv -> BN -> ReLU) ---
    x1_pre, t1_sum, t1_sq = conv3x3_stats(Z, params['tc1_w'], params['tc1_b'])
    t1_scale, t1_shift = bn_finalize(t1_sum, t1_sq, B * Ls,
                                     params['tc1_g'], params['tc1_be'])
    X1 = bn_relu(x1_pre, t1_scale, t1_shift).reshape(B, Sh, Sw, Sc)

    x2_pre, t2_sum, t2_sq = conv3x3_stats(X1, params['tc2_w'], params['tc2_b'])
    t2_scale, t2_shift = bn_finalize(t2_sum, t2_sq, B * Ls,
                                     params['tc2_g'], params['tc2_be'])
    X2 = bn_relu(x2_pre, t2_scale, t2_shift).reshape(B, Sh, Sw, Sc)

    return jnp.transpose(X2, (0, 3, 1, 2))                        # back to NCHW


if __name__ == "__main__":
    B, Sc = 2, 4
    Yc = 2 * Sc                 # TransformerUp requires Ychannels == 2 * Schannels
    Yh = Yw = 8
    Sh = Sw = 16                # S is at 2x the spatial resolution of Y

    key = jax.random.PRNGKey(0)
    kY, kS, kP = jax.random.split(key, 3)
    Y = jax.random.normal(kY, (B, Yc, Yh, Yw), jnp.float32)
    S = jax.random.normal(kS, (B, Sc, Sh, Sw), jnp.float32)
    params = init_params(kP, Yc, Sc)

    out = jax.jit(transformer_up_forward)(params, Y, S)
    out = jax.block_until_ready(out)
    assert out.shape == (B, Sc, Sh, Sw)
    assert bool(jnp.all(jnp.isfinite(out)))
    print("KERNEL_OK")
</pallas_src>

<mosaic_0001>
module attributes {stable_mosaic.version = 11 : i64} {
  func.func @_mm_stats_kernel(%arg0: i32, %arg1: i32, %arg2: memref<1x64x4xbf16, #tpu.memory_space<vmem>>, %arg3: memref<4x4xbf16, #tpu.memory_space<vmem>>, %arg4: memref<1x4xf32, #tpu.memory_space<vmem>>, %arg5: memref<1x64x4xf32, #tpu.memory_space<vmem>>, %arg6: memref<1x1x4xf32, #tpu.memory_space<vmem>>, %arg7: memref<1x1x4xf32, #tpu.memory_space<vmem>>) attributes {dimension_semantics = [#tpu.dimension_semantics<parallel>, #tpu.dimension_semantics<arbitrary>], iteration_bounds = array<i64: 2, 1>, scalar_prefetch = 0 : i64, scratch_operands = 0 : i64, tpu.core_type = #tpu.core_type<tc>, window_params = [{transform_indices = @transform_0, window_bounds = array<i64: 1, 64, 4>}, {pipeline_mode = #tpu.pipeline_mode<synchronous>, transform_indices = @transform_1, window_bounds = array<i64: 4, 4>}, {pipeline_mode = #tpu.pipeline_mode<synchronous>, transform_indices = @transform_2, window_bounds = array<i64: 1, 4>}, {transform_indices = @transform_3, window_bounds = array<i64: 1, 64, 4>}, {transform_indices = @transform_4, window_bounds = array<i64: 1, 1, 4>}, {transform_indices = @transform_5, window_bounds = array<i64: 1, 1, 4>}]} {
    %c0_i32 = arith.constant 0 : i32
    %0 = arith.cmpi eq, %arg1, %c0_i32 : i32
    %1 = arith.extui %0 : i1 to i32
    %c0_i32_0 = arith.constant 0 : i32
    %2 = arith.cmpi ne, %1, %c0_i32_0 : i32
    scf.if %2 {
      %cst_24 = arith.constant 0.000000e+00 : f32
      %30 = vector.broadcast %cst_24 : f32 to vector<1x1x4xf32>
      %c0_25 = arith.constant 0 : index
      %c0_26 = arith.constant 0 : index
      %c0_27 = arith.constant 0 : index
      %31 = vector.load %arg6[%c0_25, %c0_26, %c0_27] : memref<1x1x4xf32, #tpu.memory_space<vmem>>, vector<1x1x4xf32>
      tpu.vector_store %arg6[%c0_25, %c0_26, %c0_27], %30 {strides = array<i32>} : memref<1x1x4xf32, #tpu.memory_space<vmem>>, vector<1x1x4xf32>,
      %cst_28 = arith.constant 0.000000e+00 : f32
      %32 = vector.broadcast %cst_28 : f32 to vector<1x1x4xf32>
      %c0_29 = arith.constant 0 : index
      %c0_30 = arith.constant 0 : index
      %c0_31 = arith.constant 0 : index
      %33 = vector.load %arg7[%c0_29, %c0_30, %c0_31] : memref<1x1x4xf32, #tpu.memory_space<vmem>>, vector<1x1x4xf32>
      tpu.vector_store %arg7[%c0_29, %c0_30, %c0_31], %32 {strides = array<i32>} : memref<1x1x4xf32, #tpu.memory_space<vmem>>, vector<1x1x4xf32>,
    } else {
    }
    %c0 = arith.constant 0 : index
    %c0_1 = arith.constant 0 : index
    %c0_2 = arith.constant 0 : index
    %3 = vector.load %arg2[%c0, %c0_1, %c0_2] : memref<1x64x4xbf16, #tpu.memory_space<vmem>>, vector<1x64x4xbf16>
    %4 = vector.shape_cast %3 : vector<1x64x4xbf16> to vector<64x4xbf16>
    %c0_3 = arith.constant 0 : index
    %c0_4 = arith.constant 0 : index
    %5 = vector.load %arg3[%c0_3, %c0_4] : memref<4x4xbf16, #tpu.memory_space<vmem>>, vector<4x4xbf16>
    %cst = arith.constant dense<0.000000e+00> : vector<64x4xf32>
    %6 = tpu.matmul %4, %5, %cst {dimension_numbers = #tpu.dot_dimension_numbers<[1], [0], [0], [1], [0, 0, 1, 1], [], []>} : vector<64x4xbf16>, vector<4x4xbf16>, vector<64x4xf32> -> vector<64x4xf32>
    %c0_5 = arith.constant 0 : index
    %c0_6 = arith.constant 0 : index
    %7 = vector.load %arg4[%c0_5, %c0_6] : memref<1x4xf32, #tpu.memory_space<vmem>>, vector<1x4xf32>
    %8 = vector.broadcast %7 : vector<1x4xf32> to vector<64x4xf32>
    %9 = arith.addf %6, %8 : vector<64x4xf32>
    %c0_7 = arith.constant 0 : index
    %c0_8 = arith.constant 0 : index
    %c0_9 = arith.constant 0 : index
    %10 = vector.load %arg5[%c0_7, %c0_8, %c0_9] : memref<1x64x4xf32, #tpu.memory_space<vmem>>, vector<1x64x4xf32>
    %11 = vector.shape_cast %10 : vector<1x64x4xf32> to vector<64x4xf32>
    %12 = vector.shape_cast %9 : vector<64x4xf32> to vector<1x64x4xf32>
    tpu.vector_store %arg5[%c0_7, %c0_8, %c0_9], %12 {strides = array<i32>} : memref<1x64x4xf32, #tpu.memory_space<vmem>>, vector<1x64x4xf32>,
    %c0_10 = arith.constant 0 : index
    %c0_11 = arith.constant 0 : index
    %c0_12 = arith.constant 0 : index
    %13 = vector.load %arg6[%c0_10, %c0_11, %c0_12] : memref<1x1x4xf32, #tpu.memory_space<vmem>>, vector<1x1x4xf32>
    %14 = vector.shape_cast %13 : vector<1x1x4xf32> to vector<1x4xf32>
    %cst_13 = arith.constant dense<0.000000e+00> : vector<4xf32>
    %15 = vector.multi_reduction <add>, %9, %cst_13 [0] : vector<64x4xf32> to vector<4xf32>
    %16 = vector.shape_cast %15 : vector<4xf32> to vector<1x4xf32>
    %17 = arith.addf %14, %16 : vector<1x4xf32>
    %c0_14 = arith.constant 0 : index
    %c0_15 = arith.constant 0 : index
    %c0_16 = arith.constant 0 : index
    %18 = vector.load %arg6[%c0_14, %c0_15, %c0_16] : memref<1x1x4xf32, #tpu.memory_space<vmem>>, vector<1x1x4xf32>
    %19 = vector.shape_cast %18 : vector<1x1x4xf32> to vector<1x4xf32>
    %20 = vector.shape_cast %17 : vector<1x4xf32> to vector<1x1x4xf32>
    tpu.vector_store %arg6[%c0_14, %c0_15, %c0_16], %20 {strides = array<i32>} : memref<1x1x4xf32, #tpu.memory_space<vmem>>, vector<1x1x4xf32>,
    %c0_17 = arith.constant 0 : index
    %c0_18 = arith.constant 0 : index
    %c0_19 = arith.constant 0 : index
    %21 = vector.load %arg7[%c0_17, %c0_18, %c0_19] : memref<1x1x4xf32, #tpu.memory_space<vmem>>, vector<1x1x4xf32>
    %22 = vector.shape_cast %21 : vector<1x1x4xf32> to vector<1x4xf32>
    %23 = arith.mulf %9, %9 : vector<64x4xf32>
    %cst_20 = arith.constant dense<0.000000e+00> : vector<4xf32>
    %24 = vector.multi_reduction <add>, %23, %cst_20 [0] : vector<64x4xf32> to vector<4xf32>
    %25 = vector.shape_cast %24 : vector<4xf32> to vector<1x4xf32>
    %26 = arith.addf %22, %25 : vector<1x4xf32>
    %c0_21 = arith.constant 0 : index
    %c0_22 = arith.constant 0 : index
    %c0_23 = arith.constant 0 : index
    %27 = vector.load %arg7[%c0_21, %c0_22, %c0_23] : memref<1x1x4xf32, #tpu.memory_space<vmem>>, vector<1x1x4xf32>
    %28 = vector.shape_cast %27 : vector<1x1x4xf32> to vector<1x4xf32>
    %29 = vector.shape_cast %26 : vector<1x4xf32> to vector<1x1x4xf32>
    tpu.vector_store %arg7[%c0_21, %c0_22, %c0_23], %29 {strides = array<i32>} : memref<1x1x4xf32, #tpu.memory_space<vmem>>, vector<1x1x4xf32>,
    return
  }
  func.func @transform_0(%arg0: i32, %arg1: i32) -> (i32, i32, i32) {
    %c0_i32 = arith.constant 0 : i32
    %c0_i32_0 = arith.constant 0 : i32
    return %arg0, %arg1, %c0_i32 : i32, i32, i32
  }
  func.func @transform_1(%arg0: i32, %arg1: i32) -> (i32, i32) {
    %c0_i32 = arith.constant 0 : i32
    %c0_i32_0 = arith.constant 0 : i32
    %c0_i32_1 = arith.constant 0 : i32
    return %c0_i32, %c0_i32_0 : i32, i32
  }
  func.func @transform_2(%arg0: i32, %arg1: i32) -> (i32, i32) {
    %c0_i32 = arith.constant 0 : i32
    %c0_i32_0 = arith.constant 0 : i32
    %c0_i32_1 = arith.constant 0 : i32
    return %c0_i32, %c0_i32_0 : i32, i32
  }
  func.func @transform_3(%arg0: i32, %arg1: i32) -> (i32, i32, i32) {
    %c0_i32 = arith.constant 0 : i32
    %c0_i32_0 = arith.constant 0 : i32
    return %arg0, %arg1, %c0_i32 : i32, i32, i32
  }
  func.func @transform_4(%arg0: i32, %arg1: i32) -> (i32, i32, i32) {
    %c0_i32 = arith.constant 0 : i32
    %c0_i32_0 = arith.constant 0 : i32
    %c0_i32_1 = arith.constant 0 : i32
    return %arg0, %c0_i32, %c0_i32_0 : i32, i32, i32
  }
  func.func @transform_5(%arg0: i32, %arg1: i32) -> (i32, i32, i32) {
    %c0_i32 = arith.constant 0 : i32
    %c0_i32_0 = arith.constant 0 : i32
    %c0_i32_1 = arith.constant 0 : i32
    return %arg0, %c0_i32, %c0_i32_0 : i32, i32, i32
  }
}

module attributes {stable_mosaic.version = 11 : i64} {
  func.func @_mm_stats_kernel(%arg0: i32, %arg1: i32, %arg2: memref<1x64x8xbf16, #tpu.memory_space<vmem>>, %arg3: memref<8x4xbf16, #tpu.memory_space<vmem>>, %arg4: memref<1x4xf32, #tpu.memory_space<vmem>>, %arg5: memref<1x64x4xf32, #tpu.memory_space<vmem>>, %arg6: memref<1x1x4xf32, #tpu.memory_space<vmem>>, %arg7: memref<1x1x4xf32, #tpu.memory_space<vmem>>) attributes {dimension_semantics = [#tpu.dimension_semantics<parallel>, #tpu.dimension_semantics<arbitrary>], iteration_bounds = array<i64: 2, 1>, scalar_prefetch = 0 : i64, scratch_operands = 0 : i64, tpu.core_type = #tpu.core_type<tc>, window_params = [{transform_indices = @transform_0, window_bounds = array<i64: 1, 64, 8>}, {pipeline_mode = #tpu.pipeline_mode<synchronous>, transform_indices = @transform_1, window_bounds = array<i64: 8, 4>}, {pipeline_mode = #tpu.pipeline_mode<synchronous>, transform_indices = @transform_2, window_bounds = array<i64: 1, 4>}, {transform_indices = @transform_3, window_bounds = array<i64: 1, 64, 4>}, {transform_indices = @transform_4, window_bounds = array<i64: 1, 1, 4>}, {transform_indices = @transform_5, window_bounds = array<i64: 1, 1, 4>}]} {
    %c0_i32 = arith.constant 0 : i32
    %0 = arith.cmpi eq, %arg1, %c0_i32 : i32
    %1 = arith.extui %0 : i1 to i32
    %c0_i32_0 = arith.constant 0 : i32
    %2 = arith.cmpi ne, %1, %c0_i32_0 : i32
    scf.if %2 {
      %cst_24 = arith.constant 0.000000e+00 : f32
      %30 = vector.broadcast %cst_24 : f32 to vector<1x1x4xf32>
      %c0_25 = arith.constant 0 : index
      %c0_26 = arith.constant 0 : index
      %c0_27 = arith.constant 0 : index
      %31 = vector.load %arg6[%c0_25, %c0_26, %c0_27] : memref<1x1x4xf32, #tpu.memory_space<vmem>>, vector<1x1x4xf32>
      tpu.vector_store %arg6[%c0_25, %c0_26, %c0_27], %30 {strides = array<i32>} : memref<1x1x4xf32, #tpu.memory_space<vmem>>, vector<1x1x4xf32>,
      %cst_28 = arith.constant 0.000000e+00 : f32
      %32 = vector.broadcast %cst_28 : f32 to vector<1x1x4xf32>
      %c0_29 = arith.constant 0 : index
      %c0_30 = arith.constant 0 : index
      %c0_31 = arith.constant 0 : index
      %33 = vector.load %arg7[%c0_29, %c0_30, %c0_31] : memref<1x1x4xf32, #tpu.memory_space<vmem>>, vector<1x1x4xf32>
      tpu.vector_store %arg7[%c0_29, %c0_30, %c0_31], %32 {strides = array<i32>} : memref<1x1x4xf32, #tpu.memory_space<vmem>>, vector<1x1x4xf32>,
    } else {
    }
    %c0 = arith.constant 0 : index
    %c0_1 = arith.constant 0 : index
    %c0_2 = arith.constant 0 : index
    %3 = vector.load %arg2[%c0, %c0_1, %c0_2] : memref<1x64x8xbf16, #tpu.memory_space<vmem>>, vector<1x64x8xbf16>
    %4 = vector.shape_cast %3 : vector<1x64x8xbf16> to vector<64x8xbf16>
    %c0_3 = arith.constant 0 : index
    %c0_4 = arith.constant 0 : index
    %5 = vector.load %arg3[%c0_3, %c0_4] : memref<8x4xbf16, #tpu.memory_space<vmem>>, vector<8x4xbf16>
    %cst = arith.constant dense<0.000000e+00> : vector<64x4xf32>
    %6 = tpu.matmul %4, %5, %cst {dimension_numbers = #tpu.dot_dimension_numbers<[1], [0], [0], [1], [0, 0, 1, 1], [], []>} : vector<64x8xbf16>, vector<8x4xbf16>, vector<64x4xf32> -> vector<64x4xf32>
    %c0_5 = arith.constant 0 : index
    %c0_6 = arith.constant 0 : index
    %7 = vector.load %arg4[%c0_5, %c0_6] : memref<1x4xf32, #tpu.memory_space<vmem>>, vector<1x4xf32>
    %8 = vector.broadcast %7 : vector<1x4xf32> to vector<64x4xf32>
    %9 = arith.addf %6, %8 : vector<64x4xf32>
    %c0_7 = arith.constant 0 : index
    %c0_8 = arith.constant 0 : index
    %c0_9 = arith.constant 0 : index
    %10 = vector.load %arg5[%c0_7, %c0_8, %c0_9] : memref<1x64x4xf32, #tpu.memory_space<vmem>>, vector<1x64x4xf32>
    %11 = vector.shape_cast %10 : vector<1x64x4xf32> to vector<64x4xf32>
    %12 = vector.shape_cast %9 : vector<64x4xf32> to vector<1x64x4xf32>
    tpu.vector_store %arg5[%c0_7, %c0_8, %c0_9], %12 {strides = array<i32>} : memref<1x64x4xf32, #tpu.memory_space<vmem>>, vector<1x64x4xf32>,
    %c0_10 = arith.constant 0 : index
    %c0_11 = arith.constant 0 : index
    %c0_12 = arith.constant 0 : index
    %13 = vector.load %arg6[%c0_10, %c0_11, %c0_12] : memref<1x1x4xf32, #tpu.memory_space<vmem>>, vector<1x1x4xf32>
    %14 = vector.shape_cast %13 : vector<1x1x4xf32> to vector<1x4xf32>
    %cst_13 = arith.constant dense<0.000000e+00> : vector<4xf32>
    %15 = vector.multi_reduction <add>, %9, %cst_13 [0] : vector<64x4xf32> to vector<4xf32>
    %16 = vector.shape_cast %15 : vector<4xf32> to vector<1x4xf32>
    %17 = arith.addf %14, %16 : vector<1x4xf32>
    %c0_14 = arith.constant 0 : index
    %c0_15 = arith.constant 0 : index
    %c0_16 = arith.constant 0 : index
    %18 = vector.load %arg6[%c0_14, %c0_15, %c0_16] : memref<1x1x4xf32, #tpu.memory_space<vmem>>, vector<1x1x4xf32>
    %19 = vector.shape_cast %18 : vector<1x1x4xf32> to vector<1x4xf32>
    %20 = vector.shape_cast %17 : vector<1x4xf32> to vector<1x1x4xf32>
    tpu.vector_store %arg6[%c0_14, %c0_15, %c0_16], %20 {strides = array<i32>} : memref<1x1x4xf32, #tpu.memory_space<vmem>>, vector<1x1x4xf32>,
    %c0_17 = arith.constant 0 : index
    %c0_18 = arith.constant 0 : index
    %c0_19 = arith.constant 0 : index
    %21 = vector.load %arg7[%c0_17, %c0_18, %c0_19] : memref<1x1x4xf32, #tpu.memory_space<vmem>>, vector<1x1x4xf32>
    %22 = vector.shape_cast %21 : vector<1x1x4xf32> to vector<1x4xf32>
    %23 = arith.mulf %9, %9 : vector<64x4xf32>
    %cst_20 = arith.constant dense<0.000000e+00> : vector<4xf32>
    %24 = vector.multi_reduction <add>, %23, %cst_20 [0] : vector<64x4xf32> to vector<4xf32>
    %25 = vector.shape_cast %24 : vector<4xf32> to vector<1x4xf32>
    %26 = arith.addf %22, %25 : vector<1x4xf32>
    %c0_21 = arith.constant 0 : index
    %c0_22 = arith.constant 0 : index
    %c0_23 = arith.constant 0 : index
    %27 = vector.load %arg7[%c0_21, %c0_22, %c0_23] : memref<1x1x4xf32, #tpu.memory_space<vmem>>, vector<1x1x4xf32>
    %28 = vector.shape_cast %27 : vector<1x1x4xf32> to vector<1x4xf32>
    %29 = vector.shape_cast %26 : vector<1x4xf32> to vector<1x1x4xf32>
    tpu.vector_store %arg7[%c0_21, %c0_22, %c0_23], %29 {strides = array<i32>} : memref<1x1x4xf32, #tpu.memory_space<vmem>>, vector<1x1x4xf32>,
    return
  }
  func.func @transform_0(%arg0: i32, %arg1: i32) -> (i32, i32, i32) {
    %c0_i32 = arith.constant 0 : i32
    %c0_i32_0 = arith.constant 0 : i32
    return %arg0, %arg1, %c0_i32 : i32, i32, i32
  }
  func.func @transform_1(%arg0: i32, %arg1: i32) -> (i32, i32) {
    %c0_i32 = arith.constant 0 : i32
    %c0_i32_0 = arith.constant 0 : i32
    %c0_i32_1 = arith.constant 0 : i32
    return %c0_i32, %c0_i32_0 : i32, i32
  }
  func.func @transform_2(%arg0: i32, %arg1: i32) -> (i32, i32) {
    %c0_i32 = arith.constant 0 : i32
    %c0_i32_0 = arith.constant 0 : i32
    %c0_i32_1 = arith.constant 0 : i32
    return %c0_i32, %c0_i32_0 : i32, i32
  }
  func.func @transform_3(%arg0: i32, %arg1: i32) -> (i32, i32, i32) {
    %c0_i32 = arith.constant 0 : i32
    %c0_i32_0 = arith.constant 0 : i32
    return %arg0, %arg1, %c0_i32 : i32, i32, i32
  }
  func.func @transform_4(%arg0: i32, %arg1: i32) -> (i32, i32, i32) {
    %c0_i32 = arith.constant 0 : i32
    %c0_i32_0 = arith.constant 0 : i32
    %c0_i32_1 = arith.constant 0 : i32
    return %arg0, %c0_i32, %c0_i32_0 : i32, i32, i32
  }
  func.func @transform_5(%arg0: i32, %arg1: i32) -> (i32, i32, i32) {
    %c0_i32 = arith.constant 0 : i32
    %c0_i32_0 = arith.constant 0 : i32
    %c0_i32_1 = arith.constant 0 : i32
    return %arg0, %c0_i32, %c0_i32_0 : i32, i32, i32
  }
}

module attributes {stable_mosaic.version = 11 : i64} {
  func.func @_attn_fused_kernel(%arg0: i32, %arg1: memref<1x64x4xf32, #tpu.memory_space<vmem>>, %arg2: memref<1x64x4xf32, #tpu.memory_space<vmem>>, %arg3: memref<1x4xf32, #tpu.memory_space<vmem>>, %arg4: memref<1x4xf32, #tpu.memory_space<vmem>>, %arg5: memref<1x4xf32, #tpu.memory_space<vmem>>, %arg6: memref<1x4xf32, #tpu.memory_space<vmem>>, %arg7: memref<4x8xbf16, #tpu.memory_space<vmem>>, %arg8: memref<4x4xbf16, #tpu.memory_space<vmem>>, %arg9: memref<4x4xbf16, #tpu.memory_space<vmem>>, %arg10: memref<1x4xf32, #tpu.memory_space<vmem>>, %arg11: memref<1x64x4xf32, #tpu.memory_space<vmem>>, %arg12: memref<1x1x4xf32, #tpu.memory_space<vmem>>, %arg13: memref<1x1x4xf32, #tpu.memory_space<vmem>>) attributes {dimension_semantics = [#tpu.dimension_semantics<parallel>], iteration_bounds = array<i64: 2>, scalar_prefetch = 0 : i64, scratch_operands = 0 : i64, tpu.core_type = #tpu.core_type<tc>, window_params = [{transform_indices = @transform_0, window_bounds = array<i64: 1, 64, 4>}, {transform_indices = @transform_1, window_bounds = array<i64: 1, 64, 4>}, {pipeline_mode = #tpu.pipeline_mode<synchronous>, transform_indices = @transform_2, window_bounds = array<i64: 1, 4>}, {pipeline_mode = #tpu.pipeline_mode<synchronous>, transform_indices = @transform_3, window_bounds = array<i64: 1, 4>}, {pipeline_mode = #tpu.pipeline_mode<synchronous>, transform_indices = @transform_4, window_bounds = array<i64: 1, 4>}, {pipeline_mode = #tpu.pipeline_mode<synchronous>, transform_indices = @transform_5, window_bounds = array<i64: 1, 4>}, {pipeline_mode = #tpu.pipeline_mode<synchronous>, transform_indices = @transform_6, window_bounds = array<i64: 4, 8>}, {pipeline_mode = #tpu.pipeline_mode<synchronous>, transform_indices = @transform_7, window_bounds = array<i64: 4, 4>}, {pipeline_mode = #tpu.pipeline_mode<synchronous>, transform_indices = @transform_8, window_bounds = array<i64: 4, 4>}, {pipeline_mode = #tpu.pipeline_mode<synchronous>, transform_indices = @transform_9, window_bounds = array<i64: 1, 4>}, {transform_indices = @transform_10, window_bounds = array<i64: 1, 64, 4>}, {transform_indices = @transform_11, window_bounds = array<i64: 1, 1, 4>}, {transform_indices = @transform_12, window_bounds = array<i64: 1, 1, 4>}]} {
    %c0 = arith.constant 0 : index
    %c0_0 = arith.constant 0 : index
    %c0_1 = arith.constant 0 : index
    %0 = vector.load %arg1[%c0, %c0_0, %c0_1] : memref<1x64x4xf32, #tpu.memory_space<vmem>>, vector<1x64x4xf32>
    %1 = vector.shape_cast %0 : vector<1x64x4xf32> to vector<64x4xf32>
    %c0_2 = arith.constant 0 : index
    %c0_3 = arith.constant 0 : index
    %2 = vector.load %arg3[%c0_2, %c0_3] : memref<1x4xf32, #tpu.memory_space<vmem>>, vector<1x4xf32>
    %3 = vector.broadcast %2 : vector<1x4xf32> to vector<64x4xf32>
    %4 = arith.mulf %1, %3 : vector<64x4xf32>
    %c0_4 = arith.constant 0 : index
    %c0_5 = arith.constant 0 : index
    %5 = vector.load %arg4[%c0_4, %c0_5] : memref<1x4xf32, #tpu.memory_space<vmem>>, vector<1x4xf32>
    %6 = vector.broadcast %5 : vector<1x4xf32> to vector<64x4xf32>
    %7 = arith.addf %4, %6 : vector<64x4xf32>
    %cst = arith.constant 0.000000e+00 : f32
    %8 = vector.broadcast %cst : f32 to vector<64x4xf32>
    %9 = arith.maximumf %7, %8 : vector<64x4xf32>
    %c0_6 = arith.constant 0 : index
    %c0_7 = arith.constant 0 : index
    %c0_8 = arith.constant 0 : index
    %10 = vector.load %arg2[%c0_6, %c0_7, %c0_8] : memref<1x64x4xf32, #tpu.memory_space<vmem>>, vector<1x64x4xf32>
    %11 = vector.shape_cast %10 : vector<1x64x4xf32> to vector<64x4xf32>
    %c0_9 = arith.constant 0 : index
    %c0_10 = arith.constant 0 : index
    %12 = vector.load %arg5[%c0_9, %c0_10] : memref<1x4xf32, #tpu.memory_space<vmem>>, vector<1x4xf32>
    %13 = vector.broadcast %12 : vector<1x4xf32> to vector<64x4xf32>
    %14 = arith.mulf %11, %13 : vector<64x4xf32>
    %c0_11 = arith.constant 0 : index
    %c0_12 = arith.constant 0 : index
    %15 = vector.load %arg6[%c0_11, %c0_12] : memref<1x4xf32, #tpu.memory_space<vmem>>, vector<1x4xf32>
    %16 = vector.broadcast %15 : vector<1x4xf32> to vector<64x4xf32>
    %17 = arith.addf %14, %16 : vector<64x4xf32>
    %cst_13 = arith.constant 0.000000e+00 : f32
    %18 = vector.broadcast %cst_13 : f32 to vector<64x4xf32>
    %19 = arith.maximumf %17, %18 : vector<64x4xf32>
    %20 = arith.truncf %9 : vector<64x4xf32> to vector<64x4xbf16>
    %c0_14 = arith.constant 0 : index
    %c0_15 = arith.constant 0 : index
    %21 = vector.load %arg7[%c0_14, %c0_15] : memref<4x8xbf16, #tpu.memory_space<vmem>>, vector<4x8xbf16>
    %cst_16 = arith.constant dense<0.000000e+00> : vector<64x8xf32>
    %22 = tpu.matmul %20, %21, %cst_16 {dimension_numbers = #tpu.dot_dimension_numbers<[1], [0], [0], [1], [0, 0, 1, 1], [], []>} : vector<64x4xbf16>, vector<4x8xbf16>, vector<64x8xf32> -> vector<64x8xf32>
    %23 = vector.extract_strided_slice %22 {offsets = [0, 0], sizes = [64, 4], strides = [1, 1]} : vector<64x8xf32> to vector<64x4xf32>
    %24 = vector.extract_strided_slice %22 {offsets = [0, 4], sizes = [64, 4], strides = [1, 1]} : vector<64x8xf32> to vector<64x4xf32>
    %25 = arith.truncf %19 : vector<64x4xf32> to vector<64x4xbf16>
    %c0_17 = arith.constant 0 : index
    %c0_18 = arith.constant 0 : index
    %26 = vector.load %arg8[%c0_17, %c0_18] : memref<4x4xbf16, #tpu.memory_space<vmem>>, vector<4x4xbf16>
    %cst_19 = arith.constant dense<0.000000e+00> : vector<64x4xf32>
    %27 = tpu.matmul %25, %26, %cst_19 {dimension_numbers = #tpu.dot_dimension_numbers<[1], [0], [0], [1], [0, 0, 1, 1], [], []>} : vector<64x4xbf16>, vector<4x4xbf16>, vector<64x4xf32> -> vector<64x4xf32>
    %28 = arith.truncf %23 : vector<64x4xf32> to vector<64x4xbf16>
    %29 = arith.truncf %24 : vector<64x4xf32> to vector<64x4xbf16>
    %cst_20 = arith.constant dense<0.000000e+00> : vector<64x64xf32>
    %30 = tpu.matmul %28, %29, %cst_20 {dimension_numbers = #tpu.dot_dimension_numbers<[1], [1], [0], [0], [0, 0, 1, 0], [], []>} : vector<64x4xbf16>, vector<64x4xbf16>, vector<64x64xf32> -> vector<64x64xf32>
    %cst_21 = arith.constant 5.000000e-01 : f32
    %31 = vector.broadcast %cst_21 : f32 to vector<64x64xf32>
    %32 = arith.mulf %30, %31 : vector<64x64xf32>
    %cst_22 = arith.constant dense<0xFF800000> : vector<64xf32>
    %33 = vector.multi_reduction <maximumf>, %32, %cst_22 [0] : vector<64x64xf32> to vector<64xf32>
    %34 = vector.shape_cast %33 : vector<64xf32> to vector<1x64xf32>
    %35 = vector.broadcast %34 : vector<1x64xf32> to vector<64x64xf32>
    %36 = arith.subf %32, %35 : vector<64x64xf32>
    %37 = math.exp %36 : vector<64x64xf32>
    %cst_23 = arith.constant dense<0.000000e+00> : vector<64xf32>
    %38 = vector.multi_reduction <add>, %37, %cst_23 [0] : vector<64x64xf32> to vector<64xf32>
    %39 = vector.shape_cast %38 : vector<64xf32> to vector<1x64xf32>
    %40 = tpu.reciprocal %39 {approx = true} : vector<1x64xf32> -> vector<1x64xf32>
    %41 = vector.broadcast %40 : vector<1x64xf32> to vector<64x64xf32>
    %42 = arith.mulf %37, %41 : vector<64x64xf32>
    %43 = arith.truncf %42 : vector<64x64xf32> to vector<64x64xbf16>
    %44 = arith.truncf %27 : vector<64x4xf32> to vector<64x4xbf16>
    %cst_24 = arith.constant dense<0.000000e+00> : vector<64x4xf32>
    %45 = tpu.matmul %43, %44, %cst_24 {dimension_numbers = #tpu.dot_dimension_numbers<[1], [0], [0], [1], [0, 0, 1, 1], [], []>} : vector<64x64xbf16>, vector<64x4xbf16>, vector<64x4xf32> -> vector<64x4xf32>
    %46 = arith.truncf %45 : vector<64x4xf32> to vector<64x4xbf16>
    %c0_25 = arith.constant 0 : index
    %c0_26 = arith.constant 0 : index
    %47 = vector.load %arg9[%c0_25, %c0_26] : memref<4x4xbf16, #tpu.memory_space<vmem>>, vector<4x4xbf16>
    %cst_27 = arith.constant dense<0.000000e+00> : vector<64x4xf32>
    %48 = tpu.matmul %46, %47, %cst_27 {dimension_numbers = #tpu.dot_dimension_numbers<[1], [0], [0], [1], [0, 0, 1, 1], [], []>} : vector<64x4xbf16>, vector<4x4xbf16>, vector<64x4xf32> -> vector<64x4xf32>
    %c0_28 = arith.constant 0 : index
    %c0_29 = arith.constant 0 : index
    %49 = vector.load %arg10[%c0_28, %c0_29] : memref<1x4xf32, #tpu.memory_space<vmem>>, vector<1x4xf32>
    %50 = vector.broadcast %49 : vector<1x4xf32> to vector<64x4xf32>
    %51 = arith.addf %48, %50 : vector<64x4xf32>
    %c0_30 = arith.constant 0 : index
    %c0_31 = arith.constant 0 : index
    %c0_32 = arith.constant 0 : index
    %52 = vector.load %arg11[%c0_30, %c0_31, %c0_32] : memref<1x64x4xf32, #tpu.memory_space<vmem>>, vector<1x64x4xf32>
    %53 = vector.shape_cast %52 : vector<1x64x4xf32> to vector<64x4xf32>
    %54 = vector.shape_cast %51 : vector<64x4xf32> to vector<1x64x4xf32>
    tpu.vector_store %arg11[%c0_30, %c0_31, %c0_32], %54 {strides = array<i32>} : memref<1x64x4xf32, #tpu.memory_space<vmem>>, vector<1x64x4xf32>,
    %cst_33 = arith.constant dense<0.000000e+00> : vector<4xf32>
    %55 = vector.multi_reduction <add>, %51, %cst_33 [0] : vector<64x4xf32> to vector<4xf32>
    %56 = vector.shape_cast %55 : vector<4xf32> to vector<1x4xf32>
    %c0_34 = arith.constant 0 : index
    %c0_35 = arith.constant 0 : index
    %c0_36 = arith.constant 0 : index
    %57 = vector.load %arg12[%c0_34, %c0_35, %c0_36] : memref<1x1x4xf32, #tpu.memory_space<vmem>>, vector<1x1x4xf32>
    %58 = vector.shape_cast %57 : vector<1x1x4xf32> to vector<1x4xf32>
    %59 = vector.shape_cast %56 : vector<1x4xf32> to vector<1x1x4xf32>
    tpu.vector_store %arg12[%c0_34, %c0_35, %c0_36], %59 {strides = array<i32>} : memref<1x1x4xf32, #tpu.memory_space<vmem>>, vector<1x1x4xf32>,
    %60 = arith.mulf %51, %51 : vector<64x4xf32>
    %cst_37 = arith.constant dense<0.000000e+00> : vector<4xf32>
    %61 = vector.multi_reduction <add>, %60, %cst_37 [0] : vector<64x4xf32> to vector<4xf32>
    %62 = vector.shape_cast %61 : vector<4xf32> to vector<1x4xf32>
    %c0_38 = arith.constant 0 : index
    %c0_39 = arith.constant 0 : index
    %c0_40 = arith.constant 0 : index
    %63 = vector.load %arg13[%c0_38, %c0_39, %c0_40] : memref<1x1x4xf32, #tpu.memory_space<vmem>>, vector<1x1x4xf32>
    %64 = vector.shape_cast %63 : vector<1x1x4xf32> to vector<1x4xf32>
    %65 = vector.shape_cast %62 : vector<1x4xf32> to vector<1x1x4xf32>
    tpu.vector_store %arg13[%c0_38, %c0_39, %c0_40], %65 {strides = array<i32>} : memref<1x1x4xf32, #tpu.memory_space<vmem>>, vector<1x1x4xf32>,
    return
  }
  func.func @transform_0(%arg0: i32) -> (i32, i32, i32) {
    %c0_i32 = arith.constant 0 : i32
    %c0_i32_0 = arith.constant 0 : i32
    %c0_i32_1 = arith.constant 0 : i32
    return %arg0, %c0_i32, %c0_i32_0 : i32, i32, i32
  }
  func.func @transform_1(%arg0: i32) -> (i32, i32, i32) {
    %c0_i32 = arith.constant 0 : i32
    %c0_i32_0 = arith.constant 0 : i32
    %c0_i32_1 = arith.constant 0 : i32
    return %arg0, %c0_i32, %c0_i32_0 : i32, i32, i32
  }
  func.func @transform_2(%arg0: i32) -> (i32, i32) {
    %c0_i32 = arith.constant 0 : i32
    %c0_i32_0 = arith.constant 0 : i32
    %c0_i32_1 = arith.constant 0 : i32
    return %c0_i32, %c0_i32_0 : i32, i32
  }
  func.func @transform_3(%arg0: i32) -> (i32, i32) {
    %c0_i32 = arith.constant 0 : i32
    %c0_i32_0 = arith.constant 0 : i32
    %c0_i32_1 = arith.constant 0 : i32
    return %c0_i32, %c0_i32_0 : i32, i32
  }
  func.func @transform_4(%arg0: i32) -> (i32, i32) {
    %c0_i32 = arith.constant 0 : i32
    %c0_i32_0 = arith.constant 0 : i32
    %c0_i32_1 = arith.constant 0 : i32
    return %c0_i32, %c0_i32_0 : i32, i32
  }
  func.func @transform_5(%arg0: i32) -> (i32, i32) {
    %c0_i32 = arith.constant 0 : i32
    %c0_i32_0 = arith.constant 0 : i32
    %c0_i32_1 = arith.constant 0 : i32
    return %c0_i32, %c0_i32_0 : i32, i32
  }
  func.func @transform_6(%arg0: i32) -> (i32, i32) {
    %c0_i32 = arith.constant 0 : i32
    %c0_i32_0 = arith.constant 0 : i32
    %c0_i32_1 = arith.constant 0 : i32
    return %c0_i32, %c0_i32_0 : i32, i32
  }
  func.func @transform_7(%arg0: i32) -> (i32, i32) {
    %c0_i32 = arith.constant 0 : i32
    %c0_i32_0 = arith.constant 0 : i32
    %c0_i32_1 = arith.constant 0 : i32
    return %c0_i32, %c0_i32_0 : i32, i32
  }
  func.func @transform_8(%arg0: i32) -> (i32, i32) {
    %c0_i32 = arith.constant 0 : i32
    %c0_i32_0 = arith.constant 0 : i32
    %c0_i32_1 = arith.constant 0 : i32
    return %c0_i32, %c0_i32_0 : i32, i32
  }
  func.func @transform_9(%arg0: i32) -> (i32, i32) {
    %c0_i32 = arith.constant 0 : i32
    %c0_i32_0 = arith.constant 0 : i32
    %c0_i32_1 = arith.constant 0 : i32
    return %c0_i32, %c0_i32_0 : i32, i32
  }
  func.func @transform_10(%arg0: i32) -> (i32, i32, i32) {
    %c0_i32 = arith.constant 0 : i32
    %c0_i32_0 = arith.constant 0 : i32
    %c0_i32_1 = arith.constant 0 : i32
    return %arg0, %c0_i32, %c0_i32_0 : i32, i32, i32
  }
  func.func @transform_11(%arg0: i32) -> (i32, i32, i32) {
    %c0_i32 = arith.constant 0 : i32
    %c0_i32_0 = arith.constant 0 : i32
    %c0_i32_1 = arith.constant 0 : i32
    return %arg0, %c0_i32, %c0_i32_0 : i32, i32, i32
  }
  func.func @transform_12(%arg0: i32) -> (i32, i32, i32) {
    %c0_i32 = arith.constant 0 : i32
    %c0_i32_0 = arith.constant 0 : i32
    %c0_i32_1 = arith.constant 0 : i32
    return %arg0, %c0_i32, %c0_i32_0 : i32, i32, i32
  }
}

module attributes {stable_mosaic.version = 11 : i64} {
  func.func @_conv3x3_kernel(%arg0: i32, %arg1: memref<1x288x8xbf16, #tpu.memory_space<vmem>>, %arg2: memref<1x288x8xbf16, #tpu.memory_space<vmem>>, %arg3: memref<1x288x8xbf16, #tpu.memory_space<vmem>>, %arg4: memref<9x8x4xbf16, #tpu.memory_space<vmem>>, %arg5: memref<1x4xf32, #tpu.memory_space<vmem>>, %arg6: memref<1x256x4xf32, #tpu.memory_space<vmem>>, %arg7: memref<1x1x4xf32, #tpu.memory_space<vmem>>, %arg8: memref<1x1x4xf32, #tpu.memory_space<vmem>>) attributes {dimension_semantics = [#tpu.dimension_semantics<parallel>], iteration_bounds = array<i64: 2>, scalar_prefetch = 0 : i64, scratch_operands = 0 : i64, tpu.core_type = #tpu.core_type<tc>, window_params = [{transform_indices = @transform_0, window_bounds = array<i64: 1, 288, 8>}, {transform_indices = @transform_1, window_bounds = array<i64: 1, 288, 8>}, {transform_indices = @transform_2, window_bounds = array<i64: 1, 288, 8>}, {pipeline_mode = #tpu.pipeline_mode<synchronous>, transform_indices = @transform_3, window_bounds = array<i64: 9, 8, 4>}, {pipeline_mode = #tpu.pipeline_mode<synchronous>, transform_indices = @transform_4, window_bounds = array<i64: 1, 4>}, {transform_indices = @transform_5, window_bounds = array<i64: 1, 256, 4>}, {transform_indices = @transform_6, window_bounds = array<i64: 1, 1, 4>}, {transform_indices = @transform_7, window_bounds = array<i64: 1, 1, 4>}]} {
    %cst = arith.constant 0.000000e+00 : f32
    %0 = vector.broadcast %cst : f32 to vector<256x4xf32>
    %c0 = arith.constant 0 : index
    %c0_0 = arith.constant 0 : index
    %c0_1 = arith.constant 0 : index
    %1 = vector.load %arg1[%c0, %c0_0, %c0_1] : memref<1x288x8xbf16, #tpu.memory_space<vmem>>, vector<1x288x8xbf16>
    %2 = vector.shape_cast %1 : vector<1x288x8xbf16> to vector<288x8xbf16>
    %c0_2 = arith.constant 0 : index
    %c0_3 = arith.constant 0 : index
    %c0_4 = arith.constant 0 : index
    %3 = vector.load %arg2[%c0_2, %c0_3, %c0_4] : memref<1x288x8xbf16, #tpu.memory_space<vmem>>, vector<1x288x8xbf16>
    %4 = vector.shape_cast %3 : vector<1x288x8xbf16> to vector<288x8xbf16>
    %c0_5 = arith.constant 0 : index
    %c0_6 = arith.constant 0 : index
    %c0_7 = arith.constant 0 : index
    %5 = vector.load %arg3[%c0_5, %c0_6, %c0_7] : memref<1x288x8xbf16, #tpu.memory_space<vmem>>, vector<1x288x8xbf16>
    %6 = vector.shape_cast %5 : vector<1x288x8xbf16> to vector<288x8xbf16>
    %7 = vector.extract_strided_slice %2 {offsets = [0, 0], sizes = [256, 8], strides = [1, 1]} : vector<288x8xbf16> to vector<256x8xbf16>
    %c0_8 = arith.constant 0 : index
    %c0_9 = arith.constant 0 : index
    %c0_10 = arith.constant 0 : index
    %8 = vector.load %arg4[%c0_8, %c0_9, %c0_10] : memref<9x8x4xbf16, #tpu.memory_space<vmem>>, vector<1x8x4xbf16>
    %9 = vector.shape_cast %8 : vector<1x8x4xbf16> to vector<8x4xbf16>
    %cst_11 = arith.constant dense<0.000000e+00> : vector<256x4xf32>
    %10 = tpu.matmul %7, %9, %cst_11 {dimension_numbers = #tpu.dot_dimension_numbers<[1], [0], [0], [1], [0, 0, 1, 1], [], []>} : vector<256x8xbf16>, vector<8x4xbf16>, vector<256x4xf32> -> vector<256x4xf32>
    %11 = arith.addf %0, %10 : vector<256x4xf32>
    %12 = vector.extract_strided_slice %2 {offsets = [16, 0], sizes = [256, 8], strides = [1, 1]} : vector<288x8xbf16> to vector<256x8xbf16>
    %c3 = arith.constant 3 : index
    %c0_12 = arith.constant 0 : index
    %c0_13 = arith.constant 0 : index
    %13 = vector.load %arg4[%c3, %c0_12, %c0_13] : memref<9x8x4xbf16, #tpu.memory_space<vmem>>, vector<1x8x4xbf16>
    %14 = vector.shape_cast %13 : vector<1x8x4xbf16> to vector<8x4xbf16>
    %cst_14 = arith.constant dense<0.000000e+00> : vector<256x4xf32>
    %15 = tpu.matmul %12, %14, %cst_14 {dimension_numbers = #tpu.dot_dimension_numbers<[1], [0], [0], [1], [0, 0, 1, 1], [], []>} : vector<256x8xbf16>, vector<8x4xbf16>, vector<256x4xf32> -> vector<256x4xf32>
    %16 = arith.addf %11, %15 : vector<256x4xf32>
    %17 = vector.extract_strided_slice %2 {offsets = [32, 0], sizes = [256, 8], strides = [1, 1]} : vector<288x8xbf16> to vector<256x8xbf16>
    %c6 = arith.constant 6 : index
    %c0_15 = arith.constant 0 : index
    %c0_16 = arith.constant 0 : index
    %18 = vector.load %arg4[%c6, %c0_15, %c0_16] : memref<9x8x4xbf16, #tpu.memory_space<vmem>>, vector<1x8x4xbf16>
    %19 = vector.shape_cast %18 : vector<1x8x4xbf16> to vector<8x4xbf16>
    %cst_17 = arith.constant dense<0.000000e+00> : vector<256x4xf32>
    %20 = tpu.matmul %17, %19, %cst_17 {dimension_numbers = #tpu.dot_dimension_numbers<[1], [0], [0], [1], [0, 0, 1, 1], [], []>} : vector<256x8xbf16>, vector<8x4xbf16>, vector<256x4xf32> -> vector<256x4xf32>
    %21 = arith.addf %16, %20 : vector<256x4xf32>
    %22 = vector.extract_strided_slice %4 {offsets = [0, 0], sizes = [256, 8], strides = [1, 1]} : vector<288x8xbf16> to vector<256x8xbf16>
    %c1 = arith.constant 1 : index
    %c0_18 = arith.constant 0 : index
    %c0_19 = arith.constant 0 : index
    %23 = vector.load %arg4[%c1, %c0_18, %c0_19] : memref<9x8x4xbf16, #tpu.memory_space<vmem>>, vector<1x8x4xbf16>
    %24 = vector.shape_cast %23 : vector<1x8x4xbf16> to vector<8x4xbf16>
    %cst_20 = arith.constant dense<0.000000e+00> : vector<256x4xf32>
    %25 = tpu.matmul %22, %24, %cst_20 {dimension_numbers = #tpu.dot_dimension_numbers<[1], [0], [0], [1], [0, 0, 1, 1], [], []>} : vector<256x8xbf16>, vector<8x4xbf16>, vector<256x4xf32> -> vector<256x4xf32>
    %26 = arith.addf %21, %25 : vector<256x4xf32>
    %27 = vector.extract_strided_slice %4 {offsets = [16, 0], sizes = [256, 8], strides = [1, 1]} : vector<288x8xbf16> to vector<256x8xbf16>
    %c4 = arith.constant 4 : index
    %c0_21 = arith.constant 0 : index
    %c0_22 = arith.constant 0 : index
    %28 = vector.load %arg4[%c4, %c0_21, %c0_22] : memref<9x8x4xbf16, #tpu.memory_space<vmem>>, vector<1x8x4xbf16>
    %29 = vector.shape_cast %28 : vector<1x8x4xbf16> to vector<8x4xbf16>
    %cst_23 = arith.constant dense<0.000000e+00> : vector<256x4xf32>
    %30 = tpu.matmul %27, %29, %cst_23 {dimension_numbers = #tpu.dot_dimension_numbers<[1], [0], [0], [1], [0, 0, 1, 1], [], []>} : vector<256x8xbf16>, vector<8x4xbf16>, vector<256x4xf32> -> vector<256x4xf32>
    %31 = arith.addf %26, %30 : vector<256x4xf32>
    %32 = vector.extract_strided_slice %4 {offsets = [32, 0], sizes = [256, 8], strides = [1, 1]} : vector<288x8xbf16> to vector<256x8xbf16>
    %c7 = arith.constant 7 : index
    %c0_24 = arith.constant 0 : index
    %c0_25 = arith.constant 0 : index
    %33 = vector.load %arg4[%c7, %c0_24, %c0_25] : memref<9x8x4xbf16, #tpu.memory_space<vmem>>, vector<1x8x4xbf16>
    %34 = vector.shape_cast %33 : vector<1x8x4xbf16> to vector<8x4xbf16>
    %cst_26 = arith.constant dense<0.000000e+00> : vector<256x4xf32>
    %35 = tpu.matmul %32, %34, %cst_26 {dimension_numbers = #tpu.dot_dimension_numbers<[1], [0], [0], [1], [0, 0, 1, 1], [], []>} : vector<256x8xbf16>, vector<8x4xbf16>, vector<256x4xf32> -> vector<256x4xf32>
    %36 = arith.addf %31, %35 : vector<256x4xf32>
    %37 = vector.extract_strided_slice %6 {offsets = [0, 0], sizes = [256, 8], strides = [1, 1]} : vector<288x8xbf16> to vector<256x8xbf16>
    %c2 = arith.constant 2 : index
    %c0_27 = arith.constant 0 : index
    %c0_28 = arith.constant 0 : index
    %38 = vector.load %arg4[%c2, %c0_27, %c0_28] : memref<9x8x4xbf16, #tpu.memory_space<vmem>>, vector<1x8x4xbf16>
    %39 = vector.shape_cast %38 : vector<1x8x4xbf16> to vector<8x4xbf16>
    %cst_29 = arith.constant dense<0.000000e+00> : vector<256x4xf32>
    %40 = tpu.matmul %37, %39, %cst_29 {dimension_numbers = #tpu.dot_dimension_numbers<[1], [0], [0], [1], [0, 0, 1, 1], [], []>} : vector<256x8xbf16>, vector<8x4xbf16>, vector<256x4xf32> -> vector<256x4xf32>
    %41 = arith.addf %36, %40 : vector<256x4xf32>
    %42 = vector.extract_strided_slice %6 {offsets = [16, 0], sizes = [256, 8], strides = [1, 1]} : vector<288x8xbf16> to vector<256x8xbf16>
    %c5 = arith.constant 5 : index
    %c0_30 = arith.constant 0 : index
    %c0_31 = arith.constant 0 : index
    %43 = vector.load %arg4[%c5, %c0_30, %c0_31] : memref<9x8x4xbf16, #tpu.memory_space<vmem>>, vector<1x8x4xbf16>
    %44 = vector.shape_cast %43 : vector<1x8x4xbf16> to vector<8x4xbf16>
    %cst_32 = arith.constant dense<0.000000e+00> : vector<256x4xf32>
    %45 = tpu.matmul %42, %44, %cst_32 {dimension_numbers = #tpu.dot_dimension_numbers<[1], [0], [0], [1], [0, 0, 1, 1], [], []>} : vector<256x8xbf16>, vector<8x4xbf16>, vector<256x4xf32> -> vector<256x4xf32>
    %46 = arith.addf %41, %45 : vector<256x4xf32>
    %47 = vector.extract_strided_slice %6 {offsets = [32, 0], sizes = [256, 8], strides = [1, 1]} : vector<288x8xbf16> to vector<256x8xbf16>
    %c8 = arith.constant 8 : index
    %c0_33 = arith.constant 0 : index
    %c0_34 = arith.constant 0 : index
    %48 = vector.load %arg4[%c8, %c0_33, %c0_34] : memref<9x8x4xbf16, #tpu.memory_space<vmem>>, vector<1x8x4xbf16>
    %49 = vector.shape_cast %48 : vector<1x8x4xbf16> to vector<8x4xbf16>
    %cst_35 = arith.constant dense<0.000000e+00> : vector<256x4xf32>
    %50 = tpu.matmul %47, %49, %cst_35 {dimension_numbers = #tpu.dot_dimension_numbers<[1], [0], [0], [1], [0, 0, 1, 1], [], []>} : vector<256x8xbf16>, vector<8x4xbf16>, vector<256x4xf32> -> vector<256x4xf32>
    %51 = arith.addf %46, %50 : vector<256x4xf32>
    %c0_36 = arith.constant 0 : index
    %c0_37 = arith.constant 0 : index
    %52 = vector.load %arg5[%c0_36, %c0_37] : memref<1x4xf32, #tpu.memory_space<vmem>>, vector<1x4xf32>
    %53 = vector.broadcast %52 : vector<1x4xf32> to vector<256x4xf32>
    %54 = arith.addf %51, %53 : vector<256x4xf32>
    %c0_38 = arith.constant 0 : index
    %c0_39 = arith.constant 0 : index
    %c0_40 = arith.constant 0 : index
    %55 = vector.load %arg6[%c0_38, %c0_39, %c0_40] : memref<1x256x4xf32, #tpu.memory_space<vmem>>, vector<1x256x4xf32>
    %56 = vector.shape_cast %55 : vector<1x256x4xf32> to vector<256x4xf32>
    %57 = vector.shape_cast %54 : vector<256x4xf32> to vector<1x256x4xf32>
    tpu.vector_store %arg6[%c0_38, %c0_39, %c0_40], %57 {strides = array<i32>} : memref<1x256x4xf32, #tpu.memory_space<vmem>>, vector<1x256x4xf32>,
    %cst_41 = arith.constant dense<0.000000e+00> : vector<4xf32>
    %58 = vector.multi_reduction <add>, %54, %cst_41 [0] : vector<256x4xf32> to vector<4xf32>
    %59 = vector.shape_cast %58 : vector<4xf32> to vector<1x4xf32>
    %c0_42 = arith.constant 0 : index
    %c0_43 = arith.constant 0 : index
    %c0_44 = arith.constant 0 : index
    %60 = vector.load %arg7[%c0_42, %c0_43, %c0_44] : memref<1x1x4xf32, #tpu.memory_space<vmem>>, vector<1x1x4xf32>
    %61 = vector.shape_cast %60 : vector<1x1x4xf32> to vector<1x4xf32>
    %62 = vector.shape_cast %59 : vector<1x4xf32> to vector<1x1x4xf32>
    tpu.vector_store %arg7[%c0_42, %c0_43, %c0_44], %62 {strides = array<i32>} : memref<1x1x4xf32, #tpu.memory_space<vmem>>, vector<1x1x4xf32>,
    %63 = arith.mulf %54, %54 : vector<256x4xf32>
    %cst_45 = arith.constant dense<0.000000e+00> : vector<4xf32>
    %64 = vector.multi_reduction <add>, %63, %cst_45 [0] : vector<256x4xf32> to vector<4xf32>
    %65 = vector.shape_cast %64 : vector<4xf32> to vector<1x4xf32>
    %c0_46 = arith.constant 0 : index
    %c0_47 = arith.constant 0 : index
    %c0_48 = arith.constant 0 : index
    %66 = vector.load %arg8[%c0_46, %c0_47, %c0_48] : memref<1x1x4xf32, #tpu.memory_space<vmem>>, vector<1x1x4xf32>
    %67 = vector.shape_cast %66 : vector<1x1x4xf32> to vector<1x4xf32>
    %68 = vector.shape_cast %65 : vector<1x4xf32> to vector<1x1x4xf32>
    tpu.vector_store %arg8[%c0_46, %c0_47, %c0_48], %68 {strides = array<i32>} : memref<1x1x4xf32, #tpu.memory_space<vmem>>, vector<1x1x4xf32>,
    return
  }
  func.func @transform_0(%arg0: i32) -> (i32, i32, i32) {
    %c0_i32 = arith.constant 0 : i32
    %c0_i32_0 = arith.constant 0 : i32
    %c0_i32_1 = arith.constant 0 : i32
    return %arg0, %c0_i32, %c0_i32_0 : i32, i32, i32
  }
  func.func @transform_1(%arg0: i32) -> (i32, i32, i32) {
    %c0_i32 = arith.constant 0 : i32
    %c0_i32_0 = arith.constant 0 : i32
    %c0_i32_1 = arith.constant 0 : i32
    return %arg0, %c0_i32, %c0_i32_0 : i32, i32, i32
  }
  func.func @transform_2(%arg0: i32) -> (i32, i32, i32) {
    %c0_i32 = arith.constant 0 : i32
    %c0_i32_0 = arith.constant 0 : i32
    %c0_i32_1 = arith.constant 0 : i32
    return %arg0, %c0_i32, %c0_i32_0 : i32, i32, i32
  }
  func.func @transform_3(%arg0: i32) -> (i32, i32, i32) {
    %c0_i32 = arith.constant 0 : i32
    %c0_i32_0 = arith.constant 0 : i32
    %c0_i32_1 = arith.constant 0 : i32
    %c0_i32_2 = arith.constant 0 : i32
    return %c0_i32, %c0_i32_0, %c0_i32_1 : i32, i32, i32
  }
  func.func @transform_4(%arg0: i32) -> (i32, i32) {
    %c0_i32 = arith.constant 0 : i32
    %c0_i32_0 = arith.constant 0 : i32
    %c0_i32_1 = arith.constant 0 : i32
    return %c0_i32, %c0_i32_0 : i32, i32
  }
  func.func @transform_5(%arg0: i32) -> (i32, i32, i32) {
    %c0_i32 = arith.constant 0 : i32
    %c0_i32_0 = arith.constant 0 : i32
    %c0_i32_1 = arith.constant 0 : i32
    return %arg0, %c0_i32, %c0_i32_0 : i32, i32, i32
  }
  func.func @transform_6(%arg0: i32) -> (i32, i32, i32) {
    %c0_i32 = arith.constant 0 : i32
    %c0_i32_0 = arith.constant 0 : i32
    %c0_i32_1 = arith.constant 0 : i32
    return %arg0, %c0_i32, %c0_i32_0 : i32, i32, i32
  }
  func.func @transform_7(%arg0: i32) -> (i32, i32, i32) {
    %c0_i32 = arith.constant 0 : i32
    %c0_i32_0 = arith.constant 0 : i32
    %c0_i32_1 = arith.constant 0 : i32
    return %arg0, %c0_i32, %c0_i32_0 : i32, i32, i32
  }
}

module attributes {stable_mosaic.version = 11 : i64} {
  func.func @_conv3x3_kernel(%arg0: i32, %arg1: memref<1x288x4xbf16, #tpu.memory_space<vmem>>, %arg2: memref<1x288x4xbf16, #tpu.memory_space<vmem>>, %arg3: memref<1x288x4xbf16, #tpu.memory_space<vmem>>, %arg4: memref<9x4x4xbf16, #tpu.memory_space<vmem>>, %arg5: memref<1x4xf32, #tpu.memory_space<vmem>>, %arg6: memref<1x256x4xf32, #tpu.memory_space<vmem>>, %arg7: memref<1x1x4xf32, #tpu.memory_space<vmem>>, %arg8: memref<1x1x4xf32, #tpu.memory_space<vmem>>) attributes {dimension_semantics = [#tpu.dimension_semantics<parallel>], iteration_bounds = array<i64: 2>, scalar_prefetch = 0 : i64, scratch_operands = 0 : i64, tpu.core_type = #tpu.core_type<tc>, window_params = [{transform_indices = @transform_0, window_bounds = array<i64: 1, 288, 4>}, {transform_indices = @transform_1, window_bounds = array<i64: 1, 288, 4>}, {transform_indices = @transform_2, window_bounds = array<i64: 1, 288, 4>}, {pipeline_mode = #tpu.pipeline_mode<synchronous>, transform_indices = @transform_3, window_bounds = array<i64: 9, 4, 4>}, {pipeline_mode = #tpu.pipeline_mode<synchronous>, transform_indices = @transform_4, window_bounds = array<i64: 1, 4>}, {transform_indices = @transform_5, window_bounds = array<i64: 1, 256, 4>}, {transform_indices = @transform_6, window_bounds = array<i64: 1, 1, 4>}, {transform_indices = @transform_7, window_bounds = array<i64: 1, 1, 4>}]} {
    %cst = arith.constant 0.000000e+00 : f32
    %0 = vector.broadcast %cst : f32 to vector<256x4xf32>
    %c0 = arith.constant 0 : index
    %c0_0 = arith.constant 0 : index
    %c0_1 = arith.constant 0 : index
    %1 = vector.load %arg1[%c0, %c0_0, %c0_1] : memref<1x288x4xbf16, #tpu.memory_space<vmem>>, vector<1x288x4xbf16>
    %2 = vector.shape_cast %1 : vector<1x288x4xbf16> to vector<288x4xbf16>
    %c0_2 = arith.constant 0 : index
    %c0_3 = arith.constant 0 : index
    %c0_4 = arith.constant 0 : index
    %3 = vector.load %arg2[%c0_2, %c0_3, %c0_4] : memref<1x288x4xbf16, #tpu.memory_space<vmem>>, vector<1x288x4xbf16>
    %4 = vector.shape_cast %3 : vector<1x288x4xbf16> to vector<288x4xbf16>
    %c0_5 = arith.constant 0 : index
    %c0_6 = arith.constant 0 : index
    %c0_7 = arith.constant 0 : index
    %5 = vector.load %arg3[%c0_5, %c0_6, %c0_7] : memref<1x288x4xbf16, #tpu.memory_space<vmem>>, vector<1x288x4xbf16>
    %6 = vector.shape_cast %5 : vector<1x288x4xbf16> to vector<288x4xbf16>
    %7 = vector.extract_strided_slice %2 {offsets = [0, 0], sizes = [256, 4], strides = [1, 1]} : vector<288x4xbf16> to vector<256x4xbf16>
    %c0_8 = arith.constant 0 : index
    %c0_9 = arith.constant 0 : index
    %c0_10 = arith.constant 0 : index
    %8 = vector.load %arg4[%c0_8, %c0_9, %c0_10] : memref<9x4x4xbf16, #tpu.memory_space<vmem>>, vector<1x4x4xbf16>
    %9 = vector.shape_cast %8 : vector<1x4x4xbf16> to vector<4x4xbf16>
    %cst_11 = arith.constant dense<0.000000e+00> : vector<256x4xf32>
    %10 = tpu.matmul %7, %9, %cst_11 {dimension_numbers = #tpu.dot_dimension_numbers<[1], [0], [0], [1], [0, 0, 1, 1], [], []>} : vector<256x4xbf16>, vector<4x4xbf16>, vector<256x4xf32> -> vector<256x4xf32>
    %11 = arith.addf %0, %10 : vector<256x4xf32>
    %12 = vector.extract_strided_slice %2 {offsets = [16, 0], sizes = [256, 4], strides = [1, 1]} : vector<288x4xbf16> to vector<256x4xbf16>
    %c3 = arith.constant 3 : index
    %c0_12 = arith.constant 0 : index
    %c0_13 = arith.constant 0 : index
    %13 = vector.load %arg4[%c3, %c0_12, %c0_13] : memref<9x4x4xbf16, #tpu.memory_space<vmem>>, vector<1x4x4xbf16>
    %14 = vector.shape_cast %13 : vector<1x4x4xbf16> to vector<4x4xbf16>
    %cst_14 = arith.constant dense<0.000000e+00> : vector<256x4xf32>
    %15 = tpu.matmul %12, %14, %cst_14 {dimension_numbers = #tpu.dot_dimension_numbers<[1], [0], [0], [1], [0, 0, 1, 1], [], []>} : vector<256x4xbf16>, vector<4x4xbf16>, vector<256x4xf32> -> vector<256x4xf32>
    %16 = arith.addf %11, %15 : vector<256x4xf32>
    %17 = vector.extract_strided_slice %2 {offsets = [32, 0], sizes = [256, 4], strides = [1, 1]} : vector<288x4xbf16> to vector<256x4xbf16>
    %c6 = arith.constant 6 : index
    %c0_15 = arith.constant 0 : index
    %c0_16 = arith.constant 0 : index
    %18 = vector.load %arg4[%c6, %c0_15, %c0_16] : memref<9x4x4xbf16, #tpu.memory_space<vmem>>, vector<1x4x4xbf16>
    %19 = vector.shape_cast %18 : vector<1x4x4xbf16> to vector<4x4xbf16>
    %cst_17 = arith.constant dense<0.000000e+00> : vector<256x4xf32>
    %20 = tpu.matmul %17, %19, %cst_17 {dimension_numbers = #tpu.dot_dimension_numbers<[1], [0], [0], [1], [0, 0, 1, 1], [], []>} : vector<256x4xbf16>, vector<4x4xbf16>, vector<256x4xf32> -> vector<256x4xf32>
    %21 = arith.addf %16, %20 : vector<256x4xf32>
    %22 = vector.extract_strided_slice %4 {offsets = [0, 0], sizes = [256, 4], strides = [1, 1]} : vector<288x4xbf16> to vector<256x4xbf16>
    %c1 = arith.constant 1 : index
    %c0_18 = arith.constant 0 : index
    %c0_19 = arith.constant 0 : index
    %23 = vector.load %arg4[%c1, %c0_18, %c0_19] : memref<9x4x4xbf16, #tpu.memory_space<vmem>>, vector<1x4x4xbf16>
    %24 = vector.shape_cast %23 : vector<1x4x4xbf16> to vector<4x4xbf16>
    %cst_20 = arith.constant dense<0.000000e+00> : vector<256x4xf32>
    %25 = tpu.matmul %22, %24, %cst_20 {dimension_numbers = #tpu.dot_dimension_numbers<[1], [0], [0], [1], [0, 0, 1, 1], [], []>} : vector<256x4xbf16>, vector<4x4xbf16>, vector<256x4xf32> -> vector<256x4xf32>
    %26 = arith.addf %21, %25 : vector<256x4xf32>
    %27 = vector.extract_strided_slice %4 {offsets = [16, 0], sizes = [256, 4], strides = [1, 1]} : vector<288x4xbf16> to vector<256x4xbf16>
    %c4 = arith.constant 4 : index
    %c0_21 = arith.constant 0 : index
    %c0_22 = arith.constant 0 : index
    %28 = vector.load %arg4[%c4, %c0_21, %c0_22] : memref<9x4x4xbf16, #tpu.memory_space<vmem>>, vector<1x4x4xbf16>
    %29 = vector.shape_cast %28 : vector<1x4x4xbf16> to vector<4x4xbf16>
    %cst_23 = arith.constant dense<0.000000e+00> : vector<256x4xf32>
    %30 = tpu.matmul %27, %29, %cst_23 {dimension_numbers = #tpu.dot_dimension_numbers<[1], [0], [0], [1], [0, 0, 1, 1], [], []>} : vector<256x4xbf16>, vector<4x4xbf16>, vector<256x4xf32> -> vector<256x4xf32>
    %31 = arith.addf %26, %30 : vector<256x4xf32>
    %32 = vector.extract_strided_slice %4 {offsets = [32, 0], sizes = [256, 4], strides = [1, 1]} : vector<288x4xbf16> to vector<256x4xbf16>
    %c7 = arith.constant 7 : index
    %c0_24 = arith.constant 0 : index
    %c0_25 = arith.constant 0 : index
    %33 = vector.load %arg4[%c7, %c0_24, %c0_25] : memref<9x4x4xbf16, #tpu.memory_space<vmem>>, vector<1x4x4xbf16>
    %34 = vector.shape_cast %33 : vector<1x4x4xbf16> to vector<4x4xbf16>
    %cst_26 = arith.constant dense<0.000000e+00> : vector<256x4xf32>
    %35 = tpu.matmul %32, %34, %cst_26 {dimension_numbers = #tpu.dot_dimension_numbers<[1], [0], [0], [1], [0, 0, 1, 1], [], []>} : vector<256x4xbf16>, vector<4x4xbf16>, vector<256x4xf32> -> vector<256x4xf32>
    %36 = arith.addf %31, %35 : vector<256x4xf32>
    %37 = vector.extract_strided_slice %6 {offsets = [0, 0], sizes = [256, 4], strides = [1, 1]} : vector<288x4xbf16> to vector<256x4xbf16>
    %c2 = arith.constant 2 : index
    %c0_27 = arith.constant 0 : index
    %c0_28 = arith.constant 0 : index
    %38 = vector.load %arg4[%c2, %c0_27, %c0_28] : memref<9x4x4xbf16, #tpu.memory_space<vmem>>, vector<1x4x4xbf16>
    %39 = vector.shape_cast %38 : vector<1x4x4xbf16> to vector<4x4xbf16>
    %cst_29 = arith.constant dense<0.000000e+00> : vector<256x4xf32>
    %40 = tpu.matmul %37, %39, %cst_29 {dimension_numbers = #tpu.dot_dimension_numbers<[1], [0], [0], [1], [0, 0, 1, 1], [], []>} : vector<256x4xbf16>, vector<4x4xbf16>, vector<256x4xf32> -> vector<256x4xf32>
    %41 = arith.addf %36, %40 : vector<256x4xf32>
    %42 = vector.extract_strided_slice %6 {offsets = [16, 0], sizes = [256, 4], strides = [1, 1]} : vector<288x4xbf16> to vector<256x4xbf16>
    %c5 = arith.constant 5 : index
    %c0_30 = arith.constant 0 : index
    %c0_31 = arith.constant 0 : index
    %43 = vector.load %arg4[%c5, %c0_30, %c0_31] : memref<9x4x4xbf16, #tpu.memory_space<vmem>>, vector<1x4x4xbf16>
    %44 = vector.shape_cast %43 : vector<1x4x4xbf16> to vector<4x4xbf16>
    %cst_32 = arith.constant dense<0.000000e+00> : vector<256x4xf32>
    %45 = tpu.matmul %42, %44, %cst_32 {dimension_numbers = #tpu.dot_dimension_numbers<[1], [0], [0], [1], [0, 0, 1, 1], [], []>} : vector<256x4xbf16>, vector<4x4xbf16>, vector<256x4xf32> -> vector<256x4xf32>
    %46 = arith.addf %41, %45 : vector<256x4xf32>
    %47 = vector.extract_strided_slice %6 {offsets = [32, 0], sizes = [256, 4], strides = [1, 1]} : vector<288x4xbf16> to vector<256x4xbf16>
    %c8 = arith.constant 8 : index
    %c0_33 = arith.constant 0 : index
    %c0_34 = arith.constant 0 : index
    %48 = vector.load %arg4[%c8, %c0_33, %c0_34] : memref<9x4x4xbf16, #tpu.memory_space<vmem>>, vector<1x4x4xbf16>
    %49 = vector.shape_cast %48 : vector<1x4x4xbf16> to vector<4x4xbf16>
    %cst_35 = arith.constant dense<0.000000e+00> : vector<256x4xf32>
    %50 = tpu.matmul %47, %49, %cst_35 {dimension_numbers = #tpu.dot_dimension_numbers<[1], [0], [0], [1], [0, 0, 1, 1], [], []>} : vector<256x4xbf16>, vector<4x4xbf16>, vector<256x4xf32> -> vector<256x4xf32>
    %51 = arith.addf %46, %50 : vector<256x4xf32>
    %c0_36 = arith.constant 0 : index
    %c0_37 = arith.constant 0 : index
    %52 = vector.load %arg5[%c0_36, %c0_37] : memref<1x4xf32, #tpu.memory_space<vmem>>, vector<1x4xf32>
    %53 = vector.broadcast %52 : vector<1x4xf32> to vector<256x4xf32>
    %54 = arith.addf %51, %53 : vector<256x4xf32>
    %c0_38 = arith.constant 0 : index
    %c0_39 = arith.constant 0 : index
    %c0_40 = arith.constant 0 : index
    %55 = vector.load %arg6[%c0_38, %c0_39, %c0_40] : memref<1x256x4xf32, #tpu.memory_space<vmem>>, vector<1x256x4xf32>
    %56 = vector.shape_cast %55 : vector<1x256x4xf32> to vector<256x4xf32>
    %57 = vector.shape_cast %54 : vector<256x4xf32> to vector<1x256x4xf32>
    tpu.vector_store %arg6[%c0_38, %c0_39, %c0_40], %57 {strides = array<i32>} : memref<1x256x4xf32, #tpu.memory_space<vmem>>, vector<1x256x4xf32>,
    %cst_41 = arith.constant dense<0.000000e+00> : vector<4xf32>
    %58 = vector.multi_reduction <add>, %54, %cst_41 [0] : vector<256x4xf32> to vector<4xf32>
    %59 = vector.shape_cast %58 : vector<4xf32> to vector<1x4xf32>
    %c0_42 = arith.constant 0 : index
    %c0_43 = arith.constant 0 : index
    %c0_44 = arith.constant 0 : index
    %60 = vector.load %arg7[%c0_42, %c0_43, %c0_44] : memref<1x1x4xf32, #tpu.memory_space<vmem>>, vector<1x1x4xf32>
    %61 = vector.shape_cast %60 : vector<1x1x4xf32> to vector<1x4xf32>
    %62 = vector.shape_cast %59 : vector<1x4xf32> to vector<1x1x4xf32>
    tpu.vector_store %arg7[%c0_42, %c0_43, %c0_44], %62 {strides = array<i32>} : memref<1x1x4xf32, #tpu.memory_space<vmem>>, vector<1x1x4xf32>,
    %63 = arith.mulf %54, %54 : vector<256x4xf32>
    %cst_45 = arith.constant dense<0.000000e+00> : vector<4xf32>
    %64 = vector.multi_reduction <add>, %63, %cst_45 [0] : vector<256x4xf32> to vector<4xf32>
    %65 = vector.shape_cast %64 : vector<4xf32> to vector<1x4xf32>
    %c0_46 = arith.constant 0 : index
    %c0_47 = arith.constant 0 : index
    %c0_48 = arith.constant 0 : index
    %66 = vector.load %arg8[%c0_46, %c0_47, %c0_48] : memref<1x1x4xf32, #tpu.memory_space<vmem>>, vector<1x1x4xf32>
    %67 = vector.shape_cast %66 : vector<1x1x4xf32> to vector<1x4xf32>
    %68 = vector.shape_cast %65 : vector<1x4xf32> to vector<1x1x4xf32>
    tpu.vector_store %arg8[%c0_46, %c0_47, %c0_48], %68 {strides = array<i32>} : memref<1x1x4xf32, #tpu.memory_space<vmem>>, vector<1x1x4xf32>,
    return
  }
  func.func @transform_0(%arg0: i32) -> (i32, i32, i32) {
    %c0_i32 = arith.constant 0 : i32
    %c0_i32_0 = arith.constant 0 : i32
    %c0_i32_1 = arith.constant 0 : i32
    return %arg0, %c0_i32, %c0_i32_0 : i32, i32, i32
  }
  func.func @transform_1(%arg0: i32) -> (i32, i32, i32) {
    %c0_i32 = arith.constant 0 : i32
    %c0_i32_0 = arith.constant 0 : i32
    %c0_i32_1 = arith.constant 0 : i32
    return %arg0, %c0_i32, %c0_i32_0 : i32, i32, i32
  }
  func.func @transform_2(%arg0: i32) -> (i32, i32, i32) {
    %c0_i32 = arith.constant 0 : i32
    %c0_i32_0 = arith.constant 0 : i32
    %c0_i32_1 = arith.constant 0 : i32
    return %arg0, %c0_i32, %c0_i32_0 : i32, i32, i32
  }
  func.func @transform_3(%arg0: i32) -> (i32, i32, i32) {
    %c0_i32 = arith.constant 0 : i32
    %c0_i32_0 = arith.constant 0 : i32
    %c0_i32_1 = arith.constant 0 : i32
    %c0_i32_2 = arith.constant 0 : i32
    return %c0_i32, %c0_i32_0, %c0_i32_1 : i32, i32, i32
  }
  func.func @transform_4(%arg0: i32) -> (i32, i32) {
    %c0_i32 = arith.constant 0 : i32
    %c0_i32_0 = arith.constant 0 : i32
    %c0_i32_1 = arith.constant 0 : i32
    return %c0_i32, %c0_i32_0 : i32, i32
  }
  func.func @transform_5(%arg0: i32) -> (i32, i32, i32) {
    %c0_i32 = arith.constant 0 : i32
    %c0_i32_0 = arith.constant 0 : i32
    %c0_i32_1 = arith.constant 0 : i32
    return %arg0, %c0_i32, %c0_i32_0 : i32, i32, i32
  }
  func.func @transform_6(%arg0: i32) -> (i32, i32, i32) {
    %c0_i32 = arith.constant 0 : i32
    %c0_i32_0 = arith.constant 0 : i32
    %c0_i32_1 = arith.constant 0 : i32
    return %arg0, %c0_i32, %c0_i32_0 : i32, i32, i32
  }
  func.func @transform_7(%arg0: i32) -> (i32, i32, i32) {
    %c0_i32 = arith.constant 0 : i32
    %c0_i32_0 = arith.constant 0 : i32
    %c0_i32_1 = arith.constant 0 : i32
    return %arg0, %c0_i32, %c0_i32_0 : i32, i32, i32
  }
}

</mosaic_0001>

<llo_original>
// kernel: transformer_up_forward.6
$region0: #{transformer_up_forward.6}
  #allocation0 [shape = 'u32[]', space=smem, size = 0x4, offset = 0x4, fixed_abs, tag = 'smem constant byte address 0x4 - core index']
  #allocation1 [shape = 'u32[144,128]{1,0:T(1,128)}', space=vmem, size = 0x12000, scoped, tag = 'internal scratch']
  %s0 = inlined_call_operand.vmem [shape: bf16[2,64,4], index: 0, kind: input, shape index: {}]
  %s1 = inlined_call_operand.vmem [shape: bf16[4,4], index: 1, kind: input, shape index: {}]
  %s2 = inlined_call_operand.vmem [shape: f32[1,4], index: 2, kind: input, shape index: {}]
  %s3 = inlined_call_operand.vmem [shape: f32[2,64,4], index: 3, kind: output, shape index: {0}]
  %s4 = inlined_call_operand.vmem [shape: f32[2,1,4], index: 4, kind: output, shape index: {1}]
  %s5 = inlined_call_operand.vmem [shape: f32[2,1,4], index: 5, kind: output, shape index: {2}]
  %6 = xla_tuple %s3, %s4, %s5
  %s7 = sld [smem:[#allocation0]]
  $region65: #{transformer_up_forward.6} parent=0
    _
  %s9 = ssub.s32 1, %s7
  %s10 = scalar_select 0, %s9, %s7
  loop: start=0, step=1, limit=4
  $region2: #{transformer_up_forward.6} parent=0 // loop_pre_header
    _
  $region3: #{transformer_up_forward.6} parent=0 // loop_header
    %s12 = sphi 0, %s16
    %p13 = scmp.ge.s32.totalorder %s12, 4
    %s19 = sphi 0, %s31
    %s20 = sphi 0, %s27
    %s21 = sphi 0, %s19
    %s22 = sphi 0, %s20
    %s23 = sphi 0, %s21
    %s24 = sphi 0, %s22
    %s36 = sphi 0, %s38
    %s39 = sphi 0, %s36
    %s40 = sphi 0, %s39
    %s56 = sphi 0, %s40
    %s60 = sphi 0, %s60
    %s62 = sphi 0, %s60
    %s63 = sphi 0, %s62
    %s77 = sphi 0, %s63
    %s81 = sphi 0, %s81
    %s83 = sphi 0, %s81
    %s84 = sphi 0, %s83
    %s98 = sphi 0, %s84
    %s106 = sphi 0, %s108
    %s109 = sphi 0, %s106
    %s110 = sphi 0, %s109
    %s126 = sphi 0, %s110
    %s132 = sphi 0, %s134
    %s135 = sphi 0, %s132
    %s136 = sphi 0, %s135
    %s152 = sphi 0, %s136
    %s158 = sphi 0, %s160
    %s161 = sphi 0, %s158
    %s162 = sphi 0, %s161
    %s178 = sphi 0, %s162
  $region4: #{transformer_up_forward.6} parent=0 // loop_header_branch
    %15 = sbr.rel (%p13) target = $region8
  $region5: #{transformer_up_forward.6} parent=0 // loop_body
    %s17 = ssub.s32 %s12, 1
    %s18 = ssub.s32 %s12, 2
    %s25 = sadd.s32 1, %s20
    %p26 = scmp.ge.s32.totalorder %s25, 1
    %s27 = scalar_select %p26, 0, %s25
    %s28 = sadd.s32 1, %s19
    %s29 = scalar_select %p26, %s28, %s19
    %p30 = scmp.ge.s32.totalorder %s29, 2
    %s31 = scalar_select %p30, 0, %s29
    %s32 = ssub.s32 %s19, %s31
    %s33 = ssub.s32 %s20, %s27
    %s34 = sor.u32 %s32, %s33
    %p35 = scmp.eq.s32.totalorder %s34, 0
    %s37 = sadd.s32 %s36, 1
    %s38 = scalar_select %p35, %s36, %s37
    %p41 = pneg %p35
    %p42 = scmp.eq.s32.totalorder %s12, 1
    %p43 = por %p41, %p42
    %p44 = scmp.ne.s32.totalorder %s36, %s39
    %p45 = scmp.eq.s32.totalorder %s12, 0
    %p46 = por %p44, %p45
    %p47 = scmp.ne.s32.totalorder %s36, %s39
    %p48 = scmp.eq.s32.totalorder %s17, 1
    %p49 = por %p47, %p48
    %p50 = scmp.ne.s32.totalorder %s39, %s40
    %p51 = scmp.eq.s32.totalorder %s17, 0
    %p52 = por %p50, %p51
    %p53 = scmp.ne.s32.totalorder %s39, %s40
    %p54 = scmp.eq.s32.totalorder %s18, 1
    %p55 = por %p53, %p54
    %p57 = scmp.ne.s32.totalorder %s40, %s56
    %p58 = scmp.eq.s32.totalorder %s18, 0
    %p59 = por %p57, %p58
    %s61 = sadd.s32 %s60, 1
    %p64 = scmp.eq.s32.totalorder %s12, 1
    %p65 = scmp.ne.s32.totalorder %s60, %s62
    %p66 = scmp.eq.s32.totalorder %s12, 0
    %p67 = por %p65, %p66
    %p68 = scmp.ne.s32.totalorder %s60, %s62
    %p69 = scmp.eq.s32.totalorder %s17, 1
    %p70 = por %p68, %p69
    %p71 = scmp.ne.s32.totalorder %s62, %s63
    %p72 = scmp.eq.s32.totalorder %s17, 0
    %p73 = por %p71, %p72
    %p74 = scmp.ne.s32.totalorder %s62, %s63
    %p75 = scmp.eq.s32.totalorder %s18, 1
    %p76 = por %p74, %p75
    %p78 = scmp.ne.s32.totalorder %s63, %s77
    %p79 = scmp.eq.s32.totalorder %s18, 0
    %p80 = por %p78, %p79
    %s82 = sadd.s32 %s81, 1
    %p85 = scmp.eq.s32.totalorder %s12, 1
    %p86 = scmp.ne.s32.totalorder %s81, %s83
    %p87 = scmp.eq.s32.totalorder %s12, 0
    %p88 = por %p86, %p87
    %p89 = scmp.ne.s32.totalorder %s81, %s83
    %p90 = scmp.eq.s32.totalorder %s17, 1
    %p91 = por %p89, %p90
    %p92 = scmp.ne.s32.totalorder %s83, %s84
    %p93 = scmp.eq.s32.totalorder %s17, 0
    %p94 = por %p92, %p93
    %p95 = scmp.ne.s32.totalorder %s83, %s84
    %p96 = scmp.eq.s32.totalorder %s18, 1
    %p97 = por %p95, %p96
    %p99 = scmp.ne.s32.totalorder %s84, %s98
    %p100 = scmp.eq.s32.totalorder %s18, 0
    %p101 = por %p99, %p100
    %s102 = ssub.s32 %s19, %s31
    %s103 = ssub.s32 %s20, %s27
    %s104 = sor.u32 %s102, %s103
    %p105 = scmp.eq.s32.totalorder %s104, 0
    %s107 = sadd.s32 %s106, 1
    %s108 = scalar_select %p105, %s106, %s107
    %p111 = pneg %p105
    %p112 = scmp.eq.s32.totalorder %s12, 1
    %p113 = por %p111, %p112
    %p114 = scmp.ne.s32.totalorder %s106, %s109
    %p115 = scmp.eq.s32.totalorder %s12, 0
    %p116 = por %p114, %p115
    %p117 = scmp.ne.s32.totalorder %s106, %s109
    %p118 = scmp.eq.s32.totalorder %s17, 1
    %p119 = por %p117, %p118
    %p120 = scmp.ne.s32.totalorder %s109, %s110
    %p121 = scmp.eq.s32.totalorder %s17, 0
    %p122 = por %p120, %p121
    %p123 = scmp.ne.s32.totalorder %s109, %s110
    %p124 = scmp.eq.s32.totalorder %s18, 1
    %p125 = por %p123, %p124
    %p127 = scmp.ne.s32.totalorder %s110, %s126
    %p128 = scmp.eq.s32.totalorder %s18, 0
    %p129 = por %p127, %p128
    %s130 = ssub.s32 %s19, %s31
    %p131 = scmp.eq.s32.totalorder %s130, 0
    %s133 = sadd.s32 %s132, 1
    %s134 = scalar_select %p131, %s132, %s133
    %p137 = pneg %p131
    %p138 = scmp.eq.s32.totalorder %s12, 1
    %p139 = por %p137, %p138
    %p140 = scmp.ne.s32.totalorder %s132, %s135
    %p141 = scmp.eq.s32.totalorder %s12, 0
    %p142 = por %p140, %p141
    %p143 = scmp.ne.s32.totalorder %s132, %s135
    %p144 = scmp.eq.s32.totalorder %s17, 1
    %p145 = por %p143, %p144
    %p146 = scmp.ne.s32.totalorder %s135, %s136
    %p147 = scmp.eq.s32.totalorder %s17, 0
    %p148 = por %p146, %p147
    %p149 = scmp.ne.s32.totalorder %s135, %s136
    %p150 = scmp.eq.s32.totalorder %s18, 1
    %p151 = por %p149, %p150
    %p153 = scmp.ne.s32.totalorder %s136, %s152
    %p154 = scmp.eq.s32.totalorder %s18, 0
    %p155 = por %p153, %p154
    %s156 = ssub.s32 %s19, %s31
    %p157 = scmp.eq.s32.totalorder %s156, 0
    %s159 = sadd.s32 %s158, 1
    %s160 = scalar_select %p157, %s158, %s159
    %p163 = pneg %p157
    %p164 = scmp.eq.s32.totalorder %s12, 1
    %p165 = por %p163, %p164
    %p166 = scmp.ne.s32.totalorder %s158, %s161
    %p167 = scmp.eq.s32.totalorder %s12, 0
    %p168 = por %p166, %p167
    %p169 = scmp.ne.s32.totalorder %s158, %s161
    %p170 = scmp.eq.s32.totalorder %s17, 1
    %p171 = por %p169, %p170
    %p172 = scmp.ne.s32.totalorder %s161, %s162
    %p173 = scmp.eq.s32.totalorder %s17, 0
    %p174 = por %p172, %p173
    %p175 = scmp.ne.s32.totalorder %s161, %s162
    %p176 = scmp.eq.s32.totalorder %s18, 1
    %p177 = por %p175, %p176
    %p179 = scmp.ne.s32.totalorder %s162, %s178
    %p180 = scmp.eq.s32.totalorder %s18, 0
    %p181 = por %p179, %p180
    %p182 = scmp.le.s32.totalorder 1, %s12
    %p183 = scmp.lt.s32.totalorder %s12, 3
    %p184 = pnand %p182, %p183
    %p185 = pneg %p184
    // Predicated region
    $region9: #{transformer_up_forward.6} parent=5 // pred_check
      _
    $region10: #{transformer_up_forward.6} parent=5 // pred_check_branch
      %187 = sbr.rel (%p184) target = $region12
    $region11: #{transformer_up_forward.6} parent=5 // pred_region
      %s188 = ssub.s32 %s12, 1
      // Predicated region
      $region13: #{transformer_up_forward.6} parent=11 // pred_check
        %p189 = pneg %p73
      $region14: #{transformer_up_forward.6} parent=11 // pred_check_branch
        %191 = sbr.rel (%p189) target = $region16
      $region15: #{transformer_up_forward.6} parent=11 // pred_region
        _
      $region16: #{transformer_up_forward.6} parent=11 // pred_fallthru
        _
      // Predicated region
      $region17: #{transformer_up_forward.6} parent=11 // pred_check
        %p192 = pneg %p94
      $region18: #{transformer_up_forward.6} parent=11 // pred_check_branch
        %194 = sbr.rel (%p192) target = $region20
      $region19: #{transformer_up_forward.6} parent=11 // pred_region
        _
      $region20: #{transformer_up_forward.6} parent=11 // pred_fallthru
        _
    $region12: #{transformer_up_forward.6} parent=5 // pred_fallthru
      _
    %p195 = scmp.lt.s32.totalorder %s12, 2
    // Predicated region
    $region21: #{transformer_up_forward.6} parent=5 // pred_check
      %p196 = pneg %p195
    $region22: #{transformer_up_forward.6} parent=5 // pred_check_branch
      %198 = sbr.rel (%p196) target = $region24
    $region23: #{transformer_up_forward.6} parent=5 // pred_region
      // Predicated region
      $region25: #{transformer_up_forward.6} parent=23 // pred_check
        %p199 = pneg %p46
      $region26: #{transformer_up_forward.6} parent=23 // pred_check_branch
        %201 = sbr.rel (%p199) target = $region28
      $region27: #{transformer_up_forward.6} parent=23 // pred_region
        %s202 = smul.u32 8, %s20
        %p203 = scmp.lt.s32.totalorder %s19, 1
        %s204 = scalar_select %p203, %s19, 1
        %p205 = scmp.lt.s32.totalorder %s202, 7
        %s206 = scalar_select %p205, %s202, 7
        %s207 = smul.addr %s204, 8
        %s208 = sadd.s32 %s206, %s207
        %s209 = smul.addr %s208, 4
        %s210 = scalar_lea.vmem %s0, %s209
        %s211 = smul.u32 8, %s20
      $region28: #{transformer_up_forward.6} parent=23 // pred_fallthru
        _
    $region24: #{transformer_up_forward.6} parent=5 // pred_fallthru
      _
    %p212 = scmp.le.s32.totalorder 1, %s12
    %p213 = scmp.lt.s32.totalorder %s12, 3
    %p214 = pnand %p212, %p213
    %p215 = pneg %p214
    // Predicated region
    $region29: #{transformer_up_forward.6} parent=5 // pred_check
      _
    $region30: #{transformer_up_forward.6} parent=5 // pred_check_branch
      %217 = sbr.rel (%p214) target = $region32
    $region31: #{transformer_up_forward.6} parent=5 // pred_region
      %s218 = ssub.s32 %s12, 1
      %s219 = smul.u32 8, %s22
      %p220 = scmp.lt.s32.totalorder %s21, 1
      %s221 = scalar_select %p220, %s21, 1
      %p222 = scmp.lt.s32.totalorder %s219, 7
      %s223 = scalar_select %p222, %s219, 7
      %s224 = smul.addr %s221, 8
      %s225 = sadd.s32 %s223, %s224
      %s226 = smul.addr %s225, 4
      %s227 = scalar_lea.vmem %s0, %s226
      %p228 = pneg %p52
      %p229 = pneg %p49
      %p230 = pneg %p73
      %p231 = pneg %p70
      %p232 = pneg %p94
      %p233 = pneg %p91
      %p234 = pneg %p122
      %p235 = pneg %p119
      %s236 = smul.u32 8, %s22
      %p237 = scmp.lt.s32.totalorder %s21, 1
      %s238 = scalar_select %p237, %s21, 1
      %p239 = scmp.lt.s32.totalorder %s236, 7
      %s240 = scalar_select %p239, %s236, 7
      %s241 = smul.addr %s238, 8
      %s242 = sadd.s32 %s240, %s241
      %s243 = smul.addr %s242, 8
      %s244 = scalar_lea.vmem %s3, %s243
      %p245 = pneg %p148
      %p246 = pneg %p145
      %p247 = scmp.lt.s32.totalorder %s21, 1
      %s248 = scalar_select %p247, %s21, 1
      %s249 = scalar_lea.vmem %s4, %s248
      %p250 = pneg %p174
      %p251 = pneg %p171
      %p252 = scmp.lt.s32.totalorder %s21, 1
      %s253 = scalar_select %p252, %s21, 1
      %s254 = scalar_lea.vmem %s5, %s253
      %s255 = smul.u32 8, %s22
      %p256 = scmp.lt.s32.totalorder %s21, 1
      %s257 = scalar_select %p256, %s21, 1
      %p258 = scmp.lt.s32.totalorder %s255, 7
      %s259 = scalar_select %p258, %s255, 7
      %s260 = smul.addr %s257, 8
      %s261 = sadd.s32 %s259, %s260
      %s262 = smul.addr %s261, 4
      %s263 = scalar_lea.vmem %s0, %s262
      %s264 = smul.u32 8, %s22
      %s265 = smul.u32 8, %s22
      %p266 = scmp.lt.s32.totalorder %s21, 1
      %s267 = scalar_select %p266, %s21, 1
      %p268 = scmp.lt.s32.totalorder %s265, 7
      %s269 = scalar_select %p268, %s265, 7
      %s270 = smul.addr %s267, 8
      %s271 = sadd.s32 %s269, %s270
      %s272 = smul.addr %s271, 8
      %s273 = scalar_lea.vmem %s3, %s272
      %s274 = smul.u32 8, %s22
      %p275 = scmp.lt.s32.totalorder %s21, 1
      %s276 = scalar_select %p275, %s21, 1
      %s277 = scalar_lea.vmem %s4, %s276
      %p278 = scmp.lt.s32.totalorder %s21, 1
      %s279 = scalar_select %p278, %s21, 1
      %s280 = scalar_lea.vmem %s5, %s279
      %p282 = scmp.eq.s32.totalorder %s22, 0
      // Predicated region
      $region33: #{transformer_up_forward.6} parent=31 // pred_check
        %p283 = pneg %p282
      $region34: #{transformer_up_forward.6} parent=31 // pred_check_branch
        %285 = sbr.rel (%p283) target = $region36
      $region35: #{transformer_up_forward.6} parent=31 // pred_region
        %vm286 = vcmask 24576
        %287 = vst.msk [vmem:[%s277] sm:$0x1] %vm286, 0.0
        %288 = vst.msk [vmem:[%s280] sm:$0x1] %vm286, 0.0
      $region36: #{transformer_up_forward.6} parent=31 // pred_fallthru
        _
      %v289 = vld [vmem:[%s263] sm:$0xf]
      %v290 = vld [vmem:[%s263 + $0x4] sm:$0xf]
      %v291 = vld [vmem:[%s263 + $0x8] sm:$0xf]
      %v292 = vld [vmem:[%s263 + $0xc] sm:$0xf]
      %v293 = vld [vmem:[%s263 + $0x10] sm:$0xf]
      %v294 = vld [vmem:[%s263 + $0x14] sm:$0xf]
      %v295 = vld [vmem:[%s263 + $0x18] sm:$0xf]
      %v296 = vld [vmem:[%s263 + $0x1c] sm:$0xf]
      %v297 = vld [vmem:[%s1] sm:$0x3]
      %v298 = vld [vmem:[%s2] sm:$0x1]
      %v300 = vlaneseq
      %v301 = vshrl.u32 %v300, 7
      %v302 = vsub.s32 0, %v301
      %v303 = vrot.slane %v298, %v302
      %v313 = vunpack.c.l.b16 %v289
      %v314 = vunpack.c.l.b16 %v290
      %v315 = vunpack.c.l.b16 %v291
      %v316 = vunpack.c.l.b16 %v292
      %v317 = vunpack.c.l.b16 %v293
      %v318 = vunpack.c.l.b16 %v294
      %v319 = vunpack.c.l.b16 %v295
      %v320 = vunpack.c.l.b16 %v296
      %v321 = vpack.c.b16 %v314, %v313
      %v322 = vpack.c.b16 %v316, %v315
      %v323 = vpack.c.b16 %v318, %v317
      %v324 = vpack.c.b16 %v320, %v319
      %vm325 = vcmask 31744
      %v327 = vsel %vm325, %v321, 0
      %v330 = vsel %vm325, %v322, 0
      %v333 = vsel %vm325, %v323, 0
      %v336 = vsel %vm325, %v324, 0
      %vm338 = vcmask 1041408
      %v340 = vsel %vm338, %v297, 0
      %342 = vmatprep.subr.bf16.mxu0 0
      %343 = vmatpush1.bf16.msra.mxu0 0
      %344 = vmatprep.subr.bf16.mxu0 0
      %345 = vmatpush1.bf16.msra.mxu0 0
      %346 = vmatprep.subr.bf16.mxu0 0
      %347 = vmatpush1.bf16.msra.mxu0 0
      %348 = vmatprep.subr.bf16.mxu0 0
      %349 = vmatpush1.bf16.msra.mxu0 0
      %350 = vmatprep.subr.bf16.mxu0 0
      %351 = vmatpush1.bf16.msra.mxu0 0
      %352 = vmatprep.subr.bf16.mxu0 0
      %353 = vmatpush1.bf16.msra.mxu0 0
      %354 = vmatprep.subr.bf16.mxu0 0
      %355 = vmatpush1.bf16.msra.mxu0 0
      %356 = vmatprep.subr.bf16.mxu0 0
      %357 = vmatpush1.bf16.msra.mxu0 %v340
      %358 = vmatprep.subr.bf16.mxu0 0
      %359 = vmatpush2.bf16.msra.mxu0 0
      %360 = vmatprep.subr.bf16.mxu0 0
      %361 = vmatpush2.bf16.msra.mxu0 0
      %362 = vmatprep.subr.bf16.mxu0 0
      %363 = vmatpush2.bf16.msra.mxu0 0
      %364 = vmatprep.subr.bf16.mxu0 0
      %365 = vmatpush2.bf16.msra.mxu0 0
      %366 = vmatprep.subr.bf16.mxu0 0
      %367 = vmatpush2.bf16.msra.mxu0 0
      %368 = vmatprep.subr.bf16.mxu0 0
      %369 = vmatpush2.bf16.msra.mxu0 0
      %370 = vmatprep.subr.bf16.mxu0 0
      %371 = vmatpush2.bf16.msra.mxu0 0
      %372 = vmatprep.subr.bf16.mxu0 0
      %373 = vmatpush2.bf16.msra.mxu0 0
      %374 = vmatprep.mubr.bf16.mxu0 0
      %375 = vmatmul.mubr.bf16.gmra.mxu0 %v327
      %v376 = vpop.f32.mrf.mxu0
      %v377 = vadd.f32 %v303, %v376
      %v378 = vpop.f32.mrf.mxu0
      %v379 = vpop.f32.mrf.mxu0
      %v380 = vadd.f32 %v303, %v379
      %v381 = vpop.f32.mrf.mxu0
      %382 = vmatprep.mubr.bf16.mxu0 0
      %383 = vmatmul.mubr.bf16.gmra.mxu0 %v330
      %v384 = vpop.f32.mrf.mxu0
      %v385 = vadd.f32 %v303, %v384
      %v386 = vpop.f32.mrf.mxu0
      %v387 = vpop.f32.mrf.mxu0
      %v388 = vadd.f32 %v303, %v387
      %v389 = vpop.f32.mrf.mxu0
      %390 = vmatprep.mubr.bf16.mxu0 0
      %391 = vmatmul.mubr.bf16.gmra.mxu0 %v333
      %v392 = vpop.f32.mrf.mxu0
      %v393 = vadd.f32 %v303, %v392
      %v394 = vpop.f32.mrf.mxu0
      %v395 = vpop.f32.mrf.mxu0
      %v396 = vadd.f32 %v303, %v395
      %v397 = vpop.f32.mrf.mxu0
      %398 = vmatprep.mubr.bf16.mxu0 0
      %399 = vmatmul.mubr.bf16.gmra.mxu0 %v336
      %v400 = vpop.f32.mrf.mxu0
      %v401 = vadd.f32 %v303, %v400
      %v402 = vpop.f32.mrf.mxu0
      %v403 = vpop.f32.mrf.mxu0
      %v404 = vadd.f32 %v303, %v403
      %v405 = vpop.f32.mrf.mxu0
      %406 = vdwg.mxu0
      %407 = vst.msk [vmem:[%s273] sm:$0xff] %vm325, %v377
      %408 = vst.msk [vmem:[%s273 + $0x8] sm:$0xff] %vm325, %v380
      %409 = vst.msk [vmem:[%s273 + $0x10] sm:$0xff] %vm325, %v385
      %410 = vst.msk [vmem:[%s273 + $0x18] sm:$0xff] %vm325, %v388
      %411 = vst.msk [vmem:[%s273 + $0x20] sm:$0xff] %vm325, %v393
      %412 = vst.msk [vmem:[%s273 + $0x28] sm:$0xff] %vm325, %v396
      %413 = vst.msk [vmem:[%s273 + $0x30] sm:$0xff] %vm325, %v401
      %414 = vst.msk [vmem:[%s273 + $0x38] sm:$0xff] %vm325, %v404
      %v415 = vld [vmem:[%s277] sm:$0x1]
      %v416 = vsel %vm325, %v377, 0.0
      %v417 = vsel %vm325, %v380, 0.0
      %v418 = vadd.f32 %v416, %v417
      %v419 = vsel %vm325, %v385, 0.0
      %v420 = vadd.f32 %v418, %v419
      %v421 = vsel %vm325, %v388, 0.0
      %v422 = vadd.f32 %v420, %v421
      %v423 = vsel %vm325, %v393, 0.0
      %v424 = vadd.f32 %v422, %v423
      %v425 = vsel %vm325, %v396, 0.0
      %v426 = vadd.f32 %v424, %v425
      %v427 = vsel %vm325, %v401, 0.0
      %v428 = vadd.f32 %v426, %v427
      %v429 = vsel %vm325, %v404, 0.0
      %v430 = vadd.f32 %v428, %v429
      %v431 = vrot.slane %v430, 4
      %v432 = vadd.f32 %v430, %v431
      %v433 = vrot.slane %v432, 2
      %v434 = vadd.f32 %v432, %v433
      %v435 = vrot.slane %v434, 1
      %v436 = vadd.f32 %v434, %v435
      %v437 = vadd.f32 %v415, %v436
      %vm438 = vcmask 24576
      %439 = vst.msk [vmem:[%s277] sm:$0x1] %vm438, %v437
      %v440 = vld [vmem:[%s280] sm:$0x1]
      %v441 = vmul.f32 %v377, %v377
      %v442 = vmul.f32 %v380, %v380
      %v443 = vmul.f32 %v385, %v385
      %v444 = vmul.f32 %v388, %v388
      %v445 = vmul.f32 %v393, %v393
      %v446 = vmul.f32 %v396, %v396
      %v447 = vmul.f32 %v401, %v401
      %v448 = vmul.f32 %v404, %v404
      %v449 = vsel %vm325, %v441, 0.0
      %v450 = vsel %vm325, %v442, 0.0
      %v451 = vadd.f32 %v449, %v450
      %v452 = vsel %vm325, %v443, 0.0
      %v453 = vadd.f32 %v451, %v452
      %v454 = vsel %vm325, %v444, 0.0
      %v455 = vadd.f32 %v453, %v454
      %v456 = vsel %vm325, %v445, 0.0
      %v457 = vadd.f32 %v455, %v456
      %v458 = vsel %vm325, %v446, 0.0
      %v459 = vadd.f32 %v457, %v458
      %v460 = vsel %vm325, %v447, 0.0
      %v461 = vadd.f32 %v459, %v460
      %v462 = vsel %vm325, %v448, 0.0
      %v463 = vadd.f32 %v461, %v462
      %v464 = vrot.slane %v463, 4
      %v465 = vadd.f32 %v463, %v464
      %v466 = vrot.slane %v465, 2
      %v467 = vadd.f32 %v465, %v466
      %v468 = vrot.slane %v467, 1
      %v469 = vadd.f32 %v467, %v468
      %v470 = vadd.f32 %v440, %v469
      %471 = vst.msk [vmem:[%s280] sm:$0x1] %vm438, %v470
      %s472 = smul.u32 8, %s22
      %p473 = scmp.lt.s32.totalorder %s21, 1
      %s474 = scalar_select %p473, %s21, 1
      %p475 = scmp.lt.s32.totalorder %s472, 7
      %s476 = scalar_select %p475, %s472, 7
      %s477 = smul.addr %s474, 8
      %s478 = sadd.s32 %s476, %s477
      %s479 = smul.addr %s478, 8
      %s480 = scalar_lea.vmem %s3, %s479
      %p481 = scmp.lt.s32.totalorder %s21, 1
      %s482 = scalar_select %p481, %s21, 1
      %s483 = scalar_lea.vmem %s4, %s482
      %p484 = scmp.lt.s32.totalorder %s21, 1
      %s485 = scalar_select %p484, %s21, 1
      %s486 = scalar_lea.vmem %s5, %s485
      // Predicated region
      $region37: #{transformer_up_forward.6} parent=31 // pred_check
        %p487 = pneg %p119
      $region38: #{transformer_up_forward.6} parent=31 // pred_check_branch
        %489 = sbr.rel (%p487) target = $region40
      $region39: #{transformer_up_forward.6} parent=31 // pred_region
        %s490 = smul.u32 8, %s22
      $region40: #{transformer_up_forward.6} parent=31 // pred_fallthru
        _
      // Predicated region
      $region41: #{transformer_up_forward.6} parent=31 // pred_check
        %p491 = pneg %p145
      $region42: #{transformer_up_forward.6} parent=31 // pred_check_branch
        %493 = sbr.rel (%p491) target = $region44
      $region43: #{transformer_up_forward.6} parent=31 // pred_region
        _
      $region44: #{transformer_up_forward.6} parent=31 // pred_fallthru
        _
      // Predicated region
      $region45: #{transformer_up_forward.6} parent=31 // pred_check
        %p494 = pneg %p171
      $region46: #{transformer_up_forward.6} parent=31 // pred_check_branch
        %496 = sbr.rel (%p494) target = $region48
      $region47: #{transformer_up_forward.6} parent=31 // pred_region
        _
      $region48: #{transformer_up_forward.6} parent=31 // pred_fallthru
        _
    $region32: #{transformer_up_forward.6} parent=5 // pred_fallthru
      _
    %p497 = scmp.le.s32.totalorder 2, %s12
    // Predicated region
    $region49: #{transformer_up_forward.6} parent=5 // pred_check
      %p498 = pneg %p497
    $region50: #{transformer_up_forward.6} parent=5 // pred_check_branch
      %500 = sbr.rel (%p498) target = $region52
    $region51: #{transformer_up_forward.6} parent=5 // pred_region
      %s501 = ssub.s32 %s12, 2
      // Predicated region
      $region53: #{transformer_up_forward.6} parent=51 // pred_check
        %p502 = pneg %p125
      $region54: #{transformer_up_forward.6} parent=51 // pred_check_branch
        %504 = sbr.rel (%p502) target = $region56
      $region55: #{transformer_up_forward.6} parent=51 // pred_region
        %s505 = smul.u32 8, %s24
        %p506 = scmp.lt.s32.totalorder %s23, 1
        %s507 = scalar_select %p506, %s23, 1
        %p508 = scmp.lt.s32.totalorder %s505, 7
        %s509 = scalar_select %p508, %s505, 7
        %s510 = smul.addr %s507, 8
        %s511 = sadd.s32 %s509, %s510
        %s512 = smul.addr %s511, 8
        %s513 = scalar_lea.vmem %s3, %s512
      $region56: #{transformer_up_forward.6} parent=51 // pred_fallthru
        _
      // Predicated region
      $region57: #{transformer_up_forward.6} parent=51 // pred_check
        %p514 = pneg %p151
      $region58: #{transformer_up_forward.6} parent=51 // pred_check_branch
        %516 = sbr.rel (%p514) target = $region60
      $region59: #{transformer_up_forward.6} parent=51 // pred_region
        %p517 = scmp.lt.s32.totalorder %s23, 1
        %s518 = scalar_select %p517, %s23, 1
        %s519 = scalar_lea.vmem %s4, %s518
      $region60: #{transformer_up_forward.6} parent=51 // pred_fallthru
        _
      // Predicated region
      $region61: #{transformer_up_forward.6} parent=51 // pred_check
        %p520 = pneg %p177
      $region62: #{transformer_up_forward.6} parent=51 // pred_check_branch
        %522 = sbr.rel (%p520) target = $region64
      $region63: #{transformer_up_forward.6} parent=51 // pred_region
        %p523 = scmp.lt.s32.totalorder %s23, 1
        %s524 = scalar_select %p523, %s23, 1
        %s525 = scalar_lea.vmem %s5, %s524
      $region64: #{transformer_up_forward.6} parent=51 // pred_fallthru
        _
    $region52: #{transformer_up_forward.6} parent=5 // pred_fallthru
      _
  $region6: #{transformer_up_forward.6} parent=0 // loop_footer
    %s16 = sadd.s32 1, %s12
  $region7: #{transformer_up_forward.6} parent=0 // loop_footer_branch
    %11 = sbr.rel target = $region3
  $region8: #{transformer_up_forward.6} parent=0 // loop_exit
    _

// kernel: transformer_up_forward.7
$region0: #{transformer_up_forward.7}
  #allocation0 [shape = 'u32[]', space=smem, size = 0x4, offset = 0x4, fixed_abs, tag = 'smem constant byte address 0x4 - core index']
  #allocation1 [shape = 'u32[144,128]{1,0:T(1,128)}', space=vmem, size = 0x12000, scoped, tag = 'internal scratch']
  %s0 = inlined_call_operand.vmem [shape: bf16[2,64,8], index: 0, kind: input, shape index: {}]
  %s1 = inlined_call_operand.vmem [shape: bf16[8,4], index: 1, kind: input, shape index: {}]
  %s2 = inlined_call_operand.vmem [shape: f32[1,4], index: 2, kind: input, shape index: {}]
  %s3 = inlined_call_operand.vmem [shape: f32[2,64,4], index: 3, kind: output, shape index: {0}]
  %s4 = inlined_call_operand.vmem [shape: f32[2,1,4], index: 4, kind: output, shape index: {1}]
  %s5 = inlined_call_operand.vmem [shape: f32[2,1,4], index: 5, kind: output, shape index: {2}]
  %6 = xla_tuple %s3, %s4, %s5
  %s7 = sld [smem:[#allocation0]]
  $region65: #{transformer_up_forward.7} parent=0
    _
  %s9 = ssub.s32 1, %s7
  %s10 = scalar_select 0, %s9, %s7
  loop: start=0, step=1, limit=4
  $region2: #{transformer_up_forward.7} parent=0 // loop_pre_header
    _
  $region3: #{transformer_up_forward.7} parent=0 // loop_header
    %s12 = sphi 0, %s16
    %p13 = scmp.ge.s32.totalorder %s12, 4
    %s19 = sphi 0, %s31
    %s20 = sphi 0, %s27
    %s21 = sphi 0, %s19
    %s22 = sphi 0, %s20
    %s23 = sphi 0, %s21
    %s24 = sphi 0, %s22
    %s36 = sphi 0, %s38
    %s39 = sphi 0, %s36
    %s40 = sphi 0, %s39
    %s56 = sphi 0, %s40
    %s60 = sphi 0, %s60
    %s62 = sphi 0, %s60
    %s63 = sphi 0, %s62
    %s77 = sphi 0, %s63
    %s81 = sphi 0, %s81
    %s83 = sphi 0, %s81
    %s84 = sphi 0, %s83
    %s98 = sphi 0, %s84
    %s106 = sphi 0, %s108
    %s109 = sphi 0, %s106
    %s110 = sphi 0, %s109
    %s126 = sphi 0, %s110
    %s132 = sphi 0, %s134
    %s135 = sphi 0, %s132
    %s136 = sphi 0, %s135
    %s152 = sphi 0, %s136
    %s158 = sphi 0, %s160
    %s161 = sphi 0, %s158
    %s162 = sphi 0, %s161
    %s178 = sphi 0, %s162
  $region4: #{transformer_up_forward.7} parent=0 // loop_header_branch
    %15 = sbr.rel (%p13) target = $region8
  $region5: #{transformer_up_forward.7} parent=0 // loop_body
    %s17 = ssub.s32 %s12, 1
    %s18 = ssub.s32 %s12, 2
    %s25 = sadd.s32 1, %s20
    %p26 = scmp.ge.s32.totalorder %s25, 1
    %s27 = scalar_select %p26, 0, %s25
    %s28 = sadd.s32 1, %s19
    %s29 = scalar_select %p26, %s28, %s19
    %p30 = scmp.ge.s32.totalorder %s29, 2
    %s31 = scalar_select %p30, 0, %s29
    %s32 = ssub.s32 %s19, %s31
    %s33 = ssub.s32 %s20, %s27
    %s34 = sor.u32 %s32, %s33
    %p35 = scmp.eq.s32.totalorder %s34, 0
    %s37 = sadd.s32 %s36, 1
    %s38 = scalar_select %p35, %s36, %s37
    %p41 = pneg %p35
    %p42 = scmp.eq.s32.totalorder %s12, 1
    %p43 = por %p41, %p42
    %p44 = scmp.ne.s32.totalorder %s36, %s39
    %p45 = scmp.eq.s32.totalorder %s12, 0
    %p46 = por %p44, %p45
    %p47 = scmp.ne.s32.totalorder %s36, %s39
    %p48 = scmp.eq.s32.totalorder %s17, 1
    %p49 = por %p47, %p48
    %p50 = scmp.ne.s32.totalorder %s39, %s40
    %p51 = scmp.eq.s32.totalorder %s17, 0
    %p52 = por %p50, %p51
    %p53 = scmp.ne.s32.totalorder %s39, %s40
    %p54 = scmp.eq.s32.totalorder %s18, 1
    %p55 = por %p53, %p54
    %p57 = scmp.ne.s32.totalorder %s40, %s56
    %p58 = scmp.eq.s32.totalorder %s18, 0
    %p59 = por %p57, %p58
    %s61 = sadd.s32 %s60, 1
    %p64 = scmp.eq.s32.totalorder %s12, 1
    %p65 = scmp.ne.s32.totalorder %s60, %s62
    %p66 = scmp.eq.s32.totalorder %s12, 0
    %p67 = por %p65, %p66
    %p68 = scmp.ne.s32.totalorder %s60, %s62
    %p69 = scmp.eq.s32.totalorder %s17, 1
    %p70 = por %p68, %p69
    %p71 = scmp.ne.s32.totalorder %s62, %s63
    %p72 = scmp.eq.s32.totalorder %s17, 0
    %p73 = por %p71, %p72
    %p74 = scmp.ne.s32.totalorder %s62, %s63
    %p75 = scmp.eq.s32.totalorder %s18, 1
    %p76 = por %p74, %p75
    %p78 = scmp.ne.s32.totalorder %s63, %s77
    %p79 = scmp.eq.s32.totalorder %s18, 0
    %p80 = por %p78, %p79
    %s82 = sadd.s32 %s81, 1
    %p85 = scmp.eq.s32.totalorder %s12, 1
    %p86 = scmp.ne.s32.totalorder %s81, %s83
    %p87 = scmp.eq.s32.totalorder %s12, 0
    %p88 = por %p86, %p87
    %p89 = scmp.ne.s32.totalorder %s81, %s83
    %p90 = scmp.eq.s32.totalorder %s17, 1
    %p91 = por %p89, %p90
    %p92 = scmp.ne.s32.totalorder %s83, %s84
    %p93 = scmp.eq.s32.totalorder %s17, 0
    %p94 = por %p92, %p93
    %p95 = scmp.ne.s32.totalorder %s83, %s84
    %p96 = scmp.eq.s32.totalorder %s18, 1
    %p97 = por %p95, %p96
    %p99 = scmp.ne.s32.totalorder %s84, %s98
    %p100 = scmp.eq.s32.totalorder %s18, 0
    %p101 = por %p99, %p100
    %s102 = ssub.s32 %s19, %s31
    %s103 = ssub.s32 %s20, %s27
    %s104 = sor.u32 %s102, %s103
    %p105 = scmp.eq.s32.totalorder %s104, 0
    %s107 = sadd.s32 %s106, 1
    %s108 = scalar_select %p105, %s106, %s107
    %p111 = pneg %p105
    %p112 = scmp.eq.s32.totalorder %s12, 1
    %p113 = por %p111, %p112
    %p114 = scmp.ne.s32.totalorder %s106, %s109
    %p115 = scmp.eq.s32.totalorder %s12, 0
    %p116 = por %p114, %p115
    %p117 = scmp.ne.s32.totalorder %s106, %s109
    %p118 = scmp.eq.s32.totalorder %s17, 1
    %p119 = por %p117, %p118
    %p120 = scmp.ne.s32.totalorder %s109, %s110
    %p121 = scmp.eq.s32.totalorder %s17, 0
    %p122 = por %p120, %p121
    %p123 = scmp.ne.s32.totalorder %s109, %s110
    %p124 = scmp.eq.s32.totalorder %s18, 1
    %p125 = por %p123, %p124
    %p127 = scmp.ne.s32.totalorder %s110, %s126
    %p128 = scmp.eq.s32.totalorder %s18, 0
    %p129 = por %p127, %p128
    %s130 = ssub.s32 %s19, %s31
    %p131 = scmp.eq.s32.totalorder %s130, 0
    %s133 = sadd.s32 %s132, 1
    %s134 = scalar_select %p131, %s132, %s133
    %p137 = pneg %p131
    %p138 = scmp.eq.s32.totalorder %s12, 1
    %p139 = por %p137, %p138
    %p140 = scmp.ne.s32.totalorder %s132, %s135
    %p141 = scmp.eq.s32.totalorder %s12, 0
    %p142 = por %p140, %p141
    %p143 = scmp.ne.s32.totalorder %s132, %s135
    %p144 = scmp.eq.s32.totalorder %s17, 1
    %p145 = por %p143, %p144
    %p146 = scmp.ne.s32.totalorder %s135, %s136
    %p147 = scmp.eq.s32.totalorder %s17, 0
    %p148 = por %p146, %p147
    %p149 = scmp.ne.s32.totalorder %s135, %s136
    %p150 = scmp.eq.s32.totalorder %s18, 1
    %p151 = por %p149, %p150
    %p153 = scmp.ne.s32.totalorder %s136, %s152
    %p154 = scmp.eq.s32.totalorder %s18, 0
    %p155 = por %p153, %p154
    %s156 = ssub.s32 %s19, %s31
    %p157 = scmp.eq.s32.totalorder %s156, 0
    %s159 = sadd.s32 %s158, 1
    %s160 = scalar_select %p157, %s158, %s159
    %p163 = pneg %p157
    %p164 = scmp.eq.s32.totalorder %s12, 1
    %p165 = por %p163, %p164
    %p166 = scmp.ne.s32.totalorder %s158, %s161
    %p167 = scmp.eq.s32.totalorder %s12, 0
    %p168 = por %p166, %p167
    %p169 = scmp.ne.s32.totalorder %s158, %s161
    %p170 = scmp.eq.s32.totalorder %s17, 1
    %p171 = por %p169, %p170
    %p172 = scmp.ne.s32.totalorder %s161, %s162
    %p173 = scmp.eq.s32.totalorder %s17, 0
    %p174 = por %p172, %p173
    %p175 = scmp.ne.s32.totalorder %s161, %s162
    %p176 = scmp.eq.s32.totalorder %s18, 1
    %p177 = por %p175, %p176
    %p179 = scmp.ne.s32.totalorder %s162, %s178
    %p180 = scmp.eq.s32.totalorder %s18, 0
    %p181 = por %p179, %p180
    %p182 = scmp.le.s32.totalorder 1, %s12
    %p183 = scmp.lt.s32.totalorder %s12, 3
    %p184 = pnand %p182, %p183
    %p185 = pneg %p184
    // Predicated region
    $region9: #{transformer_up_forward.7} parent=5 // pred_check
      _
    $region10: #{transformer_up_forward.7} parent=5 // pred_check_branch
      %187 = sbr.rel (%p184) target = $region12
    $region11: #{transformer_up_forward.7} parent=5 // pred_region
      %s188 = ssub.s32 %s12, 1
      // Predicated region
      $region13: #{transformer_up_forward.7} parent=11 // pred_check
        %p189 = pneg %p73
      $region14: #{transformer_up_forward.7} parent=11 // pred_check_branch
        %191 = sbr.rel (%p189) target = $region16
      $region15: #{transformer_up_forward.7} parent=11 // pred_region
        _
      $region16: #{transformer_up_forward.7} parent=11 // pred_fallthru
        _
      // Predicated region
      $region17: #{transformer_up_forward.7} parent=11 // pred_check
        %p192 = pneg %p94
      $region18: #{transformer_up_forward.7} parent=11 // pred_check_branch
        %194 = sbr.rel (%p192) target = $region20
      $region19: #{transformer_up_forward.7} parent=11 // pred_region
        _
      $region20: #{transformer_up_forward.7} parent=11 // pred_fallthru
        _
    $region12: #{transformer_up_forward.7} parent=5 // pred_fallthru
      _
    %p195 = scmp.lt.s32.totalorder %s12, 2
    // Predicated region
    $region21: #{transformer_up_forward.7} parent=5 // pred_check
      %p196 = pneg %p195
    $region22: #{transformer_up_forward.7} parent=5 // pred_check_branch
      %198 = sbr.rel (%p196) target = $region24
    $region23: #{transformer_up_forward.7} parent=5 // pred_region
      // Predicated region
      $region25: #{transformer_up_forward.7} parent=23 // pred_check
        %p199 = pneg %p46
      $region26: #{transformer_up_forward.7} parent=23 // pred_check_branch
        %201 = sbr.rel (%p199) target = $region28
      $region27: #{transformer_up_forward.7} parent=23 // pred_region
        %s202 = smul.u32 8, %s20
        %p203 = scmp.lt.s32.totalorder %s19, 1
        %s204 = scalar_select %p203, %s19, 1
        %p205 = scmp.lt.s32.totalorder %s202, 7
        %s206 = scalar_select %p205, %s202, 7
        %s207 = smul.addr %s204, 8
        %s208 = sadd.s32 %s206, %s207
        %s209 = smul.addr %s208, 4
        %s210 = scalar_lea.vmem %s0, %s209
        %s211 = smul.u32 8, %s20
      $region28: #{transformer_up_forward.7} parent=23 // pred_fallthru
        _
    $region24: #{transformer_up_forward.7} parent=5 // pred_fallthru
      _
    %p212 = scmp.le.s32.totalorder 1, %s12
    %p213 = scmp.lt.s32.totalorder %s12, 3
    %p214 = pnand %p212, %p213
    %p215 = pneg %p214
    // Predicated region
    $region29: #{transformer_up_forward.7} parent=5 // pred_check
      _
    $region30: #{transformer_up_forward.7} parent=5 // pred_check_branch
      %217 = sbr.rel (%p214) target = $region32
    $region31: #{transformer_up_forward.7} parent=5 // pred_region
      %s218 = ssub.s32 %s12, 1
      %s219 = smul.u32 8, %s22
      %p220 = scmp.lt.s32.totalorder %s21, 1
      %s221 = scalar_select %p220, %s21, 1
      %p222 = scmp.lt.s32.totalorder %s219, 7
      %s223 = scalar_select %p222, %s219, 7
      %s224 = smul.addr %s221, 8
      %s225 = sadd.s32 %s223, %s224
      %s226 = smul.addr %s225, 4
      %s227 = scalar_lea.vmem %s0, %s226
      %p228 = pneg %p52
      %p229 = pneg %p49
      %p230 = pneg %p73
      %p231 = pneg %p70
      %p232 = pneg %p94
      %p233 = pneg %p91
      %p234 = pneg %p122
      %p235 = pneg %p119
      %s236 = smul.u32 8, %s22
      %p237 = scmp.lt.s32.totalorder %s21, 1
      %s238 = scalar_select %p237, %s21, 1
      %p239 = scmp.lt.s32.totalorder %s236, 7
      %s240 = scalar_select %p239, %s236, 7
      %s241 = smul.addr %s238, 8
      %s242 = sadd.s32 %s240, %s241
      %s243 = smul.addr %s242, 8
      %s244 = scalar_lea.vmem %s3, %s243
      %p245 = pneg %p148
      %p246 = pneg %p145
      %p247 = scmp.lt.s32.totalorder %s21, 1
      %s248 = scalar_select %p247, %s21, 1
      %s249 = scalar_lea.vmem %s4, %s248
      %p250 = pneg %p174
      %p251 = pneg %p171
      %p252 = scmp.lt.s32.totalorder %s21, 1
      %s253 = scalar_select %p252, %s21, 1
      %s254 = scalar_lea.vmem %s5, %s253
      %s255 = smul.u32 8, %s22
      %p256 = scmp.lt.s32.totalorder %s21, 1
      %s257 = scalar_select %p256, %s21, 1
      %p258 = scmp.lt.s32.totalorder %s255, 7
      %s259 = scalar_select %p258, %s255, 7
      %s260 = smul.addr %s257, 8
      %s261 = sadd.s32 %s259, %s260
      %s262 = smul.addr %s261, 4
      %s263 = scalar_lea.vmem %s0, %s262
      %s264 = smul.u32 8, %s22
      %s265 = smul.u32 8, %s22
      %p266 = scmp.lt.s32.totalorder %s21, 1
      %s267 = scalar_select %p266, %s21, 1
      %p268 = scmp.lt.s32.totalorder %s265, 7
      %s269 = scalar_select %p268, %s265, 7
      %s270 = smul.addr %s267, 8
      %s271 = sadd.s32 %s269, %s270
      %s272 = smul.addr %s271, 8
      %s273 = scalar_lea.vmem %s3, %s272
      %s274 = smul.u32 8, %s22
      %p275 = scmp.lt.s32.totalorder %s21, 1
      %s276 = scalar_select %p275, %s21, 1
      %s277 = scalar_lea.vmem %s4, %s276
      %p278 = scmp.lt.s32.totalorder %s21, 1
      %s279 = scalar_select %p278, %s21, 1
      %s280 = scalar_lea.vmem %s5, %s279
      %p282 = scmp.eq.s32.totalorder %s22, 0
      // Predicated region
      $region33: #{transformer_up_forward.7} parent=31 // pred_check
        %p283 = pneg %p282
      $region34: #{transformer_up_forward.7} parent=31 // pred_check_branch
        %285 = sbr.rel (%p283) target = $region36
      $region35: #{transformer_up_forward.7} parent=31 // pred_region
        %vm286 = vcmask 24576
        %287 = vst.msk [vmem:[%s277] sm:$0x1] %vm286, 0.0
        %288 = vst.msk [vmem:[%s280] sm:$0x1] %vm286, 0.0
      $region36: #{transformer_up_forward.7} parent=31 // pred_fallthru
        _
      %v289 = vld [vmem:[%s263] sm:$0xf]
      %v290 = vld [vmem:[%s263 + $0x4] sm:$0xf]
      %v291 = vld [vmem:[%s263 + $0x8] sm:$0xf]
      %v292 = vld [vmem:[%s263 + $0xc] sm:$0xf]
      %v293 = vld [vmem:[%s263 + $0x10] sm:$0xf]
      %v294 = vld [vmem:[%s263 + $0x14] sm:$0xf]
      %v295 = vld [vmem:[%s263 + $0x18] sm:$0xf]
      %v296 = vld [vmem:[%s263 + $0x1c] sm:$0xf]
      %v297 = vld [vmem:[%s1] sm:$0xf]
      %v298 = vld [vmem:[%s2] sm:$0x1]
      %v300 = vlaneseq
      %v301 = vshrl.u32 %v300, 7
      %v302 = vsub.s32 0, %v301
      %v303 = vrot.slane %v298, %v302
      %v313 = vunpack.c.l.b16 %v289
      %v314 = vunpack.c.l.b16 %v290
      %v315 = vunpack.c.l.b16 %v291
      %v316 = vunpack.c.l.b16 %v292
      %v317 = vunpack.c.l.b16 %v293
      %v318 = vunpack.c.l.b16 %v294
      %v319 = vunpack.c.l.b16 %v295
      %v320 = vunpack.c.l.b16 %v296
      %v321 = vpack.c.b16 %v314, %v313
      %v322 = vpack.c.b16 %v316, %v315
      %v323 = vpack.c.b16 %v318, %v317
      %v324 = vpack.c.b16 %v320, %v319
      %vm325 = vcmask 64512
      %v327 = vsel %vm325, %v321, 0
      %v330 = vsel %vm325, %v322, 0
      %v333 = vsel %vm325, %v323, 0
      %v336 = vsel %vm325, %v324, 0
      %vm338 = vcmask 1043456
      %v340 = vsel %vm338, %v297, 0
      %342 = vmatprep.subr.bf16.mxu0 0
      %343 = vmatpush1.bf16.msra.mxu0 0
      %344 = vmatprep.subr.bf16.mxu0 0
      %345 = vmatpush1.bf16.msra.mxu0 0
      %346 = vmatprep.subr.bf16.mxu0 0
      %347 = vmatpush1.bf16.msra.mxu0 0
      %348 = vmatprep.subr.bf16.mxu0 0
      %349 = vmatpush1.bf16.msra.mxu0 0
      %350 = vmatprep.subr.bf16.mxu0 0
      %351 = vmatpush1.bf16.msra.mxu0 0
      %352 = vmatprep.subr.bf16.mxu0 0
      %353 = vmatpush1.bf16.msra.mxu0 0
      %354 = vmatprep.subr.bf16.mxu0 0
      %355 = vmatpush1.bf16.msra.mxu0 0
      %356 = vmatprep.subr.bf16.mxu0 0
      %357 = vmatpush1.bf16.msra.mxu0 %v340
      %358 = vmatprep.subr.bf16.mxu0 0
      %359 = vmatpush2.bf16.msra.mxu0 0
      %360 = vmatprep.subr.bf16.mxu0 0
      %361 = vmatpush2.bf16.msra.mxu0 0
      %362 = vmatprep.subr.bf16.mxu0 0
      %363 = vmatpush2.bf16.msra.mxu0 0
      %364 = vmatprep.subr.bf16.mxu0 0
      %365 = vmatpush2.bf16.msra.mxu0 0
      %366 = vmatprep.subr.bf16.mxu0 0
      %367 = vmatpush2.bf16.msra.mxu0 0
      %368 = vmatprep.subr.bf16.mxu0 0
      %369 = vmatpush2.bf16.msra.mxu0 0
      %370 = vmatprep.subr.bf16.mxu0 0
      %371 = vmatpush2.bf16.msra.mxu0 0
      %372 = vmatprep.subr.bf16.mxu0 0
      %373 = vmatpush2.bf16.msra.mxu0 0
      %374 = vmatprep.mubr.bf16.mxu0 0
      %375 = vmatmul.mubr.bf16.gmra.mxu0 %v327
      %v376 = vpop.f32.mrf.mxu0
      %v377 = vadd.f32 %v303, %v376
      %v378 = vpop.f32.mrf.mxu0
      %v379 = vpop.f32.mrf.mxu0
      %v380 = vadd.f32 %v303, %v379
      %v381 = vpop.f32.mrf.mxu0
      %382 = vmatprep.mubr.bf16.mxu0 0
      %383 = vmatmul.mubr.bf16.gmra.mxu0 %v330
      %v384 = vpop.f32.mrf.mxu0
      %v385 = vadd.f32 %v303, %v384
      %v386 = vpop.f32.mrf.mxu0
      %v387 = vpop.f32.mrf.mxu0
      %v388 = vadd.f32 %v303, %v387
      %v389 = vpop.f32.mrf.mxu0
      %390 = vmatprep.mubr.bf16.mxu0 0
      %391 = vmatmul.mubr.bf16.gmra.mxu0 %v333
      %v392 = vpop.f32.mrf.mxu0
      %v393 = vadd.f32 %v303, %v392
      %v394 = vpop.f32.mrf.mxu0
      %v395 = vpop.f32.mrf.mxu0
      %v396 = vadd.f32 %v303, %v395
      %v397 = vpop.f32.mrf.mxu0
      %398 = vmatprep.mubr.bf16.mxu0 0
      %399 = vmatmul.mubr.bf16.gmra.mxu0 %v336
      %v400 = vpop.f32.mrf.mxu0
      %v401 = vadd.f32 %v303, %v400
      %v402 = vpop.f32.mrf.mxu0
      %v403 = vpop.f32.mrf.mxu0
      %v404 = vadd.f32 %v303, %v403
      %v405 = vpop.f32.mrf.mxu0
      %406 = vdwg.mxu0
      %vm407 = vcmask 31744
      %408 = vst.msk [vmem:[%s273] sm:$0xff] %vm407, %v377
      %409 = vst.msk [vmem:[%s273 + $0x8] sm:$0xff] %vm407, %v380
      %410 = vst.msk [vmem:[%s273 + $0x10] sm:$0xff] %vm407, %v385
      %411 = vst.msk [vmem:[%s273 + $0x18] sm:$0xff] %vm407, %v388
      %412 = vst.msk [vmem:[%s273 + $0x20] sm:$0xff] %vm407, %v393
      %413 = vst.msk [vmem:[%s273 + $0x28] sm:$0xff] %vm407, %v396
      %414 = vst.msk [vmem:[%s273 + $0x30] sm:$0xff] %vm407, %v401
      %415 = vst.msk [vmem:[%s273 + $0x38] sm:$0xff] %vm407, %v404
      %v416 = vld [vmem:[%s277] sm:$0x1]
      %v417 = vsel %vm407, %v377, 0.0
      %v418 = vsel %vm407, %v380, 0.0
      %v419 = vadd.f32 %v417, %v418
      %v420 = vsel %vm407, %v385, 0.0
      %v421 = vadd.f32 %v419, %v420
      %v422 = vsel %vm407, %v388, 0.0
      %v423 = vadd.f32 %v421, %v422
      %v424 = vsel %vm407, %v393, 0.0
      %v425 = vadd.f32 %v423, %v424
      %v426 = vsel %vm407, %v396, 0.0
      %v427 = vadd.f32 %v425, %v426
      %v428 = vsel %vm407, %v401, 0.0
      %v429 = vadd.f32 %v427, %v428
      %v430 = vsel %vm407, %v404, 0.0
      %v431 = vadd.f32 %v429, %v430
      %v432 = vrot.slane %v431, 4
      %v433 = vadd.f32 %v431, %v432
      %v434 = vrot.slane %v433, 2
      %v435 = vadd.f32 %v433, %v434
      %v436 = vrot.slane %v435, 1
      %v437 = vadd.f32 %v435, %v436
      %v438 = vadd.f32 %v416, %v437
      %vm439 = vcmask 24576
      %440 = vst.msk [vmem:[%s277] sm:$0x1] %vm439, %v438
      %v441 = vld [vmem:[%s280] sm:$0x1]
      %v442 = vmul.f32 %v377, %v377
      %v443 = vmul.f32 %v380, %v380
      %v444 = vmul.f32 %v385, %v385
      %v445 = vmul.f32 %v388, %v388
      %v446 = vmul.f32 %v393, %v393
      %v447 = vmul.f32 %v396, %v396
      %v448 = vmul.f32 %v401, %v401
      %v449 = vmul.f32 %v404, %v404
      %v450 = vsel %vm407, %v442, 0.0
      %v451 = vsel %vm407, %v443, 0.0
      %v452 = vadd.f32 %v450, %v451
      %v453 = vsel %vm407, %v444, 0.0
      %v454 = vadd.f32 %v452, %v453
      %v455 = vsel %vm407, %v445, 0.0
      %v456 = vadd.f32 %v454, %v455
      %v457 = vsel %vm407, %v446, 0.0
      %v458 = vadd.f32 %v456, %v457
      %v459 = vsel %vm407, %v447, 0.0
      %v460 = vadd.f32 %v458, %v459
      %v461 = vsel %vm407, %v448, 0.0
      %v462 = vadd.f32 %v460, %v461
      %v463 = vsel %vm407, %v449, 0.0
      %v464 = vadd.f32 %v462, %v463
      %v465 = vrot.slane %v464, 4
      %v466 = vadd.f32 %v464, %v465
      %v467 = vrot.slane %v466, 2
      %v468 = vadd.f32 %v466, %v467
      %v469 = vrot.slane %v468, 1
      %v470 = vadd.f32 %v468, %v469
      %v471 = vadd.f32 %v441, %v470
      %472 = vst.msk [vmem:[%s280] sm:$0x1] %vm439, %v471
      %s473 = smul.u32 8, %s22
      %p474 = scmp.lt.s32.totalorder %s21, 1
      %s475 = scalar_select %p474, %s21, 1
      %p476 = scmp.lt.s32.totalorder %s473, 7
      %s477 = scalar_select %p476, %s473, 7
      %s478 = smul.addr %s475, 8
      %s479 = sadd.s32 %s477, %s478
      %s480 = smul.addr %s479, 8
      %s481 = scalar_lea.vmem %s3, %s480
      %p482 = scmp.lt.s32.totalorder %s21, 1
      %s483 = scalar_select %p482, %s21, 1
      %s484 = scalar_lea.vmem %s4, %s483
      %p485 = scmp.lt.s32.totalorder %s21, 1
      %s486 = scalar_select %p485, %s21, 1
      %s487 = scalar_lea.vmem %s5, %s486
      // Predicated region
      $region37: #{transformer_up_forward.7} parent=31 // pred_check
        %p488 = pneg %p119
      $region38: #{transformer_up_forward.7} parent=31 // pred_check_branch
        %490 = sbr.rel (%p488) target = $region40
      $region39: #{transformer_up_forward.7} parent=31 // pred_region
        %s491 = smul.u32 8, %s22
      $region40: #{transformer_up_forward.7} parent=31 // pred_fallthru
        _
      // Predicated region
      $region41: #{transformer_up_forward.7} parent=31 // pred_check
        %p492 = pneg %p145
      $region42: #{transformer_up_forward.7} parent=31 // pred_check_branch
        %494 = sbr.rel (%p492) target = $region44
      $region43: #{transformer_up_forward.7} parent=31 // pred_region
        _
      $region44: #{transformer_up_forward.7} parent=31 // pred_fallthru
        _
      // Predicated region
      $region45: #{transformer_up_forward.7} parent=31 // pred_check
        %p495 = pneg %p171
      $region46: #{transformer_up_forward.7} parent=31 // pred_check_branch
        %497 = sbr.rel (%p495) target = $region48
      $region47: #{transformer_up_forward.7} parent=31 // pred_region
        _
      $region48: #{transformer_up_forward.7} parent=31 // pred_fallthru
        _
    $region32: #{transformer_up_forward.7} parent=5 // pred_fallthru
      _
    %p498 = scmp.le.s32.totalorder 2, %s12
    // Predicated region
    $region49: #{transformer_up_forward.7} parent=5 // pred_check
      %p499 = pneg %p498
    $region50: #{transformer_up_forward.7} parent=5 // pred_check_branch
      %501 = sbr.rel (%p499) target = $region52
    $region51: #{transformer_up_forward.7} parent=5 // pred_region
      %s502 = ssub.s32 %s12, 2
      // Predicated region
      $region53: #{transformer_up_forward.7} parent=51 // pred_check
        %p503 = pneg %p125
      $region54: #{transformer_up_forward.7} parent=51 // pred_check_branch
        %505 = sbr.rel (%p503) target = $region56
      $region55: #{transformer_up_forward.7} parent=51 // pred_region
        %s506 = smul.u32 8, %s24
        %p507 = scmp.lt.s32.totalorder %s23, 1
        %s508 = scalar_select %p507, %s23, 1
        %p509 = scmp.lt.s32.totalorder %s506, 7
        %s510 = scalar_select %p509, %s506, 7
        %s511 = smul.addr %s508, 8
        %s512 = sadd.s32 %s510, %s511
        %s513 = smul.addr %s512, 8
        %s514 = scalar_lea.vmem %s3, %s513
      $region56: #{transformer_up_forward.7} parent=51 // pred_fallthru
        _
      // Predicated region
      $region57: #{transformer_up_forward.7} parent=51 // pred_check
        %p515 = pneg %p151
      $region58: #{transformer_up_forward.7} parent=51 // pred_check_branch
        %517 = sbr.rel (%p515) target = $region60
      $region59: #{transformer_up_forward.7} parent=51 // pred_region
        %p518 = scmp.lt.s32.totalorder %s23, 1
        %s519 = scalar_select %p518, %s23, 1
        %s520 = scalar_lea.vmem %s4, %s519
      $region60: #{transformer_up_forward.7} parent=51 // pred_fallthru
        _
      // Predicated region
      $region61: #{transformer_up_forward.7} parent=51 // pred_check
        %p521 = pneg %p177
      $region62: #{transformer_up_forward.7} parent=51 // pred_check_branch
        %523 = sbr.rel (%p521) target = $region64
      $region63: #{transformer_up_forward.7} parent=51 // pred_region
        %p524 = scmp.lt.s32.totalorder %s23, 1
        %s525 = scalar_select %p524, %s23, 1
        %s526 = scalar_lea.vmem %s5, %s525
      $region64: #{transformer_up_forward.7} parent=51 // pred_fallthru
        _
    $region52: #{transformer_up_forward.7} parent=5 // pred_fallthru
      _
  $region6: #{transformer_up_forward.7} parent=0 // loop_footer
    %s16 = sadd.s32 1, %s12
  $region7: #{transformer_up_forward.7} parent=0 // loop_footer_branch
    %11 = sbr.rel target = $region3
  $region8: #{transformer_up_forward.7} parent=0 // loop_exit
    _

// kernel: transformer_up_forward.9
$region0: #{transformer_up_forward.9}
  #allocation0 [shape = 'u32[]', space=smem, size = 0x4, offset = 0x4, fixed_abs, tag = 'smem constant byte address 0x4 - core index']
  #allocation1 [shape = 'u32[144,128]{1,0:T(1,128)}', space=vmem, size = 0x12000, scoped, tag = 'internal scratch']
  %s0 = inlined_call_operand.vmem [shape: f32[2,64,4], index: 0, kind: input, shape index: {}]
  %s1 = inlined_call_operand.vmem [shape: f32[2,64,4], index: 1, kind: input, shape index: {}]
  %s2 = inlined_call_operand.vmem [shape: f32[1,4], index: 2, kind: input, shape index: {}]
  %s3 = inlined_call_operand.vmem [shape: f32[1,4], index: 3, kind: input, shape index: {}]
  %s4 = inlined_call_operand.vmem [shape: f32[1,4], index: 4, kind: input, shape index: {}]
  %s5 = inlined_call_operand.vmem [shape: f32[1,4], index: 5, kind: input, shape index: {}]
  %s6 = inlined_call_operand.vmem [shape: bf16[4,8], index: 6, kind: input, shape index: {}]
  %s7 = inlined_call_operand.vmem [shape: bf16[4,4], index: 7, kind: input, shape index: {}]
  %s8 = inlined_call_operand.vmem [shape: bf16[4,4], index: 8, kind: input, shape index: {}]
  %s9 = inlined_call_operand.vmem [shape: f32[1,4], index: 9, kind: input, shape index: {}]
  %s10 = inlined_call_operand.vmem [shape: f32[2,64,4], index: 10, kind: output, shape index: {0}]
  %s11 = inlined_call_operand.vmem [shape: f32[2,1,4], index: 11, kind: output, shape index: {1}]
  %s12 = inlined_call_operand.vmem [shape: f32[2,1,4], index: 12, kind: output, shape index: {2}]
  %13 = xla_tuple %s10, %s11, %s12
  %s14 = sld [smem:[#allocation0]]
  $region89: #{transformer_up_forward.9} parent=0
    _
  %s16 = ssub.s32 1, %s14
  %s17 = scalar_select 0, %s16, %s14
  loop: start=0, step=1, limit=4
  $region2: #{transformer_up_forward.9} parent=0 // loop_pre_header
    _
  $region3: #{transformer_up_forward.9} parent=0 // loop_header
    %s19 = sphi 0, %s23
    %p20 = scmp.ge.s32.totalorder %s19, 4
    %s29 = sphi 0, %s31
    %s32 = sphi 0, %s29
    %s33 = sphi 0, %s32
    %s49 = sphi 0, %s33
    %s55 = sphi 0, %s57
    %s58 = sphi 0, %s55
    %s59 = sphi 0, %s58
    %s75 = sphi 0, %s59
    %s79 = sphi 0, %s79
    %s81 = sphi 0, %s79
    %s82 = sphi 0, %s81
    %s96 = sphi 0, %s82
    %s100 = sphi 0, %s100
    %s102 = sphi 0, %s100
    %s103 = sphi 0, %s102
    %s117 = sphi 0, %s103
    %s121 = sphi 0, %s121
    %s123 = sphi 0, %s121
    %s124 = sphi 0, %s123
    %s138 = sphi 0, %s124
    %s142 = sphi 0, %s142
    %s144 = sphi 0, %s142
    %s145 = sphi 0, %s144
    %s159 = sphi 0, %s145
    %s163 = sphi 0, %s163
    %s165 = sphi 0, %s163
    %s166 = sphi 0, %s165
    %s180 = sphi 0, %s166
    %s184 = sphi 0, %s184
    %s186 = sphi 0, %s184
    %s187 = sphi 0, %s186
    %s201 = sphi 0, %s187
    %s205 = sphi 0, %s205
    %s207 = sphi 0, %s205
    %s208 = sphi 0, %s207
    %s222 = sphi 0, %s208
    %s226 = sphi 0, %s226
    %s228 = sphi 0, %s226
    %s229 = sphi 0, %s228
    %s243 = sphi 0, %s229
    %s249 = sphi 0, %s251
    %s252 = sphi 0, %s249
    %s253 = sphi 0, %s252
    %s269 = sphi 0, %s253
    %s275 = sphi 0, %s277
    %s278 = sphi 0, %s275
    %s279 = sphi 0, %s278
    %s295 = sphi 0, %s279
    %s301 = sphi 0, %s303
    %s304 = sphi 0, %s301
    %s305 = sphi 0, %s304
    %s321 = sphi 0, %s305
  $region4: #{transformer_up_forward.9} parent=0 // loop_header_branch
    %22 = sbr.rel (%p20) target = $region8
  $region5: #{transformer_up_forward.9} parent=0 // loop_body
    %s24 = ssub.s32 %s19, 1
    %s25 = ssub.s32 %s19, 2
    %s26 = sadd.s32 %s19, 1
    %s27 = ssub.s32 %s19, %s26
    %p28 = scmp.eq.s32.totalorder %s27, 0
    %s30 = sadd.s32 %s29, 1
    %s31 = scalar_select %p28, %s29, %s30
    %p34 = pneg %p28
    %p35 = scmp.eq.s32.totalorder %s19, 1
    %p36 = por %p34, %p35
    %p37 = scmp.ne.s32.totalorder %s29, %s32
    %p38 = scmp.eq.s32.totalorder %s19, 0
    %p39 = por %p37, %p38
    %p40 = scmp.ne.s32.totalorder %s29, %s32
    %p41 = scmp.eq.s32.totalorder %s24, 1
    %p42 = por %p40, %p41
    %p43 = scmp.ne.s32.totalorder %s32, %s33
    %p44 = scmp.eq.s32.totalorder %s24, 0
    %p45 = por %p43, %p44
    %p46 = scmp.ne.s32.totalorder %s32, %s33
    %p47 = scmp.eq.s32.totalorder %s25, 1
    %p48 = por %p46, %p47
    %p50 = scmp.ne.s32.totalorder %s33, %s49
    %p51 = scmp.eq.s32.totalorder %s25, 0
    %p52 = por %p50, %p51
    %s53 = ssub.s32 %s19, %s26
    %p54 = scmp.eq.s32.totalorder %s53, 0
    %s56 = sadd.s32 %s55, 1
    %s57 = scalar_select %p54, %s55, %s56
    %p60 = pneg %p54
    %p61 = scmp.eq.s32.totalorder %s19, 1
    %p62 = por %p60, %p61
    %p63 = scmp.ne.s32.totalorder %s55, %s58
    %p64 = scmp.eq.s32.totalorder %s19, 0
    %p65 = por %p63, %p64
    %p66 = scmp.ne.s32.totalorder %s55, %s58
    %p67 = scmp.eq.s32.totalorder %s24, 1
    %p68 = por %p66, %p67
    %p69 = scmp.ne.s32.totalorder %s58, %s59
    %p70 = scmp.eq.s32.totalorder %s24, 0
    %p71 = por %p69, %p70
    %p72 = scmp.ne.s32.totalorder %s58, %s59
    %p73 = scmp.eq.s32.totalorder %s25, 1
    %p74 = por %p72, %p73
    %p76 = scmp.ne.s32.totalorder %s59, %s75
    %p77 = scmp.eq.s32.totalorder %s25, 0
    %p78 = por %p76, %p77
    %s80 = sadd.s32 %s79, 1
    %p83 = scmp.eq.s32.totalorder %s19, 1
    %p84 = scmp.ne.s32.totalorder %s79, %s81
    %p85 = scmp.eq.s32.totalorder %s19, 0
    %p86 = por %p84, %p85
    %p87 = scmp.ne.s32.totalorder %s79, %s81
    %p88 = scmp.eq.s32.totalorder %s24, 1
    %p89 = por %p87, %p88
    %p90 = scmp.ne.s32.totalorder %s81, %s82
    %p91 = scmp.eq.s32.totalorder %s24, 0
    %p92 = por %p90, %p91
    %p93 = scmp.ne.s32.totalorder %s81, %s82
    %p94 = scmp.eq.s32.totalorder %s25, 1
    %p95 = por %p93, %p94
    %p97 = scmp.ne.s32.totalorder %s82, %s96
    %p98 = scmp.eq.s32.totalorder %s25, 0
    %p99 = por %p97, %p98
    %s101 = sadd.s32 %s100, 1
    %p104 = scmp.eq.s32.totalorder %s19, 1
    %p105 = scmp.ne.s32.totalorder %s100, %s102
    %p106 = scmp.eq.s32.totalorder %s19, 0
    %p107 = por %p105, %p106
    %p108 = scmp.ne.s32.totalorder %s100, %s102
    %p109 = scmp.eq.s32.totalorder %s24, 1
    %p110 = por %p108, %p109
    %p111 = scmp.ne.s32.totalorder %s102, %s103
    %p112 = scmp.eq.s32.totalorder %s24, 0
    %p113 = por %p111, %p112
    %p114 = scmp.ne.s32.totalorder %s102, %s103
    %p115 = scmp.eq.s32.totalorder %s25, 1
    %p116 = por %p114, %p115
    %p118 = scmp.ne.s32.totalorder %s103, %s117
    %p119 = scmp.eq.s32.totalorder %s25, 0
    %p120 = por %p118, %p119
    %s122 = sadd.s32 %s121, 1
    %p125 = scmp.eq.s32.totalorder %s19, 1
    %p126 = scmp.ne.s32.totalorder %s121, %s123
    %p127 = scmp.eq.s32.totalorder %s19, 0
    %p128 = por %p126, %p127
    %p129 = scmp.ne.s32.totalorder %s121, %s123
    %p130 = scmp.eq.s32.totalorder %s24, 1
    %p131 = por %p129, %p130
    %p132 = scmp.ne.s32.totalorder %s123, %s124
    %p133 = scmp.eq.s32.totalorder %s24, 0
    %p134 = por %p132, %p133
    %p135 = scmp.ne.s32.totalorder %s123, %s124
    %p136 = scmp.eq.s32.totalorder %s25, 1
    %p137 = por %p135, %p136
    %p139 = scmp.ne.s32.totalorder %s124, %s138
    %p140 = scmp.eq.s32.totalorder %s25, 0
    %p141 = por %p139, %p140
    %s143 = sadd.s32 %s142, 1
    %p146 = scmp.eq.s32.totalorder %s19, 1
    %p147 = scmp.ne.s32.totalorder %s142, %s144
    %p148 = scmp.eq.s32.totalorder %s19, 0
    %p149 = por %p147, %p148
    %p150 = scmp.ne.s32.totalorder %s142, %s144
    %p151 = scmp.eq.s32.totalorder %s24, 1
    %p152 = por %p150, %p151
    %p153 = scmp.ne.s32.totalorder %s144, %s145
    %p154 = scmp.eq.s32.totalorder %s24, 0
    %p155 = por %p153, %p154
    %p156 = scmp.ne.s32.totalorder %s144, %s145
    %p157 = scmp.eq.s32.totalorder %s25, 1
    %p158 = por %p156, %p157
    %p160 = scmp.ne.s32.totalorder %s145, %s159
    %p161 = scmp.eq.s32.totalorder %s25, 0
    %p162 = por %p160, %p161
    %s164 = sadd.s32 %s163, 1
    %p167 = scmp.eq.s32.totalorder %s19, 1
    %p168 = scmp.ne.s32.totalorder %s163, %s165
    %p169 = scmp.eq.s32.totalorder %s19, 0
    %p170 = por %p168, %p169
    %p171 = scmp.ne.s32.totalorder %s163, %s165
    %p172 = scmp.eq.s32.totalorder %s24, 1
    %p173 = por %p171, %p172
    %p174 = scmp.ne.s32.totalorder %s165, %s166
    %p175 = scmp.eq.s32.totalorder %s24, 0
    %p176 = por %p174, %p175
    %p177 = scmp.ne.s32.totalorder %s165, %s166
    %p178 = scmp.eq.s32.totalorder %s25, 1
    %p179 = por %p177, %p178
    %p181 = scmp.ne.s32.totalorder %s166, %s180
    %p182 = scmp.eq.s32.totalorder %s25, 0
    %p183 = por %p181, %p182
    %s185 = sadd.s32 %s184, 1
    %p188 = scmp.eq.s32.totalorder %s19, 1
    %p189 = scmp.ne.s32.totalorder %s184, %s186
    %p190 = scmp.eq.s32.totalorder %s19, 0
    %p191 = por %p189, %p190
    %p192 = scmp.ne.s32.totalorder %s184, %s186
    %p193 = scmp.eq.s32.totalorder %s24, 1
    %p194 = por %p192, %p193
    %p195 = scmp.ne.s32.totalorder %s186, %s187
    %p196 = scmp.eq.s32.totalorder %s24, 0
    %p197 = por %p195, %p196
    %p198 = scmp.ne.s32.totalorder %s186, %s187
    %p199 = scmp.eq.s32.totalorder %s25, 1
    %p200 = por %p198, %p199
    %p202 = scmp.ne.s32.totalorder %s187, %s201
    %p203 = scmp.eq.s32.totalorder %s25, 0
    %p204 = por %p202, %p203
    %s206 = sadd.s32 %s205, 1
    %p209 = scmp.eq.s32.totalorder %s19, 1
    %p210 = scmp.ne.s32.totalorder %s205, %s207
    %p211 = scmp.eq.s32.totalorder %s19, 0
    %p212 = por %p210, %p211
    %p213 = scmp.ne.s32.totalorder %s205, %s207
    %p214 = scmp.eq.s32.totalorder %s24, 1
    %p215 = por %p213, %p214
    %p216 = scmp.ne.s32.totalorder %s207, %s208
    %p217 = scmp.eq.s32.totalorder %s24, 0
    %p218 = por %p216, %p217
    %p219 = scmp.ne.s32.totalorder %s207, %s208
    %p220 = scmp.eq.s32.totalorder %s25, 1
    %p221 = por %p219, %p220
    %p223 = scmp.ne.s32.totalorder %s208, %s222
    %p224 = scmp.eq.s32.totalorder %s25, 0
    %p225 = por %p223, %p224
    %s227 = sadd.s32 %s226, 1
    %p230 = scmp.eq.s32.totalorder %s19, 1
    %p231 = scmp.ne.s32.totalorder %s226, %s228
    %p232 = scmp.eq.s32.totalorder %s19, 0
    %p233 = por %p231, %p232
    %p234 = scmp.ne.s32.totalorder %s226, %s228
    %p235 = scmp.eq.s32.totalorder %s24, 1
    %p236 = por %p234, %p235
    %p237 = scmp.ne.s32.totalorder %s228, %s229
    %p238 = scmp.eq.s32.totalorder %s24, 0
    %p239 = por %p237, %p238
    %p240 = scmp.ne.s32.totalorder %s228, %s229
    %p241 = scmp.eq.s32.totalorder %s25, 1
    %p242 = por %p240, %p241
    %p244 = scmp.ne.s32.totalorder %s229, %s243
    %p245 = scmp.eq.s32.totalorder %s25, 0
    %p246 = por %p244, %p245
    %s247 = ssub.s32 %s19, %s26
    %p248 = scmp.eq.s32.totalorder %s247, 0
    %s250 = sadd.s32 %s249, 1
    %s251 = scalar_select %p248, %s249, %s250
    %p254 = pneg %p248
    %p255 = scmp.eq.s32.totalorder %s19, 1
    %p256 = por %p254, %p255
    %p257 = scmp.ne.s32.totalorder %s249, %s252
    %p258 = scmp.eq.s32.totalorder %s19, 0
    %p259 = por %p257, %p258
    %p260 = scmp.ne.s32.totalorder %s249, %s252
    %p261 = scmp.eq.s32.totalorder %s24, 1
    %p262 = por %p260, %p261
    %p263 = scmp.ne.s32.totalorder %s252, %s253
    %p264 = scmp.eq.s32.totalorder %s24, 0
    %p265 = por %p263, %p264
    %p266 = scmp.ne.s32.totalorder %s252, %s253
    %p267 = scmp.eq.s32.totalorder %s25, 1
    %p268 = por %p266, %p267
    %p270 = scmp.ne.s32.totalorder %s253, %s269
    %p271 = scmp.eq.s32.totalorder %s25, 0
    %p272 = por %p270, %p271
    %s273 = ssub.s32 %s19, %s26
    %p274 = scmp.eq.s32.totalorder %s273, 0
    %s276 = sadd.s32 %s275, 1
    %s277 = scalar_select %p274, %s275, %s276
    %p280 = pneg %p274
    %p281 = scmp.eq.s32.totalorder %s19, 1
    %p282 = por %p280, %p281
    %p283 = scmp.ne.s32.totalorder %s275, %s278
    %p284 = scmp.eq.s32.totalorder %s19, 0
    %p285 = por %p283, %p284
    %p286 = scmp.ne.s32.totalorder %s275, %s278
    %p287 = scmp.eq.s32.totalorder %s24, 1
    %p288 = por %p286, %p287
    %p289 = scmp.ne.s32.totalorder %s278, %s279
    %p290 = scmp.eq.s32.totalorder %s24, 0
    %p291 = por %p289, %p290
    %p292 = scmp.ne.s32.totalorder %s278, %s279
    %p293 = scmp.eq.s32.totalorder %s25, 1
    %p294 = por %p292, %p293
    %p296 = scmp.ne.s32.totalorder %s279, %s295
    %p297 = scmp.eq.s32.totalorder %s25, 0
    %p298 = por %p296, %p297
    %s299 = ssub.s32 %s19, %s26
    %p300 = scmp.eq.s32.totalorder %s299, 0
    %s302 = sadd.s32 %s301, 1
    %s303 = scalar_select %p300, %s301, %s302
    %p306 = pneg %p300
    %p307 = scmp.eq.s32.totalorder %s19, 1
    %p308 = por %p306, %p307
    %p309 = scmp.ne.s32.totalorder %s301, %s304
    %p310 = scmp.eq.s32.totalorder %s19, 0
    %p311 = por %p309, %p310
    %p312 = scmp.ne.s32.totalorder %s301, %s304
    %p313 = scmp.eq.s32.totalorder %s24, 1
    %p314 = por %p312, %p313
    %p315 = scmp.ne.s32.totalorder %s304, %s305
    %p316 = scmp.eq.s32.totalorder %s24, 0
    %p317 = por %p315, %p316
    %p318 = scmp.ne.s32.totalorder %s304, %s305
    %p319 = scmp.eq.s32.totalorder %s25, 1
    %p320 = por %p318, %p319
    %p322 = scmp.ne.s32.totalorder %s305, %s321
    %p323 = scmp.eq.s32.totalorder %s25, 0
    %p324 = por %p322, %p323
    %p325 = scmp.le.s32.totalorder 1, %s19
    %p326 = scmp.lt.s32.totalorder %s19, 3
    %p327 = pnand %p325, %p326
    %p328 = pneg %p327
    // Predicated region
    $region9: #{transformer_up_forward.9} parent=5 // pred_check
      _
    $region10: #{transformer_up_forward.9} parent=5 // pred_check_branch
      %330 = sbr.rel (%p327) target = $region12
    $region11: #{transformer_up_forward.9} parent=5 // pred_region
      %s331 = ssub.s32 %s19, 1
      // Predicated region
      $region13: #{transformer_up_forward.9} parent=11 // pred_check
        %p332 = pneg %p92
      $region14: #{transformer_up_forward.9} parent=11 // pred_check_branch
        %334 = sbr.rel (%p332) target = $region16
      $region15: #{transformer_up_forward.9} parent=11 // pred_region
        _
      $region16: #{transformer_up_forward.9} parent=11 // pred_fallthru
        _
      // Predicated region
      $region17: #{transformer_up_forward.9} parent=11 // pred_check
        %p335 = pneg %p113
      $region18: #{transformer_up_forward.9} parent=11 // pred_check_branch
        %337 = sbr.rel (%p335) target = $region20
      $region19: #{transformer_up_forward.9} parent=11 // pred_region
        _
      $region20: #{transformer_up_forward.9} parent=11 // pred_fallthru
        _
      // Predicated region
      $region21: #{transformer_up_forward.9} parent=11 // pred_check
        %p338 = pneg %p134
      $region22: #{transformer_up_forward.9} parent=11 // pred_check_branch
        %340 = sbr.rel (%p338) target = $region24
      $region23: #{transformer_up_forward.9} parent=11 // pred_region
        _
      $region24: #{transformer_up_forward.9} parent=11 // pred_fallthru
        _
      // Predicated region
      $region25: #{transformer_up_forward.9} parent=11 // pred_check
        %p341 = pneg %p155
      $region26: #{transformer_up_forward.9} parent=11 // pred_check_branch
        %343 = sbr.rel (%p341) target = $region28
      $region27: #{transformer_up_forward.9} parent=11 // pred_region
        _
      $region28: #{transformer_up_forward.9} parent=11 // pred_fallthru
        _
      // Predicated region
      $region29: #{transformer_up_forward.9} parent=11 // pred_check
        %p344 = pneg %p176
      $region30: #{transformer_up_forward.9} parent=11 // pred_check_branch
        %346 = sbr.rel (%p344) target = $region32
      $region31: #{transformer_up_forward.9} parent=11 // pred_region
        _
      $region32: #{transformer_up_forward.9} parent=11 // pred_fallthru
        _
      // Predicated region
      $region33: #{transformer_up_forward.9} parent=11 // pred_check
        %p347 = pneg %p197
      $region34: #{transformer_up_forward.9} parent=11 // pred_check_branch
        %349 = sbr.rel (%p347) target = $region36
      $region35: #{transformer_up_forward.9} parent=11 // pred_region
        _
      $region36: #{transformer_up_forward.9} parent=11 // pred_fallthru
        _
      // Predicated region
      $region37: #{transformer_up_forward.9} parent=11 // pred_check
        %p350 = pneg %p218
      $region38: #{transformer_up_forward.9} parent=11 // pred_check_branch
        %352 = sbr.rel (%p350) target = $region40
      $region39: #{transformer_up_forward.9} parent=11 // pred_region
        _
      $region40: #{transformer_up_forward.9} parent=11 // pred_fallthru
        _
      // Predicated region
      $region41: #{transformer_up_forward.9} parent=11 // pred_check
        %p353 = pneg %p239
      $region42: #{transformer_up_forward.9} parent=11 // pred_check_branch
        %355 = sbr.rel (%p353) target = $region44
      $region43: #{transformer_up_forward.9} parent=11 // pred_region
        _
      $region44: #{transformer_up_forward.9} parent=11 // pred_fallthru
        _
    $region12: #{transformer_up_forward.9} parent=5 // pred_fallthru
      _
    %p356 = scmp.lt.s32.totalorder %s19, 2
    // Predicated region
    $region45: #{transformer_up_forward.9} parent=5 // pred_check
      %p357 = pneg %p356
    $region46: #{transformer_up_forward.9} parent=5 // pred_check_branch
      %359 = sbr.rel (%p357) target = $region48
    $region47: #{transformer_up_forward.9} parent=5 // pred_region
      // Predicated region
      $region49: #{transformer_up_forward.9} parent=47 // pred_check
        %p360 = pneg %p39
      $region50: #{transformer_up_forward.9} parent=47 // pred_check_branch
        %362 = sbr.rel (%p360) target = $region52
      $region51: #{transformer_up_forward.9} parent=47 // pred_region
        %p363 = scmp.lt.s32.totalorder %s19, 1
        %s364 = scalar_select %p363, %s19, 1
        %s365 = smul.addr %s364, 8
        %s366 = smul.addr %s365, 8
        %s367 = scalar_lea.vmem %s0, %s366
      $region52: #{transformer_up_forward.9} parent=47 // pred_fallthru
        _
      // Predicated region
      $region53: #{transformer_up_forward.9} parent=47 // pred_check
        %p368 = pneg %p65
      $region54: #{transformer_up_forward.9} parent=47 // pred_check_branch
        %370 = sbr.rel (%p368) target = $region56
      $region55: #{transformer_up_forward.9} parent=47 // pred_region
        %p371 = scmp.lt.s32.totalorder %s19, 1
        %s372 = scalar_select %p371, %s19, 1
        %s373 = smul.addr %s372, 8
        %s374 = smul.addr %s373, 8
        %s375 = scalar_lea.vmem %s1, %s374
      $region56: #{transformer_up_forward.9} parent=47 // pred_fallthru
        _
    $region48: #{transformer_up_forward.9} parent=5 // pred_fallthru
      _
    %p376 = scmp.le.s32.totalorder 1, %s19
    %p377 = scmp.lt.s32.totalorder %s19, 3
    %p378 = pnand %p376, %p377
    %p379 = pneg %p378
    // Predicated region
    $region57: #{transformer_up_forward.9} parent=5 // pred_check
      _
    $region58: #{transformer_up_forward.9} parent=5 // pred_check_branch
      %381 = sbr.rel (%p378) target = $region60
    $region59: #{transformer_up_forward.9} parent=5 // pred_region
      %s382 = ssub.s32 %s19, 1
      %p383 = scmp.lt.s32.totalorder %s24, 1
      %s384 = scalar_select %p383, %s24, 1
      %s385 = smul.addr %s384, 8
      %s386 = smul.addr %s385, 8
      %s387 = scalar_lea.vmem %s0, %s386
      %p388 = pneg %p45
      %p389 = pneg %p42
      %p390 = scmp.lt.s32.totalorder %s24, 1
      %s391 = scalar_select %p390, %s24, 1
      %s392 = smul.addr %s391, 8
      %s393 = smul.addr %s392, 8
      %s394 = scalar_lea.vmem %s1, %s393
      %p395 = pneg %p71
      %p396 = pneg %p68
      %p397 = pneg %p92
      %p398 = pneg %p89
      %p399 = pneg %p113
      %p400 = pneg %p110
      %p401 = pneg %p134
      %p402 = pneg %p131
      %p403 = pneg %p155
      %p404 = pneg %p152
      %p405 = pneg %p176
      %p406 = pneg %p173
      %p407 = pneg %p197
      %p408 = pneg %p194
      %p409 = pneg %p218
      %p410 = pneg %p215
      %p411 = pneg %p239
      %p412 = pneg %p236
      %p413 = pneg %p265
      %p414 = pneg %p262
      %p415 = scmp.lt.s32.totalorder %s24, 1
      %s416 = scalar_select %p415, %s24, 1
      %s417 = smul.addr %s416, 8
      %s418 = smul.addr %s417, 8
      %s419 = scalar_lea.vmem %s10, %s418
      %p420 = pneg %p291
      %p421 = pneg %p288
      %p422 = scmp.lt.s32.totalorder %s24, 1
      %s423 = scalar_select %p422, %s24, 1
      %s424 = scalar_lea.vmem %s11, %s423
      %p425 = pneg %p317
      %p426 = pneg %p314
      %p427 = scmp.lt.s32.totalorder %s24, 1
      %s428 = scalar_select %p427, %s24, 1
      %s429 = scalar_lea.vmem %s12, %s428
      %p430 = scmp.lt.s32.totalorder %s24, 1
      %s431 = scalar_select %p430, %s24, 1
      %s432 = smul.addr %s431, 8
      %s433 = smul.addr %s432, 8
      %s434 = scalar_lea.vmem %s0, %s433
      %p435 = scmp.lt.s32.totalorder %s24, 1
      %s436 = scalar_select %p435, %s24, 1
      %s437 = smul.addr %s436, 8
      %s438 = smul.addr %s437, 8
      %s439 = scalar_lea.vmem %s1, %s438
      %p440 = scmp.lt.s32.totalorder %s24, 1
      %s441 = scalar_select %p440, %s24, 1
      %s442 = smul.addr %s441, 8
      %s443 = smul.addr %s442, 8
      %s444 = scalar_lea.vmem %s10, %s443
      %p445 = scmp.lt.s32.totalorder %s24, 1
      %s446 = scalar_select %p445, %s24, 1
      %s447 = scalar_lea.vmem %s11, %s446
      %p448 = scmp.lt.s32.totalorder %s24, 1
      %s449 = scalar_select %p448, %s24, 1
      %s450 = scalar_lea.vmem %s12, %s449
      %v452 = vld [vmem:[%s434] sm:$0xff]
      %v453 = vld [vmem:[%s434 + $0x8] sm:$0xff]
      %v454 = vld [vmem:[%s434 + $0x10] sm:$0xff]
      %v455 = vld [vmem:[%s434 + $0x18] sm:$0xff]
      %v456 = vld [vmem:[%s434 + $0x20] sm:$0xff]
      %v457 = vld [vmem:[%s434 + $0x28] sm:$0xff]
      %v458 = vld [vmem:[%s434 + $0x30] sm:$0xff]
      %v459 = vld [vmem:[%s434 + $0x38] sm:$0xff]
      %v460 = vld [vmem:[%s2] sm:$0x1]
      %v462 = vlaneseq
      %v463 = vshrl.u32 %v462, 7
      %v464 = vsub.s32 0, %v463
      %v465 = vrot.slane %v460, %v464
      %v467 = vmul.f32 %v452, %v465
      %v468 = vmul.f32 %v453, %v465
      %v469 = vmul.f32 %v454, %v465
      %v470 = vmul.f32 %v455, %v465
      %v471 = vmul.f32 %v456, %v465
      %v472 = vmul.f32 %v457, %v465
      %v473 = vmul.f32 %v458, %v465
      %v474 = vmul.f32 %v459, %v465
      %v475 = vld [vmem:[%s3] sm:$0x1]
      %v477 = vlaneseq
      %v478 = vshrl.u32 %v477, 7
      %v479 = vsub.s32 0, %v478
      %v480 = vrot.slane %v475, %v479
      %v482 = vadd.f32 %v467, %v480
      %v483 = vadd.f32 %v468, %v480
      %v484 = vadd.f32 %v469, %v480
      %v485 = vadd.f32 %v470, %v480
      %v486 = vadd.f32 %v471, %v480
      %v487 = vadd.f32 %v472, %v480
      %v488 = vadd.f32 %v473, %v480
      %v489 = vadd.f32 %v474, %v480
      %v490 = vmax.f32 %v482, 0.0
      %v491 = vmax.f32 %v483, 0.0
      %v492 = vmax.f32 %v484, 0.0
      %v493 = vmax.f32 %v485, 0.0
      %v494 = vmax.f32 %v486, 0.0
      %v495 = vmax.f32 %v487, 0.0
      %v496 = vmax.f32 %v488, 0.0
      %v497 = vmax.f32 %v489, 0.0
      %v498 = vld [vmem:[%s439] sm:$0xff]
      %v499 = vld [vmem:[%s439 + $0x8] sm:$0xff]
      %v500 = vld [vmem:[%s439 + $0x10] sm:$0xff]
      %v501 = vld [vmem:[%s439 + $0x18] sm:$0xff]
      %v502 = vld [vmem:[%s439 + $0x20] sm:$0xff]
      %v503 = vld [vmem:[%s439 + $0x28] sm:$0xff]
      %v504 = vld [vmem:[%s439 + $0x30] sm:$0xff]
      %v505 = vld [vmem:[%s439 + $0x38] sm:$0xff]
      %v506 = vld [vmem:[%s4] sm:$0x1]
      %v508 = vlaneseq
      %v509 = vshrl.u32 %v508, 7
      %v510 = vsub.s32 0, %v509
      %v511 = vrot.slane %v506, %v510
      %v513 = vmul.f32 %v498, %v511
      %v514 = vmul.f32 %v499, %v511
      %v515 = vmul.f32 %v500, %v511
      %v516 = vmul.f32 %v501, %v511
      %v517 = vmul.f32 %v502, %v511
      %v518 = vmul.f32 %v503, %v511
      %v519 = vmul.f32 %v504, %v511
      %v520 = vmul.f32 %v505, %v511
      %v521 = vld [vmem:[%s5] sm:$0x1]
      %v523 = vlaneseq
      %v524 = vshrl.u32 %v523, 7
      %v525 = vsub.s32 0, %v524
      %v526 = vrot.slane %v521, %v525
      %v528 = vadd.f32 %v513, %v526
      %v529 = vadd.f32 %v514, %v526
      %v530 = vadd.f32 %v515, %v526
      %v531 = vadd.f32 %v516, %v526
      %v532 = vadd.f32 %v517, %v526
      %v533 = vadd.f32 %v518, %v526
      %v534 = vadd.f32 %v519, %v526
      %v535 = vadd.f32 %v520, %v526
      %v536 = vmax.f32 %v528, 0.0
      %v537 = vmax.f32 %v529, 0.0
      %v538 = vmax.f32 %v530, 0.0
      %v539 = vmax.f32 %v531, 0.0
      %v540 = vmax.f32 %v532, 0.0
      %v541 = vmax.f32 %v533, 0.0
      %v542 = vmax.f32 %v534, 0.0
      %v543 = vmax.f32 %v535, 0.0
      %v544 = vpack.c.bf16 %v491, %v490
      %v545 = vpack.c.bf16 %v493, %v492
      %v546 = vpack.c.bf16 %v495, %v494
      %v547 = vpack.c.bf16 %v497, %v496
      %v548 = vld [vmem:[%s6] sm:$0x3]
      %vm549 = vcmask 31744
      %v551 = vsel %vm549, %v544, 0
      %v554 = vsel %vm549, %v545, 0
      %v557 = vsel %vm549, %v546, 0
      %v560 = vsel %vm549, %v547, 0
      %vm562 = vcmask 1041408
      %v564 = vsel %vm562, %v548, 0
      %566 = vmatprep.subr.bf16.mxu0 0
      %567 = vmatpush1.bf16.msra.mxu0 0
      %568 = vmatprep.subr.bf16.mxu0 0
      %569 = vmatpush1.bf16.msra.mxu0 0
      %570 = vmatprep.subr.bf16.mxu0 0
      %571 = vmatpush1.bf16.msra.mxu0 0
      %572 = vmatprep.subr.bf16.mxu0 0
      %573 = vmatpush1.bf16.msra.mxu0 0
      %574 = vmatprep.subr.bf16.mxu0 0
      %575 = vmatpush1.bf16.msra.mxu0 0
      %576 = vmatprep.subr.bf16.mxu0 0
      %577 = vmatpush1.bf16.msra.mxu0 0
      %578 = vmatprep.subr.bf16.mxu0 0
      %579 = vmatpush1.bf16.msra.mxu0 0
      %580 = vmatprep.subr.bf16.mxu0 0
      %581 = vmatpush1.bf16.msra.mxu0 %v564
      %582 = vmatprep.subr.bf16.mxu0 0
      %583 = vmatpush2.bf16.msra.mxu0 0
      %584 = vmatprep.subr.bf16.mxu0 0
      %585 = vmatpush2.bf16.msra.mxu0 0
      %586 = vmatprep.subr.bf16.mxu0 0
      %587 = vmatpush2.bf16.msra.mxu0 0
      %588 = vmatprep.subr.bf16.mxu0 0
      %589 = vmatpush2.bf16.msra.mxu0 0
      %590 = vmatprep.subr.bf16.mxu0 0
      %591 = vmatpush2.bf16.msra.mxu0 0
      %592 = vmatprep.subr.bf16.mxu0 0
      %593 = vmatpush2.bf16.msra.mxu0 0
      %594 = vmatprep.subr.bf16.mxu0 0
      %595 = vmatpush2.bf16.msra.mxu0 0
      %596 = vmatprep.subr.bf16.mxu0 0
      %597 = vmatpush2.bf16.msra.mxu0 0
      %598 = vmatprep.mubr.bf16.mxu0 0
      %599 = vmatmul.mubr.bf16.gmra.mxu0 %v551
      %v600 = vpop.f32.mrf.mxu0
      %v601 = vadd.f32 0.0, %v600
      %v602 = vpop.f32.mrf.mxu0
      %v603 = vpop.f32.mrf.mxu0
      %v604 = vadd.f32 0.0, %v603
      %v605 = vpop.f32.mrf.mxu0
      %606 = vmatprep.mubr.bf16.mxu0 0
      %607 = vmatmul.mubr.bf16.gmra.mxu0 %v554
      %v608 = vpop.f32.mrf.mxu0
      %v609 = vadd.f32 0.0, %v608
      %v610 = vpop.f32.mrf.mxu0
      %v611 = vpop.f32.mrf.mxu0
      %v612 = vadd.f32 0.0, %v611
      %v613 = vpop.f32.mrf.mxu0
      %614 = vmatprep.mubr.bf16.mxu0 0
      %615 = vmatmul.mubr.bf16.gmra.mxu0 %v557
      %v616 = vpop.f32.mrf.mxu0
      %v617 = vadd.f32 0.0, %v616
      %v618 = vpop.f32.mrf.mxu0
      %v619 = vpop.f32.mrf.mxu0
      %v620 = vadd.f32 0.0, %v619
      %v621 = vpop.f32.mrf.mxu0
      %622 = vmatprep.mubr.bf16.mxu0 0
      %623 = vmatmul.mubr.bf16.gmra.mxu0 %v560
      %v624 = vpop.f32.mrf.mxu0
      %v625 = vadd.f32 0.0, %v624
      %v626 = vpop.f32.mrf.mxu0
      %v627 = vpop.f32.mrf.mxu0
      %v628 = vadd.f32 0.0, %v627
      %v629 = vpop.f32.mrf.mxu0
      %630 = vdwg.mxu0
      %v631 = vpack.c.bf16 %v537, %v536
      %v632 = vpack.c.bf16 %v539, %v538
      %v633 = vpack.c.bf16 %v541, %v540
      %v634 = vpack.c.bf16 %v543, %v542
      %v635 = vld [vmem:[%s7] sm:$0x3]
      %v637 = vsel %vm549, %v631, 0
      %v640 = vsel %vm549, %v632, 0
      %v643 = vsel %vm549, %v633, 0
      %v646 = vsel %vm549, %v634, 0
      %v649 = vsel %vm562, %v635, 0
      %651 = vmatprep.subr.bf16.mxu0 0
      %652 = vmatpush1.bf16.msra.mxu0 0
      %653 = vmatprep.subr.bf16.mxu0 0
      %654 = vmatpush1.bf16.msra.mxu0 0
      %655 = vmatprep.subr.bf16.mxu0 0
      %656 = vmatpush1.bf16.msra.mxu0 0
      %657 = vmatprep.subr.bf16.mxu0 0
      %658 = vmatpush1.bf16.msra.mxu0 0
      %659 = vmatprep.subr.bf16.mxu0 0
      %660 = vmatpush1.bf16.msra.mxu0 0
      %661 = vmatprep.subr.bf16.mxu0 0
      %662 = vmatpush1.bf16.msra.mxu0 0
      %663 = vmatprep.subr.bf16.mxu0 0
      %664 = vmatpush1.bf16.msra.mxu0 0
      %665 = vmatprep.subr.bf16.mxu0 0
      %666 = vmatpush1.bf16.msra.mxu0 %v649
      %667 = vmatprep.subr.bf16.mxu0 0
      %668 = vmatpush2.bf16.msra.mxu0 0
      %669 = vmatprep.subr.bf16.mxu0 0
      %670 = vmatpush2.bf16.msra.mxu0 0
      %671 = vmatprep.subr.bf16.mxu0 0
      %672 = vmatpush2.bf16.msra.mxu0 0
      %673 = vmatprep.subr.bf16.mxu0 0
      %674 = vmatpush2.bf16.msra.mxu0 0
      %675 = vmatprep.subr.bf16.mxu0 0
      %676 = vmatpush2.bf16.msra.mxu0 0
      %677 = vmatprep.subr.bf16.mxu0 0
      %678 = vmatpush2.bf16.msra.mxu0 0
      %679 = vmatprep.subr.bf16.mxu0 0
      %680 = vmatpush2.bf16.msra.mxu0 0
      %681 = vmatprep.subr.bf16.mxu0 0
      %682 = vmatpush2.bf16.msra.mxu0 0
      %683 = vmatprep.mubr.bf16.mxu0 0
      %684 = vmatmul.mubr.bf16.gmra.mxu0 %v637
      %v685 = vpop.f32.mrf.mxu0
      %v686 = vadd.f32 0.0, %v685
      %v687 = vpop.f32.mrf.mxu0
      %v688 = vpop.f32.mrf.mxu0
      %v689 = vadd.f32 0.0, %v688
      %v690 = vpop.f32.mrf.mxu0
      %691 = vmatprep.mubr.bf16.mxu0 0
      %692 = vmatmul.mubr.bf16.gmra.mxu0 %v640
      %v693 = vpop.f32.mrf.mxu0
      %v694 = vadd.f32 0.0, %v693
      %v695 = vpop.f32.mrf.mxu0
      %v696 = vpop.f32.mrf.mxu0
      %v697 = vadd.f32 0.0, %v696
      %v698 = vpop.f32.mrf.mxu0
      %699 = vmatprep.mubr.bf16.mxu0 0
      %700 = vmatmul.mubr.bf16.gmra.mxu0 %v643
      %v701 = vpop.f32.mrf.mxu0
      %v702 = vadd.f32 0.0, %v701
      %v703 = vpop.f32.mrf.mxu0
      %v704 = vpop.f32.mrf.mxu0
      %v705 = vadd.f32 0.0, %v704
      %v706 = vpop.f32.mrf.mxu0
      %707 = vmatprep.mubr.bf16.mxu0 0
      %708 = vmatmul.mubr.bf16.gmra.mxu0 %v646
      %v709 = vpop.f32.mrf.mxu0
      %v710 = vadd.f32 0.0, %v709
      %v711 = vpop.f32.mrf.mxu0
      %v712 = vpop.f32.mrf.mxu0
      %v713 = vadd.f32 0.0, %v712
      %v714 = vpop.f32.mrf.mxu0
      %715 = vdwg.mxu0
      %v716 = vpack.c.bf16 %v604, %v601
      %v717 = vpack.c.bf16 %v612, %v609
      %v718 = vpack.c.bf16 %v620, %v617
      %v719 = vpack.c.bf16 %v628, %v625
      %724 = vrot.lane.b32.xlu0 %v716, 124
      %v725 = vpop.permute.xlu0 %724
      %726 = vrot.lane.b32.xlu0 %v717, 124
      %v727 = vpop.permute.xlu0 %726
      %728 = vrot.lane.b32.xlu0 %v718, 124
      %v729 = vpop.permute.xlu0 %728
      %730 = vrot.lane.b32.xlu0 %v719, 124
      %v731 = vpop.permute.xlu0 %730
      %v733 = vsel %vm549, %v716, 0
      %v736 = vsel %vm549, %v717, 0
      %v739 = vsel %vm549, %v718, 0
      %v742 = vsel %vm549, %v719, 0
      %v745 = vsel %vm549, %v725, 0
      %v748 = vsel %vm549, %v727, 0
      %v751 = vsel %vm549, %v729, 0
      %v754 = vsel %vm549, %v731, 0
      %756 = vmatprep.subr.bf16.mxu0 0
      %757 = vmatpush1.bf16.xpose.msra.mxu0 0
      %758 = vmatprep.subr.bf16.mxu0 0
      %759 = vmatpush1.bf16.xpose.msra.mxu0 0
      %760 = vmatprep.subr.bf16.mxu0 0
      %761 = vmatpush1.bf16.xpose.msra.mxu0 0
      %762 = vmatprep.subr.bf16.mxu0 0
      %763 = vmatpush1.bf16.xpose.msra.mxu0 0
      %764 = vmatprep.subr.bf16.mxu0 0
      %765 = vmatpush1.bf16.xpose.msra.mxu0 %v754
      %766 = vmatprep.subr.bf16.mxu0 0
      %767 = vmatpush1.bf16.xpose.msra.mxu0 %v751
      %768 = vmatprep.subr.bf16.mxu0 0
      %769 = vmatpush1.bf16.xpose.msra.mxu0 %v748
      %770 = vmatprep.subr.bf16.mxu0 0
      %771 = vmatpush1.bf16.xpose.msra.mxu0 %v745
      %772 = vmatprep.subr.bf16.mxu0 0
      %773 = vmatpush2.bf16.xpose.msra.mxu0 0
      %774 = vmatprep.subr.bf16.mxu0 0
      %775 = vmatpush2.bf16.xpose.msra.mxu0 0
      %776 = vmatprep.subr.bf16.mxu0 0
      %777 = vmatpush2.bf16.xpose.msra.mxu0 0
      %778 = vmatprep.subr.bf16.mxu0 0
      %779 = vmatpush2.bf16.xpose.msra.mxu0 0
      %780 = vmatprep.subr.bf16.mxu0 0
      %781 = vmatpush2.bf16.xpose.msra.mxu0 0
      %782 = vmatprep.subr.bf16.mxu0 0
      %783 = vmatpush2.bf16.xpose.msra.mxu0 0
      %784 = vmatprep.subr.bf16.mxu0 0
      %785 = vmatpush2.bf16.xpose.msra.mxu0 0
      %786 = vmatprep.subr.bf16.mxu0 0
      %787 = vmatpush2.bf16.xpose.msra.mxu0 0
      %788 = vmatprep.mubr.bf16.mxu0 0
      %789 = vmatmul.mubr.bf16.gmra.mxu0 %v733
      %v790 = vpop.f32.mrf.mxu0
      %v791 = vadd.f32 0.0, %v790
      %v792 = vpop.f32.mrf.mxu0
      %v793 = vpop.f32.mrf.mxu0
      %v794 = vadd.f32 0.0, %v793
      %v795 = vpop.f32.mrf.mxu0
      %796 = vmatprep.mubr.bf16.mxu0 0
      %797 = vmatmul.mubr.bf16.gmra.mxu0 %v736
      %v798 = vpop.f32.mrf.mxu0
      %v799 = vadd.f32 0.0, %v798
      %v800 = vpop.f32.mrf.mxu0
      %v801 = vpop.f32.mrf.mxu0
      %v802 = vadd.f32 0.0, %v801
      %v803 = vpop.f32.mrf.mxu0
      %804 = vmatprep.mubr.bf16.mxu0 0
      %805 = vmatmul.mubr.bf16.gmra.mxu0 %v739
      %v806 = vpop.f32.mrf.mxu0
      %v807 = vadd.f32 0.0, %v806
      %v808 = vpop.f32.mrf.mxu0
      %v809 = vpop.f32.mrf.mxu0
      %v810 = vadd.f32 0.0, %v809
      %v811 = vpop.f32.mrf.mxu0
      %812 = vmatprep.mubr.bf16.mxu0 0
      %813 = vmatmul.mubr.bf16.gmra.mxu0 %v742
      %v814 = vpop.f32.mrf.mxu0
      %v815 = vadd.f32 0.0, %v814
      %v816 = vpop.f32.mrf.mxu0
      %v817 = vpop.f32.mrf.mxu0
      %v818 = vadd.f32 0.0, %v817
      %v819 = vpop.f32.mrf.mxu0
      %820 = vdwg.mxu0
      %v821 = vmul.f32 %v791, 0.5
      %v822 = vmul.f32 %v794, 0.5
      %v823 = vmul.f32 %v799, 0.5
      %v824 = vmul.f32 %v802, 0.5
      %v825 = vmul.f32 %v807, 0.5
      %v826 = vmul.f32 %v810, 0.5
      %v827 = vmul.f32 %v815, 0.5
      %v828 = vmul.f32 %v818, 0.5
      %vm829 = vcmask 523264
      %v830 = vsel %vm829, %v821, -inf
      %v831 = vsel %vm829, %v822, -inf
      %v832 = vsel %vm829, %v823, -inf
      %v833 = vsel %vm829, %v824, -inf
      %v834 = vsel %vm829, %v825, -inf
      %v835 = vmax.f32 %v830, %v834
      %v836 = vsel %vm829, %v826, -inf
      %v837 = vmax.f32 %v831, %v836
      %v838 = vsel %vm829, %v827, -inf
      %v839 = vmax.f32 %v832, %v838
      %v840 = vsel %vm829, %v828, -inf
      %v841 = vmax.f32 %v833, %v840
      %v842 = vmax.f32 %v835, %v837
      %v843 = vmax.f32 %v839, %v841
      %v844 = vmax.f32 %v842, %v843
      %v845 = vrot.slane %v844, 4
      %v846 = vmax.f32 %v844, %v845
      %v847 = vrot.slane %v846, 2
      %v848 = vmax.f32 %v846, %v847
      %v849 = vrot.slane %v848, 1
      %v850 = vmax.f32 %v848, %v849
      %v851 = vsub.f32 %v821, %v850
      %v852 = vsub.f32 %v822, %v850
      %v853 = vsub.f32 %v823, %v850
      %v854 = vsub.f32 %v824, %v850
      %v855 = vsub.f32 %v825, %v850
      %v856 = vsub.f32 %v826, %v850
      %v857 = vsub.f32 %v827, %v850
      %v858 = vsub.f32 %v828, %v850
      %v859 = vmul.f32 %v851, 1.442695
      %v860 = vpow.pop %v859
      %v861 = vmul.f32 %v852, 1.442695
      %v862 = vpow.pop %v861
      %v863 = vmul.f32 %v853, 1.442695
      %v864 = vpow.pop %v863
      %v865 = vmul.f32 %v854, 1.442695
      %v866 = vpow.pop %v865
      %v867 = vmul.f32 %v855, 1.442695
      %v868 = vpow.pop %v867
      %v869 = vmul.f32 %v856, 1.442695
      %v870 = vpow.pop %v869
      %v871 = vmul.f32 %v857, 1.442695
      %v872 = vpow.pop %v871
      %v873 = vmul.f32 %v858, 1.442695
      %v874 = vpow.pop %v873
      %v875 = vsel %vm829, %v860, 0.0
      %v876 = vsel %vm829, %v862, 0.0
      %v877 = vadd.f32 %v875, %v876
      %v878 = vsel %vm829, %v864, 0.0
      %v879 = vadd.f32 %v877, %v878
      %v880 = vsel %vm829, %v866, 0.0
      %v881 = vadd.f32 %v879, %v880
      %v882 = vsel %vm829, %v868, 0.0
      %v883 = vadd.f32 %v881, %v882
      %v884 = vsel %vm829, %v870, 0.0
      %v885 = vadd.f32 %v883, %v884
      %v886 = vsel %vm829, %v872, 0.0
      %v887 = vadd.f32 %v885, %v886
      %v888 = vsel %vm829, %v874, 0.0
      %v889 = vadd.f32 %v887, %v888
      %v890 = vrot.slane %v889, 4
      %v891 = vadd.f32 %v889, %v890
      %v892 = vrot.slane %v891, 2
      %v893 = vadd.f32 %v891, %v892
      %v894 = vrot.slane %v893, 1
      %v895 = vadd.f32 %v893, %v894
      %v896 = vrcp.pop %v895
      %v897 = vmul.f32 %v860, %v896
      %v898 = vmul.f32 %v862, %v896
      %v899 = vmul.f32 %v864, %v896
      %v900 = vmul.f32 %v866, %v896
      %v901 = vmul.f32 %v868, %v896
      %v902 = vmul.f32 %v870, %v896
      %v903 = vmul.f32 %v872, %v896
      %v904 = vmul.f32 %v874, %v896
      %v905 = vpack.c.bf16 %v898, %v897
      %v906 = vpack.c.bf16 %v900, %v899
      %v907 = vpack.c.bf16 %v902, %v901
      %v908 = vpack.c.bf16 %v904, %v903
      %v909 = vpack.c.bf16 %v689, %v686
      %v910 = vpack.c.bf16 %v697, %v694
      %v911 = vpack.c.bf16 %v705, %v702
      %v912 = vpack.c.bf16 %v713, %v710
      %v914 = vsel %vm829, %v905, 0
      %v917 = vsel %vm829, %v906, 0
      %v920 = vsel %vm829, %v907, 0
      %v923 = vsel %vm829, %v908, 0
      %925 = vmatprep.subr.bf16.mxu0 0
      %926 = vmatpush1.bf16.msra.mxu0 0
      %927 = vmatprep.subr.bf16.mxu0 0
      %928 = vmatpush1.bf16.msra.mxu0 0
      %929 = vmatprep.subr.bf16.mxu0 0
      %930 = vmatpush1.bf16.msra.mxu0 0
      %931 = vmatprep.subr.bf16.mxu0 0
      %932 = vmatpush1.bf16.msra.mxu0 0
      %933 = vmatprep.subr.bf16.mxu0 0
      %934 = vmatpush1.bf16.msra.mxu0 %v912
      %935 = vmatprep.subr.bf16.mxu0 0
      %936 = vmatpush1.bf16.msra.mxu0 %v911
      %937 = vmatprep.subr.bf16.mxu0 0
      %938 = vmatpush1.bf16.msra.mxu0 %v910
      %939 = vmatprep.subr.bf16.mxu0 0
      %940 = vmatpush1.bf16.msra.mxu0 %v909
      %941 = vmatprep.subr.bf16.mxu0 0
      %942 = vmatpush2.bf16.msra.mxu0 0
      %943 = vmatprep.subr.bf16.mxu0 0
      %944 = vmatpush2.bf16.msra.mxu0 0
      %945 = vmatprep.subr.bf16.mxu0 0
      %946 = vmatpush2.bf16.msra.mxu0 0
      %947 = vmatprep.subr.bf16.mxu0 0
      %948 = vmatpush2.bf16.msra.mxu0 0
      %949 = vmatprep.subr.bf16.mxu0 0
      %950 = vmatpush2.bf16.msra.mxu0 0
      %951 = vmatprep.subr.bf16.mxu0 0
      %952 = vmatpush2.bf16.msra.mxu0 0
      %953 = vmatprep.subr.bf16.mxu0 0
      %954 = vmatpush2.bf16.msra.mxu0 0
      %955 = vmatprep.subr.bf16.mxu0 0
      %956 = vmatpush2.bf16.msra.mxu0 0
      %957 = vmatprep.mubr.bf16.mxu0 0
      %958 = vmatmul.mubr.bf16.gmra.mxu0 %v914
      %v959 = vpop.f32.mrf.mxu0
      %v960 = vadd.f32 0.0, %v959
      %v961 = vpop.f32.mrf.mxu0
      %v962 = vpop.f32.mrf.mxu0
      %v963 = vadd.f32 0.0, %v962
      %v964 = vpop.f32.mrf.mxu0
      %965 = vmatprep.mubr.bf16.mxu0 0
      %966 = vmatmul.mubr.bf16.gmra.mxu0 %v917
      %v967 = vpop.f32.mrf.mxu0
      %v968 = vadd.f32 0.0, %v967
      %v969 = vpop.f32.mrf.mxu0
      %v970 = vpop.f32.mrf.mxu0
      %v971 = vadd.f32 0.0, %v970
      %v972 = vpop.f32.mrf.mxu0
      %973 = vmatprep.mubr.bf16.mxu0 0
      %974 = vmatmul.mubr.bf16.gmra.mxu0 %v920
      %v975 = vpop.f32.mrf.mxu0
      %v976 = vadd.f32 0.0, %v975
      %v977 = vpop.f32.mrf.mxu0
      %v978 = vpop.f32.mrf.mxu0
      %v979 = vadd.f32 0.0, %v978
      %v980 = vpop.f32.mrf.mxu0
      %981 = vmatprep.mubr.bf16.mxu0 0
      %982 = vmatmul.mubr.bf16.gmra.mxu0 %v923
      %v983 = vpop.f32.mrf.mxu0
      %v984 = vadd.f32 0.0, %v983
      %v985 = vpop.f32.mrf.mxu0
      %v986 = vpop.f32.mrf.mxu0
      %v987 = vadd.f32 0.0, %v986
      %v988 = vpop.f32.mrf.mxu0
      %989 = vdwg.mxu0
      %v990 = vpack.c.bf16 %v963, %v960
      %v991 = vpack.c.bf16 %v971, %v968
      %v992 = vpack.c.bf16 %v979, %v976
      %v993 = vpack.c.bf16 %v987, %v984
      %v994 = vld [vmem:[%s8] sm:$0x3]
      %v995 = vld [vmem:[%s9] sm:$0x1]
      %v997 = vlaneseq
      %v998 = vshrl.u32 %v997, 7
      %v999 = vsub.s32 0, %v998
      %v1000 = vrot.slane %v995, %v999
      %v1003 = vsel %vm549, %v990, 0
      %v1006 = vsel %vm549, %v991, 0
      %v1009 = vsel %vm549, %v992, 0
      %v1012 = vsel %vm549, %v993, 0
      %v1015 = vsel %vm562, %v994, 0
      %1017 = vmatprep.subr.bf16.mxu0 0
      %1018 = vmatpush1.bf16.msra.mxu0 0
      %1019 = vmatprep.subr.bf16.mxu0 0
      %1020 = vmatpush1.bf16.msra.mxu0 0
      %1021 = vmatprep.subr.bf16.mxu0 0
      %1022 = vmatpush1.bf16.msra.mxu0 0
      %1023 = vmatprep.subr.bf16.mxu0 0
      %1024 = vmatpush1.bf16.msra.mxu0 0
      %1025 = vmatprep.subr.bf16.mxu0 0
      %1026 = vmatpush1.bf16.msra.mxu0 0
      %1027 = vmatprep.subr.bf16.mxu0 0
      %1028 = vmatpush1.bf16.msra.mxu0 0
      %1029 = vmatprep.subr.bf16.mxu0 0
      %1030 = vmatpush1.bf16.msra.mxu0 0
      %1031 = vmatprep.subr.bf16.mxu0 0
      %1032 = vmatpush1.bf16.msra.mxu0 %v1015
      %1033 = vmatprep.subr.bf16.mxu0 0
      %1034 = vmatpush2.bf16.msra.mxu0 0
      %1035 = vmatprep.subr.bf16.mxu0 0
      %1036 = vmatpush2.bf16.msra.mxu0 0
      %1037 = vmatprep.subr.bf16.mxu0 0
      %1038 = vmatpush2.bf16.msra.mxu0 0
      %1039 = vmatprep.subr.bf16.mxu0 0
      %1040 = vmatpush2.bf16.msra.mxu0 0
      %1041 = vmatprep.subr.bf16.mxu0 0
      %1042 = vmatpush2.bf16.msra.mxu0 0
      %1043 = vmatprep.subr.bf16.mxu0 0
      %1044 = vmatpush2.bf16.msra.mxu0 0
      %1045 = vmatprep.subr.bf16.mxu0 0
      %1046 = vmatpush2.bf16.msra.mxu0 0
      %1047 = vmatprep.subr.bf16.mxu0 0
      %1048 = vmatpush2.bf16.msra.mxu0 0
      %1049 = vmatprep.mubr.bf16.mxu0 0
      %1050 = vmatmul.mubr.bf16.gmra.mxu0 %v1003
      %v1051 = vpop.f32.mrf.mxu0
      %v1052 = vadd.f32 %v1000, %v1051
      %v1053 = vpop.f32.mrf.mxu0
      %v1054 = vpop.f32.mrf.mxu0
      %v1055 = vadd.f32 %v1000, %v1054
      %v1056 = vpop.f32.mrf.mxu0
      %1057 = vmatprep.mubr.bf16.mxu0 0
      %1058 = vmatmul.mubr.bf16.gmra.mxu0 %v1006
      %v1059 = vpop.f32.mrf.mxu0
      %v1060 = vadd.f32 %v1000, %v1059
      %v1061 = vpop.f32.mrf.mxu0
      %v1062 = vpop.f32.mrf.mxu0
      %v1063 = vadd.f32 %v1000, %v1062
      %v1064 = vpop.f32.mrf.mxu0
      %1065 = vmatprep.mubr.bf16.mxu0 0
      %1066 = vmatmul.mubr.bf16.gmra.mxu0 %v1009
      %v1067 = vpop.f32.mrf.mxu0
      %v1068 = vadd.f32 %v1000, %v1067
      %v1069 = vpop.f32.mrf.mxu0
      %v1070 = vpop.f32.mrf.mxu0
      %v1071 = vadd.f32 %v1000, %v1070
      %v1072 = vpop.f32.mrf.mxu0
      %1073 = vmatprep.mubr.bf16.mxu0 0
      %1074 = vmatmul.mubr.bf16.gmra.mxu0 %v1012
      %v1075 = vpop.f32.mrf.mxu0
      %v1076 = vadd.f32 %v1000, %v1075
      %v1077 = vpop.f32.mrf.mxu0
      %v1078 = vpop.f32.mrf.mxu0
      %v1079 = vadd.f32 %v1000, %v1078
      %v1080 = vpop.f32.mrf.mxu0
      %1081 = vdwg.mxu0
      %1082 = vst.msk [vmem:[%s444] sm:$0xff] %vm549, %v1052
      %1083 = vst.msk [vmem:[%s444 + $0x8] sm:$0xff] %vm549, %v1055
      %1084 = vst.msk [vmem:[%s444 + $0x10] sm:$0xff] %vm549, %v1060
      %1085 = vst.msk [vmem:[%s444 + $0x18] sm:$0xff] %vm549, %v1063
      %1086 = vst.msk [vmem:[%s444 + $0x20] sm:$0xff] %vm549, %v1068
      %1087 = vst.msk [vmem:[%s444 + $0x28] sm:$0xff] %vm549, %v1071
      %1088 = vst.msk [vmem:[%s444 + $0x30] sm:$0xff] %vm549, %v1076
      %1089 = vst.msk [vmem:[%s444 + $0x38] sm:$0xff] %vm549, %v1079
      %v1090 = vsel %vm549, %v1052, 0.0
      %v1091 = vsel %vm549, %v1055, 0.0
      %v1092 = vadd.f32 %v1090, %v1091
      %v1093 = vsel %vm549, %v1060, 0.0
      %v1094 = vadd.f32 %v1092, %v1093
      %v1095 = vsel %vm549, %v1063, 0.0
      %v1096 = vadd.f32 %v1094, %v1095
      %v1097 = vsel %vm549, %v1068, 0.0
      %v1098 = vadd.f32 %v1096, %v1097
      %v1099 = vsel %vm549, %v1071, 0.0
      %v1100 = vadd.f32 %v1098, %v1099
      %v1101 = vsel %vm549, %v1076, 0.0
      %v1102 = vadd.f32 %v1100, %v1101
      %v1103 = vsel %vm549, %v1079, 0.0
      %v1104 = vadd.f32 %v1102, %v1103
      %v1105 = vrot.slane %v1104, 4
      %v1106 = vadd.f32 %v1104, %v1105
      %v1107 = vrot.slane %v1106, 2
      %v1108 = vadd.f32 %v1106, %v1107
      %v1109 = vrot.slane %v1108, 1
      %v1110 = vadd.f32 %v1108, %v1109
      %vm1111 = vcmask 24576
      %1112 = vst.msk [vmem:[%s447] sm:$0x1] %vm1111, %v1110
      %v1113 = vmul.f32 %v1052, %v1052
      %v1114 = vmul.f32 %v1055, %v1055
      %v1115 = vmul.f32 %v1060, %v1060
      %v1116 = vmul.f32 %v1063, %v1063
      %v1117 = vmul.f32 %v1068, %v1068
      %v1118 = vmul.f32 %v1071, %v1071
      %v1119 = vmul.f32 %v1076, %v1076
      %v1120 = vmul.f32 %v1079, %v1079
      %v1121 = vsel %vm549, %v1113, 0.0
      %v1122 = vsel %vm549, %v1114, 0.0
      %v1123 = vadd.f32 %v1121, %v1122
      %v1124 = vsel %vm549, %v1115, 0.0
      %v1125 = vadd.f32 %v1123, %v1124
      %v1126 = vsel %vm549, %v1116, 0.0
      %v1127 = vadd.f32 %v1125, %v1126
      %v1128 = vsel %vm549, %v1117, 0.0
      %v1129 = vadd.f32 %v1127, %v1128
      %v1130 = vsel %vm549, %v1118, 0.0
      %v1131 = vadd.f32 %v1129, %v1130
      %v1132 = vsel %vm549, %v1119, 0.0
      %v1133 = vadd.f32 %v1131, %v1132
      %v1134 = vsel %vm549, %v1120, 0.0
      %v1135 = vadd.f32 %v1133, %v1134
      %v1136 = vrot.slane %v1135, 4
      %v1137 = vadd.f32 %v1135, %v1136
      %v1138 = vrot.slane %v1137, 2
      %v1139 = vadd.f32 %v1137, %v1138
      %v1140 = vrot.slane %v1139, 1
      %v1141 = vadd.f32 %v1139, %v1140
      %1142 = vst.msk [vmem:[%s450] sm:$0x1] %vm1111, %v1141
      %p1143 = scmp.lt.s32.totalorder %s24, 1
      %s1144 = scalar_select %p1143, %s24, 1
      %s1145 = smul.addr %s1144, 8
      %s1146 = smul.addr %s1145, 8
      %s1147 = scalar_lea.vmem %s10, %s1146
      %p1148 = scmp.lt.s32.totalorder %s24, 1
      %s1149 = scalar_select %p1148, %s24, 1
      %s1150 = scalar_lea.vmem %s11, %s1149
      %p1151 = scmp.lt.s32.totalorder %s24, 1
      %s1152 = scalar_select %p1151, %s24, 1
      %s1153 = scalar_lea.vmem %s12, %s1152
      // Predicated region
      $region61: #{transformer_up_forward.9} parent=59 // pred_check
        %p1154 = pneg %p262
      $region62: #{transformer_up_forward.9} parent=59 // pred_check_branch
        %1156 = sbr.rel (%p1154) target = $region64
      $region63: #{transformer_up_forward.9} parent=59 // pred_region
        _
      $region64: #{transformer_up_forward.9} parent=59 // pred_fallthru
        _
      // Predicated region
      $region65: #{transformer_up_forward.9} parent=59 // pred_check
        %p1157 = pneg %p288
      $region66: #{transformer_up_forward.9} parent=59 // pred_check_branch
        %1159 = sbr.rel (%p1157) target = $region68
      $region67: #{transformer_up_forward.9} parent=59 // pred_region
        _
      $region68: #{transformer_up_forward.9} parent=59 // pred_fallthru
        _
      // Predicated region
      $region69: #{transformer_up_forward.9} parent=59 // pred_check
        %p1160 = pneg %p314
      $region70: #{transformer_up_forward.9} parent=59 // pred_check_branch
        %1162 = sbr.rel (%p1160) target = $region72
      $region71: #{transformer_up_forward.9} parent=59 // pred_region
        _
      $region72: #{transformer_up_forward.9} parent=59 // pred_fallthru
        _
    $region60: #{transformer_up_forward.9} parent=5 // pred_fallthru
      _
    %p1163 = scmp.le.s32.totalorder 2, %s19
    // Predicated region
    $region73: #{transformer_up_forward.9} parent=5 // pred_check
      %p1164 = pneg %p1163
    $region74: #{transformer_up_forward.9} parent=5 // pred_check_branch
      %1166 = sbr.rel (%p1164) target = $region76
    $region75: #{transformer_up_forward.9} parent=5 // pred_region
      %s1167 = ssub.s32 %s19, 2
      // Predicated region
      $region77: #{transformer_up_forward.9} parent=75 // pred_check
        %p1168 = pneg %p268
      $region78: #{transformer_up_forward.9} parent=75 // pred_check_branch
        %1170 = sbr.rel (%p1168) target = $region80
      $region79: #{transformer_up_forward.9} parent=75 // pred_region
        %p1171 = scmp.lt.s32.totalorder %s25, 1
        %s1172 = scalar_select %p1171, %s25, 1
        %s1173 = smul.addr %s1172, 8
        %s1174 = smul.addr %s1173, 8
        %s1175 = scalar_lea.vmem %s10, %s1174
      $region80: #{transformer_up_forward.9} parent=75 // pred_fallthru
        _
      // Predicated region
      $region81: #{transformer_up_forward.9} parent=75 // pred_check
        %p1176 = pneg %p294
      $region82: #{transformer_up_forward.9} parent=75 // pred_check_branch
        %1178 = sbr.rel (%p1176) target = $region84
      $region83: #{transformer_up_forward.9} parent=75 // pred_region
        %p1179 = scmp.lt.s32.totalorder %s25, 1
        %s1180 = scalar_select %p1179, %s25, 1
        %s1181 = scalar_lea.vmem %s11, %s1180
      $region84: #{transformer_up_forward.9} parent=75 // pred_fallthru
        _
      // Predicated region
      $region85: #{transformer_up_forward.9} parent=75 // pred_check
        %p1182 = pneg %p320
      $region86: #{transformer_up_forward.9} parent=75 // pred_check_branch
        %1184 = sbr.rel (%p1182) target = $region88
      $region87: #{transformer_up_forward.9} parent=75 // pred_region
        %p1185 = scmp.lt.s32.totalorder %s25, 1
        %s1186 = scalar_select %p1185, %s25, 1
        %s1187 = scalar_lea.vmem %s12, %s1186
      $region88: #{transformer_up_forward.9} parent=75 // pred_fallthru
        _
    $region76: #{transformer_up_forward.9} parent=5 // pred_fallthru
      _
  $region6: #{transformer_up_forward.9} parent=0 // loop_footer
    %s23 = sadd.s32 1, %s19
  $region7: #{transformer_up_forward.9} parent=0 // loop_footer_branch
    %18 = sbr.rel target = $region3
  $region8: #{transformer_up_forward.9} parent=0 // loop_exit
    _

// kernel: transformer_up_forward.8
$region0: #{transformer_up_forward.8}
  #allocation0 [shape = 'u32[]', space=smem, size = 0x4, offset = 0x4, fixed_abs, tag = 'smem constant byte address 0x4 - core index']
  #allocation1 [shape = 'u32[144,128]{1,0:T(1,128)}', space=vmem, size = 0x12000, scoped, tag = 'internal scratch']
  %s0 = inlined_call_operand.vmem [shape: bf16[2,288,8], index: 0, kind: input, shape index: {}]
  %s1 = inlined_call_operand.vmem [shape: bf16[2,288,8], index: 1, kind: input, shape index: {}]
  %s2 = inlined_call_operand.vmem [shape: bf16[2,288,8], index: 2, kind: input, shape index: {}]
  %s3 = inlined_call_operand.vmem [shape: bf16[9,8,4], index: 3, kind: input, shape index: {}]
  %s4 = inlined_call_operand.vmem [shape: f32[1,4], index: 4, kind: input, shape index: {}]
  %s5 = inlined_call_operand.vmem [shape: f32[2,256,4], index: 5, kind: output, shape index: {0}]
  %s6 = inlined_call_operand.vmem [shape: f32[2,1,4], index: 6, kind: output, shape index: {1}]
  %s7 = inlined_call_operand.vmem [shape: f32[2,1,4], index: 7, kind: output, shape index: {2}]
  %8 = xla_tuple %s5, %s6, %s7
  %s9 = sld [smem:[#allocation0]]
  $region69: #{transformer_up_forward.8} parent=0
    _
  %s11 = ssub.s32 1, %s9
  %s12 = scalar_select 0, %s11, %s9
  loop: start=0, step=1, limit=4
  $region2: #{transformer_up_forward.8} parent=0 // loop_pre_header
    _
  $region3: #{transformer_up_forward.8} parent=0 // loop_header
    %s14 = sphi 0, %s18
    %p15 = scmp.ge.s32.totalorder %s14, 4
    %s24 = sphi 0, %s26
    %s27 = sphi 0, %s24
    %s28 = sphi 0, %s27
    %s44 = sphi 0, %s28
    %s50 = sphi 0, %s52
    %s53 = sphi 0, %s50
    %s54 = sphi 0, %s53
    %s70 = sphi 0, %s54
    %s76 = sphi 0, %s78
    %s79 = sphi 0, %s76
    %s80 = sphi 0, %s79
    %s96 = sphi 0, %s80
    %s100 = sphi 0, %s100
    %s102 = sphi 0, %s100
    %s103 = sphi 0, %s102
    %s117 = sphi 0, %s103
    %s121 = sphi 0, %s121
    %s123 = sphi 0, %s121
    %s124 = sphi 0, %s123
    %s138 = sphi 0, %s124
    %s144 = sphi 0, %s146
    %s147 = sphi 0, %s144
    %s148 = sphi 0, %s147
    %s164 = sphi 0, %s148
    %s170 = sphi 0, %s172
    %s173 = sphi 0, %s170
    %s174 = sphi 0, %s173
    %s190 = sphi 0, %s174
    %s196 = sphi 0, %s198
    %s199 = sphi 0, %s196
    %s200 = sphi 0, %s199
    %s216 = sphi 0, %s200
  $region4: #{transformer_up_forward.8} parent=0 // loop_header_branch
    %17 = sbr.rel (%p15) target = $region8
  $region5: #{transformer_up_forward.8} parent=0 // loop_body
    %s19 = ssub.s32 %s14, 1
    %s20 = ssub.s32 %s14, 2
    %s21 = sadd.s32 %s14, 1
    %s22 = ssub.s32 %s14, %s21
    %p23 = scmp.eq.s32.totalorder %s22, 0
    %s25 = sadd.s32 %s24, 1
    %s26 = scalar_select %p23, %s24, %s25
    %p29 = pneg %p23
    %p30 = scmp.eq.s32.totalorder %s14, 1
    %p31 = por %p29, %p30
    %p32 = scmp.ne.s32.totalorder %s24, %s27
    %p33 = scmp.eq.s32.totalorder %s14, 0
    %p34 = por %p32, %p33
    %p35 = scmp.ne.s32.totalorder %s24, %s27
    %p36 = scmp.eq.s32.totalorder %s19, 1
    %p37 = por %p35, %p36
    %p38 = scmp.ne.s32.totalorder %s27, %s28
    %p39 = scmp.eq.s32.totalorder %s19, 0
    %p40 = por %p38, %p39
    %p41 = scmp.ne.s32.totalorder %s27, %s28
    %p42 = scmp.eq.s32.totalorder %s20, 1
    %p43 = por %p41, %p42
    %p45 = scmp.ne.s32.totalorder %s28, %s44
    %p46 = scmp.eq.s32.totalorder %s20, 0
    %p47 = por %p45, %p46
    %s48 = ssub.s32 %s14, %s21
    %p49 = scmp.eq.s32.totalorder %s48, 0
    %s51 = sadd.s32 %s50, 1
    %s52 = scalar_select %p49, %s50, %s51
    %p55 = pneg %p49
    %p56 = scmp.eq.s32.totalorder %s14, 1
    %p57 = por %p55, %p56
    %p58 = scmp.ne.s32.totalorder %s50, %s53
    %p59 = scmp.eq.s32.totalorder %s14, 0
    %p60 = por %p58, %p59
    %p61 = scmp.ne.s32.totalorder %s50, %s53
    %p62 = scmp.eq.s32.totalorder %s19, 1
    %p63 = por %p61, %p62
    %p64 = scmp.ne.s32.totalorder %s53, %s54
    %p65 = scmp.eq.s32.totalorder %s19, 0
    %p66 = por %p64, %p65
    %p67 = scmp.ne.s32.totalorder %s53, %s54
    %p68 = scmp.eq.s32.totalorder %s20, 1
    %p69 = por %p67, %p68
    %p71 = scmp.ne.s32.totalorder %s54, %s70
    %p72 = scmp.eq.s32.totalorder %s20, 0
    %p73 = por %p71, %p72
    %s74 = ssub.s32 %s14, %s21
    %p75 = scmp.eq.s32.totalorder %s74, 0
    %s77 = sadd.s32 %s76, 1
    %s78 = scalar_select %p75, %s76, %s77
    %p81 = pneg %p75
    %p82 = scmp.eq.s32.totalorder %s14, 1
    %p83 = por %p81, %p82
    %p84 = scmp.ne.s32.totalorder %s76, %s79
    %p85 = scmp.eq.s32.totalorder %s14, 0
    %p86 = por %p84, %p85
    %p87 = scmp.ne.s32.totalorder %s76, %s79
    %p88 = scmp.eq.s32.totalorder %s19, 1
    %p89 = por %p87, %p88
    %p90 = scmp.ne.s32.totalorder %s79, %s80
    %p91 = scmp.eq.s32.totalorder %s19, 0
    %p92 = por %p90, %p91
    %p93 = scmp.ne.s32.totalorder %s79, %s80
    %p94 = scmp.eq.s32.totalorder %s20, 1
    %p95 = por %p93, %p94
    %p97 = scmp.ne.s32.totalorder %s80, %s96
    %p98 = scmp.eq.s32.totalorder %s20, 0
    %p99 = por %p97, %p98
    %s101 = sadd.s32 %s100, 1
    %p104 = scmp.eq.s32.totalorder %s14, 1
    %p105 = scmp.ne.s32.totalorder %s100, %s102
    %p106 = scmp.eq.s32.totalorder %s14, 0
    %p107 = por %p105, %p106
    %p108 = scmp.ne.s32.totalorder %s100, %s102
    %p109 = scmp.eq.s32.totalorder %s19, 1
    %p110 = por %p108, %p109
    %p111 = scmp.ne.s32.totalorder %s102, %s103
    %p112 = scmp.eq.s32.totalorder %s19, 0
    %p113 = por %p111, %p112
    %p114 = scmp.ne.s32.totalorder %s102, %s103
    %p115 = scmp.eq.s32.totalorder %s20, 1
    %p116 = por %p114, %p115
    %p118 = scmp.ne.s32.totalorder %s103, %s117
    %p119 = scmp.eq.s32.totalorder %s20, 0
    %p120 = por %p118, %p119
    %s122 = sadd.s32 %s121, 1
    %p125 = scmp.eq.s32.totalorder %s14, 1
    %p126 = scmp.ne.s32.totalorder %s121, %s123
    %p127 = scmp.eq.s32.totalorder %s14, 0
    %p128 = por %p126, %p127
    %p129 = scmp.ne.s32.totalorder %s121, %s123
    %p130 = scmp.eq.s32.totalorder %s19, 1
    %p131 = por %p129, %p130
    %p132 = scmp.ne.s32.totalorder %s123, %s124
    %p133 = scmp.eq.s32.totalorder %s19, 0
    %p134 = por %p132, %p133
    %p135 = scmp.ne.s32.totalorder %s123, %s124
    %p136 = scmp.eq.s32.totalorder %s20, 1
    %p137 = por %p135, %p136
    %p139 = scmp.ne.s32.totalorder %s124, %s138
    %p140 = scmp.eq.s32.totalorder %s20, 0
    %p141 = por %p139, %p140
    %s142 = ssub.s32 %s14, %s21
    %p143 = scmp.eq.s32.totalorder %s142, 0
    %s145 = sadd.s32 %s144, 1
    %s146 = scalar_select %p143, %s144, %s145
    %p149 = pneg %p143
    %p150 = scmp.eq.s32.totalorder %s14, 1
    %p151 = por %p149, %p150
    %p152 = scmp.ne.s32.totalorder %s144, %s147
    %p153 = scmp.eq.s32.totalorder %s14, 0
    %p154 = por %p152, %p153
    %p155 = scmp.ne.s32.totalorder %s144, %s147
    %p156 = scmp.eq.s32.totalorder %s19, 1
    %p157 = por %p155, %p156
    %p158 = scmp.ne.s32.totalorder %s147, %s148
    %p159 = scmp.eq.s32.totalorder %s19, 0
    %p160 = por %p158, %p159
    %p161 = scmp.ne.s32.totalorder %s147, %s148
    %p162 = scmp.eq.s32.totalorder %s20, 1
    %p163 = por %p161, %p162
    %p165 = scmp.ne.s32.totalorder %s148, %s164
    %p166 = scmp.eq.s32.totalorder %s20, 0
    %p167 = por %p165, %p166
    %s168 = ssub.s32 %s14, %s21
    %p169 = scmp.eq.s32.totalorder %s168, 0
    %s171 = sadd.s32 %s170, 1
    %s172 = scalar_select %p169, %s170, %s171
    %p175 = pneg %p169
    %p176 = scmp.eq.s32.totalorder %s14, 1
    %p177 = por %p175, %p176
    %p178 = scmp.ne.s32.totalorder %s170, %s173
    %p179 = scmp.eq.s32.totalorder %s14, 0
    %p180 = por %p178, %p179
    %p181 = scmp.ne.s32.totalorder %s170, %s173
    %p182 = scmp.eq.s32.totalorder %s19, 1
    %p183 = por %p181, %p182
    %p184 = scmp.ne.s32.totalorder %s173, %s174
    %p185 = scmp.eq.s32.totalorder %s19, 0
    %p186 = por %p184, %p185
    %p187 = scmp.ne.s32.totalorder %s173, %s174
    %p188 = scmp.eq.s32.totalorder %s20, 1
    %p189 = por %p187, %p188
    %p191 = scmp.ne.s32.totalorder %s174, %s190
    %p192 = scmp.eq.s32.totalorder %s20, 0
    %p193 = por %p191, %p192
    %s194 = ssub.s32 %s14, %s21
    %p195 = scmp.eq.s32.totalorder %s194, 0
    %s197 = sadd.s32 %s196, 1
    %s198 = scalar_select %p195, %s196, %s197
    %p201 = pneg %p195
    %p202 = scmp.eq.s32.totalorder %s14, 1
    %p203 = por %p201, %p202
    %p204 = scmp.ne.s32.totalorder %s196, %s199
    %p205 = scmp.eq.s32.totalorder %s14, 0
    %p206 = por %p204, %p205
    %p207 = scmp.ne.s32.totalorder %s196, %s199
    %p208 = scmp.eq.s32.totalorder %s19, 1
    %p209 = por %p207, %p208
    %p210 = scmp.ne.s32.totalorder %s199, %s200
    %p211 = scmp.eq.s32.totalorder %s19, 0
    %p212 = por %p210, %p211
    %p213 = scmp.ne.s32.totalorder %s199, %s200
    %p214 = scmp.eq.s32.totalorder %s20, 1
    %p215 = por %p213, %p214
    %p217 = scmp.ne.s32.totalorder %s200, %s216
    %p218 = scmp.eq.s32.totalorder %s20, 0
    %p219 = por %p217, %p218
    %p220 = scmp.le.s32.totalorder 1, %s14
    %p221 = scmp.lt.s32.totalorder %s14, 3
    %p222 = pnand %p220, %p221
    %p223 = pneg %p222
    // Predicated region
    $region9: #{transformer_up_forward.8} parent=5 // pred_check
      _
    $region10: #{transformer_up_forward.8} parent=5 // pred_check_branch
      %225 = sbr.rel (%p222) target = $region12
    $region11: #{transformer_up_forward.8} parent=5 // pred_region
      %s226 = ssub.s32 %s14, 1
      // Predicated region
      $region13: #{transformer_up_forward.8} parent=11 // pred_check
        %p227 = pneg %p113
      $region14: #{transformer_up_forward.8} parent=11 // pred_check_branch
        %229 = sbr.rel (%p227) target = $region16
      $region15: #{transformer_up_forward.8} parent=11 // pred_region
        _
      $region16: #{transformer_up_forward.8} parent=11 // pred_fallthru
        _
      // Predicated region
      $region17: #{transformer_up_forward.8} parent=11 // pred_check
        %p230 = pneg %p134
      $region18: #{transformer_up_forward.8} parent=11 // pred_check_branch
        %232 = sbr.rel (%p230) target = $region20
      $region19: #{transformer_up_forward.8} parent=11 // pred_region
        _
      $region20: #{transformer_up_forward.8} parent=11 // pred_fallthru
        _
    $region12: #{transformer_up_forward.8} parent=5 // pred_fallthru
      _
    %p233 = scmp.lt.s32.totalorder %s14, 2
    // Predicated region
    $region21: #{transformer_up_forward.8} parent=5 // pred_check
      %p234 = pneg %p233
    $region22: #{transformer_up_forward.8} parent=5 // pred_check_branch
      %236 = sbr.rel (%p234) target = $region24
    $region23: #{transformer_up_forward.8} parent=5 // pred_region
      // Predicated region
      $region25: #{transformer_up_forward.8} parent=23 // pred_check
        %p237 = pneg %p34
      $region26: #{transformer_up_forward.8} parent=23 // pred_check_branch
        %239 = sbr.rel (%p237) target = $region28
      $region27: #{transformer_up_forward.8} parent=23 // pred_region
        %p240 = scmp.lt.s32.totalorder %s14, 1
        %s241 = scalar_select %p240, %s14, 1
        %s242 = smul.addr %s241, 36
        %s243 = smul.addr %s242, 4
        %s244 = scalar_lea.vmem %s0, %s243
      $region28: #{transformer_up_forward.8} parent=23 // pred_fallthru
        _
      // Predicated region
      $region29: #{transformer_up_forward.8} parent=23 // pred_check
        %p245 = pneg %p60
      $region30: #{transformer_up_forward.8} parent=23 // pred_check_branch
        %247 = sbr.rel (%p245) target = $region32
      $region31: #{transformer_up_forward.8} parent=23 // pred_region
        %p248 = scmp.lt.s32.totalorder %s14, 1
        %s249 = scalar_select %p248, %s14, 1
        %s250 = smul.addr %s249, 36
        %s251 = smul.addr %s250, 4
        %s252 = scalar_lea.vmem %s1, %s251
      $region32: #{transformer_up_forward.8} parent=23 // pred_fallthru
        _
      // Predicated region
      $region33: #{transformer_up_forward.8} parent=23 // pred_check
        %p253 = pneg %p86
      $region34: #{transformer_up_forward.8} parent=23 // pred_check_branch
        %255 = sbr.rel (%p253) target = $region36
      $region35: #{transformer_up_forward.8} parent=23 // pred_region
        %p256 = scmp.lt.s32.totalorder %s14, 1
        %s257 = scalar_select %p256, %s14, 1
        %s258 = smul.addr %s257, 36
        %s259 = smul.addr %s258, 4
        %s260 = scalar_lea.vmem %s2, %s259
      $region36: #{transformer_up_forward.8} parent=23 // pred_fallthru
        _
    $region24: #{transformer_up_forward.8} parent=5 // pred_fallthru
      _
    %p261 = scmp.le.s32.totalorder 1, %s14
    %p262 = scmp.lt.s32.totalorder %s14, 3
    %p263 = pnand %p261, %p262
    %p264 = pneg %p263
    // Predicated region
    $region37: #{transformer_up_forward.8} parent=5 // pred_check
      _
    $region38: #{transformer_up_forward.8} parent=5 // pred_check_branch
      %266 = sbr.rel (%p263) target = $region40
    $region39: #{transformer_up_forward.8} parent=5 // pred_region
      %s267 = ssub.s32 %s14, 1
      %p268 = scmp.lt.s32.totalorder %s19, 1
      %s269 = scalar_select %p268, %s19, 1
      %s270 = smul.addr %s269, 36
      %s271 = smul.addr %s270, 4
      %s272 = scalar_lea.vmem %s0, %s271
      %p273 = pneg %p40
      %p274 = pneg %p37
      %p275 = scmp.lt.s32.totalorder %s19, 1
      %s276 = scalar_select %p275, %s19, 1
      %s277 = smul.addr %s276, 36
      %s278 = smul.addr %s277, 4
      %s279 = scalar_lea.vmem %s1, %s278
      %p280 = pneg %p66
      %p281 = pneg %p63
      %p282 = scmp.lt.s32.totalorder %s19, 1
      %s283 = scalar_select %p282, %s19, 1
      %s284 = smul.addr %s283, 36
      %s285 = smul.addr %s284, 4
      %s286 = scalar_lea.vmem %s2, %s285
      %p287 = pneg %p92
      %p288 = pneg %p89
      %p289 = pneg %p113
      %p290 = pneg %p110
      %p291 = pneg %p134
      %p292 = pneg %p131
      %p293 = pneg %p160
      %p294 = pneg %p157
      %p295 = scmp.lt.s32.totalorder %s19, 1
      %s296 = scalar_select %p295, %s19, 1
      %s297 = smul.addr %s296, 32
      %s298 = smul.addr %s297, 8
      %s299 = scalar_lea.vmem %s5, %s298
      %p300 = pneg %p186
      %p301 = pneg %p183
      %p302 = scmp.lt.s32.totalorder %s19, 1
      %s303 = scalar_select %p302, %s19, 1
      %s304 = scalar_lea.vmem %s6, %s303
      %p305 = pneg %p212
      %p306 = pneg %p209
      %p307 = scmp.lt.s32.totalorder %s19, 1
      %s308 = scalar_select %p307, %s19, 1
      %s309 = scalar_lea.vmem %s7, %s308
      %p310 = scmp.lt.s32.totalorder %s19, 1
      %s311 = scalar_select %p310, %s19, 1
      %s312 = smul.addr %s311, 36
      %s313 = smul.addr %s312, 4
      %s314 = scalar_lea.vmem %s0, %s313
      %p315 = scmp.lt.s32.totalorder %s19, 1
      %s316 = scalar_select %p315, %s19, 1
      %s317 = smul.addr %s316, 36
      %s318 = smul.addr %s317, 4
      %s319 = scalar_lea.vmem %s1, %s318
      %p320 = scmp.lt.s32.totalorder %s19, 1
      %s321 = scalar_select %p320, %s19, 1
      %s322 = smul.addr %s321, 36
      %s323 = smul.addr %s322, 4
      %s324 = scalar_lea.vmem %s2, %s323
      %p325 = scmp.lt.s32.totalorder %s19, 1
      %s326 = scalar_select %p325, %s19, 1
      %s327 = smul.addr %s326, 32
      %s328 = smul.addr %s327, 8
      %s329 = scalar_lea.vmem %s5, %s328
      %p330 = scmp.lt.s32.totalorder %s19, 1
      %s331 = scalar_select %p330, %s19, 1
      %s332 = scalar_lea.vmem %s6, %s331
      %p333 = scmp.lt.s32.totalorder %s19, 1
      %s334 = scalar_select %p333, %s19, 1
      %s335 = scalar_lea.vmem %s7, %s334
      %v337 = vld [vmem:[%s314] sm:$0xf]
      %v338 = vld [vmem:[%s314 + $0x4] sm:$0xf]
      %v339 = vld [vmem:[%s314 + $0x8] sm:$0xf]
      %v340 = vld [vmem:[%s314 + $0xc] sm:$0xf]
      %v341 = vld [vmem:[%s314 + $0x10] sm:$0xf]
      %v342 = vld [vmem:[%s314 + $0x14] sm:$0xf]
      %v343 = vld [vmem:[%s314 + $0x18] sm:$0xf]
      %v344 = vld [vmem:[%s314 + $0x1c] sm:$0xf]
      %v345 = vld [vmem:[%s314 + $0x20] sm:$0xf]
      %v346 = vld [vmem:[%s314 + $0x24] sm:$0xf]
      %v347 = vld [vmem:[%s314 + $0x28] sm:$0xf]
      %v348 = vld [vmem:[%s314 + $0x2c] sm:$0xf]
      %v349 = vld [vmem:[%s314 + $0x30] sm:$0xf]
      %v350 = vld [vmem:[%s314 + $0x34] sm:$0xf]
      %v351 = vld [vmem:[%s314 + $0x38] sm:$0xf]
      %v352 = vld [vmem:[%s314 + $0x3c] sm:$0xf]
      %v353 = vld [vmem:[%s314 + $0x40] sm:$0xf]
      %v354 = vld [vmem:[%s314 + $0x44] sm:$0xf]
      %v355 = vld [vmem:[%s314 + $0x48] sm:$0xf]
      %v356 = vld [vmem:[%s314 + $0x4c] sm:$0xf]
      %v357 = vld [vmem:[%s314 + $0x50] sm:$0xf]
      %v358 = vld [vmem:[%s314 + $0x54] sm:$0xf]
      %v359 = vld [vmem:[%s314 + $0x58] sm:$0xf]
      %v360 = vld [vmem:[%s314 + $0x5c] sm:$0xf]
      %v361 = vld [vmem:[%s314 + $0x60] sm:$0xf]
      %v362 = vld [vmem:[%s314 + $0x64] sm:$0xf]
      %v363 = vld [vmem:[%s314 + $0x68] sm:$0xf]
      %v364 = vld [vmem:[%s314 + $0x6c] sm:$0xf]
      %v365 = vld [vmem:[%s314 + $0x70] sm:$0xf]
      %v366 = vld [vmem:[%s314 + $0x74] sm:$0xf]
      %v367 = vld [vmem:[%s314 + $0x78] sm:$0xf]
      %v368 = vld [vmem:[%s314 + $0x7c] sm:$0xf]
      %v369 = vld [vmem:[%s314 + $0x80] sm:$0xf]
      %v370 = vld [vmem:[%s314 + $0x84] sm:$0xf]
      %v371 = vld [vmem:[%s314 + $0x88] sm:$0xf]
      %v372 = vld [vmem:[%s314 + $0x8c] sm:$0xf]
      %v373 = vld [vmem:[%s319] sm:$0xf]
      %v374 = vld [vmem:[%s319 + $0x4] sm:$0xf]
      %v375 = vld [vmem:[%s319 + $0x8] sm:$0xf]
      %v376 = vld [vmem:[%s319 + $0xc] sm:$0xf]
      %v377 = vld [vmem:[%s319 + $0x10] sm:$0xf]
      %v378 = vld [vmem:[%s319 + $0x14] sm:$0xf]
      %v379 = vld [vmem:[%s319 + $0x18] sm:$0xf]
      %v380 = vld [vmem:[%s319 + $0x1c] sm:$0xf]
      %v381 = vld [vmem:[%s319 + $0x20] sm:$0xf]
      %v382 = vld [vmem:[%s319 + $0x24] sm:$0xf]
      %v383 = vld [vmem:[%s319 + $0x28] sm:$0xf]
      %v384 = vld [vmem:[%s319 + $0x2c] sm:$0xf]
      %v385 = vld [vmem:[%s319 + $0x30] sm:$0xf]
      %v386 = vld [vmem:[%s319 + $0x34] sm:$0xf]
      %v387 = vld [vmem:[%s319 + $0x38] sm:$0xf]
      %v388 = vld [vmem:[%s319 + $0x3c] sm:$0xf]
      %v389 = vld [vmem:[%s319 + $0x40] sm:$0xf]
      %v390 = vld [vmem:[%s319 + $0x44] sm:$0xf]
      %v391 = vld [vmem:[%s319 + $0x48] sm:$0xf]
      %v392 = vld [vmem:[%s319 + $0x4c] sm:$0xf]
      %v393 = vld [vmem:[%s319 + $0x50] sm:$0xf]
      %v394 = vld [vmem:[%s319 + $0x54] sm:$0xf]
      %v395 = vld [vmem:[%s319 + $0x58] sm:$0xf]
      %v396 = vld [vmem:[%s319 + $0x5c] sm:$0xf]
      %v397 = vld [vmem:[%s319 + $0x60] sm:$0xf]
      %v398 = vld [vmem:[%s319 + $0x64] sm:$0xf]
      %v399 = vld [vmem:[%s319 + $0x68] sm:$0xf]
      %v400 = vld [vmem:[%s319 + $0x6c] sm:$0xf]
      %v401 = vld [vmem:[%s319 + $0x70] sm:$0xf]
      %v402 = vld [vmem:[%s319 + $0x74] sm:$0xf]
      %v403 = vld [vmem:[%s319 + $0x78] sm:$0xf]
      %v404 = vld [vmem:[%s319 + $0x7c] sm:$0xf]
      %v405 = vld [vmem:[%s319 + $0x80] sm:$0xf]
      %v406 = vld [vmem:[%s319 + $0x84] sm:$0xf]
      %v407 = vld [vmem:[%s319 + $0x88] sm:$0xf]
      %v408 = vld [vmem:[%s319 + $0x8c] sm:$0xf]
      %v409 = vld [vmem:[%s324] sm:$0xf]
      %v410 = vld [vmem:[%s324 + $0x4] sm:$0xf]
      %v411 = vld [vmem:[%s324 + $0x8] sm:$0xf]
      %v412 = vld [vmem:[%s324 + $0xc] sm:$0xf]
      %v413 = vld [vmem:[%s324 + $0x10] sm:$0xf]
      %v414 = vld [vmem:[%s324 + $0x14] sm:$0xf]
      %v415 = vld [vmem:[%s324 + $0x18] sm:$0xf]
      %v416 = vld [vmem:[%s324 + $0x1c] sm:$0xf]
      %v417 = vld [vmem:[%s324 + $0x20] sm:$0xf]
      %v418 = vld [vmem:[%s324 + $0x24] sm:$0xf]
      %v419 = vld [vmem:[%s324 + $0x28] sm:$0xf]
      %v420 = vld [vmem:[%s324 + $0x2c] sm:$0xf]
      %v421 = vld [vmem:[%s324 + $0x30] sm:$0xf]
      %v422 = vld [vmem:[%s324 + $0x34] sm:$0xf]
      %v423 = vld [vmem:[%s324 + $0x38] sm:$0xf]
      %v424 = vld [vmem:[%s324 + $0x3c] sm:$0xf]
      %v425 = vld [vmem:[%s324 + $0x40] sm:$0xf]
      %v426 = vld [vmem:[%s324 + $0x44] sm:$0xf]
      %v427 = vld [vmem:[%s324 + $0x48] sm:$0xf]
      %v428 = vld [vmem:[%s324 + $0x4c] sm:$0xf]
      %v429 = vld [vmem:[%s324 + $0x50] sm:$0xf]
      %v430 = vld [vmem:[%s324 + $0x54] sm:$0xf]
      %v431 = vld [vmem:[%s324 + $0x58] sm:$0xf]
      %v432 = vld [vmem:[%s324 + $0x5c] sm:$0xf]
      %v433 = vld [vmem:[%s324 + $0x60] sm:$0xf]
      %v434 = vld [vmem:[%s324 + $0x64] sm:$0xf]
      %v435 = vld [vmem:[%s324 + $0x68] sm:$0xf]
      %v436 = vld [vmem:[%s324 + $0x6c] sm:$0xf]
      %v437 = vld [vmem:[%s324 + $0x70] sm:$0xf]
      %v438 = vld [vmem:[%s324 + $0x74] sm:$0xf]
      %v439 = vld [vmem:[%s324 + $0x78] sm:$0xf]
      %v440 = vld [vmem:[%s324 + $0x7c] sm:$0xf]
      %v441 = vld [vmem:[%s324 + $0x80] sm:$0xf]
      %v442 = vld [vmem:[%s324 + $0x84] sm:$0xf]
      %v443 = vld [vmem:[%s324 + $0x88] sm:$0xf]
      %v444 = vld [vmem:[%s324 + $0x8c] sm:$0xf]
      %v445 = vld [vmem:[%s3] sm:$0xf]
      %s446 = scalar_lea.vmem %s3, 12
      %v447 = vld [vmem:[%s446] sm:$0xf]
      %v480 = vunpack.c.l.b16 %v339
      %v481 = vunpack.c.l.b16 %v340
      %v482 = vunpack.c.l.b16 %v341
      %v483 = vunpack.c.l.b16 %v342
      %v484 = vunpack.c.l.b16 %v343
      %v485 = vunpack.c.l.b16 %v344
      %v486 = vunpack.c.l.b16 %v345
      %v487 = vunpack.c.l.b16 %v346
      %v488 = vunpack.c.l.b16 %v347
      %v489 = vunpack.c.l.b16 %v348
      %v490 = vunpack.c.l.b16 %v349
      %v491 = vunpack.c.l.b16 %v350
      %v492 = vunpack.c.l.b16 %v351
      %v493 = vunpack.c.l.b16 %v352
      %v494 = vunpack.c.l.b16 %v353
      %v495 = vunpack.c.l.b16 %v354
      %v496 = vunpack.c.l.b16 %v355
      %v497 = vunpack.c.l.b16 %v356
      %v498 = vunpack.c.l.b16 %v357
      %v499 = vunpack.c.l.b16 %v358
      %v500 = vunpack.c.l.b16 %v359
      %v501 = vunpack.c.l.b16 %v360
      %v502 = vunpack.c.l.b16 %v361
      %v503 = vunpack.c.l.b16 %v362
      %v504 = vunpack.c.l.b16 %v363
      %v505 = vunpack.c.l.b16 %v364
      %v506 = vunpack.c.l.b16 %v365
      %v507 = vunpack.c.l.b16 %v366
      %v508 = vunpack.c.l.b16 %v367
      %v509 = vunpack.c.l.b16 %v368
      %v510 = vunpack.c.l.b16 %v369
      %v511 = vunpack.c.l.b16 %v370
      %v512 = vpack.c.b16 %v481, %v480
      %v513 = vpack.c.b16 %v483, %v482
      %v514 = vpack.c.b16 %v485, %v484
      %v515 = vpack.c.b16 %v487, %v486
      %v516 = vpack.c.b16 %v489, %v488
      %v517 = vpack.c.b16 %v491, %v490
      %v518 = vpack.c.b16 %v493, %v492
      %v519 = vpack.c.b16 %v495, %v494
      %v520 = vpack.c.b16 %v497, %v496
      %v521 = vpack.c.b16 %v499, %v498
      %v522 = vpack.c.b16 %v501, %v500
      %v523 = vpack.c.b16 %v503, %v502
      %v524 = vpack.c.b16 %v505, %v504
      %v525 = vpack.c.b16 %v507, %v506
      %v526 = vpack.c.b16 %v509, %v508
      %v527 = vpack.c.b16 %v511, %v510
      %vm528 = vcmask 64512
      %v530 = vsel %vm528, %v512, 0
      %v533 = vsel %vm528, %v513, 0
      %v536 = vsel %vm528, %v514, 0
      %v539 = vsel %vm528, %v515, 0
      %v542 = vsel %vm528, %v516, 0
      %v545 = vsel %vm528, %v517, 0
      %v548 = vsel %vm528, %v518, 0
      %v551 = vsel %vm528, %v519, 0
      %v554 = vsel %vm528, %v520, 0
      %v557 = vsel %vm528, %v521, 0
      %v560 = vsel %vm528, %v522, 0
      %v563 = vsel %vm528, %v523, 0
      %v566 = vsel %vm528, %v524, 0
      %v569 = vsel %vm528, %v525, 0
      %v572 = vsel %vm528, %v526, 0
      %v575 = vsel %vm528, %v527, 0
      %vm577 = vcmask 1043456
      %v579 = vsel %vm577, %v447, 0
      %581 = vmatprep.subr.bf16.mxu0 0
      %582 = vmatpush1.bf16.msra.mxu0 0
      %583 = vmatprep.subr.bf16.mxu0 0
      %584 = vmatpush1.bf16.msra.mxu0 0
      %585 = vmatprep.subr.bf16.mxu0 0
      %586 = vmatpush1.bf16.msra.mxu0 0
      %587 = vmatprep.subr.bf16.mxu0 0
      %588 = vmatpush1.bf16.msra.mxu0 0
      %589 = vmatprep.subr.bf16.mxu0 0
      %590 = vmatpush1.bf16.msra.mxu0 0
      %591 = vmatprep.subr.bf16.mxu0 0
      %592 = vmatpush1.bf16.msra.mxu0 0
      %593 = vmatprep.subr.bf16.mxu0 0
      %594 = vmatpush1.bf16.msra.mxu0 0
      %595 = vmatprep.subr.bf16.mxu0 0
      %596 = vmatpush1.bf16.msra.mxu0 %v579
      %597 = vmatprep.subr.bf16.mxu0 0
      %598 = vmatpush2.bf16.msra.mxu0 0
      %599 = vmatprep.subr.bf16.mxu0 0
      %600 = vmatpush2.bf16.msra.mxu0 0
      %601 = vmatprep.subr.bf16.mxu0 0
      %602 = vmatpush2.bf16.msra.mxu0 0
      %603 = vmatprep.subr.bf16.mxu0 0
      %604 = vmatpush2.bf16.msra.mxu0 0
      %605 = vmatprep.subr.bf16.mxu0 0
      %606 = vmatpush2.bf16.msra.mxu0 0
      %607 = vmatprep.subr.bf16.mxu0 0
      %608 = vmatpush2.bf16.msra.mxu0 0
      %609 = vmatprep.subr.bf16.mxu0 0
      %610 = vmatpush2.bf16.msra.mxu0 0
      %611 = vmatprep.subr.bf16.mxu0 0
      %612 = vmatpush2.bf16.msra.mxu0 0
      %613 = vmatprep.mubr.bf16.mxu0 0
      %614 = vmatmul.mubr.bf16.gmra.mxu0 %v530
      %v615 = vpop.f32.mrf.mxu0
      %v616 = vadd.f32 0.0, %v615
      %v617 = vpop.f32.mrf.mxu0
      %v618 = vpop.f32.mrf.mxu0
      %v619 = vadd.f32 0.0, %v618
      %v620 = vpop.f32.mrf.mxu0
      %621 = vmatprep.mubr.bf16.mxu0 0
      %622 = vmatmul.mubr.bf16.gmra.mxu0 %v533
      %v623 = vpop.f32.mrf.mxu0
      %v624 = vadd.f32 0.0, %v623
      %v625 = vpop.f32.mrf.mxu0
      %v626 = vpop.f32.mrf.mxu0
      %v627 = vadd.f32 0.0, %v626
      %v628 = vpop.f32.mrf.mxu0
      %629 = vmatprep.mubr.bf16.mxu0 0
      %630 = vmatmul.mubr.bf16.gmra.mxu0 %v536
      %v631 = vpop.f32.mrf.mxu0
      %v632 = vadd.f32 0.0, %v631
      %v633 = vpop.f32.mrf.mxu0
      %v634 = vpop.f32.mrf.mxu0
      %v635 = vadd.f32 0.0, %v634
      %v636 = vpop.f32.mrf.mxu0
      %637 = vmatprep.mubr.bf16.mxu0 0
      %638 = vmatmul.mubr.bf16.gmra.mxu0 %v539
      %v639 = vpop.f32.mrf.mxu0
      %v640 = vadd.f32 0.0, %v639
      %v641 = vpop.f32.mrf.mxu0
      %v642 = vpop.f32.mrf.mxu0
      %v643 = vadd.f32 0.0, %v642
      %v644 = vpop.f32.mrf.mxu0
      %645 = vmatprep.mubr.bf16.mxu0 0
      %646 = vmatmul.mubr.bf16.gmra.mxu0 %v542
      %v647 = vpop.f32.mrf.mxu0
      %v648 = vadd.f32 0.0, %v647
      %v649 = vpop.f32.mrf.mxu0
      %v650 = vpop.f32.mrf.mxu0
      %v651 = vadd.f32 0.0, %v650
      %v652 = vpop.f32.mrf.mxu0
      %653 = vmatprep.mubr.bf16.mxu0 0
      %654 = vmatmul.mubr.bf16.gmra.mxu0 %v545
      %v655 = vpop.f32.mrf.mxu0
      %v656 = vadd.f32 0.0, %v655
      %v657 = vpop.f32.mrf.mxu0
      %v658 = vpop.f32.mrf.mxu0
      %v659 = vadd.f32 0.0, %v658
      %v660 = vpop.f32.mrf.mxu0
      %661 = vmatprep.mubr.bf16.mxu0 0
      %662 = vmatmul.mubr.bf16.gmra.mxu0 %v548
      %v663 = vpop.f32.mrf.mxu0
      %v664 = vadd.f32 0.0, %v663
      %v665 = vpop.f32.mrf.mxu0
      %v666 = vpop.f32.mrf.mxu0
      %v667 = vadd.f32 0.0, %v666
      %v668 = vpop.f32.mrf.mxu0
      %669 = vmatprep.mubr.bf16.mxu0 0
      %670 = vmatmul.mubr.bf16.gmra.mxu0 %v551
      %v671 = vpop.f32.mrf.mxu0
      %v672 = vadd.f32 0.0, %v671
      %v673 = vpop.f32.mrf.mxu0
      %v674 = vpop.f32.mrf.mxu0
      %v675 = vadd.f32 0.0, %v674
      %v676 = vpop.f32.mrf.mxu0
      %677 = vmatprep.mubr.bf16.mxu0 0
      %678 = vmatmul.mubr.bf16.gmra.mxu0 %v554
      %v679 = vpop.f32.mrf.mxu0
      %v680 = vadd.f32 0.0, %v679
      %v681 = vpop.f32.mrf.mxu0
      %v682 = vpop.f32.mrf.mxu0
      %v683 = vadd.f32 0.0, %v682
      %v684 = vpop.f32.mrf.mxu0
      %685 = vmatprep.mubr.bf16.mxu0 0
      %686 = vmatmul.mubr.bf16.gmra.mxu0 %v557
      %v687 = vpop.f32.mrf.mxu0
      %v688 = vadd.f32 0.0, %v687
      %v689 = vpop.f32.mrf.mxu0
      %v690 = vpop.f32.mrf.mxu0
      %v691 = vadd.f32 0.0, %v690
      %v692 = vpop.f32.mrf.mxu0
      %693 = vmatprep.mubr.bf16.mxu0 0
      %694 = vmatmul.mubr.bf16.gmra.mxu0 %v560
      %v695 = vpop.f32.mrf.mxu0
      %v696 = vadd.f32 0.0, %v695
      %v697 = vpop.f32.mrf.mxu0
      %v698 = vpop.f32.mrf.mxu0
      %v699 = vadd.f32 0.0, %v698
      %v700 = vpop.f32.mrf.mxu0
      %701 = vmatprep.mubr.bf16.mxu0 0
      %702 = vmatmul.mubr.bf16.gmra.mxu0 %v563
      %v703 = vpop.f32.mrf.mxu0
      %v704 = vadd.f32 0.0, %v703
      %v705 = vpop.f32.mrf.mxu0
      %v706 = vpop.f32.mrf.mxu0
      %v707 = vadd.f32 0.0, %v706
      %v708 = vpop.f32.mrf.mxu0
      %709 = vmatprep.mubr.bf16.mxu0 0
      %710 = vmatmul.mubr.bf16.gmra.mxu0 %v566
      %v711 = vpop.f32.mrf.mxu0
      %v712 = vadd.f32 0.0, %v711
      %v713 = vpop.f32.mrf.mxu0
      %v714 = vpop.f32.mrf.mxu0
      %v715 = vadd.f32 0.0, %v714
      %v716 = vpop.f32.mrf.mxu0
      %717 = vmatprep.mubr.bf16.mxu0 0
      %718 = vmatmul.mubr.bf16.gmra.mxu0 %v569
      %v719 = vpop.f32.mrf.mxu0
      %v720 = vadd.f32 0.0, %v719
      %v721 = vpop.f32.mrf.mxu0
      %v722 = vpop.f32.mrf.mxu0
      %v723 = vadd.f32 0.0, %v722
      %v724 = vpop.f32.mrf.mxu0
      %725 = vmatprep.mubr.bf16.mxu0 0
      %726 = vmatmul.mubr.bf16.gmra.mxu0 %v572
      %v727 = vpop.f32.mrf.mxu0
      %v728 = vadd.f32 0.0, %v727
      %v729 = vpop.f32.mrf.mxu0
      %v730 = vpop.f32.mrf.mxu0
      %v731 = vadd.f32 0.0, %v730
      %v732 = vpop.f32.mrf.mxu0
      %733 = vmatprep.mubr.bf16.mxu0 0
      %734 = vmatmul.mubr.bf16.gmra.mxu0 %v575
      %v735 = vpop.f32.mrf.mxu0
      %v736 = vadd.f32 0.0, %v735
      %v737 = vpop.f32.mrf.mxu0
      %v738 = vpop.f32.mrf.mxu0
      %v739 = vadd.f32 0.0, %v738
      %v740 = vpop.f32.mrf.mxu0
      %741 = vdwg.mxu0
      %v744 = vunpack.c.l.b16 %v337
      %v745 = vunpack.c.l.b16 %v338
      %v746 = vpack.c.b16 %v745, %v744
      %v748 = vsel %vm528, %v746, 0
      %v751 = vsel %vm577, %v445, 0
      %753 = vmatprep.subr.bf16.mxu0 0
      %754 = vmatpush1.bf16.msra.mxu0 0
      %755 = vmatprep.subr.bf16.mxu0 0
      %756 = vmatpush1.bf16.msra.mxu0 0
      %757 = vmatprep.subr.bf16.mxu0 0
      %758 = vmatpush1.bf16.msra.mxu0 0
      %759 = vmatprep.subr.bf16.mxu0 0
      %760 = vmatpush1.bf16.msra.mxu0 0
      %761 = vmatprep.subr.bf16.mxu0 0
      %762 = vmatpush1.bf16.msra.mxu0 0
      %763 = vmatprep.subr.bf16.mxu0 0
      %764 = vmatpush1.bf16.msra.mxu0 0
      %765 = vmatprep.subr.bf16.mxu0 0
      %766 = vmatpush1.bf16.msra.mxu0 0
      %767 = vmatprep.subr.bf16.mxu0 0
      %768 = vmatpush1.bf16.msra.mxu0 %v751
      %769 = vmatprep.subr.bf16.mxu0 0
      %770 = vmatpush2.bf16.msra.mxu0 0
      %771 = vmatprep.subr.bf16.mxu0 0
      %772 = vmatpush2.bf16.msra.mxu0 0
      %773 = vmatprep.subr.bf16.mxu0 0
      %774 = vmatpush2.bf16.msra.mxu0 0
      %775 = vmatprep.subr.bf16.mxu0 0
      %776 = vmatpush2.bf16.msra.mxu0 0
      %777 = vmatprep.subr.bf16.mxu0 0
      %778 = vmatpush2.bf16.msra.mxu0 0
      %779 = vmatprep.subr.bf16.mxu0 0
      %780 = vmatpush2.bf16.msra.mxu0 0
      %781 = vmatprep.subr.bf16.mxu0 0
      %782 = vmatpush2.bf16.msra.mxu0 0
      %783 = vmatprep.subr.bf16.mxu0 0
      %784 = vmatpush2.bf16.msra.mxu0 0
      %785 = vmatprep.mubr.bf16.mxu0 0
      %786 = vmatmul.mubr.bf16.gmra.mxu0 %v748
      %v787 = vpop.f32.mrf.mxu0
      %v788 = vadd.f32 %v616, %v787
      %v789 = vpop.f32.mrf.mxu0
      %v790 = vpop.f32.mrf.mxu0
      %v791 = vadd.f32 %v619, %v790
      %v792 = vpop.f32.mrf.mxu0
      %793 = vmatprep.mubr.bf16.mxu0 0
      %794 = vmatmul.mubr.bf16.gmra.mxu0 %v530
      %v795 = vpop.f32.mrf.mxu0
      %v796 = vadd.f32 %v624, %v795
      %v797 = vpop.f32.mrf.mxu0
      %v798 = vpop.f32.mrf.mxu0
      %v799 = vadd.f32 %v627, %v798
      %v800 = vpop.f32.mrf.mxu0
      %801 = vmatprep.mubr.bf16.mxu0 0
      %802 = vmatmul.mubr.bf16.gmra.mxu0 %v533
      %v803 = vpop.f32.mrf.mxu0
      %v804 = vadd.f32 %v632, %v803
      %v805 = vpop.f32.mrf.mxu0
      %v806 = vpop.f32.mrf.mxu0
      %v807 = vadd.f32 %v635, %v806
      %v808 = vpop.f32.mrf.mxu0
      %809 = vmatprep.mubr.bf16.mxu0 0
      %810 = vmatmul.mubr.bf16.gmra.mxu0 %v536
      %v811 = vpop.f32.mrf.mxu0
      %v812 = vadd.f32 %v640, %v811
      %v813 = vpop.f32.mrf.mxu0
      %v814 = vpop.f32.mrf.mxu0
      %v815 = vadd.f32 %v643, %v814
      %v816 = vpop.f32.mrf.mxu0
      %817 = vmatprep.mubr.bf16.mxu0 0
      %818 = vmatmul.mubr.bf16.gmra.mxu0 %v539
      %v819 = vpop.f32.mrf.mxu0
      %v820 = vadd.f32 %v648, %v819
      %v821 = vpop.f32.mrf.mxu0
      %v822 = vpop.f32.mrf.mxu0
      %v823 = vadd.f32 %v651, %v822
      %v824 = vpop.f32.mrf.mxu0
      %825 = vmatprep.mubr.bf16.mxu0 0
      %826 = vmatmul.mubr.bf16.gmra.mxu0 %v542
      %v827 = vpop.f32.mrf.mxu0
      %v828 = vadd.f32 %v656, %v827
      %v829 = vpop.f32.mrf.mxu0
      %v830 = vpop.f32.mrf.mxu0
      %v831 = vadd.f32 %v659, %v830
      %v832 = vpop.f32.mrf.mxu0
      %833 = vmatprep.mubr.bf16.mxu0 0
      %834 = vmatmul.mubr.bf16.gmra.mxu0 %v545
      %v835 = vpop.f32.mrf.mxu0
      %v836 = vadd.f32 %v664, %v835
      %v837 = vpop.f32.mrf.mxu0
      %v838 = vpop.f32.mrf.mxu0
      %v839 = vadd.f32 %v667, %v838
      %v840 = vpop.f32.mrf.mxu0
      %841 = vmatprep.mubr.bf16.mxu0 0
      %842 = vmatmul.mubr.bf16.gmra.mxu0 %v548
      %v843 = vpop.f32.mrf.mxu0
      %v844 = vadd.f32 %v672, %v843
      %v845 = vpop.f32.mrf.mxu0
      %v846 = vpop.f32.mrf.mxu0
      %v847 = vadd.f32 %v675, %v846
      %v848 = vpop.f32.mrf.mxu0
      %849 = vmatprep.mubr.bf16.mxu0 0
      %850 = vmatmul.mubr.bf16.gmra.mxu0 %v551
      %v851 = vpop.f32.mrf.mxu0
      %v852 = vadd.f32 %v680, %v851
      %v853 = vpop.f32.mrf.mxu0
      %v854 = vpop.f32.mrf.mxu0
      %v855 = vadd.f32 %v683, %v854
      %v856 = vpop.f32.mrf.mxu0
      %857 = vmatprep.mubr.bf16.mxu0 0
      %858 = vmatmul.mubr.bf16.gmra.mxu0 %v554
      %v859 = vpop.f32.mrf.mxu0
      %v860 = vadd.f32 %v688, %v859
      %v861 = vpop.f32.mrf.mxu0
      %v862 = vpop.f32.mrf.mxu0
      %v863 = vadd.f32 %v691, %v862
      %v864 = vpop.f32.mrf.mxu0
      %865 = vmatprep.mubr.bf16.mxu0 0
      %866 = vmatmul.mubr.bf16.gmra.mxu0 %v557
      %v867 = vpop.f32.mrf.mxu0
      %v868 = vadd.f32 %v696, %v867
      %v869 = vpop.f32.mrf.mxu0
      %v870 = vpop.f32.mrf.mxu0
      %v871 = vadd.f32 %v699, %v870
      %v872 = vpop.f32.mrf.mxu0
      %873 = vmatprep.mubr.bf16.mxu0 0
      %874 = vmatmul.mubr.bf16.gmra.mxu0 %v560
      %v875 = vpop.f32.mrf.mxu0
      %v876 = vadd.f32 %v704, %v875
      %v877 = vpop.f32.mrf.mxu0
      %v878 = vpop.f32.mrf.mxu0
      %v879 = vadd.f32 %v707, %v878
      %v880 = vpop.f32.mrf.mxu0
      %881 = vmatprep.mubr.bf16.mxu0 0
      %882 = vmatmul.mubr.bf16.gmra.mxu0 %v563
      %v883 = vpop.f32.mrf.mxu0
      %v884 = vadd.f32 %v712, %v883
      %v885 = vpop.f32.mrf.mxu0
      %v886 = vpop.f32.mrf.mxu0
      %v887 = vadd.f32 %v715, %v886
      %v888 = vpop.f32.mrf.mxu0
      %889 = vmatprep.mubr.bf16.mxu0 0
      %890 = vmatmul.mubr.bf16.gmra.mxu0 %v566
      %v891 = vpop.f32.mrf.mxu0
      %v892 = vadd.f32 %v720, %v891
      %v893 = vpop.f32.mrf.mxu0
      %v894 = vpop.f32.mrf.mxu0
      %v895 = vadd.f32 %v723, %v894
      %v896 = vpop.f32.mrf.mxu0
      %897 = vmatprep.mubr.bf16.mxu0 0
      %898 = vmatmul.mubr.bf16.gmra.mxu0 %v569
      %v899 = vpop.f32.mrf.mxu0
      %v900 = vadd.f32 %v728, %v899
      %v901 = vpop.f32.mrf.mxu0
      %v902 = vpop.f32.mrf.mxu0
      %v903 = vadd.f32 %v731, %v902
      %v904 = vpop.f32.mrf.mxu0
      %905 = vmatprep.mubr.bf16.mxu0 0
      %906 = vmatmul.mubr.bf16.gmra.mxu0 %v572
      %v907 = vpop.f32.mrf.mxu0
      %v908 = vadd.f32 %v736, %v907
      %v909 = vpop.f32.mrf.mxu0
      %v910 = vpop.f32.mrf.mxu0
      %v911 = vadd.f32 %v739, %v910
      %v912 = vpop.f32.mrf.mxu0
      %913 = vdwg.mxu0
      %s914 = scalar_lea.vmem %s3, 24
      %v915 = vld [vmem:[%s914] sm:$0xf]
      %v918 = vunpack.c.l.b16 %v371
      %v919 = vunpack.c.l.b16 %v372
      %v920 = vpack.c.b16 %v919, %v918
      %v922 = vsel %vm528, %v920, 0
      %v925 = vsel %vm577, %v915, 0
      %927 = vmatprep.subr.bf16.mxu0 0
      %928 = vmatpush1.bf16.msra.mxu0 0
      %929 = vmatprep.subr.bf16.mxu0 0
      %930 = vmatpush1.bf16.msra.mxu0 0
      %931 = vmatprep.subr.bf16.mxu0 0
      %932 = vmatpush1.bf16.msra.mxu0 0
      %933 = vmatprep.subr.bf16.mxu0 0
      %934 = vmatpush1.bf16.msra.mxu0 0
      %935 = vmatprep.subr.bf16.mxu0 0
      %936 = vmatpush1.bf16.msra.mxu0 0
      %937 = vmatprep.subr.bf16.mxu0 0
      %938 = vmatpush1.bf16.msra.mxu0 0
      %939 = vmatprep.subr.bf16.mxu0 0
      %940 = vmatpush1.bf16.msra.mxu0 0
      %941 = vmatprep.subr.bf16.mxu0 0
      %942 = vmatpush1.bf16.msra.mxu0 %v925
      %943 = vmatprep.subr.bf16.mxu0 0
      %944 = vmatpush2.bf16.msra.mxu0 0
      %945 = vmatprep.subr.bf16.mxu0 0
      %946 = vmatpush2.bf16.msra.mxu0 0
      %947 = vmatprep.subr.bf16.mxu0 0
      %948 = vmatpush2.bf16.msra.mxu0 0
      %949 = vmatprep.subr.bf16.mxu0 0
      %950 = vmatpush2.bf16.msra.mxu0 0
      %951 = vmatprep.subr.bf16.mxu0 0
      %952 = vmatpush2.bf16.msra.mxu0 0
      %953 = vmatprep.subr.bf16.mxu0 0
      %954 = vmatpush2.bf16.msra.mxu0 0
      %955 = vmatprep.subr.bf16.mxu0 0
      %956 = vmatpush2.bf16.msra.mxu0 0
      %957 = vmatprep.subr.bf16.mxu0 0
      %958 = vmatpush2.bf16.msra.mxu0 0
      %959 = vmatprep.mubr.bf16.mxu0 0
      %960 = vmatmul.mubr.bf16.gmra.mxu0 %v533
      %v961 = vpop.f32.mrf.mxu0
      %v962 = vadd.f32 0.0, %v961
      %v963 = vpop.f32.mrf.mxu0
      %v964 = vpop.f32.mrf.mxu0
      %v965 = vadd.f32 0.0, %v964
      %v966 = vpop.f32.mrf.mxu0
      %967 = vmatprep.mubr.bf16.mxu0 0
      %968 = vmatmul.mubr.bf16.gmra.mxu0 %v536
      %v969 = vpop.f32.mrf.mxu0
      %v970 = vadd.f32 0.0, %v969
      %v971 = vpop.f32.mrf.mxu0
      %v972 = vpop.f32.mrf.mxu0
      %v973 = vadd.f32 0.0, %v972
      %v974 = vpop.f32.mrf.mxu0
      %975 = vmatprep.mubr.bf16.mxu0 0
      %976 = vmatmul.mubr.bf16.gmra.mxu0 %v539
      %v977 = vpop.f32.mrf.mxu0
      %v978 = vadd.f32 0.0, %v977
      %v979 = vpop.f32.mrf.mxu0
      %v980 = vpop.f32.mrf.mxu0
      %v981 = vadd.f32 0.0, %v980
      %v982 = vpop.f32.mrf.mxu0
      %983 = vmatprep.mubr.bf16.mxu0 0
      %984 = vmatmul.mubr.bf16.gmra.mxu0 %v542
      %v985 = vpop.f32.mrf.mxu0
      %v986 = vadd.f32 0.0, %v985
      %v987 = vpop.f32.mrf.mxu0
      %v988 = vpop.f32.mrf.mxu0
      %v989 = vadd.f32 0.0, %v988
      %v990 = vpop.f32.mrf.mxu0
      %991 = vmatprep.mubr.bf16.mxu0 0
      %992 = vmatmul.mubr.bf16.gmra.mxu0 %v545
      %v993 = vpop.f32.mrf.mxu0
      %v994 = vadd.f32 0.0, %v993
      %v995 = vpop.f32.mrf.mxu0
      %v996 = vpop.f32.mrf.mxu0
      %v997 = vadd.f32 0.0, %v996
      %v998 = vpop.f32.mrf.mxu0
      %999 = vmatprep.mubr.bf16.mxu0 0
      %1000 = vmatmul.mubr.bf16.gmra.mxu0 %v548
      %v1001 = vpop.f32.mrf.mxu0
      %v1002 = vadd.f32 0.0, %v1001
      %v1003 = vpop.f32.mrf.mxu0
      %v1004 = vpop.f32.mrf.mxu0
      %v1005 = vadd.f32 0.0, %v1004
      %v1006 = vpop.f32.mrf.mxu0
      %1007 = vmatprep.mubr.bf16.mxu0 0
      %1008 = vmatmul.mubr.bf16.gmra.mxu0 %v551
      %v1009 = vpop.f32.mrf.mxu0
      %v1010 = vadd.f32 0.0, %v1009
      %v1011 = vpop.f32.mrf.mxu0
      %v1012 = vpop.f32.mrf.mxu0
      %v1013 = vadd.f32 0.0, %v1012
      %v1014 = vpop.f32.mrf.mxu0
      %1015 = vmatprep.mubr.bf16.mxu0 0
      %1016 = vmatmul.mubr.bf16.gmra.mxu0 %v554
      %v1017 = vpop.f32.mrf.mxu0
      %v1018 = vadd.f32 0.0, %v1017
      %v1019 = vpop.f32.mrf.mxu0
      %v1020 = vpop.f32.mrf.mxu0
      %v1021 = vadd.f32 0.0, %v1020
      %v1022 = vpop.f32.mrf.mxu0
      %1023 = vmatprep.mubr.bf16.mxu0 0
      %1024 = vmatmul.mubr.bf16.gmra.mxu0 %v557
      %v1025 = vpop.f32.mrf.mxu0
      %v1026 = vadd.f32 0.0, %v1025
      %v1027 = vpop.f32.mrf.mxu0
      %v1028 = vpop.f32.mrf.mxu0
      %v1029 = vadd.f32 0.0, %v1028
      %v1030 = vpop.f32.mrf.mxu0
      %1031 = vmatprep.mubr.bf16.mxu0 0
      %1032 = vmatmul.mubr.bf16.gmra.mxu0 %v560
      %v1033 = vpop.f32.mrf.mxu0
      %v1034 = vadd.f32 0.0, %v1033
      %v1035 = vpop.f32.mrf.mxu0
      %v1036 = vpop.f32.mrf.mxu0
      %v1037 = vadd.f32 0.0, %v1036
      %v1038 = vpop.f32.mrf.mxu0
      %1039 = vmatprep.mubr.bf16.mxu0 0
      %1040 = vmatmul.mubr.bf16.gmra.mxu0 %v563
      %v1041 = vpop.f32.mrf.mxu0
      %v1042 = vadd.f32 0.0, %v1041
      %v1043 = vpop.f32.mrf.mxu0
      %v1044 = vpop.f32.mrf.mxu0
      %v1045 = vadd.f32 0.0, %v1044
      %v1046 = vpop.f32.mrf.mxu0
      %1047 = vmatprep.mubr.bf16.mxu0 0
      %1048 = vmatmul.mubr.bf16.gmra.mxu0 %v566
      %v1049 = vpop.f32.mrf.mxu0
      %v1050 = vadd.f32 0.0, %v1049
      %v1051 = vpop.f32.mrf.mxu0
      %v1052 = vpop.f32.mrf.mxu0
      %v1053 = vadd.f32 0.0, %v1052
      %v1054 = vpop.f32.mrf.mxu0
      %1055 = vmatprep.mubr.bf16.mxu0 0
      %1056 = vmatmul.mubr.bf16.gmra.mxu0 %v569
      %v1057 = vpop.f32.mrf.mxu0
      %v1058 = vadd.f32 0.0, %v1057
      %v1059 = vpop.f32.mrf.mxu0
      %v1060 = vpop.f32.mrf.mxu0
      %v1061 = vadd.f32 0.0, %v1060
      %v1062 = vpop.f32.mrf.mxu0
      %1063 = vmatprep.mubr.bf16.mxu0 0
      %1064 = vmatmul.mubr.bf16.gmra.mxu0 %v572
      %v1065 = vpop.f32.mrf.mxu0
      %v1066 = vadd.f32 0.0, %v1065
      %v1067 = vpop.f32.mrf.mxu0
      %v1068 = vpop.f32.mrf.mxu0
      %v1069 = vadd.f32 0.0, %v1068
      %v1070 = vpop.f32.mrf.mxu0
      %1071 = vmatprep.mubr.bf16.mxu0 0
      %1072 = vmatmul.mubr.bf16.gmra.mxu0 %v575
      %v1073 = vpop.f32.mrf.mxu0
      %v1074 = vadd.f32 0.0, %v1073
      %v1075 = vpop.f32.mrf.mxu0
      %v1076 = vpop.f32.mrf.mxu0
      %v1077 = vadd.f32 0.0, %v1076
      %v1078 = vpop.f32.mrf.mxu0
      %1079 = vmatprep.mubr.bf16.mxu0 0
      %1080 = vmatmul.mubr.bf16.gmra.mxu0 %v922
      %v1081 = vpop.f32.mrf.mxu0
      %v1082 = vadd.f32 0.0, %v1081
      %v1083 = vpop.f32.mrf.mxu0
      %v1084 = vpop.f32.mrf.mxu0
      %v1085 = vadd.f32 0.0, %v1084
      %v1086 = vpop.f32.mrf.mxu0
      %1087 = vdwg.mxu0
      %v1088 = vadd.f32 %v788, %v962
      %v1089 = vadd.f32 %v791, %v965
      %v1090 = vadd.f32 %v796, %v970
      %v1091 = vadd.f32 %v799, %v973
      %v1092 = vadd.f32 %v804, %v978
      %v1093 = vadd.f32 %v807, %v981
      %v1094 = vadd.f32 %v812, %v986
      %v1095 = vadd.f32 %v815, %v989
      %v1096 = vadd.f32 %v820, %v994
      %v1097 = vadd.f32 %v823, %v997
      %v1098 = vadd.f32 %v828, %v1002
      %v1099 = vadd.f32 %v831, %v1005
      %v1100 = vadd.f32 %v836, %v1010
      %v1101 = vadd.f32 %v839, %v1013
      %v1102 = vadd.f32 %v844, %v1018
      %v1103 = vadd.f32 %v847, %v1021
      %v1104 = vadd.f32 %v852, %v1026
      %v1105 = vadd.f32 %v855, %v1029
      %v1106 = vadd.f32 %v860, %v1034
      %v1107 = vadd.f32 %v863, %v1037
      %v1108 = vadd.f32 %v868, %v1042
      %v1109 = vadd.f32 %v871, %v1045
      %v1110 = vadd.f32 %v876, %v1050
      %v1111 = vadd.f32 %v879, %v1053
      %v1112 = vadd.f32 %v884, %v1058
      %v1113 = vadd.f32 %v887, %v1061
      %v1114 = vadd.f32 %v892, %v1066
      %v1115 = vadd.f32 %v895, %v1069
      %v1116 = vadd.f32 %v900, %v1074
      %v1117 = vadd.f32 %v903, %v1077
      %v1118 = vadd.f32 %v908, %v1082
      %v1119 = vadd.f32 %v911, %v1085
      %s1120 = scalar_lea.vmem %s3, 4
      %v1121 = vld [vmem:[%s1120] sm:$0xf]
      %v1154 = vunpack.c.l.b16 %v373
      %v1155 = vunpack.c.l.b16 %v374
      %v1156 = vunpack.c.l.b16 %v375
      %v1157 = vunpack.c.l.b16 %v376
      %v1158 = vunpack.c.l.b16 %v377
      %v1159 = vunpack.c.l.b16 %v378
      %v1160 = vunpack.c.l.b16 %v379
      %v1161 = vunpack.c.l.b16 %v380
      %v1162 = vunpack.c.l.b16 %v381
      %v1163 = vunpack.c.l.b16 %v382
      %v1164 = vunpack.c.l.b16 %v383
      %v1165 = vunpack.c.l.b16 %v384
      %v1166 = vunpack.c.l.b16 %v385
      %v1167 = vunpack.c.l.b16 %v386
      %v1168 = vunpack.c.l.b16 %v387
      %v1169 = vunpack.c.l.b16 %v388
      %v1170 = vunpack.c.l.b16 %v389
      %v1171 = vunpack.c.l.b16 %v390
      %v1172 = vunpack.c.l.b16 %v391
      %v1173 = vunpack.c.l.b16 %v392
      %v1174 = vunpack.c.l.b16 %v393
      %v1175 = vunpack.c.l.b16 %v394
      %v1176 = vunpack.c.l.b16 %v395
      %v1177 = vunpack.c.l.b16 %v396
      %v1178 = vunpack.c.l.b16 %v397
      %v1179 = vunpack.c.l.b16 %v398
      %v1180 = vunpack.c.l.b16 %v399
      %v1181 = vunpack.c.l.b16 %v400
      %v1182 = vunpack.c.l.b16 %v401
      %v1183 = vunpack.c.l.b16 %v402
      %v1184 = vunpack.c.l.b16 %v403
      %v1185 = vunpack.c.l.b16 %v404
      %v1186 = vpack.c.b16 %v1155, %v1154
      %v1187 = vpack.c.b16 %v1157, %v1156
      %v1188 = vpack.c.b16 %v1159, %v1158
      %v1189 = vpack.c.b16 %v1161, %v1160
      %v1190 = vpack.c.b16 %v1163, %v1162
      %v1191 = vpack.c.b16 %v1165, %v1164
      %v1192 = vpack.c.b16 %v1167, %v1166
      %v1193 = vpack.c.b16 %v1169, %v1168
      %v1194 = vpack.c.b16 %v1171, %v1170
      %v1195 = vpack.c.b16 %v1173, %v1172
      %v1196 = vpack.c.b16 %v1175, %v1174
      %v1197 = vpack.c.b16 %v1177, %v1176
      %v1198 = vpack.c.b16 %v1179, %v1178
      %v1199 = vpack.c.b16 %v1181, %v1180
      %v1200 = vpack.c.b16 %v1183, %v1182
      %v1201 = vpack.c.b16 %v1185, %v1184
      %v1203 = vsel %vm528, %v1186, 0
      %v1206 = vsel %vm528, %v1187, 0
      %v1209 = vsel %vm528, %v1188, 0
      %v1212 = vsel %vm528, %v1189, 0
      %v1215 = vsel %vm528, %v1190, 0
      %v1218 = vsel %vm528, %v1191, 0
      %v1221 = vsel %vm528, %v1192, 0
      %v1224 = vsel %vm528, %v1193, 0
      %v1227 = vsel %vm528, %v1194, 0
      %v1230 = vsel %vm528, %v1195, 0
      %v1233 = vsel %vm528, %v1196, 0
      %v1236 = vsel %vm528, %v1197, 0
      %v1239 = vsel %vm528, %v1198, 0
      %v1242 = vsel %vm528, %v1199, 0
      %v1245 = vsel %vm528, %v1200, 0
      %v1248 = vsel %vm528, %v1201, 0
      %v1251 = vsel %vm577, %v1121, 0
      %1253 = vmatprep.subr.bf16.mxu0 0
      %1254 = vmatpush1.bf16.msra.mxu0 0
      %1255 = vmatprep.subr.bf16.mxu0 0
      %1256 = vmatpush1.bf16.msra.mxu0 0
      %1257 = vmatprep.subr.bf16.mxu0 0
      %1258 = vmatpush1.bf16.msra.mxu0 0
      %1259 = vmatprep.subr.bf16.mxu0 0
      %1260 = vmatpush1.bf16.msra.mxu0 0
      %1261 = vmatprep.subr.bf16.mxu0 0
      %1262 = vmatpush1.bf16.msra.mxu0 0
      %1263 = vmatprep.subr.bf16.mxu0 0
      %1264 = vmatpush1.bf16.msra.mxu0 0
      %1265 = vmatprep.subr.bf16.mxu0 0
      %1266 = vmatpush1.bf16.msra.mxu0 0
      %1267 = vmatprep.subr.bf16.mxu0 0
      %1268 = vmatpush1.bf16.msra.mxu0 %v1251
      %1269 = vmatprep.subr.bf16.mxu0 0
      %1270 = vmatpush2.bf16.msra.mxu0 0
      %1271 = vmatprep.subr.bf16.mxu0 0
      %1272 = vmatpush2.bf16.msra.mxu0 0
      %1273 = vmatprep.subr.bf16.mxu0 0
      %1274 = vmatpush2.bf16.msra.mxu0 0
      %1275 = vmatprep.subr.bf16.mxu0 0
      %1276 = vmatpush2.bf16.msra.mxu0 0
      %1277 = vmatprep.subr.bf16.mxu0 0
      %1278 = vmatpush2.bf16.msra.mxu0 0
      %1279 = vmatprep.subr.bf16.mxu0 0
      %1280 = vmatpush2.bf16.msra.mxu0 0
      %1281 = vmatprep.subr.bf16.mxu0 0
      %1282 = vmatpush2.bf16.msra.mxu0 0
      %1283 = vmatprep.subr.bf16.mxu0 0
      %1284 = vmatpush2.bf16.msra.mxu0 0
      %1285 = vmatprep.mubr.bf16.mxu0 0
      %1286 = vmatmul.mubr.bf16.gmra.mxu0 %v1203
      %v1287 = vpop.f32.mrf.mxu0
      %v1288 = vadd.f32 0.0, %v1287
      %v1289 = vpop.f32.mrf.mxu0
      %v1290 = vpop.f32.mrf.mxu0
      %v1291 = vadd.f32 0.0, %v1290
      %v1292 = vpop.f32.mrf.mxu0
      %1293 = vmatprep.mubr.bf16.mxu0 0
      %1294 = vmatmul.mubr.bf16.gmra.mxu0 %v1206
      %v1295 = vpop.f32.mrf.mxu0
      %v1296 = vadd.f32 0.0, %v1295
      %v1297 = vpop.f32.mrf.mxu0
      %v1298 = vpop.f32.mrf.mxu0
      %v1299 = vadd.f32 0.0, %v1298
      %v1300 = vpop.f32.mrf.mxu0
      %1301 = vmatprep.mubr.bf16.mxu0 0
      %1302 = vmatmul.mubr.bf16.gmra.mxu0 %v1209
      %v1303 = vpop.f32.mrf.mxu0
      %v1304 = vadd.f32 0.0, %v1303
      %v1305 = vpop.f32.mrf.mxu0
      %v1306 = vpop.f32.mrf.mxu0
      %v1307 = vadd.f32 0.0, %v1306
      %v1308 = vpop.f32.mrf.mxu0
      %1309 = vmatprep.mubr.bf16.mxu0 0
      %1310 = vmatmul.mubr.bf16.gmra.mxu0 %v1212
      %v1311 = vpop.f32.mrf.mxu0
      %v1312 = vadd.f32 0.0, %v1311
      %v1313 = vpop.f32.mrf.mxu0
      %v1314 = vpop.f32.mrf.mxu0
      %v1315 = vadd.f32 0.0, %v1314
      %v1316 = vpop.f32.mrf.mxu0
      %1317 = vmatprep.mubr.bf16.mxu0 0
      %1318 = vmatmul.mubr.bf16.gmra.mxu0 %v1215
      %v1319 = vpop.f32.mrf.mxu0
      %v1320 = vadd.f32 0.0, %v1319
      %v1321 = vpop.f32.mrf.mxu0
      %v1322 = vpop.f32.mrf.mxu0
      %v1323 = vadd.f32 0.0, %v1322
      %v1324 = vpop.f32.mrf.mxu0
      %1325 = vmatprep.mubr.bf16.mxu0 0
      %1326 = vmatmul.mubr.bf16.gmra.mxu0 %v1218
      %v1327 = vpop.f32.mrf.mxu0
      %v1328 = vadd.f32 0.0, %v1327
      %v1329 = vpop.f32.mrf.mxu0
      %v1330 = vpop.f32.mrf.mxu0
      %v1331 = vadd.f32 0.0, %v1330
      %v1332 = vpop.f32.mrf.mxu0
      %1333 = vmatprep.mubr.bf16.mxu0 0
      %1334 = vmatmul.mubr.bf16.gmra.mxu0 %v1221
      %v1335 = vpop.f32.mrf.mxu0
      %v1336 = vadd.f32 0.0, %v1335
      %v1337 = vpop.f32.mrf.mxu0
      %v1338 = vpop.f32.mrf.mxu0
      %v1339 = vadd.f32 0.0, %v1338
      %v1340 = vpop.f32.mrf.mxu0
      %1341 = vmatprep.mubr.bf16.mxu0 0
      %1342 = vmatmul.mubr.bf16.gmra.mxu0 %v1224
      %v1343 = vpop.f32.mrf.mxu0
      %v1344 = vadd.f32 0.0, %v1343
      %v1345 = vpop.f32.mrf.mxu0
      %v1346 = vpop.f32.mrf.mxu0
      %v1347 = vadd.f32 0.0, %v1346
      %v1348 = vpop.f32.mrf.mxu0
      %1349 = vmatprep.mubr.bf16.mxu0 0
      %1350 = vmatmul.mubr.bf16.gmra.mxu0 %v1227
      %v1351 = vpop.f32.mrf.mxu0
      %v1352 = vadd.f32 0.0, %v1351
      %v1353 = vpop.f32.mrf.mxu0
      %v1354 = vpop.f32.mrf.mxu0
      %v1355 = vadd.f32 0.0, %v1354
      %v1356 = vpop.f32.mrf.mxu0
      %1357 = vmatprep.mubr.bf16.mxu0 0
      %1358 = vmatmul.mubr.bf16.gmra.mxu0 %v1230
      %v1359 = vpop.f32.mrf.mxu0
      %v1360 = vadd.f32 0.0, %v1359
      %v1361 = vpop.f32.mrf.mxu0
      %v1362 = vpop.f32.mrf.mxu0
      %v1363 = vadd.f32 0.0, %v1362
      %v1364 = vpop.f32.mrf.mxu0
      %1365 = vmatprep.mubr.bf16.mxu0 0
      %1366 = vmatmul.mubr.bf16.gmra.mxu0 %v1233
      %v1367 = vpop.f32.mrf.mxu0
      %v1368 = vadd.f32 0.0, %v1367
      %v1369 = vpop.f32.mrf.mxu0
      %v1370 = vpop.f32.mrf.mxu0
      %v1371 = vadd.f32 0.0, %v1370
      %v1372 = vpop.f32.mrf.mxu0
      %1373 = vmatprep.mubr.bf16.mxu0 0
      %1374 = vmatmul.mubr.bf16.gmra.mxu0 %v1236
      %v1375 = vpop.f32.mrf.mxu0
      %v1376 = vadd.f32 0.0, %v1375
      %v1377 = vpop.f32.mrf.mxu0
      %v1378 = vpop.f32.mrf.mxu0
      %v1379 = vadd.f32 0.0, %v1378
      %v1380 = vpop.f32.mrf.mxu0
      %1381 = vmatprep.mubr.bf16.mxu0 0
      %1382 = vmatmul.mubr.bf16.gmra.mxu0 %v1239
      %v1383 = vpop.f32.mrf.mxu0
      %v1384 = vadd.f32 0.0, %v1383
      %v1385 = vpop.f32.mrf.mxu0
      %v1386 = vpop.f32.mrf.mxu0
      %v1387 = vadd.f32 0.0, %v1386
      %v1388 = vpop.f32.mrf.mxu0
      %1389 = vmatprep.mubr.bf16.mxu0 0
      %1390 = vmatmul.mubr.bf16.gmra.mxu0 %v1242
      %v1391 = vpop.f32.mrf.mxu0
      %v1392 = vadd.f32 0.0, %v1391
      %v1393 = vpop.f32.mrf.mxu0
      %v1394 = vpop.f32.mrf.mxu0
      %v1395 = vadd.f32 0.0, %v1394
      %v1396 = vpop.f32.mrf.mxu0
      %1397 = vmatprep.mubr.bf16.mxu0 0
      %1398 = vmatmul.mubr.bf16.gmra.mxu0 %v1245
      %v1399 = vpop.f32.mrf.mxu0
      %v1400 = vadd.f32 0.0, %v1399
      %v1401 = vpop.f32.mrf.mxu0
      %v1402 = vpop.f32.mrf.mxu0
      %v1403 = vadd.f32 0.0, %v1402
      %v1404 = vpop.f32.mrf.mxu0
      %1405 = vmatprep.mubr.bf16.mxu0 0
      %1406 = vmatmul.mubr.bf16.gmra.mxu0 %v1248
      %v1407 = vpop.f32.mrf.mxu0
      %v1408 = vadd.f32 0.0, %v1407
      %v1409 = vpop.f32.mrf.mxu0
      %v1410 = vpop.f32.mrf.mxu0
      %v1411 = vadd.f32 0.0, %v1410
      %v1412 = vpop.f32.mrf.mxu0
      %1413 = vdwg.mxu0
      %v1414 = vadd.f32 %v1088, %v1288
      %v1415 = vadd.f32 %v1089, %v1291
      %v1416 = vadd.f32 %v1090, %v1296
      %v1417 = vadd.f32 %v1091, %v1299
      %v1418 = vadd.f32 %v1092, %v1304
      %v1419 = vadd.f32 %v1093, %v1307
      %v1420 = vadd.f32 %v1094, %v1312
      %v1421 = vadd.f32 %v1095, %v1315
      %v1422 = vadd.f32 %v1096, %v1320
      %v1423 = vadd.f32 %v1097, %v1323
      %v1424 = vadd.f32 %v1098, %v1328
      %v1425 = vadd.f32 %v1099, %v1331
      %v1426 = vadd.f32 %v1100, %v1336
      %v1427 = vadd.f32 %v1101, %v1339
      %v1428 = vadd.f32 %v1102, %v1344
      %v1429 = vadd.f32 %v1103, %v1347
      %v1430 = vadd.f32 %v1104, %v1352
      %v1431 = vadd.f32 %v1105, %v1355
      %v1432 = vadd.f32 %v1106, %v1360
      %v1433 = vadd.f32 %v1107, %v1363
      %v1434 = vadd.f32 %v1108, %v1368
      %v1435 = vadd.f32 %v1109, %v1371
      %v1436 = vadd.f32 %v1110, %v1376
      %v1437 = vadd.f32 %v1111, %v1379
      %v1438 = vadd.f32 %v1112, %v1384
      %v1439 = vadd.f32 %v1113, %v1387
      %v1440 = vadd.f32 %v1114, %v1392
      %v1441 = vadd.f32 %v1115, %v1395
      %v1442 = vadd.f32 %v1116, %v1400
      %v1443 = vadd.f32 %v1117, %v1403
      %v1444 = vadd.f32 %v1118, %v1408
      %v1445 = vadd.f32 %v1119, %v1411
      %s1446 = scalar_lea.vmem %s3, 16
      %v1447 = vld [vmem:[%s1446] sm:$0xf]
      %v1450 = vunpack.c.l.b16 %v405
      %v1451 = vunpack.c.l.b16 %v406
      %v1452 = vpack.c.b16 %v1451, %v1450
      %v1454 = vsel %vm528, %v1452, 0
      %v1457 = vsel %vm577, %v1447, 0
      %1459 = vmatprep.subr.bf16.mxu0 0
      %1460 = vmatpush1.bf16.msra.mxu0 0
      %1461 = vmatprep.subr.bf16.mxu0 0
      %1462 = vmatpush1.bf16.msra.mxu0 0
      %1463 = vmatprep.subr.bf16.mxu0 0
      %1464 = vmatpush1.bf16.msra.mxu0 0
      %1465 = vmatprep.subr.bf16.mxu0 0
      %1466 = vmatpush1.bf16.msra.mxu0 0
      %1467 = vmatprep.subr.bf16.mxu0 0
      %1468 = vmatpush1.bf16.msra.mxu0 0
      %1469 = vmatprep.subr.bf16.mxu0 0
      %1470 = vmatpush1.bf16.msra.mxu0 0
      %1471 = vmatprep.subr.bf16.mxu0 0
      %1472 = vmatpush1.bf16.msra.mxu0 0
      %1473 = vmatprep.subr.bf16.mxu0 0
      %1474 = vmatpush1.bf16.msra.mxu0 %v1457
      %1475 = vmatprep.subr.bf16.mxu0 0
      %1476 = vmatpush2.bf16.msra.mxu0 0
      %1477 = vmatprep.subr.bf16.mxu0 0
      %1478 = vmatpush2.bf16.msra.mxu0 0
      %1479 = vmatprep.subr.bf16.mxu0 0
      %1480 = vmatpush2.bf16.msra.mxu0 0
      %1481 = vmatprep.subr.bf16.mxu0 0
      %1482 = vmatpush2.bf16.msra.mxu0 0
      %1483 = vmatprep.subr.bf16.mxu0 0
      %1484 = vmatpush2.bf16.msra.mxu0 0
      %1485 = vmatprep.subr.bf16.mxu0 0
      %1486 = vmatpush2.bf16.msra.mxu0 0
      %1487 = vmatprep.subr.bf16.mxu0 0
      %1488 = vmatpush2.bf16.msra.mxu0 0
      %1489 = vmatprep.subr.bf16.mxu0 0
      %1490 = vmatpush2.bf16.msra.mxu0 0
      %1491 = vmatprep.mubr.bf16.mxu0 0
      %1492 = vmatmul.mubr.bf16.gmra.mxu0 %v1206
      %v1493 = vpop.f32.mrf.mxu0
      %v1494 = vadd.f32 0.0, %v1493
      %v1495 = vpop.f32.mrf.mxu0
      %v1496 = vpop.f32.mrf.mxu0
      %v1497 = vadd.f32 0.0, %v1496
      %v1498 = vpop.f32.mrf.mxu0
      %1499 = vmatprep.mubr.bf16.mxu0 0
      %1500 = vmatmul.mubr.bf16.gmra.mxu0 %v1209
      %v1501 = vpop.f32.mrf.mxu0
      %v1502 = vadd.f32 0.0, %v1501
      %v1503 = vpop.f32.mrf.mxu0
      %v1504 = vpop.f32.mrf.mxu0
      %v1505 = vadd.f32 0.0, %v1504
      %v1506 = vpop.f32.mrf.mxu0
      %1507 = vmatprep.mubr.bf16.mxu0 0
      %1508 = vmatmul.mubr.bf16.gmra.mxu0 %v1212
      %v1509 = vpop.f32.mrf.mxu0
      %v1510 = vadd.f32 0.0, %v1509
      %v1511 = vpop.f32.mrf.mxu0
      %v1512 = vpop.f32.mrf.mxu0
      %v1513 = vadd.f32 0.0, %v1512
      %v1514 = vpop.f32.mrf.mxu0
      %1515 = vmatprep.mubr.bf16.mxu0 0
      %1516 = vmatmul.mubr.bf16.gmra.mxu0 %v1215
      %v1517 = vpop.f32.mrf.mxu0
      %v1518 = vadd.f32 0.0, %v1517
      %v1519 = vpop.f32.mrf.mxu0
      %v1520 = vpop.f32.mrf.mxu0
      %v1521 = vadd.f32 0.0, %v1520
      %v1522 = vpop.f32.mrf.mxu0
      %1523 = vmatprep.mubr.bf16.mxu0 0
      %1524 = vmatmul.mubr.bf16.gmra.mxu0 %v1218
      %v1525 = vpop.f32.mrf.mxu0
      %v1526 = vadd.f32 0.0, %v1525
      %v1527 = vpop.f32.mrf.mxu0
      %v1528 = vpop.f32.mrf.mxu0
      %v1529 = vadd.f32 0.0, %v1528
      %v1530 = vpop.f32.mrf.mxu0
      %1531 = vmatprep.mubr.bf16.mxu0 0
      %1532 = vmatmul.mubr.bf16.gmra.mxu0 %v1221
      %v1533 = vpop.f32.mrf.mxu0
      %v1534 = vadd.f32 0.0, %v1533
      %v1535 = vpop.f32.mrf.mxu0
      %v1536 = vpop.f32.mrf.mxu0
      %v1537 = vadd.f32 0.0, %v1536
      %v1538 = vpop.f32.mrf.mxu0
      %1539 = vmatprep.mubr.bf16.mxu0 0
      %1540 = vmatmul.mubr.bf16.gmra.mxu0 %v1224
      %v1541 = vpop.f32.mrf.mxu0
      %v1542 = vadd.f32 0.0, %v1541
      %v1543 = vpop.f32.mrf.mxu0
      %v1544 = vpop.f32.mrf.mxu0
      %v1545 = vadd.f32 0.0, %v1544
      %v1546 = vpop.f32.mrf.mxu0
      %1547 = vmatprep.mubr.bf16.mxu0 0
      %1548 = vmatmul.mubr.bf16.gmra.mxu0 %v1227
      %v1549 = vpop.f32.mrf.mxu0
      %v1550 = vadd.f32 0.0, %v1549
      %v1551 = vpop.f32.mrf.mxu0
      %v1552 = vpop.f32.mrf.mxu0
      %v1553 = vadd.f32 0.0, %v1552
      %v1554 = vpop.f32.mrf.mxu0
      %1555 = vmatprep.mubr.bf16.mxu0 0
      %1556 = vmatmul.mubr.bf16.gmra.mxu0 %v1230
      %v1557 = vpop.f32.mrf.mxu0
      %v1558 = vadd.f32 0.0, %v1557
      %v1559 = vpop.f32.mrf.mxu0
      %v1560 = vpop.f32.mrf.mxu0
      %v1561 = vadd.f32 0.0, %v1560
      %v1562 = vpop.f32.mrf.mxu0
      %1563 = vmatprep.mubr.bf16.mxu0 0
      %1564 = vmatmul.mubr.bf16.gmra.mxu0 %v1233
      %v1565 = vpop.f32.mrf.mxu0
      %v1566 = vadd.f32 0.0, %v1565
      %v1567 = vpop.f32.mrf.mxu0
      %v1568 = vpop.f32.mrf.mxu0
      %v1569 = vadd.f32 0.0, %v1568
      %v1570 = vpop.f32.mrf.mxu0
      %1571 = vmatprep.mubr.bf16.mxu0 0
      %1572 = vmatmul.mubr.bf16.gmra.mxu0 %v1236
      %v1573 = vpop.f32.mrf.mxu0
      %v1574 = vadd.f32 0.0, %v1573
      %v1575 = vpop.f32.mrf.mxu0
      %v1576 = vpop.f32.mrf.mxu0
      %v1577 = vadd.f32 0.0, %v1576
      %v1578 = vpop.f32.mrf.mxu0
      %1579 = vmatprep.mubr.bf16.mxu0 0
      %1580 = vmatmul.mubr.bf16.gmra.mxu0 %v1239
      %v1581 = vpop.f32.mrf.mxu0
      %v1582 = vadd.f32 0.0, %v1581
      %v1583 = vpop.f32.mrf.mxu0
      %v1584 = vpop.f32.mrf.mxu0
      %v1585 = vadd.f32 0.0, %v1584
      %v1586 = vpop.f32.mrf.mxu0
      %1587 = vmatprep.mubr.bf16.mxu0 0
      %1588 = vmatmul.mubr.bf16.gmra.mxu0 %v1242
      %v1589 = vpop.f32.mrf.mxu0
      %v1590 = vadd.f32 0.0, %v1589
      %v1591 = vpop.f32.mrf.mxu0
      %v1592 = vpop.f32.mrf.mxu0
      %v1593 = vadd.f32 0.0, %v1592
      %v1594 = vpop.f32.mrf.mxu0
      %1595 = vmatprep.mubr.bf16.mxu0 0
      %1596 = vmatmul.mubr.bf16.gmra.mxu0 %v1245
      %v1597 = vpop.f32.mrf.mxu0
      %v1598 = vadd.f32 0.0, %v1597
      %v1599 = vpop.f32.mrf.mxu0
      %v1600 = vpop.f32.mrf.mxu0
      %v1601 = vadd.f32 0.0, %v1600
      %v1602 = vpop.f32.mrf.mxu0
      %1603 = vmatprep.mubr.bf16.mxu0 0
      %1604 = vmatmul.mubr.bf16.gmra.mxu0 %v1248
      %v1605 = vpop.f32.mrf.mxu0
      %v1606 = vadd.f32 0.0, %v1605
      %v1607 = vpop.f32.mrf.mxu0
      %v1608 = vpop.f32.mrf.mxu0
      %v1609 = vadd.f32 0.0, %v1608
      %v1610 = vpop.f32.mrf.mxu0
      %1611 = vmatprep.mubr.bf16.mxu0 0
      %1612 = vmatmul.mubr.bf16.gmra.mxu0 %v1454
      %v1613 = vpop.f32.mrf.mxu0
      %v1614 = vadd.f32 0.0, %v1613
      %v1615 = vpop.f32.mrf.mxu0
      %v1616 = vpop.f32.mrf.mxu0
      %v1617 = vadd.f32 0.0, %v1616
      %v1618 = vpop.f32.mrf.mxu0
      %1619 = vdwg.mxu0
      %v1620 = vadd.f32 %v1414, %v1494
      %v1621 = vadd.f32 %v1415, %v1497
      %v1622 = vadd.f32 %v1416, %v1502
      %v1623 = vadd.f32 %v1417, %v1505
      %v1624 = vadd.f32 %v1418, %v1510
      %v1625 = vadd.f32 %v1419, %v1513
      %v1626 = vadd.f32 %v1420, %v1518
      %v1627 = vadd.f32 %v1421, %v1521
      %v1628 = vadd.f32 %v1422, %v1526
      %v1629 = vadd.f32 %v1423, %v1529
      %v1630 = vadd.f32 %v1424, %v1534
      %v1631 = vadd.f32 %v1425, %v1537
      %v1632 = vadd.f32 %v1426, %v1542
      %v1633 = vadd.f32 %v1427, %v1545
      %v1634 = vadd.f32 %v1428, %v1550
      %v1635 = vadd.f32 %v1429, %v1553
      %v1636 = vadd.f32 %v1430, %v1558
      %v1637 = vadd.f32 %v1431, %v1561
      %v1638 = vadd.f32 %v1432, %v1566
      %v1639 = vadd.f32 %v1433, %v1569
      %v1640 = vadd.f32 %v1434, %v1574
      %v1641 = vadd.f32 %v1435, %v1577
      %v1642 = vadd.f32 %v1436, %v1582
      %v1643 = vadd.f32 %v1437, %v1585
      %v1644 = vadd.f32 %v1438, %v1590
      %v1645 = vadd.f32 %v1439, %v1593
      %v1646 = vadd.f32 %v1440, %v1598
      %v1647 = vadd.f32 %v1441, %v1601
      %v1648 = vadd.f32 %v1442, %v1606
      %v1649 = vadd.f32 %v1443, %v1609
      %v1650 = vadd.f32 %v1444, %v1614
      %v1651 = vadd.f32 %v1445, %v1617
      %s1652 = scalar_lea.vmem %s3, 28
      %v1653 = vld [vmem:[%s1652] sm:$0xf]
      %v1656 = vunpack.c.l.b16 %v407
      %v1657 = vunpack.c.l.b16 %v408
      %v1658 = vpack.c.b16 %v1657, %v1656
      %v1660 = vsel %vm528, %v1658, 0
      %v1663 = vsel %vm577, %v1653, 0
      %1665 = vmatprep.subr.bf16.mxu0 0
      %1666 = vmatpush1.bf16.msra.mxu0 0
      %1667 = vmatprep.subr.bf16.mxu0 0
      %1668 = vmatpush1.bf16.msra.mxu0 0
      %1669 = vmatprep.subr.bf16.mxu0 0
      %1670 = vmatpush1.bf16.msra.mxu0 0
      %1671 = vmatprep.subr.bf16.mxu0 0
      %1672 = vmatpush1.bf16.msra.mxu0 0
      %1673 = vmatprep.subr.bf16.mxu0 0
      %1674 = vmatpush1.bf16.msra.mxu0 0
      %1675 = vmatprep.subr.bf16.mxu0 0
      %1676 = vmatpush1.bf16.msra.mxu0 0
      %1677 = vmatprep.subr.bf16.mxu0 0
      %1678 = vmatpush1.bf16.msra.mxu0 0
      %1679 = vmatprep.subr.bf16.mxu0 0
      %1680 = vmatpush1.bf16.msra.mxu0 %v1663
      %1681 = vmatprep.subr.bf16.mxu0 0
      %1682 = vmatpush2.bf16.msra.mxu0 0
      %1683 = vmatprep.subr.bf16.mxu0 0
      %1684 = vmatpush2.bf16.msra.mxu0 0
      %1685 = vmatprep.subr.bf16.mxu0 0
      %1686 = vmatpush2.bf16.msra.mxu0 0
      %1687 = vmatprep.subr.bf16.mxu0 0
      %1688 = vmatpush2.bf16.msra.mxu0 0
      %1689 = vmatprep.subr.bf16.mxu0 0
      %1690 = vmatpush2.bf16.msra.mxu0 0
      %1691 = vmatprep.subr.bf16.mxu0 0
      %1692 = vmatpush2.bf16.msra.mxu0 0
      %1693 = vmatprep.subr.bf16.mxu0 0
      %1694 = vmatpush2.bf16.msra.mxu0 0
      %1695 = vmatprep.subr.bf16.mxu0 0
      %1696 = vmatpush2.bf16.msra.mxu0 0
      %1697 = vmatprep.mubr.bf16.mxu0 0
      %1698 = vmatmul.mubr.bf16.gmra.mxu0 %v1209
      %v1699 = vpop.f32.mrf.mxu0
      %v1700 = vadd.f32 0.0, %v1699
      %v1701 = vpop.f32.mrf.mxu0
      %v1702 = vpop.f32.mrf.mxu0
      %v1703 = vadd.f32 0.0, %v1702
      %v1704 = vpop.f32.mrf.mxu0
      %1705 = vmatprep.mubr.bf16.mxu0 0
      %1706 = vmatmul.mubr.bf16.gmra.mxu0 %v1212
      %v1707 = vpop.f32.mrf.mxu0
      %v1708 = vadd.f32 0.0, %v1707
      %v1709 = vpop.f32.mrf.mxu0
      %v1710 = vpop.f32.mrf.mxu0
      %v1711 = vadd.f32 0.0, %v1710
      %v1712 = vpop.f32.mrf.mxu0
      %1713 = vmatprep.mubr.bf16.mxu0 0
      %1714 = vmatmul.mubr.bf16.gmra.mxu0 %v1215
      %v1715 = vpop.f32.mrf.mxu0
      %v1716 = vadd.f32 0.0, %v1715
      %v1717 = vpop.f32.mrf.mxu0
      %v1718 = vpop.f32.mrf.mxu0
      %v1719 = vadd.f32 0.0, %v1718
      %v1720 = vpop.f32.mrf.mxu0
      %1721 = vmatprep.mubr.bf16.mxu0 0
      %1722 = vmatmul.mubr.bf16.gmra.mxu0 %v1218
      %v1723 = vpop.f32.mrf.mxu0
      %v1724 = vadd.f32 0.0, %v1723
      %v1725 = vpop.f32.mrf.mxu0
      %v1726 = vpop.f32.mrf.mxu0
      %v1727 = vadd.f32 0.0, %v1726
      %v1728 = vpop.f32.mrf.mxu0
      %1729 = vmatprep.mubr.bf16.mxu0 0
      %1730 = vmatmul.mubr.bf16.gmra.mxu0 %v1221
      %v1731 = vpop.f32.mrf.mxu0
      %v1732 = vadd.f32 0.0, %v1731
      %v1733 = vpop.f32.mrf.mxu0
      %v1734 = vpop.f32.mrf.mxu0
      %v1735 = vadd.f32 0.0, %v1734
      %v1736 = vpop.f32.mrf.mxu0
      %1737 = vmatprep.mubr.bf16.mxu0 0
      %1738 = vmatmul.mubr.bf16.gmra.mxu0 %v1224
      %v1739 = vpop.f32.mrf.mxu0
      %v1740 = vadd.f32 0.0, %v1739
      %v1741 = vpop.f32.mrf.mxu0
      %v1742 = vpop.f32.mrf.mxu0
      %v1743 = vadd.f32 0.0, %v1742
      %v1744 = vpop.f32.mrf.mxu0
      %1745 = vmatprep.mubr.bf16.mxu0 0
      %1746 = vmatmul.mubr.bf16.gmra.mxu0 %v1227
      %v1747 = vpop.f32.mrf.mxu0
      %v1748 = vadd.f32 0.0, %v1747
      %v1749 = vpop.f32.mrf.mxu0
      %v1750 = vpop.f32.mrf.mxu0
      %v1751 = vadd.f32 0.0, %v1750
      %v1752 = vpop.f32.mrf.mxu0
      %1753 = vmatprep.mubr.bf16.mxu0 0
      %1754 = vmatmul.mubr.bf16.gmra.mxu0 %v1230
      %v1755 = vpop.f32.mrf.mxu0
      %v1756 = vadd.f32 0.0, %v1755
      %v1757 = vpop.f32.mrf.mxu0
      %v1758 = vpop.f32.mrf.mxu0
      %v1759 = vadd.f32 0.0, %v1758
      %v1760 = vpop.f32.mrf.mxu0
      %1761 = vmatprep.mubr.bf16.mxu0 0
      %1762 = vmatmul.mubr.bf16.gmra.mxu0 %v1233
      %v1763 = vpop.f32.mrf.mxu0
      %v1764 = vadd.f32 0.0, %v1763
      %v1765 = vpop.f32.mrf.mxu0
      %v1766 = vpop.f32.mrf.mxu0
      %v1767 = vadd.f32 0.0, %v1766
      %v1768 = vpop.f32.mrf.mxu0
      %1769 = vmatprep.mubr.bf16.mxu0 0
      %1770 = vmatmul.mubr.bf16.gmra.mxu0 %v1236
      %v1771 = vpop.f32.mrf.mxu0
      %v1772 = vadd.f32 0.0, %v1771
      %v1773 = vpop.f32.mrf.mxu0
      %v1774 = vpop.f32.mrf.mxu0
      %v1775 = vadd.f32 0.0, %v1774
      %v1776 = vpop.f32.mrf.mxu0
      %1777 = vmatprep.mubr.bf16.mxu0 0
      %1778 = vmatmul.mubr.bf16.gmra.mxu0 %v1239
      %v1779 = vpop.f32.mrf.mxu0
      %v1780 = vadd.f32 0.0, %v1779
      %v1781 = vpop.f32.mrf.mxu0
      %v1782 = vpop.f32.mrf.mxu0
      %v1783 = vadd.f32 0.0, %v1782
      %v1784 = vpop.f32.mrf.mxu0
      %1785 = vmatprep.mubr.bf16.mxu0 0
      %1786 = vmatmul.mubr.bf16.gmra.mxu0 %v1242
      %v1787 = vpop.f32.mrf.mxu0
      %v1788 = vadd.f32 0.0, %v1787
      %v1789 = vpop.f32.mrf.mxu0
      %v1790 = vpop.f32.mrf.mxu0
      %v1791 = vadd.f32 0.0, %v1790
      %v1792 = vpop.f32.mrf.mxu0
      %1793 = vmatprep.mubr.bf16.mxu0 0
      %1794 = vmatmul.mubr.bf16.gmra.mxu0 %v1245
      %v1795 = vpop.f32.mrf.mxu0
      %v1796 = vadd.f32 0.0, %v1795
      %v1797 = vpop.f32.mrf.mxu0
      %v1798 = vpop.f32.mrf.mxu0
      %v1799 = vadd.f32 0.0, %v1798
      %v1800 = vpop.f32.mrf.mxu0
      %1801 = vmatprep.mubr.bf16.mxu0 0
      %1802 = vmatmul.mubr.bf16.gmra.mxu0 %v1248
      %v1803 = vpop.f32.mrf.mxu0
      %v1804 = vadd.f32 0.0, %v1803
      %v1805 = vpop.f32.mrf.mxu0
      %v1806 = vpop.f32.mrf.mxu0
      %v1807 = vadd.f32 0.0, %v1806
      %v1808 = vpop.f32.mrf.mxu0
      %1809 = vmatprep.mubr.bf16.mxu0 0
      %1810 = vmatmul.mubr.bf16.gmra.mxu0 %v1454
      %v1811 = vpop.f32.mrf.mxu0
      %v1812 = vadd.f32 0.0, %v1811
      %v1813 = vpop.f32.mrf.mxu0
      %v1814 = vpop.f32.mrf.mxu0
      %v1815 = vadd.f32 0.0, %v1814
      %v1816 = vpop.f32.mrf.mxu0
      %1817 = vmatprep.mubr.bf16.mxu0 0
      %1818 = vmatmul.mubr.bf16.gmra.mxu0 %v1660
      %v1819 = vpop.f32.mrf.mxu0
      %v1820 = vadd.f32 0.0, %v1819
      %v1821 = vpop.f32.mrf.mxu0
      %v1822 = vpop.f32.mrf.mxu0
      %v1823 = vadd.f32 0.0, %v1822
      %v1824 = vpop.f32.mrf.mxu0
      %1825 = vdwg.mxu0
      %v1826 = vadd.f32 %v1620, %v1700
      %v1827 = vadd.f32 %v1621, %v1703
      %v1828 = vadd.f32 %v1622, %v1708
      %v1829 = vadd.f32 %v1623, %v1711
      %v1830 = vadd.f32 %v1624, %v1716
      %v1831 = vadd.f32 %v1625, %v1719
      %v1832 = vadd.f32 %v1626, %v1724
      %v1833 = vadd.f32 %v1627, %v1727
      %v1834 = vadd.f32 %v1628, %v1732
      %v1835 = vadd.f32 %v1629, %v1735
      %v1836 = vadd.f32 %v1630, %v1740
      %v1837 = vadd.f32 %v1631, %v1743
      %v1838 = vadd.f32 %v1632, %v1748
      %v1839 = vadd.f32 %v1633, %v1751
      %v1840 = vadd.f32 %v1634, %v1756
      %v1841 = vadd.f32 %v1635, %v1759
      %v1842 = vadd.f32 %v1636, %v1764
      %v1843 = vadd.f32 %v1637, %v1767
      %v1844 = vadd.f32 %v1638, %v1772
      %v1845 = vadd.f32 %v1639, %v1775
      %v1846 = vadd.f32 %v1640, %v1780
      %v1847 = vadd.f32 %v1641, %v1783
      %v1848 = vadd.f32 %v1642, %v1788
      %v1849 = vadd.f32 %v1643, %v1791
      %v1850 = vadd.f32 %v1644, %v1796
      %v1851 = vadd.f32 %v1645, %v1799
      %v1852 = vadd.f32 %v1646, %v1804
      %v1853 = vadd.f32 %v1647, %v1807
      %v1854 = vadd.f32 %v1648, %v1812
      %v1855 = vadd.f32 %v1649, %v1815
      %v1856 = vadd.f32 %v1650, %v1820
      %v1857 = vadd.f32 %v1651, %v1823
      %s1858 = scalar_lea.vmem %s3, 8
      %v1859 = vld [vmem:[%s1858] sm:$0xf]
      %v1892 = vunpack.c.l.b16 %v409
      %v1893 = vunpack.c.l.b16 %v410
      %v1894 = vunpack.c.l.b16 %v411
      %v1895 = vunpack.c.l.b16 %v412
      %v1896 = vunpack.c.l.b16 %v413
      %v1897 = vunpack.c.l.b16 %v414
      %v1898 = vunpack.c.l.b16 %v415
      %v1899 = vunpack.c.l.b16 %v416
      %v1900 = vunpack.c.l.b16 %v417
      %v1901 = vunpack.c.l.b16 %v418
      %v1902 = vunpack.c.l.b16 %v419
      %v1903 = vunpack.c.l.b16 %v420
      %v1904 = vunpack.c.l.b16 %v421
      %v1905 = vunpack.c.l.b16 %v422
      %v1906 = vunpack.c.l.b16 %v423
      %v1907 = vunpack.c.l.b16 %v424
      %v1908 = vunpack.c.l.b16 %v425
      %v1909 = vunpack.c.l.b16 %v426
      %v1910 = vunpack.c.l.b16 %v427
      %v1911 = vunpack.c.l.b16 %v428
      %v1912 = vunpack.c.l.b16 %v429
      %v1913 = vunpack.c.l.b16 %v430
      %v1914 = vunpack.c.l.b16 %v431
      %v1915 = vunpack.c.l.b16 %v432
      %v1916 = vunpack.c.l.b16 %v433
      %v1917 = vunpack.c.l.b16 %v434
      %v1918 = vunpack.c.l.b16 %v435
      %v1919 = vunpack.c.l.b16 %v436
      %v1920 = vunpack.c.l.b16 %v437
      %v1921 = vunpack.c.l.b16 %v438
      %v1922 = vunpack.c.l.b16 %v439
      %v1923 = vunpack.c.l.b16 %v440
      %v1924 = vpack.c.b16 %v1893, %v1892
      %v1925 = vpack.c.b16 %v1895, %v1894
      %v1926 = vpack.c.b16 %v1897, %v1896
      %v1927 = vpack.c.b16 %v1899, %v1898
      %v1928 = vpack.c.b16 %v1901, %v1900
      %v1929 = vpack.c.b16 %v1903, %v1902
      %v1930 = vpack.c.b16 %v1905, %v1904
      %v1931 = vpack.c.b16 %v1907, %v1906
      %v1932 = vpack.c.b16 %v1909, %v1908
      %v1933 = vpack.c.b16 %v1911, %v1910
      %v1934 = vpack.c.b16 %v1913, %v1912
      %v1935 = vpack.c.b16 %v1915, %v1914
      %v1936 = vpack.c.b16 %v1917, %v1916
      %v1937 = vpack.c.b16 %v1919, %v1918
      %v1938 = vpack.c.b16 %v1921, %v1920
      %v1939 = vpack.c.b16 %v1923, %v1922
      %v1941 = vsel %vm528, %v1924, 0
      %v1944 = vsel %vm528, %v1925, 0
      %v1947 = vsel %vm528, %v1926, 0
      %v1950 = vsel %vm528, %v1927, 0
      %v1953 = vsel %vm528, %v1928, 0
      %v1956 = vsel %vm528, %v1929, 0
      %v1959 = vsel %vm528, %v1930, 0
      %v1962 = vsel %vm528, %v1931, 0
      %v1965 = vsel %vm528, %v1932, 0
      %v1968 = vsel %vm528, %v1933, 0
      %v1971 = vsel %vm528, %v1934, 0
      %v1974 = vsel %vm528, %v1935, 0
      %v1977 = vsel %vm528, %v1936, 0
      %v1980 = vsel %vm528, %v1937, 0
      %v1983 = vsel %vm528, %v1938, 0
      %v1986 = vsel %vm528, %v1939, 0
      %v1989 = vsel %vm577, %v1859, 0
      %1991 = vmatprep.subr.bf16.mxu0 0
      %1992 = vmatpush1.bf16.msra.mxu0 0
      %1993 = vmatprep.subr.bf16.mxu0 0
      %1994 = vmatpush1.bf16.msra.mxu0 0
      %1995 = vmatprep.subr.bf16.mxu0 0
      %1996 = vmatpush1.bf16.msra.mxu0 0
      %1997 = vmatprep.subr.bf16.mxu0 0
      %1998 = vmatpush1.bf16.msra.mxu0 0
      %1999 = vmatprep.subr.bf16.mxu0 0
      %2000 = vmatpush1.bf16.msra.mxu0 0
      %2001 = vmatprep.subr.bf16.mxu0 0
      %2002 = vmatpush1.bf16.msra.mxu0 0
      %2003 = vmatprep.subr.bf16.mxu0 0
      %2004 = vmatpush1.bf16.msra.mxu0 0
      %2005 = vmatprep.subr.bf16.mxu0 0
      %2006 = vmatpush1.bf16.msra.mxu0 %v1989
      %2007 = vmatprep.subr.bf16.mxu0 0
      %2008 = vmatpush2.bf16.msra.mxu0 0
      %2009 = vmatprep.subr.bf16.mxu0 0
      %2010 = vmatpush2.bf16.msra.mxu0 0
      %2011 = vmatprep.subr.bf16.mxu0 0
      %2012 = vmatpush2.bf16.msra.mxu0 0
      %2013 = vmatprep.subr.bf16.mxu0 0
      %2014 = vmatpush2.bf16.msra.mxu0 0
      %2015 = vmatprep.subr.bf16.mxu0 0
      %2016 = vmatpush2.bf16.msra.mxu0 0
      %2017 = vmatprep.subr.bf16.mxu0 0
      %2018 = vmatpush2.bf16.msra.mxu0 0
      %2019 = vmatprep.subr.bf16.mxu0 0
      %2020 = vmatpush2.bf16.msra.mxu0 0
      %2021 = vmatprep.subr.bf16.mxu0 0
      %2022 = vmatpush2.bf16.msra.mxu0 0
      %2023 = vmatprep.mubr.bf16.mxu0 0
      %2024 = vmatmul.mubr.bf16.gmra.mxu0 %v1941
      %v2025 = vpop.f32.mrf.mxu0
      %v2026 = vadd.f32 0.0, %v2025
      %v2027 = vpop.f32.mrf.mxu0
      %v2028 = vpop.f32.mrf.mxu0
      %v2029 = vadd.f32 0.0, %v2028
      %v2030 = vpop.f32.mrf.mxu0
      %2031 = vmatprep.mubr.bf16.mxu0 0
      %2032 = vmatmul.mubr.bf16.gmra.mxu0 %v1944
      %v2033 = vpop.f32.mrf.mxu0
      %v2034 = vadd.f32 0.0, %v2033
      %v2035 = vpop.f32.mrf.mxu0
      %v2036 = vpop.f32.mrf.mxu0
      %v2037 = vadd.f32 0.0, %v2036
      %v2038 = vpop.f32.mrf.mxu0
      %2039 = vmatprep.mubr.bf16.mxu0 0
      %2040 = vmatmul.mubr.bf16.gmra.mxu0 %v1947
      %v2041 = vpop.f32.mrf.mxu0
      %v2042 = vadd.f32 0.0, %v2041
      %v2043 = vpop.f32.mrf.mxu0
      %v2044 = vpop.f32.mrf.mxu0
      %v2045 = vadd.f32 0.0, %v2044
      %v2046 = vpop.f32.mrf.mxu0
      %2047 = vmatprep.mubr.bf16.mxu0 0
      %2048 = vmatmul.mubr.bf16.gmra.mxu0 %v1950
      %v2049 = vpop.f32.mrf.mxu0
      %v2050 = vadd.f32 0.0, %v2049
      %v2051 = vpop.f32.mrf.mxu0
      %v2052 = vpop.f32.mrf.mxu0
      %v2053 = vadd.f32 0.0, %v2052
      %v2054 = vpop.f32.mrf.mxu0
      %2055 = vmatprep.mubr.bf16.mxu0 0
      %2056 = vmatmul.mubr.bf16.gmra.mxu0 %v1953
      %v2057 = vpop.f32.mrf.mxu0
      %v2058 = vadd.f32 0.0, %v2057
      %v2059 = vpop.f32.mrf.mxu0
      %v2060 = vpop.f32.mrf.mxu0
      %v2061 = vadd.f32 0.0, %v2060
      %v2062 = vpop.f32.mrf.mxu0
      %2063 = vmatprep.mubr.bf16.mxu0 0
      %2064 = vmatmul.mubr.bf16.gmra.mxu0 %v1956
      %v2065 = vpop.f32.mrf.mxu0
      %v2066 = vadd.f32 0.0, %v2065
      %v2067 = vpop.f32.mrf.mxu0
      %v2068 = vpop.f32.mrf.mxu0
      %v2069 = vadd.f32 0.0, %v2068
      %v2070 = vpop.f32.mrf.mxu0
      %2071 = vmatprep.mubr.bf16.mxu0 0
      %2072 = vmatmul.mubr.bf16.gmra.mxu0 %v1959
      %v2073 = vpop.f32.mrf.mxu0
      %v2074 = vadd.f32 0.0, %v2073
      %v2075 = vpop.f32.mrf.mxu0
      %v2076 = vpop.f32.mrf.mxu0
      %v2077 = vadd.f32 0.0, %v2076
      %v2078 = vpop.f32.mrf.mxu0
      %2079 = vmatprep.mubr.bf16.mxu0 0
      %2080 = vmatmul.mubr.bf16.gmra.mxu0 %v1962
      %v2081 = vpop.f32.mrf.mxu0
      %v2082 = vadd.f32 0.0, %v2081
      %v2083 = vpop.f32.mrf.mxu0
      %v2084 = vpop.f32.mrf.mxu0
      %v2085 = vadd.f32 0.0, %v2084
      %v2086 = vpop.f32.mrf.mxu0
      %2087 = vmatprep.mubr.bf16.mxu0 0
      %2088 = vmatmul.mubr.bf16.gmra.mxu0 %v1965
      %v2089 = vpop.f32.mrf.mxu0
      %v2090 = vadd.f32 0.0, %v2089
      %v2091 = vpop.f32.mrf.mxu0
      %v2092 = vpop.f32.mrf.mxu0
      %v2093 = vadd.f32 0.0, %v2092
      %v2094 = vpop.f32.mrf.mxu0
      %2095 = vmatprep.mubr.bf16.mxu0 0
      %2096 = vmatmul.mubr.bf16.gmra.mxu0 %v1968
      %v2097 = vpop.f32.mrf.mxu0
      %v2098 = vadd.f32 0.0, %v2097
      %v2099 = vpop.f32.mrf.mxu0
      %v2100 = vpop.f32.mrf.mxu0
      %v2101 = vadd.f32 0.0, %v2100
      %v2102 = vpop.f32.mrf.mxu0
      %2103 = vmatprep.mubr.bf16.mxu0 0
      %2104 = vmatmul.mubr.bf16.gmra.mxu0 %v1971
      %v2105 = vpop.f32.mrf.mxu0
      %v2106 = vadd.f32 0.0, %v2105
      %v2107 = vpop.f32.mrf.mxu0
      %v2108 = vpop.f32.mrf.mxu0
      %v2109 = vadd.f32 0.0, %v2108
      %v2110 = vpop.f32.mrf.mxu0
      %2111 = vmatprep.mubr.bf16.mxu0 0
      %2112 = vmatmul.mubr.bf16.gmra.mxu0 %v1974
      %v2113 = vpop.f32.mrf.mxu0
      %v2114 = vadd.f32 0.0, %v2113
      %v2115 = vpop.f32.mrf.mxu0
      %v2116 = vpop.f32.mrf.mxu0
      %v2117 = vadd.f32 0.0, %v2116
      %v2118 = vpop.f32.mrf.mxu0
      %2119 = vmatprep.mubr.bf16.mxu0 0
      %2120 = vmatmul.mubr.bf16.gmra.mxu0 %v1977
      %v2121 = vpop.f32.mrf.mxu0
      %v2122 = vadd.f32 0.0, %v2121
      %v2123 = vpop.f32.mrf.mxu0
      %v2124 = vpop.f32.mrf.mxu0
      %v2125 = vadd.f32 0.0, %v2124
      %v2126 = vpop.f32.mrf.mxu0
      %2127 = vmatprep.mubr.bf16.mxu0 0
      %2128 = vmatmul.mubr.bf16.gmra.mxu0 %v1980
      %v2129 = vpop.f32.mrf.mxu0
      %v2130 = vadd.f32 0.0, %v2129
      %v2131 = vpop.f32.mrf.mxu0
      %v2132 = vpop.f32.mrf.mxu0
      %v2133 = vadd.f32 0.0, %v2132
      %v2134 = vpop.f32.mrf.mxu0
      %2135 = vmatprep.mubr.bf16.mxu0 0
      %2136 = vmatmul.mubr.bf16.gmra.mxu0 %v1983
      %v2137 = vpop.f32.mrf.mxu0
      %v2138 = vadd.f32 0.0, %v2137
      %v2139 = vpop.f32.mrf.mxu0
      %v2140 = vpop.f32.mrf.mxu0
      %v2141 = vadd.f32 0.0, %v2140
      %v2142 = vpop.f32.mrf.mxu0
      %2143 = vmatprep.mubr.bf16.mxu0 0
      %2144 = vmatmul.mubr.bf16.gmra.mxu0 %v1986
      %v2145 = vpop.f32.mrf.mxu0
      %v2146 = vadd.f32 0.0, %v2145
      %v2147 = vpop.f32.mrf.mxu0
      %v2148 = vpop.f32.mrf.mxu0
      %v2149 = vadd.f32 0.0, %v2148
      %v2150 = vpop.f32.mrf.mxu0
      %2151 = vdwg.mxu0
      %v2152 = vadd.f32 %v1826, %v2026
      %v2153 = vadd.f32 %v1827, %v2029
      %v2154 = vadd.f32 %v1828, %v2034
      %v2155 = vadd.f32 %v1829, %v2037
      %v2156 = vadd.f32 %v1830, %v2042
      %v2157 = vadd.f32 %v1831, %v2045
      %v2158 = vadd.f32 %v1832, %v2050
      %v2159 = vadd.f32 %v1833, %v2053
      %v2160 = vadd.f32 %v1834, %v2058
      %v2161 = vadd.f32 %v1835, %v2061
      %v2162 = vadd.f32 %v1836, %v2066
      %v2163 = vadd.f32 %v1837, %v2069
      %v2164 = vadd.f32 %v1838, %v2074
      %v2165 = vadd.f32 %v1839, %v2077
      %v2166 = vadd.f32 %v1840, %v2082
      %v2167 = vadd.f32 %v1841, %v2085
      %v2168 = vadd.f32 %v1842, %v2090
      %v2169 = vadd.f32 %v1843, %v2093
      %v2170 = vadd.f32 %v1844, %v2098
      %v2171 = vadd.f32 %v1845, %v2101
      %v2172 = vadd.f32 %v1846, %v2106
      %v2173 = vadd.f32 %v1847, %v2109
      %v2174 = vadd.f32 %v1848, %v2114
      %v2175 = vadd.f32 %v1849, %v2117
      %v2176 = vadd.f32 %v1850, %v2122
      %v2177 = vadd.f32 %v1851, %v2125
      %v2178 = vadd.f32 %v1852, %v2130
      %v2179 = vadd.f32 %v1853, %v2133
      %v2180 = vadd.f32 %v1854, %v2138
      %v2181 = vadd.f32 %v1855, %v2141
      %v2182 = vadd.f32 %v1856, %v2146
      %v2183 = vadd.f32 %v1857, %v2149
      %s2184 = scalar_lea.vmem %s3, 20
      %v2185 = vld [vmem:[%s2184] sm:$0xf]
      %v2188 = vunpack.c.l.b16 %v441
      %v2189 = vunpack.c.l.b16 %v442
      %v2190 = vpack.c.b16 %v2189, %v2188
      %v2192 = vsel %vm528, %v2190, 0
      %v2195 = vsel %vm577, %v2185, 0
      %2197 = vmatprep.subr.bf16.mxu0 0
      %2198 = vmatpush1.bf16.msra.mxu0 0
      %2199 = vmatprep.subr.bf16.mxu0 0
      %2200 = vmatpush1.bf16.msra.mxu0 0
      %2201 = vmatprep.subr.bf16.mxu0 0
      %2202 = vmatpush1.bf16.msra.mxu0 0
      %2203 = vmatprep.subr.bf16.mxu0 0
      %2204 = vmatpush1.bf16.msra.mxu0 0
      %2205 = vmatprep.subr.bf16.mxu0 0
      %2206 = vmatpush1.bf16.msra.mxu0 0
      %2207 = vmatprep.subr.bf16.mxu0 0
      %2208 = vmatpush1.bf16.msra.mxu0 0
      %2209 = vmatprep.subr.bf16.mxu0 0
      %2210 = vmatpush1.bf16.msra.mxu0 0
      %2211 = vmatprep.subr.bf16.mxu0 0
      %2212 = vmatpush1.bf16.msra.mxu0 %v2195
      %2213 = vmatprep.subr.bf16.mxu0 0
      %2214 = vmatpush2.bf16.msra.mxu0 0
      %2215 = vmatprep.subr.bf16.mxu0 0
      %2216 = vmatpush2.bf16.msra.mxu0 0
      %2217 = vmatprep.subr.bf16.mxu0 0
      %2218 = vmatpush2.bf16.msra.mxu0 0
      %2219 = vmatprep.subr.bf16.mxu0 0
      %2220 = vmatpush2.bf16.msra.mxu0 0
      %2221 = vmatprep.subr.bf16.mxu0 0
      %2222 = vmatpush2.bf16.msra.mxu0 0
      %2223 = vmatprep.subr.bf16.mxu0 0
      %2224 = vmatpush2.bf16.msra.mxu0 0
      %2225 = vmatprep.subr.bf16.mxu0 0
      %2226 = vmatpush2.bf16.msra.mxu0 0
      %2227 = vmatprep.subr.bf16.mxu0 0
      %2228 = vmatpush2.bf16.msra.mxu0 0
      %2229 = vmatprep.mubr.bf16.mxu0 0
      %2230 = vmatmul.mubr.bf16.gmra.mxu0 %v1944
      %v2231 = vpop.f32.mrf.mxu0
      %v2232 = vadd.f32 0.0, %v2231
      %v2233 = vpop.f32.mrf.mxu0
      %v2234 = vpop.f32.mrf.mxu0
      %v2235 = vadd.f32 0.0, %v2234
      %v2236 = vpop.f32.mrf.mxu0
      %2237 = vmatprep.mubr.bf16.mxu0 0
      %2238 = vmatmul.mubr.bf16.gmra.mxu0 %v1947
      %v2239 = vpop.f32.mrf.mxu0
      %v2240 = vadd.f32 0.0, %v2239
      %v2241 = vpop.f32.mrf.mxu0
      %v2242 = vpop.f32.mrf.mxu0
      %v2243 = vadd.f32 0.0, %v2242
      %v2244 = vpop.f32.mrf.mxu0
      %2245 = vmatprep.mubr.bf16.mxu0 0
      %2246 = vmatmul.mubr.bf16.gmra.mxu0 %v1950
      %v2247 = vpop.f32.mrf.mxu0
      %v2248 = vadd.f32 0.0, %v2247
      %v2249 = vpop.f32.mrf.mxu0
      %v2250 = vpop.f32.mrf.mxu0
      %v2251 = vadd.f32 0.0, %v2250
      %v2252 = vpop.f32.mrf.mxu0
      %2253 = vmatprep.mubr.bf16.mxu0 0
      %2254 = vmatmul.mubr.bf16.gmra.mxu0 %v1953
      %v2255 = vpop.f32.mrf.mxu0
      %v2256 = vadd.f32 0.0, %v2255
      %v2257 = vpop.f32.mrf.mxu0
      %v2258 = vpop.f32.mrf.mxu0
      %v2259 = vadd.f32 0.0, %v2258
      %v2260 = vpop.f32.mrf.mxu0
      %2261 = vmatprep.mubr.bf16.mxu0 0
      %2262 = vmatmul.mubr.bf16.gmra.mxu0 %v1956
      %v2263 = vpop.f32.mrf.mxu0
      %v2264 = vadd.f32 0.0, %v2263
      %v2265 = vpop.f32.mrf.mxu0
      %v2266 = vpop.f32.mrf.mxu0
      %v2267 = vadd.f32 0.0, %v2266
      %v2268 = vpop.f32.mrf.mxu0
      %2269 = vmatprep.mubr.bf16.mxu0 0
      %2270 = vmatmul.mubr.bf16.gmra.mxu0 %v1959
      %v2271 = vpop.f32.mrf.mxu0
      %v2272 = vadd.f32 0.0, %v2271
      %v2273 = vpop.f32.mrf.mxu0
      %v2274 = vpop.f32.mrf.mxu0
      %v2275 = vadd.f32 0.0, %v2274
      %v2276 = vpop.f32.mrf.mxu0
      %2277 = vmatprep.mubr.bf16.mxu0 0
      %2278 = vmatmul.mubr.bf16.gmra.mxu0 %v1962
      %v2279 = vpop.f32.mrf.mxu0
      %v2280 = vadd.f32 0.0, %v2279
      %v2281 = vpop.f32.mrf.mxu0
      %v2282 = vpop.f32.mrf.mxu0
      %v2283 = vadd.f32 0.0, %v2282
      %v2284 = vpop.f32.mrf.mxu0
      %2285 = vmatprep.mubr.bf16.mxu0 0
      %2286 = vmatmul.mubr.bf16.gmra.mxu0 %v1965
      %v2287 = vpop.f32.mrf.mxu0
      %v2288 = vadd.f32 0.0, %v2287
      %v2289 = vpop.f32.mrf.mxu0
      %v2290 = vpop.f32.mrf.mxu0
      %v2291 = vadd.f32 0.0, %v2290
      %v2292 = vpop.f32.mrf.mxu0
      %2293 = vmatprep.mubr.bf16.mxu0 0
      %2294 = vmatmul.mubr.bf16.gmra.mxu0 %v1968
      %v2295 = vpop.f32.mrf.mxu0
      %v2296 = vadd.f32 0.0, %v2295
      %v2297 = vpop.f32.mrf.mxu0
      %v2298 = vpop.f32.mrf.mxu0
      %v2299 = vadd.f32 0.0, %v2298
      %v2300 = vpop.f32.mrf.mxu0
      %2301 = vmatprep.mubr.bf16.mxu0 0
      %2302 = vmatmul.mubr.bf16.gmra.mxu0 %v1971
      %v2303 = vpop.f32.mrf.mxu0
      %v2304 = vadd.f32 0.0, %v2303
      %v2305 = vpop.f32.mrf.mxu0
      %v2306 = vpop.f32.mrf.mxu0
      %v2307 = vadd.f32 0.0, %v2306
      %v2308 = vpop.f32.mrf.mxu0
      %2309 = vmatprep.mubr.bf16.mxu0 0
      %2310 = vmatmul.mubr.bf16.gmra.mxu0 %v1974
      %v2311 = vpop.f32.mrf.mxu0
      %v2312 = vadd.f32 0.0, %v2311
      %v2313 = vpop.f32.mrf.mxu0
      %v2314 = vpop.f32.mrf.mxu0
      %v2315 = vadd.f32 0.0, %v2314
      %v2316 = vpop.f32.mrf.mxu0
      %2317 = vmatprep.mubr.bf16.mxu0 0
      %2318 = vmatmul.mubr.bf16.gmra.mxu0 %v1977
      %v2319 = vpop.f32.mrf.mxu0
      %v2320 = vadd.f32 0.0, %v2319
      %v2321 = vpop.f32.mrf.mxu0
      %v2322 = vpop.f32.mrf.mxu0
      %v2323 = vadd.f32 0.0, %v2322
      %v2324 = vpop.f32.mrf.mxu0
      %2325 = vmatprep.mubr.bf16.mxu0 0
      %2326 = vmatmul.mubr.bf16.gmra.mxu0 %v1980
      %v2327 = vpop.f32.mrf.mxu0
      %v2328 = vadd.f32 0.0, %v2327
      %v2329 = vpop.f32.mrf.mxu0
      %v2330 = vpop.f32.mrf.mxu0
      %v2331 = vadd.f32 0.0, %v2330
      %v2332 = vpop.f32.mrf.mxu0
      %2333 = vmatprep.mubr.bf16.mxu0 0
      %2334 = vmatmul.mubr.bf16.gmra.mxu0 %v1983
      %v2335 = vpop.f32.mrf.mxu0
      %v2336 = vadd.f32 0.0, %v2335
      %v2337 = vpop.f32.mrf.mxu0
      %v2338 = vpop.f32.mrf.mxu0
      %v2339 = vadd.f32 0.0, %v2338
      %v2340 = vpop.f32.mrf.mxu0
      %2341 = vmatprep.mubr.bf16.mxu0 0
      %2342 = vmatmul.mubr.bf16.gmra.mxu0 %v1986
      %v2343 = vpop.f32.mrf.mxu0
      %v2344 = vadd.f32 0.0, %v2343
      %v2345 = vpop.f32.mrf.mxu0
      %v2346 = vpop.f32.mrf.mxu0
      %v2347 = vadd.f32 0.0, %v2346
      %v2348 = vpop.f32.mrf.mxu0
      %2349 = vmatprep.mubr.bf16.mxu0 0
      %2350 = vmatmul.mubr.bf16.gmra.mxu0 %v2192
      %v2351 = vpop.f32.mrf.mxu0
      %v2352 = vadd.f32 0.0, %v2351
      %v2353 = vpop.f32.mrf.mxu0
      %v2354 = vpop.f32.mrf.mxu0
      %v2355 = vadd.f32 0.0, %v2354
      %v2356 = vpop.f32.mrf.mxu0
      %2357 = vdwg.mxu0
      %v2358 = vadd.f32 %v2152, %v2232
      %v2359 = vadd.f32 %v2153, %v2235
      %v2360 = vadd.f32 %v2154, %v2240
      %v2361 = vadd.f32 %v2155, %v2243
      %v2362 = vadd.f32 %v2156, %v2248
      %v2363 = vadd.f32 %v2157, %v2251
      %v2364 = vadd.f32 %v2158, %v2256
      %v2365 = vadd.f32 %v2159, %v2259
      %v2366 = vadd.f32 %v2160, %v2264
      %v2367 = vadd.f32 %v2161, %v2267
      %v2368 = vadd.f32 %v2162, %v2272
      %v2369 = vadd.f32 %v2163, %v2275
      %v2370 = vadd.f32 %v2164, %v2280
      %v2371 = vadd.f32 %v2165, %v2283
      %v2372 = vadd.f32 %v2166, %v2288
      %v2373 = vadd.f32 %v2167, %v2291
      %v2374 = vadd.f32 %v2168, %v2296
      %v2375 = vadd.f32 %v2169, %v2299
      %v2376 = vadd.f32 %v2170, %v2304
      %v2377 = vadd.f32 %v2171, %v2307
      %v2378 = vadd.f32 %v2172, %v2312
      %v2379 = vadd.f32 %v2173, %v2315
      %v2380 = vadd.f32 %v2174, %v2320
      %v2381 = vadd.f32 %v2175, %v2323
      %v2382 = vadd.f32 %v2176, %v2328
      %v2383 = vadd.f32 %v2177, %v2331
      %v2384 = vadd.f32 %v2178, %v2336
      %v2385 = vadd.f32 %v2179, %v2339
      %v2386 = vadd.f32 %v2180, %v2344
      %v2387 = vadd.f32 %v2181, %v2347
      %v2388 = vadd.f32 %v2182, %v2352
      %v2389 = vadd.f32 %v2183, %v2355
      %s2390 = scalar_lea.vmem %s3, 32
      %v2391 = vld [vmem:[%s2390] sm:$0xf]
      %v2394 = vunpack.c.l.b16 %v443
      %v2395 = vunpack.c.l.b16 %v444
      %v2396 = vpack.c.b16 %v2395, %v2394
      %v2398 = vsel %vm528, %v2396, 0
      %v2401 = vsel %vm577, %v2391, 0
      %2403 = vmatprep.subr.bf16.mxu0 0
      %2404 = vmatpush1.bf16.msra.mxu0 0
      %2405 = vmatprep.subr.bf16.mxu0 0
      %2406 = vmatpush1.bf16.msra.mxu0 0
      %2407 = vmatprep.subr.bf16.mxu0 0
      %2408 = vmatpush1.bf16.msra.mxu0 0
      %2409 = vmatprep.subr.bf16.mxu0 0
      %2410 = vmatpush1.bf16.msra.mxu0 0
      %2411 = vmatprep.subr.bf16.mxu0 0
      %2412 = vmatpush1.bf16.msra.mxu0 0
      %2413 = vmatprep.subr.bf16.mxu0 0
      %2414 = vmatpush1.bf16.msra.mxu0 0
      %2415 = vmatprep.subr.bf16.mxu0 0
      %2416 = vmatpush1.bf16.msra.mxu0 0
      %2417 = vmatprep.subr.bf16.mxu0 0
      %2418 = vmatpush1.bf16.msra.mxu0 %v2401
      %2419 = vmatprep.subr.bf16.mxu0 0
      %2420 = vmatpush2.bf16.msra.mxu0 0
      %2421 = vmatprep.subr.bf16.mxu0 0
      %2422 = vmatpush2.bf16.msra.mxu0 0
      %2423 = vmatprep.subr.bf16.mxu0 0
      %2424 = vmatpush2.bf16.msra.mxu0 0
      %2425 = vmatprep.subr.bf16.mxu0 0
      %2426 = vmatpush2.bf16.msra.mxu0 0
      %2427 = vmatprep.subr.bf16.mxu0 0
      %2428 = vmatpush2.bf16.msra.mxu0 0
      %2429 = vmatprep.subr.bf16.mxu0 0
      %2430 = vmatpush2.bf16.msra.mxu0 0
      %2431 = vmatprep.subr.bf16.mxu0 0
      %2432 = vmatpush2.bf16.msra.mxu0 0
      %2433 = vmatprep.subr.bf16.mxu0 0
      %2434 = vmatpush2.bf16.msra.mxu0 0
      %2435 = vmatprep.mubr.bf16.mxu0 0
      %2436 = vmatmul.mubr.bf16.gmra.mxu0 %v1947
      %v2437 = vpop.f32.mrf.mxu0
      %v2438 = vadd.f32 0.0, %v2437
      %v2439 = vpop.f32.mrf.mxu0
      %v2440 = vpop.f32.mrf.mxu0
      %v2441 = vadd.f32 0.0, %v2440
      %v2442 = vpop.f32.mrf.mxu0
      %2443 = vmatprep.mubr.bf16.mxu0 0
      %2444 = vmatmul.mubr.bf16.gmra.mxu0 %v1950
      %v2445 = vpop.f32.mrf.mxu0
      %v2446 = vadd.f32 0.0, %v2445
      %v2447 = vpop.f32.mrf.mxu0
      %v2448 = vpop.f32.mrf.mxu0
      %v2449 = vadd.f32 0.0, %v2448
      %v2450 = vpop.f32.mrf.mxu0
      %2451 = vmatprep.mubr.bf16.mxu0 0
      %2452 = vmatmul.mubr.bf16.gmra.mxu0 %v1953
      %v2453 = vpop.f32.mrf.mxu0
      %v2454 = vadd.f32 0.0, %v2453
      %v2455 = vpop.f32.mrf.mxu0
      %v2456 = vpop.f32.mrf.mxu0
      %v2457 = vadd.f32 0.0, %v2456
      %v2458 = vpop.f32.mrf.mxu0
      %2459 = vmatprep.mubr.bf16.mxu0 0
      %2460 = vmatmul.mubr.bf16.gmra.mxu0 %v1956
      %v2461 = vpop.f32.mrf.mxu0
      %v2462 = vadd.f32 0.0, %v2461
      %v2463 = vpop.f32.mrf.mxu0
      %v2464 = vpop.f32.mrf.mxu0
      %v2465 = vadd.f32 0.0, %v2464
      %v2466 = vpop.f32.mrf.mxu0
      %2467 = vmatprep.mubr.bf16.mxu0 0
      %2468 = vmatmul.mubr.bf16.gmra.mxu0 %v1959
      %v2469 = vpop.f32.mrf.mxu0
      %v2470 = vadd.f32 0.0, %v2469
      %v2471 = vpop.f32.mrf.mxu0
      %v2472 = vpop.f32.mrf.mxu0
      %v2473 = vadd.f32 0.0, %v2472
      %v2474 = vpop.f32.mrf.mxu0
      %2475 = vmatprep.mubr.bf16.mxu0 0
      %2476 = vmatmul.mubr.bf16.gmra.mxu0 %v1962
      %v2477 = vpop.f32.mrf.mxu0
      %v2478 = vadd.f32 0.0, %v2477
      %v2479 = vpop.f32.mrf.mxu0
      %v2480 = vpop.f32.mrf.mxu0
      %v2481 = vadd.f32 0.0, %v2480
      %v2482 = vpop.f32.mrf.mxu0
      %2483 = vmatprep.mubr.bf16.mxu0 0
      %2484 = vmatmul.mubr.bf16.gmra.mxu0 %v1965
      %v2485 = vpop.f32.mrf.mxu0
      %v2486 = vadd.f32 0.0, %v2485
      %v2487 = vpop.f32.mrf.mxu0
      %v2488 = vpop.f32.mrf.mxu0
      %v2489 = vadd.f32 0.0, %v2488
      %v2490 = vpop.f32.mrf.mxu0
      %2491 = vmatprep.mubr.bf16.mxu0 0
      %2492 = vmatmul.mubr.bf16.gmra.mxu0 %v1968
      %v2493 = vpop.f32.mrf.mxu0
      %v2494 = vadd.f32 0.0, %v2493
      %v2495 = vpop.f32.mrf.mxu0
      %v2496 = vpop.f32.mrf.mxu0
      %v2497 = vadd.f32 0.0, %v2496
      %v2498 = vpop.f32.mrf.mxu0
      %2499 = vmatprep.mubr.bf16.mxu0 0
      %2500 = vmatmul.mubr.bf16.gmra.mxu0 %v1971
      %v2501 = vpop.f32.mrf.mxu0
      %v2502 = vadd.f32 0.0, %v2501
      %v2503 = vpop.f32.mrf.mxu0
      %v2504 = vpop.f32.mrf.mxu0
      %v2505 = vadd.f32 0.0, %v2504
      %v2506 = vpop.f32.mrf.mxu0
      %2507 = vmatprep.mubr.bf16.mxu0 0
      %2508 = vmatmul.mubr.bf16.gmra.mxu0 %v1974
      %v2509 = vpop.f32.mrf.mxu0
      %v2510 = vadd.f32 0.0, %v2509
      %v2511 = vpop.f32.mrf.mxu0
      %v2512 = vpop.f32.mrf.mxu0
      %v2513 = vadd.f32 0.0, %v2512
      %v2514 = vpop.f32.mrf.mxu0
      %2515 = vmatprep.mubr.bf16.mxu0 0
      %2516 = vmatmul.mubr.bf16.gmra.mxu0 %v1977
      %v2517 = vpop.f32.mrf.mxu0
      %v2518 = vadd.f32 0.0, %v2517
      %v2519 = vpop.f32.mrf.mxu0
      %v2520 = vpop.f32.mrf.mxu0
      %v2521 = vadd.f32 0.0, %v2520
      %v2522 = vpop.f32.mrf.mxu0
      %2523 = vmatprep.mubr.bf16.mxu0 0
      %2524 = vmatmul.mubr.bf16.gmra.mxu0 %v1980
      %v2525 = vpop.f32.mrf.mxu0
      %v2526 = vadd.f32 0.0, %v2525
      %v2527 = vpop.f32.mrf.mxu0
      %v2528 = vpop.f32.mrf.mxu0
      %v2529 = vadd.f32 0.0, %v2528
      %v2530 = vpop.f32.mrf.mxu0
      %2531 = vmatprep.mubr.bf16.mxu0 0
      %2532 = vmatmul.mubr.bf16.gmra.mxu0 %v1983
      %v2533 = vpop.f32.mrf.mxu0
      %v2534 = vadd.f32 0.0, %v2533
      %v2535 = vpop.f32.mrf.mxu0
      %v2536 = vpop.f32.mrf.mxu0
      %v2537 = vadd.f32 0.0, %v2536
      %v2538 = vpop.f32.mrf.mxu0
      %2539 = vmatprep.mubr.bf16.mxu0 0
      %2540 = vmatmul.mubr.bf16.gmra.mxu0 %v1986
      %v2541 = vpop.f32.mrf.mxu0
      %v2542 = vadd.f32 0.0, %v2541
      %v2543 = vpop.f32.mrf.mxu0
      %v2544 = vpop.f32.mrf.mxu0
      %v2545 = vadd.f32 0.0, %v2544
      %v2546 = vpop.f32.mrf.mxu0
      %2547 = vmatprep.mubr.bf16.mxu0 0
      %2548 = vmatmul.mubr.bf16.gmra.mxu0 %v2192
      %v2549 = vpop.f32.mrf.mxu0
      %v2550 = vadd.f32 0.0, %v2549
      %v2551 = vpop.f32.mrf.mxu0
      %v2552 = vpop.f32.mrf.mxu0
      %v2553 = vadd.f32 0.0, %v2552
      %v2554 = vpop.f32.mrf.mxu0
      %2555 = vmatprep.mubr.bf16.mxu0 0
      %2556 = vmatmul.mubr.bf16.gmra.mxu0 %v2398
      %v2557 = vpop.f32.mrf.mxu0
      %v2558 = vadd.f32 0.0, %v2557
      %v2559 = vpop.f32.mrf.mxu0
      %v2560 = vpop.f32.mrf.mxu0
      %v2561 = vadd.f32 0.0, %v2560
      %v2562 = vpop.f32.mrf.mxu0
      %2563 = vdwg.mxu0
      %v2564 = vadd.f32 %v2358, %v2438
      %v2565 = vadd.f32 %v2359, %v2441
      %v2566 = vadd.f32 %v2360, %v2446
      %v2567 = vadd.f32 %v2361, %v2449
      %v2568 = vadd.f32 %v2362, %v2454
      %v2569 = vadd.f32 %v2363, %v2457
      %v2570 = vadd.f32 %v2364, %v2462
      %v2571 = vadd.f32 %v2365, %v2465
      %v2572 = vadd.f32 %v2366, %v2470
      %v2573 = vadd.f32 %v2367, %v2473
      %v2574 = vadd.f32 %v2368, %v2478
      %v2575 = vadd.f32 %v2369, %v2481
      %v2576 = vadd.f32 %v2370, %v2486
      %v2577 = vadd.f32 %v2371, %v2489
      %v2578 = vadd.f32 %v2372, %v2494
      %v2579 = vadd.f32 %v2373, %v2497
      %v2580 = vadd.f32 %v2374, %v2502
      %v2581 = vadd.f32 %v2375, %v2505
      %v2582 = vadd.f32 %v2376, %v2510
      %v2583 = vadd.f32 %v2377, %v2513
      %v2584 = vadd.f32 %v2378, %v2518
      %v2585 = vadd.f32 %v2379, %v2521
      %v2586 = vadd.f32 %v2380, %v2526
      %v2587 = vadd.f32 %v2381, %v2529
      %v2588 = vadd.f32 %v2382, %v2534
      %v2589 = vadd.f32 %v2383, %v2537
      %v2590 = vadd.f32 %v2384, %v2542
      %v2591 = vadd.f32 %v2385, %v2545
      %v2592 = vadd.f32 %v2386, %v2550
      %v2593 = vadd.f32 %v2387, %v2553
      %v2594 = vadd.f32 %v2388, %v2558
      %v2595 = vadd.f32 %v2389, %v2561
      %v2596 = vld [vmem:[%s4] sm:$0x1]
      %v2598 = vlaneseq
      %v2599 = vshrl.u32 %v2598, 7
      %v2600 = vsub.s32 0, %v2599
      %v2601 = vrot.slane %v2596, %v2600
      %v2603 = vadd.f32 %v2564, %v2601
      %v2604 = vadd.f32 %v2565, %v2601
      %v2605 = vadd.f32 %v2566, %v2601
      %v2606 = vadd.f32 %v2567, %v2601
      %v2607 = vadd.f32 %v2568, %v2601
      %v2608 = vadd.f32 %v2569, %v2601
      %v2609 = vadd.f32 %v2570, %v2601
      %v2610 = vadd.f32 %v2571, %v2601
      %v2611 = vadd.f32 %v2572, %v2601
      %v2612 = vadd.f32 %v2573, %v2601
      %v2613 = vadd.f32 %v2574, %v2601
      %v2614 = vadd.f32 %v2575, %v2601
      %v2615 = vadd.f32 %v2576, %v2601
      %v2616 = vadd.f32 %v2577, %v2601
      %v2617 = vadd.f32 %v2578, %v2601
      %v2618 = vadd.f32 %v2579, %v2601
      %v2619 = vadd.f32 %v2580, %v2601
      %v2620 = vadd.f32 %v2581, %v2601
      %v2621 = vadd.f32 %v2582, %v2601
      %v2622 = vadd.f32 %v2583, %v2601
      %v2623 = vadd.f32 %v2584, %v2601
      %v2624 = vadd.f32 %v2585, %v2601
      %v2625 = vadd.f32 %v2586, %v2601
      %v2626 = vadd.f32 %v2587, %v2601
      %v2627 = vadd.f32 %v2588, %v2601
      %v2628 = vadd.f32 %v2589, %v2601
      %v2629 = vadd.f32 %v2590, %v2601
      %v2630 = vadd.f32 %v2591, %v2601
      %v2631 = vadd.f32 %v2592, %v2601
      %v2632 = vadd.f32 %v2593, %v2601
      %v2633 = vadd.f32 %v2594, %v2601
      %v2634 = vadd.f32 %v2595, %v2601
      %vm2635 = vcmask 31744
      %2636 = vst.msk [vmem:[%s329] sm:$0xff] %vm2635, %v2603
      %2637 = vst.msk [vmem:[%s329 + $0x8] sm:$0xff] %vm2635, %v2604
      %2638 = vst.msk [vmem:[%s329 + $0x10] sm:$0xff] %vm2635, %v2605
      %2639 = vst.msk [vmem:[%s329 + $0x18] sm:$0xff] %vm2635, %v2606
      %2640 = vst.msk [vmem:[%s329 + $0x20] sm:$0xff] %vm2635, %v2607
      %2641 = vst.msk [vmem:[%s329 + $0x28] sm:$0xff] %vm2635, %v2608
      %2642 = vst.msk [vmem:[%s329 + $0x30] sm:$0xff] %vm2635, %v2609
      %2643 = vst.msk [vmem:[%s329 + $0x38] sm:$0xff] %vm2635, %v2610
      %2644 = vst.msk [vmem:[%s329 + $0x40] sm:$0xff] %vm2635, %v2611
      %2645 = vst.msk [vmem:[%s329 + $0x48] sm:$0xff] %vm2635, %v2612
      %2646 = vst.msk [vmem:[%s329 + $0x50] sm:$0xff] %vm2635, %v2613
      %2647 = vst.msk [vmem:[%s329 + $0x58] sm:$0xff] %vm2635, %v2614
      %2648 = vst.msk [vmem:[%s329 + $0x60] sm:$0xff] %vm2635, %v2615
      %2649 = vst.msk [vmem:[%s329 + $0x68] sm:$0xff] %vm2635, %v2616
      %2650 = vst.msk [vmem:[%s329 + $0x70] sm:$0xff] %vm2635, %v2617
      %2651 = vst.msk [vmem:[%s329 + $0x78] sm:$0xff] %vm2635, %v2618
      %2652 = vst.msk [vmem:[%s329 + $0x80] sm:$0xff] %vm2635, %v2619
      %2653 = vst.msk [vmem:[%s329 + $0x88] sm:$0xff] %vm2635, %v2620
      %2654 = vst.msk [vmem:[%s329 + $0x90] sm:$0xff] %vm2635, %v2621
      %2655 = vst.msk [vmem:[%s329 + $0x98] sm:$0xff] %vm2635, %v2622
      %2656 = vst.msk [vmem:[%s329 + $0xa0] sm:$0xff] %vm2635, %v2623
      %2657 = vst.msk [vmem:[%s329 + $0xa8] sm:$0xff] %vm2635, %v2624
      %2658 = vst.msk [vmem:[%s329 + $0xb0] sm:$0xff] %vm2635, %v2625
      %2659 = vst.msk [vmem:[%s329 + $0xb8] sm:$0xff] %vm2635, %v2626
      %2660 = vst.msk [vmem:[%s329 + $0xc0] sm:$0xff] %vm2635, %v2627
      %2661 = vst.msk [vmem:[%s329 + $0xc8] sm:$0xff] %vm2635, %v2628
      %2662 = vst.msk [vmem:[%s329 + $0xd0] sm:$0xff] %vm2635, %v2629
      %2663 = vst.msk [vmem:[%s329 + $0xd8] sm:$0xff] %vm2635, %v2630
      %2664 = vst.msk [vmem:[%s329 + $0xe0] sm:$0xff] %vm2635, %v2631
      %2665 = vst.msk [vmem:[%s329 + $0xe8] sm:$0xff] %vm2635, %v2632
      %2666 = vst.msk [vmem:[%s329 + $0xf0] sm:$0xff] %vm2635, %v2633
      %2667 = vst.msk [vmem:[%s329 + $0xf8] sm:$0xff] %vm2635, %v2634
      %v2668 = vsel %vm2635, %v2603, 0.0
      %v2669 = vsel %vm2635, %v2604, 0.0
      %v2670 = vadd.f32 %v2668, %v2669
      %v2671 = vsel %vm2635, %v2605, 0.0
      %v2672 = vadd.f32 %v2670, %v2671
      %v2673 = vsel %vm2635, %v2606, 0.0
      %v2674 = vadd.f32 %v2672, %v2673
      %v2675 = vsel %vm2635, %v2607, 0.0
      %v2676 = vadd.f32 %v2674, %v2675
      %v2677 = vsel %vm2635, %v2608, 0.0
      %v2678 = vadd.f32 %v2676, %v2677
      %v2679 = vsel %vm2635, %v2609, 0.0
      %v2680 = vadd.f32 %v2678, %v2679
      %v2681 = vsel %vm2635, %v2610, 0.0
      %v2682 = vadd.f32 %v2680, %v2681
      %v2683 = vsel %vm2635, %v2611, 0.0
      %v2684 = vadd.f32 %v2682, %v2683
      %v2685 = vsel %vm2635, %v2612, 0.0
      %v2686 = vadd.f32 %v2684, %v2685
      %v2687 = vsel %vm2635, %v2613, 0.0
      %v2688 = vadd.f32 %v2686, %v2687
      %v2689 = vsel %vm2635, %v2614, 0.0
      %v2690 = vadd.f32 %v2688, %v2689
      %v2691 = vsel %vm2635, %v2615, 0.0
      %v2692 = vadd.f32 %v2690, %v2691
      %v2693 = vsel %vm2635, %v2616, 0.0
      %v2694 = vadd.f32 %v2692, %v2693
      %v2695 = vsel %vm2635, %v2617, 0.0
      %v2696 = vadd.f32 %v2694, %v2695
      %v2697 = vsel %vm2635, %v2618, 0.0
      %v2698 = vadd.f32 %v2696, %v2697
      %v2699 = vsel %vm2635, %v2619, 0.0
      %v2700 = vadd.f32 %v2698, %v2699
      %v2701 = vsel %vm2635, %v2620, 0.0
      %v2702 = vadd.f32 %v2700, %v2701
      %v2703 = vsel %vm2635, %v2621, 0.0
      %v2704 = vadd.f32 %v2702, %v2703
      %v2705 = vsel %vm2635, %v2622, 0.0
      %v2706 = vadd.f32 %v2704, %v2705
      %v2707 = vsel %vm2635, %v2623, 0.0
      %v2708 = vadd.f32 %v2706, %v2707
      %v2709 = vsel %vm2635, %v2624, 0.0
      %v2710 = vadd.f32 %v2708, %v2709
      %v2711 = vsel %vm2635, %v2625, 0.0
      %v2712 = vadd.f32 %v2710, %v2711
      %v2713 = vsel %vm2635, %v2626, 0.0
      %v2714 = vadd.f32 %v2712, %v2713
      %v2715 = vsel %vm2635, %v2627, 0.0
      %v2716 = vadd.f32 %v2714, %v2715
      %v2717 = vsel %vm2635, %v2628, 0.0
      %v2718 = vadd.f32 %v2716, %v2717
      %v2719 = vsel %vm2635, %v2629, 0.0
      %v2720 = vadd.f32 %v2718, %v2719
      %v2721 = vsel %vm2635, %v2630, 0.0
      %v2722 = vadd.f32 %v2720, %v2721
      %v2723 = vsel %vm2635, %v2631, 0.0
      %v2724 = vadd.f32 %v2722, %v2723
      %v2725 = vsel %vm2635, %v2632, 0.0
      %v2726 = vadd.f32 %v2724, %v2725
      %v2727 = vsel %vm2635, %v2633, 0.0
      %v2728 = vadd.f32 %v2726, %v2727
      %v2729 = vsel %vm2635, %v2634, 0.0
      %v2730 = vadd.f32 %v2728, %v2729
      %v2731 = vrot.slane %v2730, 4
      %v2732 = vadd.f32 %v2730, %v2731
      %v2733 = vrot.slane %v2732, 2
      %v2734 = vadd.f32 %v2732, %v2733
      %v2735 = vrot.slane %v2734, 1
      %v2736 = vadd.f32 %v2734, %v2735
      %vm2737 = vcmask 24576
      %2738 = vst.msk [vmem:[%s332] sm:$0x1] %vm2737, %v2736
      %v2739 = vmul.f32 %v2603, %v2603
      %v2740 = vmul.f32 %v2604, %v2604
      %v2741 = vmul.f32 %v2605, %v2605
      %v2742 = vmul.f32 %v2606, %v2606
      %v2743 = vmul.f32 %v2607, %v2607
      %v2744 = vmul.f32 %v2608, %v2608
      %v2745 = vmul.f32 %v2609, %v2609
      %v2746 = vmul.f32 %v2610, %v2610
      %v2747 = vmul.f32 %v2611, %v2611
      %v2748 = vmul.f32 %v2612, %v2612
      %v2749 = vmul.f32 %v2613, %v2613
      %v2750 = vmul.f32 %v2614, %v2614
      %v2751 = vmul.f32 %v2615, %v2615
      %v2752 = vmul.f32 %v2616, %v2616
      %v2753 = vmul.f32 %v2617, %v2617
      %v2754 = vmul.f32 %v2618, %v2618
      %v2755 = vmul.f32 %v2619, %v2619
      %v2756 = vmul.f32 %v2620, %v2620
      %v2757 = vmul.f32 %v2621, %v2621
      %v2758 = vmul.f32 %v2622, %v2622
      %v2759 = vmul.f32 %v2623, %v2623
      %v2760 = vmul.f32 %v2624, %v2624
      %v2761 = vmul.f32 %v2625, %v2625
      %v2762 = vmul.f32 %v2626, %v2626
      %v2763 = vmul.f32 %v2627, %v2627
      %v2764 = vmul.f32 %v2628, %v2628
      %v2765 = vmul.f32 %v2629, %v2629
      %v2766 = vmul.f32 %v2630, %v2630
      %v2767 = vmul.f32 %v2631, %v2631
      %v2768 = vmul.f32 %v2632, %v2632
      %v2769 = vmul.f32 %v2633, %v2633
      %v2770 = vmul.f32 %v2634, %v2634
      %v2771 = vsel %vm2635, %v2739, 0.0
      %v2772 = vsel %vm2635, %v2740, 0.0
      %v2773 = vadd.f32 %v2771, %v2772
      %v2774 = vsel %vm2635, %v2741, 0.0
      %v2775 = vadd.f32 %v2773, %v2774
      %v2776 = vsel %vm2635, %v2742, 0.0
      %v2777 = vadd.f32 %v2775, %v2776
      %v2778 = vsel %vm2635, %v2743, 0.0
      %v2779 = vadd.f32 %v2777, %v2778
      %v2780 = vsel %vm2635, %v2744, 0.0
      %v2781 = vadd.f32 %v2779, %v2780
      %v2782 = vsel %vm2635, %v2745, 0.0
      %v2783 = vadd.f32 %v2781, %v2782
      %v2784 = vsel %vm2635, %v2746, 0.0
      %v2785 = vadd.f32 %v2783, %v2784
      %v2786 = vsel %vm2635, %v2747, 0.0
      %v2787 = vadd.f32 %v2785, %v2786
      %v2788 = vsel %vm2635, %v2748, 0.0
      %v2789 = vadd.f32 %v2787, %v2788
      %v2790 = vsel %vm2635, %v2749, 0.0
      %v2791 = vadd.f32 %v2789, %v2790
      %v2792 = vsel %vm2635, %v2750, 0.0
      %v2793 = vadd.f32 %v2791, %v2792
      %v2794 = vsel %vm2635, %v2751, 0.0
      %v2795 = vadd.f32 %v2793, %v2794
      %v2796 = vsel %vm2635, %v2752, 0.0
      %v2797 = vadd.f32 %v2795, %v2796
      %v2798 = vsel %vm2635, %v2753, 0.0
      %v2799 = vadd.f32 %v2797, %v2798
      %v2800 = vsel %vm2635, %v2754, 0.0
      %v2801 = vadd.f32 %v2799, %v2800
      %v2802 = vsel %vm2635, %v2755, 0.0
      %v2803 = vadd.f32 %v2801, %v2802
      %v2804 = vsel %vm2635, %v2756, 0.0
      %v2805 = vadd.f32 %v2803, %v2804
      %v2806 = vsel %vm2635, %v2757, 0.0
      %v2807 = vadd.f32 %v2805, %v2806
      %v2808 = vsel %vm2635, %v2758, 0.0
      %v2809 = vadd.f32 %v2807, %v2808
      %v2810 = vsel %vm2635, %v2759, 0.0
      %v2811 = vadd.f32 %v2809, %v2810
      %v2812 = vsel %vm2635, %v2760, 0.0
      %v2813 = vadd.f32 %v2811, %v2812
      %v2814 = vsel %vm2635, %v2761, 0.0
      %v2815 = vadd.f32 %v2813, %v2814
      %v2816 = vsel %vm2635, %v2762, 0.0
      %v2817 = vadd.f32 %v2815, %v2816
      %v2818 = vsel %vm2635, %v2763, 0.0
      %v2819 = vadd.f32 %v2817, %v2818
      %v2820 = vsel %vm2635, %v2764, 0.0
      %v2821 = vadd.f32 %v2819, %v2820
      %v2822 = vsel %vm2635, %v2765, 0.0
      %v2823 = vadd.f32 %v2821, %v2822
      %v2824 = vsel %vm2635, %v2766, 0.0
      %v2825 = vadd.f32 %v2823, %v2824
      %v2826 = vsel %vm2635, %v2767, 0.0
      %v2827 = vadd.f32 %v2825, %v2826
      %v2828 = vsel %vm2635, %v2768, 0.0
      %v2829 = vadd.f32 %v2827, %v2828
      %v2830 = vsel %vm2635, %v2769, 0.0
      %v2831 = vadd.f32 %v2829, %v2830
      %v2832 = vsel %vm2635, %v2770, 0.0
      %v2833 = vadd.f32 %v2831, %v2832
      %v2834 = vrot.slane %v2833, 4
      %v2835 = vadd.f32 %v2833, %v2834
      %v2836 = vrot.slane %v2835, 2
      %v2837 = vadd.f32 %v2835, %v2836
      %v2838 = vrot.slane %v2837, 1
      %v2839 = vadd.f32 %v2837, %v2838
      %2840 = vst.msk [vmem:[%s335] sm:$0x1] %vm2737, %v2839
      %p2841 = scmp.lt.s32.totalorder %s19, 1
      %s2842 = scalar_select %p2841, %s19, 1
      %s2843 = smul.addr %s2842, 32
      %s2844 = smul.addr %s2843, 8
      %s2845 = scalar_lea.vmem %s5, %s2844
      %p2846 = scmp.lt.s32.totalorder %s19, 1
      %s2847 = scalar_select %p2846, %s19, 1
      %s2848 = scalar_lea.vmem %s6, %s2847
      %p2849 = scmp.lt.s32.totalorder %s19, 1
      %s2850 = scalar_select %p2849, %s19, 1
      %s2851 = scalar_lea.vmem %s7, %s2850
      // Predicated region
      $region41: #{transformer_up_forward.8} parent=39 // pred_check
        %p2852 = pneg %p157
      $region42: #{transformer_up_forward.8} parent=39 // pred_check_branch
        %2854 = sbr.rel (%p2852) target = $region44
      $region43: #{transformer_up_forward.8} parent=39 // pred_region
        _
      $region44: #{transformer_up_forward.8} parent=39 // pred_fallthru
        _
      // Predicated region
      $region45: #{transformer_up_forward.8} parent=39 // pred_check
        %p2855 = pneg %p183
      $region46: #{transformer_up_forward.8} parent=39 // pred_check_branch
        %2857 = sbr.rel (%p2855) target = $region48
      $region47: #{transformer_up_forward.8} parent=39 // pred_region
        _
      $region48: #{transformer_up_forward.8} parent=39 // pred_fallthru
        _
      // Predicated region
      $region49: #{transformer_up_forward.8} parent=39 // pred_check
        %p2858 = pneg %p209
      $region50: #{transformer_up_forward.8} parent=39 // pred_check_branch
        %2860 = sbr.rel (%p2858) target = $region52
      $region51: #{transformer_up_forward.8} parent=39 // pred_region
        _
      $region52: #{transformer_up_forward.8} parent=39 // pred_fallthru
        _
    $region40: #{transformer_up_forward.8} parent=5 // pred_fallthru
      _
    %p2861 = scmp.le.s32.totalorder 2, %s14
    // Predicated region
    $region53: #{transformer_up_forward.8} parent=5 // pred_check
      %p2862 = pneg %p2861
    $region54: #{transformer_up_forward.8} parent=5 // pred_check_branch
      %2864 = sbr.rel (%p2862) target = $region56
    $region55: #{transformer_up_forward.8} parent=5 // pred_region
      %s2865 = ssub.s32 %s14, 2
      // Predicated region
      $region57: #{transformer_up_forward.8} parent=55 // pred_check
        %p2866 = pneg %p163
      $region58: #{transformer_up_forward.8} parent=55 // pred_check_branch
        %2868 = sbr.rel (%p2866) target = $region60
      $region59: #{transformer_up_forward.8} parent=55 // pred_region
        %p2869 = scmp.lt.s32.totalorder %s20, 1
        %s2870 = scalar_select %p2869, %s20, 1
        %s2871 = smul.addr %s2870, 32
        %s2872 = smul.addr %s2871, 8
        %s2873 = scalar_lea.vmem %s5, %s2872
      $region60: #{transformer_up_forward.8} parent=55 // pred_fallthru
        _
      // Predicated region
      $region61: #{transformer_up_forward.8} parent=55 // pred_check
        %p2874 = pneg %p189
      $region62: #{transformer_up_forward.8} parent=55 // pred_check_branch
        %2876 = sbr.rel (%p2874) target = $region64
      $region63: #{transformer_up_forward.8} parent=55 // pred_region
        %p2877 = scmp.lt.s32.totalorder %s20, 1
        %s2878 = scalar_select %p2877, %s20, 1
        %s2879 = scalar_lea.vmem %s6, %s2878
      $region64: #{transformer_up_forward.8} parent=55 // pred_fallthru
        _
      // Predicated region
      $region65: #{transformer_up_forward.8} parent=55 // pred_check
        %p2880 = pneg %p215
      $region66: #{transformer_up_forward.8} parent=55 // pred_check_branch
        %2882 = sbr.rel (%p2880) target = $region68
      $region67: #{transformer_up_forward.8} parent=55 // pred_region
        %p2883 = scmp.lt.s32.totalorder %s20, 1
        %s2884 = scalar_select %p2883, %s20, 1
        %s2885 = scalar_lea.vmem %s7, %s2884
      $region68: #{transformer_up_forward.8} parent=55 // pred_fallthru
        _
    $region56: #{transformer_up_forward.8} parent=5 // pred_fallthru
      _
  $region6: #{transformer_up_forward.8} parent=0 // loop_footer
    %s18 = sadd.s32 1, %s14
  $region7: #{transformer_up_forward.8} parent=0 // loop_footer_branch
    %13 = sbr.rel target = $region3
  $region8: #{transformer_up_forward.8} parent=0 // loop_exit
    _

// kernel: transformer_up_forward.11
$region0: #{transformer_up_forward.11}
  #allocation0 [shape = 'u32[]', space=smem, size = 0x4, offset = 0x4, fixed_abs, tag = 'smem constant byte address 0x4 - core index']
  #allocation1 [shape = 'u32[144,128]{1,0:T(1,128)}', space=vmem, size = 0x12000, scoped, tag = 'internal scratch']
  %s0 = inlined_call_operand.vmem [shape: bf16[2,288,4], index: 0, kind: input, shape index: {}]
  %s1 = inlined_call_operand.vmem [shape: bf16[2,288,4], index: 1, kind: input, shape index: {}]
  %s2 = inlined_call_operand.vmem [shape: bf16[2,288,4], index: 2, kind: input, shape index: {}]
  %s3 = inlined_call_operand.vmem [shape: bf16[9,4,4], index: 3, kind: input, shape index: {}]
  %s4 = inlined_call_operand.vmem [shape: f32[1,4], index: 4, kind: input, shape index: {}]
  %s5 = inlined_call_operand.vmem [shape: f32[2,256,4], index: 5, kind: output, shape index: {0}]
  %s6 = inlined_call_operand.vmem [shape: f32[2,1,4], index: 6, kind: output, shape index: {1}]
  %s7 = inlined_call_operand.vmem [shape: f32[2,1,4], index: 7, kind: output, shape index: {2}]
  %8 = xla_tuple %s5, %s6, %s7
  %s9 = sld [smem:[#allocation0]]
  $region69: #{transformer_up_forward.11} parent=0
    _
  %s11 = ssub.s32 1, %s9
  %s12 = scalar_select 0, %s11, %s9
  loop: start=0, step=1, limit=4
  $region2: #{transformer_up_forward.11} parent=0 // loop_pre_header
    _
  $region3: #{transformer_up_forward.11} parent=0 // loop_header
    %s14 = sphi 0, %s18
    %p15 = scmp.ge.s32.totalorder %s14, 4
    %s24 = sphi 0, %s26
    %s27 = sphi 0, %s24
    %s28 = sphi 0, %s27
    %s44 = sphi 0, %s28
    %s50 = sphi 0, %s52
    %s53 = sphi 0, %s50
    %s54 = sphi 0, %s53
    %s70 = sphi 0, %s54
    %s76 = sphi 0, %s78
    %s79 = sphi 0, %s76
    %s80 = sphi 0, %s79
    %s96 = sphi 0, %s80
    %s100 = sphi 0, %s100
    %s102 = sphi 0, %s100
    %s103 = sphi 0, %s102
    %s117 = sphi 0, %s103
    %s121 = sphi 0, %s121
    %s123 = sphi 0, %s121
    %s124 = sphi 0, %s123
    %s138 = sphi 0, %s124
    %s144 = sphi 0, %s146
    %s147 = sphi 0, %s144
    %s148 = sphi 0, %s147
    %s164 = sphi 0, %s148
    %s170 = sphi 0, %s172
    %s173 = sphi 0, %s170
    %s174 = sphi 0, %s173
    %s190 = sphi 0, %s174
    %s196 = sphi 0, %s198
    %s199 = sphi 0, %s196
    %s200 = sphi 0, %s199
    %s216 = sphi 0, %s200
  $region4: #{transformer_up_forward.11} parent=0 // loop_header_branch
    %17 = sbr.rel (%p15) target = $region8
  $region5: #{transformer_up_forward.11} parent=0 // loop_body
    %s19 = ssub.s32 %s14, 1
    %s20 = ssub.s32 %s14, 2
    %s21 = sadd.s32 %s14, 1
    %s22 = ssub.s32 %s14, %s21
    %p23 = scmp.eq.s32.totalorder %s22, 0
    %s25 = sadd.s32 %s24, 1
    %s26 = scalar_select %p23, %s24, %s25
    %p29 = pneg %p23
    %p30 = scmp.eq.s32.totalorder %s14, 1
    %p31 = por %p29, %p30
    %p32 = scmp.ne.s32.totalorder %s24, %s27
    %p33 = scmp.eq.s32.totalorder %s14, 0
    %p34 = por %p32, %p33
    %p35 = scmp.ne.s32.totalorder %s24, %s27
    %p36 = scmp.eq.s32.totalorder %s19, 1
    %p37 = por %p35, %p36
    %p38 = scmp.ne.s32.totalorder %s27, %s28
    %p39 = scmp.eq.s32.totalorder %s19, 0
    %p40 = por %p38, %p39
    %p41 = scmp.ne.s32.totalorder %s27, %s28
    %p42 = scmp.eq.s32.totalorder %s20, 1
    %p43 = por %p41, %p42
    %p45 = scmp.ne.s32.totalorder %s28, %s44
    %p46 = scmp.eq.s32.totalorder %s20, 0
    %p47 = por %p45, %p46
    %s48 = ssub.s32 %s14, %s21
    %p49 = scmp.eq.s32.totalorder %s48, 0
    %s51 = sadd.s32 %s50, 1
    %s52 = scalar_select %p49, %s50, %s51
    %p55 = pneg %p49
    %p56 = scmp.eq.s32.totalorder %s14, 1
    %p57 = por %p55, %p56
    %p58 = scmp.ne.s32.totalorder %s50, %s53
    %p59 = scmp.eq.s32.totalorder %s14, 0
    %p60 = por %p58, %p59
    %p61 = scmp.ne.s32.totalorder %s50, %s53
    %p62 = scmp.eq.s32.totalorder %s19, 1
    %p63 = por %p61, %p62
    %p64 = scmp.ne.s32.totalorder %s53, %s54
    %p65 = scmp.eq.s32.totalorder %s19, 0
    %p66 = por %p64, %p65
    %p67 = scmp.ne.s32.totalorder %s53, %s54
    %p68 = scmp.eq.s32.totalorder %s20, 1
    %p69 = por %p67, %p68
    %p71 = scmp.ne.s32.totalorder %s54, %s70
    %p72 = scmp.eq.s32.totalorder %s20, 0
    %p73 = por %p71, %p72
    %s74 = ssub.s32 %s14, %s21
    %p75 = scmp.eq.s32.totalorder %s74, 0
    %s77 = sadd.s32 %s76, 1
    %s78 = scalar_select %p75, %s76, %s77
    %p81 = pneg %p75
    %p82 = scmp.eq.s32.totalorder %s14, 1
    %p83 = por %p81, %p82
    %p84 = scmp.ne.s32.totalorder %s76, %s79
    %p85 = scmp.eq.s32.totalorder %s14, 0
    %p86 = por %p84, %p85
    %p87 = scmp.ne.s32.totalorder %s76, %s79
    %p88 = scmp.eq.s32.totalorder %s19, 1
    %p89 = por %p87, %p88
    %p90 = scmp.ne.s32.totalorder %s79, %s80
    %p91 = scmp.eq.s32.totalorder %s19, 0
    %p92 = por %p90, %p91
    %p93 = scmp.ne.s32.totalorder %s79, %s80
    %p94 = scmp.eq.s32.totalorder %s20, 1
    %p95 = por %p93, %p94
    %p97 = scmp.ne.s32.totalorder %s80, %s96
    %p98 = scmp.eq.s32.totalorder %s20, 0
    %p99 = por %p97, %p98
    %s101 = sadd.s32 %s100, 1
    %p104 = scmp.eq.s32.totalorder %s14, 1
    %p105 = scmp.ne.s32.totalorder %s100, %s102
    %p106 = scmp.eq.s32.totalorder %s14, 0
    %p107 = por %p105, %p106
    %p108 = scmp.ne.s32.totalorder %s100, %s102
    %p109 = scmp.eq.s32.totalorder %s19, 1
    %p110 = por %p108, %p109
    %p111 = scmp.ne.s32.totalorder %s102, %s103
    %p112 = scmp.eq.s32.totalorder %s19, 0
    %p113 = por %p111, %p112
    %p114 = scmp.ne.s32.totalorder %s102, %s103
    %p115 = scmp.eq.s32.totalorder %s20, 1
    %p116 = por %p114, %p115
    %p118 = scmp.ne.s32.totalorder %s103, %s117
    %p119 = scmp.eq.s32.totalorder %s20, 0
    %p120 = por %p118, %p119
    %s122 = sadd.s32 %s121, 1
    %p125 = scmp.eq.s32.totalorder %s14, 1
    %p126 = scmp.ne.s32.totalorder %s121, %s123
    %p127 = scmp.eq.s32.totalorder %s14, 0
    %p128 = por %p126, %p127
    %p129 = scmp.ne.s32.totalorder %s121, %s123
    %p130 = scmp.eq.s32.totalorder %s19, 1
    %p131 = por %p129, %p130
    %p132 = scmp.ne.s32.totalorder %s123, %s124
    %p133 = scmp.eq.s32.totalorder %s19, 0
    %p134 = por %p132, %p133
    %p135 = scmp.ne.s32.totalorder %s123, %s124
    %p136 = scmp.eq.s32.totalorder %s20, 1
    %p137 = por %p135, %p136
    %p139 = scmp.ne.s32.totalorder %s124, %s138
    %p140 = scmp.eq.s32.totalorder %s20, 0
    %p141 = por %p139, %p140
    %s142 = ssub.s32 %s14, %s21
    %p143 = scmp.eq.s32.totalorder %s142, 0
    %s145 = sadd.s32 %s144, 1
    %s146 = scalar_select %p143, %s144, %s145
    %p149 = pneg %p143
    %p150 = scmp.eq.s32.totalorder %s14, 1
    %p151 = por %p149, %p150
    %p152 = scmp.ne.s32.totalorder %s144, %s147
    %p153 = scmp.eq.s32.totalorder %s14, 0
    %p154 = por %p152, %p153
    %p155 = scmp.ne.s32.totalorder %s144, %s147
    %p156 = scmp.eq.s32.totalorder %s19, 1
    %p157 = por %p155, %p156
    %p158 = scmp.ne.s32.totalorder %s147, %s148
    %p159 = scmp.eq.s32.totalorder %s19, 0
    %p160 = por %p158, %p159
    %p161 = scmp.ne.s32.totalorder %s147, %s148
    %p162 = scmp.eq.s32.totalorder %s20, 1
    %p163 = por %p161, %p162
    %p165 = scmp.ne.s32.totalorder %s148, %s164
    %p166 = scmp.eq.s32.totalorder %s20, 0
    %p167 = por %p165, %p166
    %s168 = ssub.s32 %s14, %s21
    %p169 = scmp.eq.s32.totalorder %s168, 0
    %s171 = sadd.s32 %s170, 1
    %s172 = scalar_select %p169, %s170, %s171
    %p175 = pneg %p169
    %p176 = scmp.eq.s32.totalorder %s14, 1
    %p177 = por %p175, %p176
    %p178 = scmp.ne.s32.totalorder %s170, %s173
    %p179 = scmp.eq.s32.totalorder %s14, 0
    %p180 = por %p178, %p179
    %p181 = scmp.ne.s32.totalorder %s170, %s173
    %p182 = scmp.eq.s32.totalorder %s19, 1
    %p183 = por %p181, %p182
    %p184 = scmp.ne.s32.totalorder %s173, %s174
    %p185 = scmp.eq.s32.totalorder %s19, 0
    %p186 = por %p184, %p185
    %p187 = scmp.ne.s32.totalorder %s173, %s174
    %p188 = scmp.eq.s32.totalorder %s20, 1
    %p189 = por %p187, %p188
    %p191 = scmp.ne.s32.totalorder %s174, %s190
    %p192 = scmp.eq.s32.totalorder %s20, 0
    %p193 = por %p191, %p192
    %s194 = ssub.s32 %s14, %s21
    %p195 = scmp.eq.s32.totalorder %s194, 0
    %s197 = sadd.s32 %s196, 1
    %s198 = scalar_select %p195, %s196, %s197
    %p201 = pneg %p195
    %p202 = scmp.eq.s32.totalorder %s14, 1
    %p203 = por %p201, %p202
    %p204 = scmp.ne.s32.totalorder %s196, %s199
    %p205 = scmp.eq.s32.totalorder %s14, 0
    %p206 = por %p204, %p205
    %p207 = scmp.ne.s32.totalorder %s196, %s199
    %p208 = scmp.eq.s32.totalorder %s19, 1
    %p209 = por %p207, %p208
    %p210 = scmp.ne.s32.totalorder %s199, %s200
    %p211 = scmp.eq.s32.totalorder %s19, 0
    %p212 = por %p210, %p211
    %p213 = scmp.ne.s32.totalorder %s199, %s200
    %p214 = scmp.eq.s32.totalorder %s20, 1
    %p215 = por %p213, %p214
    %p217 = scmp.ne.s32.totalorder %s200, %s216
    %p218 = scmp.eq.s32.totalorder %s20, 0
    %p219 = por %p217, %p218
    %p220 = scmp.le.s32.totalorder 1, %s14
    %p221 = scmp.lt.s32.totalorder %s14, 3
    %p222 = pnand %p220, %p221
    %p223 = pneg %p222
    // Predicated region
    $region9: #{transformer_up_forward.11} parent=5 // pred_check
      _
    $region10: #{transformer_up_forward.11} parent=5 // pred_check_branch
      %225 = sbr.rel (%p222) target = $region12
    $region11: #{transformer_up_forward.11} parent=5 // pred_region
      %s226 = ssub.s32 %s14, 1
      // Predicated region
      $region13: #{transformer_up_forward.11} parent=11 // pred_check
        %p227 = pneg %p113
      $region14: #{transformer_up_forward.11} parent=11 // pred_check_branch
        %229 = sbr.rel (%p227) target = $region16
      $region15: #{transformer_up_forward.11} parent=11 // pred_region
        _
      $region16: #{transformer_up_forward.11} parent=11 // pred_fallthru
        _
      // Predicated region
      $region17: #{transformer_up_forward.11} parent=11 // pred_check
        %p230 = pneg %p134
      $region18: #{transformer_up_forward.11} parent=11 // pred_check_branch
        %232 = sbr.rel (%p230) target = $region20
      $region19: #{transformer_up_forward.11} parent=11 // pred_region
        _
      $region20: #{transformer_up_forward.11} parent=11 // pred_fallthru
        _
    $region12: #{transformer_up_forward.11} parent=5 // pred_fallthru
      _
    %p233 = scmp.lt.s32.totalorder %s14, 2
    // Predicated region
    $region21: #{transformer_up_forward.11} parent=5 // pred_check
      %p234 = pneg %p233
    $region22: #{transformer_up_forward.11} parent=5 // pred_check_branch
      %236 = sbr.rel (%p234) target = $region24
    $region23: #{transformer_up_forward.11} parent=5 // pred_region
      // Predicated region
      $region25: #{transformer_up_forward.11} parent=23 // pred_check
        %p237 = pneg %p34
      $region26: #{transformer_up_forward.11} parent=23 // pred_check_branch
        %239 = sbr.rel (%p237) target = $region28
      $region27: #{transformer_up_forward.11} parent=23 // pred_region
        %p240 = scmp.lt.s32.totalorder %s14, 1
        %s241 = scalar_select %p240, %s14, 1
        %s242 = smul.addr %s241, 36
        %s243 = smul.addr %s242, 4
        %s244 = scalar_lea.vmem %s0, %s243
      $region28: #{transformer_up_forward.11} parent=23 // pred_fallthru
        _
      // Predicated region
      $region29: #{transformer_up_forward.11} parent=23 // pred_check
        %p245 = pneg %p60
      $region30: #{transformer_up_forward.11} parent=23 // pred_check_branch
        %247 = sbr.rel (%p245) target = $region32
      $region31: #{transformer_up_forward.11} parent=23 // pred_region
        %p248 = scmp.lt.s32.totalorder %s14, 1
        %s249 = scalar_select %p248, %s14, 1
        %s250 = smul.addr %s249, 36
        %s251 = smul.addr %s250, 4
        %s252 = scalar_lea.vmem %s1, %s251
      $region32: #{transformer_up_forward.11} parent=23 // pred_fallthru
        _
      // Predicated region
      $region33: #{transformer_up_forward.11} parent=23 // pred_check
        %p253 = pneg %p86
      $region34: #{transformer_up_forward.11} parent=23 // pred_check_branch
        %255 = sbr.rel (%p253) target = $region36
      $region35: #{transformer_up_forward.11} parent=23 // pred_region
        %p256 = scmp.lt.s32.totalorder %s14, 1
        %s257 = scalar_select %p256, %s14, 1
        %s258 = smul.addr %s257, 36
        %s259 = smul.addr %s258, 4
        %s260 = scalar_lea.vmem %s2, %s259
      $region36: #{transformer_up_forward.11} parent=23 // pred_fallthru
        _
    $region24: #{transformer_up_forward.11} parent=5 // pred_fallthru
      _
    %p261 = scmp.le.s32.totalorder 1, %s14
    %p262 = scmp.lt.s32.totalorder %s14, 3
    %p263 = pnand %p261, %p262
    %p264 = pneg %p263
    // Predicated region
    $region37: #{transformer_up_forward.11} parent=5 // pred_check
      _
    $region38: #{transformer_up_forward.11} parent=5 // pred_check_branch
      %266 = sbr.rel (%p263) target = $region40
    $region39: #{transformer_up_forward.11} parent=5 // pred_region
      %s267 = ssub.s32 %s14, 1
      %p268 = scmp.lt.s32.totalorder %s19, 1
      %s269 = scalar_select %p268, %s19, 1
      %s270 = smul.addr %s269, 36
      %s271 = smul.addr %s270, 4
      %s272 = scalar_lea.vmem %s0, %s271
      %p273 = pneg %p40
      %p274 = pneg %p37
      %p275 = scmp.lt.s32.totalorder %s19, 1
      %s276 = scalar_select %p275, %s19, 1
      %s277 = smul.addr %s276, 36
      %s278 = smul.addr %s277, 4
      %s279 = scalar_lea.vmem %s1, %s278
      %p280 = pneg %p66
      %p281 = pneg %p63
      %p282 = scmp.lt.s32.totalorder %s19, 1
      %s283 = scalar_select %p282, %s19, 1
      %s284 = smul.addr %s283, 36
      %s285 = smul.addr %s284, 4
      %s286 = scalar_lea.vmem %s2, %s285
      %p287 = pneg %p92
      %p288 = pneg %p89
      %p289 = pneg %p113
      %p290 = pneg %p110
      %p291 = pneg %p134
      %p292 = pneg %p131
      %p293 = pneg %p160
      %p294 = pneg %p157
      %p295 = scmp.lt.s32.totalorder %s19, 1
      %s296 = scalar_select %p295, %s19, 1
      %s297 = smul.addr %s296, 32
      %s298 = smul.addr %s297, 8
      %s299 = scalar_lea.vmem %s5, %s298
      %p300 = pneg %p186
      %p301 = pneg %p183
      %p302 = scmp.lt.s32.totalorder %s19, 1
      %s303 = scalar_select %p302, %s19, 1
      %s304 = scalar_lea.vmem %s6, %s303
      %p305 = pneg %p212
      %p306 = pneg %p209
      %p307 = scmp.lt.s32.totalorder %s19, 1
      %s308 = scalar_select %p307, %s19, 1
      %s309 = scalar_lea.vmem %s7, %s308
      %p310 = scmp.lt.s32.totalorder %s19, 1
      %s311 = scalar_select %p310, %s19, 1
      %s312 = smul.addr %s311, 36
      %s313 = smul.addr %s312, 4
      %s314 = scalar_lea.vmem %s0, %s313
      %p315 = scmp.lt.s32.totalorder %s19, 1
      %s316 = scalar_select %p315, %s19, 1
      %s317 = smul.addr %s316, 36
      %s318 = smul.addr %s317, 4
      %s319 = scalar_lea.vmem %s1, %s318
      %p320 = scmp.lt.s32.totalorder %s19, 1
      %s321 = scalar_select %p320, %s19, 1
      %s322 = smul.addr %s321, 36
      %s323 = smul.addr %s322, 4
      %s324 = scalar_lea.vmem %s2, %s323
      %p325 = scmp.lt.s32.totalorder %s19, 1
      %s326 = scalar_select %p325, %s19, 1
      %s327 = smul.addr %s326, 32
      %s328 = smul.addr %s327, 8
      %s329 = scalar_lea.vmem %s5, %s328
      %p330 = scmp.lt.s32.totalorder %s19, 1
      %s331 = scalar_select %p330, %s19, 1
      %s332 = scalar_lea.vmem %s6, %s331
      %p333 = scmp.lt.s32.totalorder %s19, 1
      %s334 = scalar_select %p333, %s19, 1
      %s335 = scalar_lea.vmem %s7, %s334
      %v337 = vld [vmem:[%s314] sm:$0xf]
      %v338 = vld [vmem:[%s314 + $0x4] sm:$0xf]
      %v339 = vld [vmem:[%s314 + $0x8] sm:$0xf]
      %v340 = vld [vmem:[%s314 + $0xc] sm:$0xf]
      %v341 = vld [vmem:[%s314 + $0x10] sm:$0xf]
      %v342 = vld [vmem:[%s314 + $0x14] sm:$0xf]
      %v343 = vld [vmem:[%s314 + $0x18] sm:$0xf]
      %v344 = vld [vmem:[%s314 + $0x1c] sm:$0xf]
      %v345 = vld [vmem:[%s314 + $0x20] sm:$0xf]
      %v346 = vld [vmem:[%s314 + $0x24] sm:$0xf]
      %v347 = vld [vmem:[%s314 + $0x28] sm:$0xf]
      %v348 = vld [vmem:[%s314 + $0x2c] sm:$0xf]
      %v349 = vld [vmem:[%s314 + $0x30] sm:$0xf]
      %v350 = vld [vmem:[%s314 + $0x34] sm:$0xf]
      %v351 = vld [vmem:[%s314 + $0x38] sm:$0xf]
      %v352 = vld [vmem:[%s314 + $0x3c] sm:$0xf]
      %v353 = vld [vmem:[%s314 + $0x40] sm:$0xf]
      %v354 = vld [vmem:[%s314 + $0x44] sm:$0xf]
      %v355 = vld [vmem:[%s314 + $0x48] sm:$0xf]
      %v356 = vld [vmem:[%s314 + $0x4c] sm:$0xf]
      %v357 = vld [vmem:[%s314 + $0x50] sm:$0xf]
      %v358 = vld [vmem:[%s314 + $0x54] sm:$0xf]
      %v359 = vld [vmem:[%s314 + $0x58] sm:$0xf]
      %v360 = vld [vmem:[%s314 + $0x5c] sm:$0xf]
      %v361 = vld [vmem:[%s314 + $0x60] sm:$0xf]
      %v362 = vld [vmem:[%s314 + $0x64] sm:$0xf]
      %v363 = vld [vmem:[%s314 + $0x68] sm:$0xf]
      %v364 = vld [vmem:[%s314 + $0x6c] sm:$0xf]
      %v365 = vld [vmem:[%s314 + $0x70] sm:$0xf]
      %v366 = vld [vmem:[%s314 + $0x74] sm:$0xf]
      %v367 = vld [vmem:[%s314 + $0x78] sm:$0xf]
      %v368 = vld [vmem:[%s314 + $0x7c] sm:$0xf]
      %v369 = vld [vmem:[%s314 + $0x80] sm:$0xf]
      %v370 = vld [vmem:[%s314 + $0x84] sm:$0xf]
      %v371 = vld [vmem:[%s314 + $0x88] sm:$0xf]
      %v372 = vld [vmem:[%s314 + $0x8c] sm:$0xf]
      %v373 = vld [vmem:[%s319] sm:$0xf]
      %v374 = vld [vmem:[%s319 + $0x4] sm:$0xf]
      %v375 = vld [vmem:[%s319 + $0x8] sm:$0xf]
      %v376 = vld [vmem:[%s319 + $0xc] sm:$0xf]
      %v377 = vld [vmem:[%s319 + $0x10] sm:$0xf]
      %v378 = vld [vmem:[%s319 + $0x14] sm:$0xf]
      %v379 = vld [vmem:[%s319 + $0x18] sm:$0xf]
      %v380 = vld [vmem:[%s319 + $0x1c] sm:$0xf]
      %v381 = vld [vmem:[%s319 + $0x20] sm:$0xf]
      %v382 = vld [vmem:[%s319 + $0x24] sm:$0xf]
      %v383 = vld [vmem:[%s319 + $0x28] sm:$0xf]
      %v384 = vld [vmem:[%s319 + $0x2c] sm:$0xf]
      %v385 = vld [vmem:[%s319 + $0x30] sm:$0xf]
      %v386 = vld [vmem:[%s319 + $0x34] sm:$0xf]
      %v387 = vld [vmem:[%s319 + $0x38] sm:$0xf]
      %v388 = vld [vmem:[%s319 + $0x3c] sm:$0xf]
      %v389 = vld [vmem:[%s319 + $0x40] sm:$0xf]
      %v390 = vld [vmem:[%s319 + $0x44] sm:$0xf]
      %v391 = vld [vmem:[%s319 + $0x48] sm:$0xf]
      %v392 = vld [vmem:[%s319 + $0x4c] sm:$0xf]
      %v393 = vld [vmem:[%s319 + $0x50] sm:$0xf]
      %v394 = vld [vmem:[%s319 + $0x54] sm:$0xf]
      %v395 = vld [vmem:[%s319 + $0x58] sm:$0xf]
      %v396 = vld [vmem:[%s319 + $0x5c] sm:$0xf]
      %v397 = vld [vmem:[%s319 + $0x60] sm:$0xf]
      %v398 = vld [vmem:[%s319 + $0x64] sm:$0xf]
      %v399 = vld [vmem:[%s319 + $0x68] sm:$0xf]
      %v400 = vld [vmem:[%s319 + $0x6c] sm:$0xf]
      %v401 = vld [vmem:[%s319 + $0x70] sm:$0xf]
      %v402 = vld [vmem:[%s319 + $0x74] sm:$0xf]
      %v403 = vld [vmem:[%s319 + $0x78] sm:$0xf]
      %v404 = vld [vmem:[%s319 + $0x7c] sm:$0xf]
      %v405 = vld [vmem:[%s319 + $0x80] sm:$0xf]
      %v406 = vld [vmem:[%s319 + $0x84] sm:$0xf]
      %v407 = vld [vmem:[%s319 + $0x88] sm:$0xf]
      %v408 = vld [vmem:[%s319 + $0x8c] sm:$0xf]
      %v409 = vld [vmem:[%s324] sm:$0xf]
      %v410 = vld [vmem:[%s324 + $0x4] sm:$0xf]
      %v411 = vld [vmem:[%s324 + $0x8] sm:$0xf]
      %v412 = vld [vmem:[%s324 + $0xc] sm:$0xf]
      %v413 = vld [vmem:[%s324 + $0x10] sm:$0xf]
      %v414 = vld [vmem:[%s324 + $0x14] sm:$0xf]
      %v415 = vld [vmem:[%s324 + $0x18] sm:$0xf]
      %v416 = vld [vmem:[%s324 + $0x1c] sm:$0xf]
      %v417 = vld [vmem:[%s324 + $0x20] sm:$0xf]
      %v418 = vld [vmem:[%s324 + $0x24] sm:$0xf]
      %v419 = vld [vmem:[%s324 + $0x28] sm:$0xf]
      %v420 = vld [vmem:[%s324 + $0x2c] sm:$0xf]
      %v421 = vld [vmem:[%s324 + $0x30] sm:$0xf]
      %v422 = vld [vmem:[%s324 + $0x34] sm:$0xf]
      %v423 = vld [vmem:[%s324 + $0x38] sm:$0xf]
      %v424 = vld [vmem:[%s324 + $0x3c] sm:$0xf]
      %v425 = vld [vmem:[%s324 + $0x40] sm:$0xf]
      %v426 = vld [vmem:[%s324 + $0x44] sm:$0xf]
      %v427 = vld [vmem:[%s324 + $0x48] sm:$0xf]
      %v428 = vld [vmem:[%s324 + $0x4c] sm:$0xf]
      %v429 = vld [vmem:[%s324 + $0x50] sm:$0xf]
      %v430 = vld [vmem:[%s324 + $0x54] sm:$0xf]
      %v431 = vld [vmem:[%s324 + $0x58] sm:$0xf]
      %v432 = vld [vmem:[%s324 + $0x5c] sm:$0xf]
      %v433 = vld [vmem:[%s324 + $0x60] sm:$0xf]
      %v434 = vld [vmem:[%s324 + $0x64] sm:$0xf]
      %v435 = vld [vmem:[%s324 + $0x68] sm:$0xf]
      %v436 = vld [vmem:[%s324 + $0x6c] sm:$0xf]
      %v437 = vld [vmem:[%s324 + $0x70] sm:$0xf]
      %v438 = vld [vmem:[%s324 + $0x74] sm:$0xf]
      %v439 = vld [vmem:[%s324 + $0x78] sm:$0xf]
      %v440 = vld [vmem:[%s324 + $0x7c] sm:$0xf]
      %v441 = vld [vmem:[%s324 + $0x80] sm:$0xf]
      %v442 = vld [vmem:[%s324 + $0x84] sm:$0xf]
      %v443 = vld [vmem:[%s324 + $0x88] sm:$0xf]
      %v444 = vld [vmem:[%s324 + $0x8c] sm:$0xf]
      %v445 = vld [vmem:[%s3] sm:$0x3]
      %s446 = scalar_lea.vmem %s3, 6
      %v447 = vld [vmem:[%s446] sm:$0x3]
      %v480 = vunpack.c.l.b16 %v339
      %v481 = vunpack.c.l.b16 %v340
      %v482 = vunpack.c.l.b16 %v341
      %v483 = vunpack.c.l.b16 %v342
      %v484 = vunpack.c.l.b16 %v343
      %v485 = vunpack.c.l.b16 %v344
      %v486 = vunpack.c.l.b16 %v345
      %v487 = vunpack.c.l.b16 %v346
      %v488 = vunpack.c.l.b16 %v347
      %v489 = vunpack.c.l.b16 %v348
      %v490 = vunpack.c.l.b16 %v349
      %v491 = vunpack.c.l.b16 %v350
      %v492 = vunpack.c.l.b16 %v351
      %v493 = vunpack.c.l.b16 %v352
      %v494 = vunpack.c.l.b16 %v353
      %v495 = vunpack.c.l.b16 %v354
      %v496 = vunpack.c.l.b16 %v355
      %v497 = vunpack.c.l.b16 %v356
      %v498 = vunpack.c.l.b16 %v357
      %v499 = vunpack.c.l.b16 %v358
      %v500 = vunpack.c.l.b16 %v359
      %v501 = vunpack.c.l.b16 %v360
      %v502 = vunpack.c.l.b16 %v361
      %v503 = vunpack.c.l.b16 %v362
      %v504 = vunpack.c.l.b16 %v363
      %v505 = vunpack.c.l.b16 %v364
      %v506 = vunpack.c.l.b16 %v365
      %v507 = vunpack.c.l.b16 %v366
      %v508 = vunpack.c.l.b16 %v367
      %v509 = vunpack.c.l.b16 %v368
      %v510 = vunpack.c.l.b16 %v369
      %v511 = vunpack.c.l.b16 %v370
      %v512 = vpack.c.b16 %v481, %v480
      %v513 = vpack.c.b16 %v483, %v482
      %v514 = vpack.c.b16 %v485, %v484
      %v515 = vpack.c.b16 %v487, %v486
      %v516 = vpack.c.b16 %v489, %v488
      %v517 = vpack.c.b16 %v491, %v490
      %v518 = vpack.c.b16 %v493, %v492
      %v519 = vpack.c.b16 %v495, %v494
      %v520 = vpack.c.b16 %v497, %v496
      %v521 = vpack.c.b16 %v499, %v498
      %v522 = vpack.c.b16 %v501, %v500
      %v523 = vpack.c.b16 %v503, %v502
      %v524 = vpack.c.b16 %v505, %v504
      %v525 = vpack.c.b16 %v507, %v506
      %v526 = vpack.c.b16 %v509, %v508
      %v527 = vpack.c.b16 %v511, %v510
      %vm528 = vcmask 31744
      %v530 = vsel %vm528, %v512, 0
      %v533 = vsel %vm528, %v513, 0
      %v536 = vsel %vm528, %v514, 0
      %v539 = vsel %vm528, %v515, 0
      %v542 = vsel %vm528, %v516, 0
      %v545 = vsel %vm528, %v517, 0
      %v548 = vsel %vm528, %v518, 0
      %v551 = vsel %vm528, %v519, 0
      %v554 = vsel %vm528, %v520, 0
      %v557 = vsel %vm528, %v521, 0
      %v560 = vsel %vm528, %v522, 0
      %v563 = vsel %vm528, %v523, 0
      %v566 = vsel %vm528, %v524, 0
      %v569 = vsel %vm528, %v525, 0
      %v572 = vsel %vm528, %v526, 0
      %v575 = vsel %vm528, %v527, 0
      %vm577 = vcmask 1041408
      %v579 = vsel %vm577, %v447, 0
      %581 = vmatprep.subr.bf16.mxu0 0
      %582 = vmatpush1.bf16.msra.mxu0 0
      %583 = vmatprep.subr.bf16.mxu0 0
      %584 = vmatpush1.bf16.msra.mxu0 0
      %585 = vmatprep.subr.bf16.mxu0 0
      %586 = vmatpush1.bf16.msra.mxu0 0
      %587 = vmatprep.subr.bf16.mxu0 0
      %588 = vmatpush1.bf16.msra.mxu0 0
      %589 = vmatprep.subr.bf16.mxu0 0
      %590 = vmatpush1.bf16.msra.mxu0 0
      %591 = vmatprep.subr.bf16.mxu0 0
      %592 = vmatpush1.bf16.msra.mxu0 0
      %593 = vmatprep.subr.bf16.mxu0 0
      %594 = vmatpush1.bf16.msra.mxu0 0
      %595 = vmatprep.subr.bf16.mxu0 0
      %596 = vmatpush1.bf16.msra.mxu0 %v579
      %597 = vmatprep.subr.bf16.mxu0 0
      %598 = vmatpush2.bf16.msra.mxu0 0
      %599 = vmatprep.subr.bf16.mxu0 0
      %600 = vmatpush2.bf16.msra.mxu0 0
      %601 = vmatprep.subr.bf16.mxu0 0
      %602 = vmatpush2.bf16.msra.mxu0 0
      %603 = vmatprep.subr.bf16.mxu0 0
      %604 = vmatpush2.bf16.msra.mxu0 0
      %605 = vmatprep.subr.bf16.mxu0 0
      %606 = vmatpush2.bf16.msra.mxu0 0
      %607 = vmatprep.subr.bf16.mxu0 0
      %608 = vmatpush2.bf16.msra.mxu0 0
      %609 = vmatprep.subr.bf16.mxu0 0
      %610 = vmatpush2.bf16.msra.mxu0 0
      %611 = vmatprep.subr.bf16.mxu0 0
      %612 = vmatpush2.bf16.msra.mxu0 0
      %613 = vmatprep.mubr.bf16.mxu0 0
      %614 = vmatmul.mubr.bf16.gmra.mxu0 %v530
      %v615 = vpop.f32.mrf.mxu0
      %v616 = vadd.f32 0.0, %v615
      %v617 = vpop.f32.mrf.mxu0
      %v618 = vpop.f32.mrf.mxu0
      %v619 = vadd.f32 0.0, %v618
      %v620 = vpop.f32.mrf.mxu0
      %621 = vmatprep.mubr.bf16.mxu0 0
      %622 = vmatmul.mubr.bf16.gmra.mxu0 %v533
      %v623 = vpop.f32.mrf.mxu0
      %v624 = vadd.f32 0.0, %v623
      %v625 = vpop.f32.mrf.mxu0
      %v626 = vpop.f32.mrf.mxu0
      %v627 = vadd.f32 0.0, %v626
      %v628 = vpop.f32.mrf.mxu0
      %629 = vmatprep.mubr.bf16.mxu0 0
      %630 = vmatmul.mubr.bf16.gmra.mxu0 %v536
      %v631 = vpop.f32.mrf.mxu0
      %v632 = vadd.f32 0.0, %v631
      %v633 = vpop.f32.mrf.mxu0
      %v634 = vpop.f32.mrf.mxu0
      %v635 = vadd.f32 0.0, %v634
      %v636 = vpop.f32.mrf.mxu0
      %637 = vmatprep.mubr.bf16.mxu0 0
      %638 = vmatmul.mubr.bf16.gmra.mxu0 %v539
      %v639 = vpop.f32.mrf.mxu0
      %v640 = vadd.f32 0.0, %v639
      %v641 = vpop.f32.mrf.mxu0
      %v642 = vpop.f32.mrf.mxu0
      %v643 = vadd.f32 0.0, %v642
      %v644 = vpop.f32.mrf.mxu0
      %645 = vmatprep.mubr.bf16.mxu0 0
      %646 = vmatmul.mubr.bf16.gmra.mxu0 %v542
      %v647 = vpop.f32.mrf.mxu0
      %v648 = vadd.f32 0.0, %v647
      %v649 = vpop.f32.mrf.mxu0
      %v650 = vpop.f32.mrf.mxu0
      %v651 = vadd.f32 0.0, %v650
      %v652 = vpop.f32.mrf.mxu0
      %653 = vmatprep.mubr.bf16.mxu0 0
      %654 = vmatmul.mubr.bf16.gmra.mxu0 %v545
      %v655 = vpop.f32.mrf.mxu0
      %v656 = vadd.f32 0.0, %v655
      %v657 = vpop.f32.mrf.mxu0
      %v658 = vpop.f32.mrf.mxu0
      %v659 = vadd.f32 0.0, %v658
      %v660 = vpop.f32.mrf.mxu0
      %661 = vmatprep.mubr.bf16.mxu0 0
      %662 = vmatmul.mubr.bf16.gmra.mxu0 %v548
      %v663 = vpop.f32.mrf.mxu0
      %v664 = vadd.f32 0.0, %v663
      %v665 = vpop.f32.mrf.mxu0
      %v666 = vpop.f32.mrf.mxu0
      %v667 = vadd.f32 0.0, %v666
      %v668 = vpop.f32.mrf.mxu0
      %669 = vmatprep.mubr.bf16.mxu0 0
      %670 = vmatmul.mubr.bf16.gmra.mxu0 %v551
      %v671 = vpop.f32.mrf.mxu0
      %v672 = vadd.f32 0.0, %v671
      %v673 = vpop.f32.mrf.mxu0
      %v674 = vpop.f32.mrf.mxu0
      %v675 = vadd.f32 0.0, %v674
      %v676 = vpop.f32.mrf.mxu0
      %677 = vmatprep.mubr.bf16.mxu0 0
      %678 = vmatmul.mubr.bf16.gmra.mxu0 %v554
      %v679 = vpop.f32.mrf.mxu0
      %v680 = vadd.f32 0.0, %v679
      %v681 = vpop.f32.mrf.mxu0
      %v682 = vpop.f32.mrf.mxu0
      %v683 = vadd.f32 0.0, %v682
      %v684 = vpop.f32.mrf.mxu0
      %685 = vmatprep.mubr.bf16.mxu0 0
      %686 = vmatmul.mubr.bf16.gmra.mxu0 %v557
      %v687 = vpop.f32.mrf.mxu0
      %v688 = vadd.f32 0.0, %v687
      %v689 = vpop.f32.mrf.mxu0
      %v690 = vpop.f32.mrf.mxu0
      %v691 = vadd.f32 0.0, %v690
      %v692 = vpop.f32.mrf.mxu0
      %693 = vmatprep.mubr.bf16.mxu0 0
      %694 = vmatmul.mubr.bf16.gmra.mxu0 %v560
      %v695 = vpop.f32.mrf.mxu0
      %v696 = vadd.f32 0.0, %v695
      %v697 = vpop.f32.mrf.mxu0
      %v698 = vpop.f32.mrf.mxu0
      %v699 = vadd.f32 0.0, %v698
      %v700 = vpop.f32.mrf.mxu0
      %701 = vmatprep.mubr.bf16.mxu0 0
      %702 = vmatmul.mubr.bf16.gmra.mxu0 %v563
      %v703 = vpop.f32.mrf.mxu0
      %v704 = vadd.f32 0.0, %v703
      %v705 = vpop.f32.mrf.mxu0
      %v706 = vpop.f32.mrf.mxu0
      %v707 = vadd.f32 0.0, %v706
      %v708 = vpop.f32.mrf.mxu0
      %709 = vmatprep.mubr.bf16.mxu0 0
      %710 = vmatmul.mubr.bf16.gmra.mxu0 %v566
      %v711 = vpop.f32.mrf.mxu0
      %v712 = vadd.f32 0.0, %v711
      %v713 = vpop.f32.mrf.mxu0
      %v714 = vpop.f32.mrf.mxu0
      %v715 = vadd.f32 0.0, %v714
      %v716 = vpop.f32.mrf.mxu0
      %717 = vmatprep.mubr.bf16.mxu0 0
      %718 = vmatmul.mubr.bf16.gmra.mxu0 %v569
      %v719 = vpop.f32.mrf.mxu0
      %v720 = vadd.f32 0.0, %v719
      %v721 = vpop.f32.mrf.mxu0
      %v722 = vpop.f32.mrf.mxu0
      %v723 = vadd.f32 0.0, %v722
      %v724 = vpop.f32.mrf.mxu0
      %725 = vmatprep.mubr.bf16.mxu0 0
      %726 = vmatmul.mubr.bf16.gmra.mxu0 %v572
      %v727 = vpop.f32.mrf.mxu0
      %v728 = vadd.f32 0.0, %v727
      %v729 = vpop.f32.mrf.mxu0
      %v730 = vpop.f32.mrf.mxu0
      %v731 = vadd.f32 0.0, %v730
      %v732 = vpop.f32.mrf.mxu0
      %733 = vmatprep.mubr.bf16.mxu0 0
      %734 = vmatmul.mubr.bf16.gmra.mxu0 %v575
      %v735 = vpop.f32.mrf.mxu0
      %v736 = vadd.f32 0.0, %v735
      %v737 = vpop.f32.mrf.mxu0
      %v738 = vpop.f32.mrf.mxu0
      %v739 = vadd.f32 0.0, %v738
      %v740 = vpop.f32.mrf.mxu0
      %741 = vdwg.mxu0
      %v744 = vunpack.c.l.b16 %v337
      %v745 = vunpack.c.l.b16 %v338
      %v746 = vpack.c.b16 %v745, %v744
      %v748 = vsel %vm528, %v746, 0
      %v751 = vsel %vm577, %v445, 0
      %753 = vmatprep.subr.bf16.mxu0 0
      %754 = vmatpush1.bf16.msra.mxu0 0
      %755 = vmatprep.subr.bf16.mxu0 0
      %756 = vmatpush1.bf16.msra.mxu0 0
      %757 = vmatprep.subr.bf16.mxu0 0
      %758 = vmatpush1.bf16.msra.mxu0 0
      %759 = vmatprep.subr.bf16.mxu0 0
      %760 = vmatpush1.bf16.msra.mxu0 0
      %761 = vmatprep.subr.bf16.mxu0 0
      %762 = vmatpush1.bf16.msra.mxu0 0
      %763 = vmatprep.subr.bf16.mxu0 0
      %764 = vmatpush1.bf16.msra.mxu0 0
      %765 = vmatprep.subr.bf16.mxu0 0
      %766 = vmatpush1.bf16.msra.mxu0 0
      %767 = vmatprep.subr.bf16.mxu0 0
      %768 = vmatpush1.bf16.msra.mxu0 %v751
      %769 = vmatprep.subr.bf16.mxu0 0
      %770 = vmatpush2.bf16.msra.mxu0 0
      %771 = vmatprep.subr.bf16.mxu0 0
      %772 = vmatpush2.bf16.msra.mxu0 0
      %773 = vmatprep.subr.bf16.mxu0 0
      %774 = vmatpush2.bf16.msra.mxu0 0
      %775 = vmatprep.subr.bf16.mxu0 0
      %776 = vmatpush2.bf16.msra.mxu0 0
      %777 = vmatprep.subr.bf16.mxu0 0
      %778 = vmatpush2.bf16.msra.mxu0 0
      %779 = vmatprep.subr.bf16.mxu0 0
      %780 = vmatpush2.bf16.msra.mxu0 0
      %781 = vmatprep.subr.bf16.mxu0 0
      %782 = vmatpush2.bf16.msra.mxu0 0
      %783 = vmatprep.subr.bf16.mxu0 0
      %784 = vmatpush2.bf16.msra.mxu0 0
      %785 = vmatprep.mubr.bf16.mxu0 0
      %786 = vmatmul.mubr.bf16.gmra.mxu0 %v748
      %v787 = vpop.f32.mrf.mxu0
      %v788 = vadd.f32 %v616, %v787
      %v789 = vpop.f32.mrf.mxu0
      %v790 = vpop.f32.mrf.mxu0
      %v791 = vadd.f32 %v619, %v790
      %v792 = vpop.f32.mrf.mxu0
      %793 = vmatprep.mubr.bf16.mxu0 0
      %794 = vmatmul.mubr.bf16.gmra.mxu0 %v530
      %v795 = vpop.f32.mrf.mxu0
      %v796 = vadd.f32 %v624, %v795
      %v797 = vpop.f32.mrf.mxu0
      %v798 = vpop.f32.mrf.mxu0
      %v799 = vadd.f32 %v627, %v798
      %v800 = vpop.f32.mrf.mxu0
      %801 = vmatprep.mubr.bf16.mxu0 0
      %802 = vmatmul.mubr.bf16.gmra.mxu0 %v533
      %v803 = vpop.f32.mrf.mxu0
      %v804 = vadd.f32 %v632, %v803
      %v805 = vpop.f32.mrf.mxu0
      %v806 = vpop.f32.mrf.mxu0
      %v807 = vadd.f32 %v635, %v806
      %v808 = vpop.f32.mrf.mxu0
      %809 = vmatprep.mubr.bf16.mxu0 0
      %810 = vmatmul.mubr.bf16.gmra.mxu0 %v536
      %v811 = vpop.f32.mrf.mxu0
      %v812 = vadd.f32 %v640, %v811
      %v813 = vpop.f32.mrf.mxu0
      %v814 = vpop.f32.mrf.mxu0
      %v815 = vadd.f32 %v643, %v814
      %v816 = vpop.f32.mrf.mxu0
      %817 = vmatprep.mubr.bf16.mxu0 0
      %818 = vmatmul.mubr.bf16.gmra.mxu0 %v539
      %v819 = vpop.f32.mrf.mxu0
      %v820 = vadd.f32 %v648, %v819
      %v821 = vpop.f32.mrf.mxu0
      %v822 = vpop.f32.mrf.mxu0
      %v823 = vadd.f32 %v651, %v822
      %v824 = vpop.f32.mrf.mxu0
      %825 = vmatprep.mubr.bf16.mxu0 0
      %826 = vmatmul.mubr.bf16.gmra.mxu0 %v542
      %v827 = vpop.f32.mrf.mxu0
      %v828 = vadd.f32 %v656, %v827
      %v829 = vpop.f32.mrf.mxu0
      %v830 = vpop.f32.mrf.mxu0
      %v831 = vadd.f32 %v659, %v830
      %v832 = vpop.f32.mrf.mxu0
      %833 = vmatprep.mubr.bf16.mxu0 0
      %834 = vmatmul.mubr.bf16.gmra.mxu0 %v545
      %v835 = vpop.f32.mrf.mxu0
      %v836 = vadd.f32 %v664, %v835
      %v837 = vpop.f32.mrf.mxu0
      %v838 = vpop.f32.mrf.mxu0
      %v839 = vadd.f32 %v667, %v838
      %v840 = vpop.f32.mrf.mxu0
      %841 = vmatprep.mubr.bf16.mxu0 0
      %842 = vmatmul.mubr.bf16.gmra.mxu0 %v548
      %v843 = vpop.f32.mrf.mxu0
      %v844 = vadd.f32 %v672, %v843
      %v845 = vpop.f32.mrf.mxu0
      %v846 = vpop.f32.mrf.mxu0
      %v847 = vadd.f32 %v675, %v846
      %v848 = vpop.f32.mrf.mxu0
      %849 = vmatprep.mubr.bf16.mxu0 0
      %850 = vmatmul.mubr.bf16.gmra.mxu0 %v551
      %v851 = vpop.f32.mrf.mxu0
      %v852 = vadd.f32 %v680, %v851
      %v853 = vpop.f32.mrf.mxu0
      %v854 = vpop.f32.mrf.mxu0
      %v855 = vadd.f32 %v683, %v854
      %v856 = vpop.f32.mrf.mxu0
      %857 = vmatprep.mubr.bf16.mxu0 0
      %858 = vmatmul.mubr.bf16.gmra.mxu0 %v554
      %v859 = vpop.f32.mrf.mxu0
      %v860 = vadd.f32 %v688, %v859
      %v861 = vpop.f32.mrf.mxu0
      %v862 = vpop.f32.mrf.mxu0
      %v863 = vadd.f32 %v691, %v862
      %v864 = vpop.f32.mrf.mxu0
      %865 = vmatprep.mubr.bf16.mxu0 0
      %866 = vmatmul.mubr.bf16.gmra.mxu0 %v557
      %v867 = vpop.f32.mrf.mxu0
      %v868 = vadd.f32 %v696, %v867
      %v869 = vpop.f32.mrf.mxu0
      %v870 = vpop.f32.mrf.mxu0
      %v871 = vadd.f32 %v699, %v870
      %v872 = vpop.f32.mrf.mxu0
      %873 = vmatprep.mubr.bf16.mxu0 0
      %874 = vmatmul.mubr.bf16.gmra.mxu0 %v560
      %v875 = vpop.f32.mrf.mxu0
      %v876 = vadd.f32 %v704, %v875
      %v877 = vpop.f32.mrf.mxu0
      %v878 = vpop.f32.mrf.mxu0
      %v879 = vadd.f32 %v707, %v878
      %v880 = vpop.f32.mrf.mxu0
      %881 = vmatprep.mubr.bf16.mxu0 0
      %882 = vmatmul.mubr.bf16.gmra.mxu0 %v563
      %v883 = vpop.f32.mrf.mxu0
      %v884 = vadd.f32 %v712, %v883
      %v885 = vpop.f32.mrf.mxu0
      %v886 = vpop.f32.mrf.mxu0
      %v887 = vadd.f32 %v715, %v886
      %v888 = vpop.f32.mrf.mxu0
      %889 = vmatprep.mubr.bf16.mxu0 0
      %890 = vmatmul.mubr.bf16.gmra.mxu0 %v566
      %v891 = vpop.f32.mrf.mxu0
      %v892 = vadd.f32 %v720, %v891
      %v893 = vpop.f32.mrf.mxu0
      %v894 = vpop.f32.mrf.mxu0
      %v895 = vadd.f32 %v723, %v894
      %v896 = vpop.f32.mrf.mxu0
      %897 = vmatprep.mubr.bf16.mxu0 0
      %898 = vmatmul.mubr.bf16.gmra.mxu0 %v569
      %v899 = vpop.f32.mrf.mxu0
      %v900 = vadd.f32 %v728, %v899
      %v901 = vpop.f32.mrf.mxu0
      %v902 = vpop.f32.mrf.mxu0
      %v903 = vadd.f32 %v731, %v902
      %v904 = vpop.f32.mrf.mxu0
      %905 = vmatprep.mubr.bf16.mxu0 0
      %906 = vmatmul.mubr.bf16.gmra.mxu0 %v572
      %v907 = vpop.f32.mrf.mxu0
      %v908 = vadd.f32 %v736, %v907
      %v909 = vpop.f32.mrf.mxu0
      %v910 = vpop.f32.mrf.mxu0
      %v911 = vadd.f32 %v739, %v910
      %v912 = vpop.f32.mrf.mxu0
      %913 = vdwg.mxu0
      %s914 = scalar_lea.vmem %s3, 12
      %v915 = vld [vmem:[%s914] sm:$0x3]
      %v918 = vunpack.c.l.b16 %v371
      %v919 = vunpack.c.l.b16 %v372
      %v920 = vpack.c.b16 %v919, %v918
      %v922 = vsel %vm528, %v920, 0
      %v925 = vsel %vm577, %v915, 0
      %927 = vmatprep.subr.bf16.mxu0 0
      %928 = vmatpush1.bf16.msra.mxu0 0
      %929 = vmatprep.subr.bf16.mxu0 0
      %930 = vmatpush1.bf16.msra.mxu0 0
      %931 = vmatprep.subr.bf16.mxu0 0
      %932 = vmatpush1.bf16.msra.mxu0 0
      %933 = vmatprep.subr.bf16.mxu0 0
      %934 = vmatpush1.bf16.msra.mxu0 0
      %935 = vmatprep.subr.bf16.mxu0 0
      %936 = vmatpush1.bf16.msra.mxu0 0
      %937 = vmatprep.subr.bf16.mxu0 0
      %938 = vmatpush1.bf16.msra.mxu0 0
      %939 = vmatprep.subr.bf16.mxu0 0
      %940 = vmatpush1.bf16.msra.mxu0 0
      %941 = vmatprep.subr.bf16.mxu0 0
      %942 = vmatpush1.bf16.msra.mxu0 %v925
      %943 = vmatprep.subr.bf16.mxu0 0
      %944 = vmatpush2.bf16.msra.mxu0 0
      %945 = vmatprep.subr.bf16.mxu0 0
      %946 = vmatpush2.bf16.msra.mxu0 0
      %947 = vmatprep.subr.bf16.mxu0 0
      %948 = vmatpush2.bf16.msra.mxu0 0
      %949 = vmatprep.subr.bf16.mxu0 0
      %950 = vmatpush2.bf16.msra.mxu0 0
      %951 = vmatprep.subr.bf16.mxu0 0
      %952 = vmatpush2.bf16.msra.mxu0 0
      %953 = vmatprep.subr.bf16.mxu0 0
      %954 = vmatpush2.bf16.msra.mxu0 0
      %955 = vmatprep.subr.bf16.mxu0 0
      %956 = vmatpush2.bf16.msra.mxu0 0
      %957 = vmatprep.subr.bf16.mxu0 0
      %958 = vmatpush2.bf16.msra.mxu0 0
      %959 = vmatprep.mubr.bf16.mxu0 0
      %960 = vmatmul.mubr.bf16.gmra.mxu0 %v533
      %v961 = vpop.f32.mrf.mxu0
      %v962 = vadd.f32 0.0, %v961
      %v963 = vpop.f32.mrf.mxu0
      %v964 = vpop.f32.mrf.mxu0
      %v965 = vadd.f32 0.0, %v964
      %v966 = vpop.f32.mrf.mxu0
      %967 = vmatprep.mubr.bf16.mxu0 0
      %968 = vmatmul.mubr.bf16.gmra.mxu0 %v536
      %v969 = vpop.f32.mrf.mxu0
      %v970 = vadd.f32 0.0, %v969
      %v971 = vpop.f32.mrf.mxu0
      %v972 = vpop.f32.mrf.mxu0
      %v973 = vadd.f32 0.0, %v972
      %v974 = vpop.f32.mrf.mxu0
      %975 = vmatprep.mubr.bf16.mxu0 0
      %976 = vmatmul.mubr.bf16.gmra.mxu0 %v539
      %v977 = vpop.f32.mrf.mxu0
      %v978 = vadd.f32 0.0, %v977
      %v979 = vpop.f32.mrf.mxu0
      %v980 = vpop.f32.mrf.mxu0
      %v981 = vadd.f32 0.0, %v980
      %v982 = vpop.f32.mrf.mxu0
      %983 = vmatprep.mubr.bf16.mxu0 0
      %984 = vmatmul.mubr.bf16.gmra.mxu0 %v542
      %v985 = vpop.f32.mrf.mxu0
      %v986 = vadd.f32 0.0, %v985
      %v987 = vpop.f32.mrf.mxu0
      %v988 = vpop.f32.mrf.mxu0
      %v989 = vadd.f32 0.0, %v988
      %v990 = vpop.f32.mrf.mxu0
      %991 = vmatprep.mubr.bf16.mxu0 0
      %992 = vmatmul.mubr.bf16.gmra.mxu0 %v545
      %v993 = vpop.f32.mrf.mxu0
      %v994 = vadd.f32 0.0, %v993
      %v995 = vpop.f32.mrf.mxu0
      %v996 = vpop.f32.mrf.mxu0
      %v997 = vadd.f32 0.0, %v996
      %v998 = vpop.f32.mrf.mxu0
      %999 = vmatprep.mubr.bf16.mxu0 0
      %1000 = vmatmul.mubr.bf16.gmra.mxu0 %v548
      %v1001 = vpop.f32.mrf.mxu0
      %v1002 = vadd.f32 0.0, %v1001
      %v1003 = vpop.f32.mrf.mxu0
      %v1004 = vpop.f32.mrf.mxu0
      %v1005 = vadd.f32 0.0, %v1004
      %v1006 = vpop.f32.mrf.mxu0
      %1007 = vmatprep.mubr.bf16.mxu0 0
      %1008 = vmatmul.mubr.bf16.gmra.mxu0 %v551
      %v1009 = vpop.f32.mrf.mxu0
      %v1010 = vadd.f32 0.0, %v1009
      %v1011 = vpop.f32.mrf.mxu0
      %v1012 = vpop.f32.mrf.mxu0
      %v1013 = vadd.f32 0.0, %v1012
      %v1014 = vpop.f32.mrf.mxu0
      %1015 = vmatprep.mubr.bf16.mxu0 0
      %1016 = vmatmul.mubr.bf16.gmra.mxu0 %v554
      %v1017 = vpop.f32.mrf.mxu0
      %v1018 = vadd.f32 0.0, %v1017
      %v1019 = vpop.f32.mrf.mxu0
      %v1020 = vpop.f32.mrf.mxu0
      %v1021 = vadd.f32 0.0, %v1020
      %v1022 = vpop.f32.mrf.mxu0
      %1023 = vmatprep.mubr.bf16.mxu0 0
      %1024 = vmatmul.mubr.bf16.gmra.mxu0 %v557
      %v1025 = vpop.f32.mrf.mxu0
      %v1026 = vadd.f32 0.0, %v1025
      %v1027 = vpop.f32.mrf.mxu0
      %v1028 = vpop.f32.mrf.mxu0
      %v1029 = vadd.f32 0.0, %v1028
      %v1030 = vpop.f32.mrf.mxu0
      %1031 = vmatprep.mubr.bf16.mxu0 0
      %1032 = vmatmul.mubr.bf16.gmra.mxu0 %v560
      %v1033 = vpop.f32.mrf.mxu0
      %v1034 = vadd.f32 0.0, %v1033
      %v1035 = vpop.f32.mrf.mxu0
      %v1036 = vpop.f32.mrf.mxu0
      %v1037 = vadd.f32 0.0, %v1036
      %v1038 = vpop.f32.mrf.mxu0
      %1039 = vmatprep.mubr.bf16.mxu0 0
      %1040 = vmatmul.mubr.bf16.gmra.mxu0 %v563
      %v1041 = vpop.f32.mrf.mxu0
      %v1042 = vadd.f32 0.0, %v1041
      %v1043 = vpop.f32.mrf.mxu0
      %v1044 = vpop.f32.mrf.mxu0
      %v1045 = vadd.f32 0.0, %v1044
      %v1046 = vpop.f32.mrf.mxu0
      %1047 = vmatprep.mubr.bf16.mxu0 0
      %1048 = vmatmul.mubr.bf16.gmra.mxu0 %v566
      %v1049 = vpop.f32.mrf.mxu0
      %v1050 = vadd.f32 0.0, %v1049
      %v1051 = vpop.f32.mrf.mxu0
      %v1052 = vpop.f32.mrf.mxu0
      %v1053 = vadd.f32 0.0, %v1052
      %v1054 = vpop.f32.mrf.mxu0
      %1055 = vmatprep.mubr.bf16.mxu0 0
      %1056 = vmatmul.mubr.bf16.gmra.mxu0 %v569
      %v1057 = vpop.f32.mrf.mxu0
      %v1058 = vadd.f32 0.0, %v1057
      %v1059 = vpop.f32.mrf.mxu0
      %v1060 = vpop.f32.mrf.mxu0
      %v1061 = vadd.f32 0.0, %v1060
      %v1062 = vpop.f32.mrf.mxu0
      %1063 = vmatprep.mubr.bf16.mxu0 0
      %1064 = vmatmul.mubr.bf16.gmra.mxu0 %v572
      %v1065 = vpop.f32.mrf.mxu0
      %v1066 = vadd.f32 0.0, %v1065
      %v1067 = vpop.f32.mrf.mxu0
      %v1068 = vpop.f32.mrf.mxu0
      %v1069 = vadd.f32 0.0, %v1068
      %v1070 = vpop.f32.mrf.mxu0
      %1071 = vmatprep.mubr.bf16.mxu0 0
      %1072 = vmatmul.mubr.bf16.gmra.mxu0 %v575
      %v1073 = vpop.f32.mrf.mxu0
      %v1074 = vadd.f32 0.0, %v1073
      %v1075 = vpop.f32.mrf.mxu0
      %v1076 = vpop.f32.mrf.mxu0
      %v1077 = vadd.f32 0.0, %v1076
      %v1078 = vpop.f32.mrf.mxu0
      %1079 = vmatprep.mubr.bf16.mxu0 0
      %1080 = vmatmul.mubr.bf16.gmra.mxu0 %v922
      %v1081 = vpop.f32.mrf.mxu0
      %v1082 = vadd.f32 0.0, %v1081
      %v1083 = vpop.f32.mrf.mxu0
      %v1084 = vpop.f32.mrf.mxu0
      %v1085 = vadd.f32 0.0, %v1084
      %v1086 = vpop.f32.mrf.mxu0
      %1087 = vdwg.mxu0
      %v1088 = vadd.f32 %v788, %v962
      %v1089 = vadd.f32 %v791, %v965
      %v1090 = vadd.f32 %v796, %v970
      %v1091 = vadd.f32 %v799, %v973
      %v1092 = vadd.f32 %v804, %v978
      %v1093 = vadd.f32 %v807, %v981
      %v1094 = vadd.f32 %v812, %v986
      %v1095 = vadd.f32 %v815, %v989
      %v1096 = vadd.f32 %v820, %v994
      %v1097 = vadd.f32 %v823, %v997
      %v1098 = vadd.f32 %v828, %v1002
      %v1099 = vadd.f32 %v831, %v1005
      %v1100 = vadd.f32 %v836, %v1010
      %v1101 = vadd.f32 %v839, %v1013
      %v1102 = vadd.f32 %v844, %v1018
      %v1103 = vadd.f32 %v847, %v1021
      %v1104 = vadd.f32 %v852, %v1026
      %v1105 = vadd.f32 %v855, %v1029
      %v1106 = vadd.f32 %v860, %v1034
      %v1107 = vadd.f32 %v863, %v1037
      %v1108 = vadd.f32 %v868, %v1042
      %v1109 = vadd.f32 %v871, %v1045
      %v1110 = vadd.f32 %v876, %v1050
      %v1111 = vadd.f32 %v879, %v1053
      %v1112 = vadd.f32 %v884, %v1058
      %v1113 = vadd.f32 %v887, %v1061
      %v1114 = vadd.f32 %v892, %v1066
      %v1115 = vadd.f32 %v895, %v1069
      %v1116 = vadd.f32 %v900, %v1074
      %v1117 = vadd.f32 %v903, %v1077
      %v1118 = vadd.f32 %v908, %v1082
      %v1119 = vadd.f32 %v911, %v1085
      %s1120 = scalar_lea.vmem %s3, 2
      %v1121 = vld [vmem:[%s1120] sm:$0x3]
      %v1154 = vunpack.c.l.b16 %v373
      %v1155 = vunpack.c.l.b16 %v374
      %v1156 = vunpack.c.l.b16 %v375
      %v1157 = vunpack.c.l.b16 %v376
      %v1158 = vunpack.c.l.b16 %v377
      %v1159 = vunpack.c.l.b16 %v378
      %v1160 = vunpack.c.l.b16 %v379
      %v1161 = vunpack.c.l.b16 %v380
      %v1162 = vunpack.c.l.b16 %v381
      %v1163 = vunpack.c.l.b16 %v382
      %v1164 = vunpack.c.l.b16 %v383
      %v1165 = vunpack.c.l.b16 %v384
      %v1166 = vunpack.c.l.b16 %v385
      %v1167 = vunpack.c.l.b16 %v386
      %v1168 = vunpack.c.l.b16 %v387
      %v1169 = vunpack.c.l.b16 %v388
      %v1170 = vunpack.c.l.b16 %v389
      %v1171 = vunpack.c.l.b16 %v390
      %v1172 = vunpack.c.l.b16 %v391
      %v1173 = vunpack.c.l.b16 %v392
      %v1174 = vunpack.c.l.b16 %v393
      %v1175 = vunpack.c.l.b16 %v394
      %v1176 = vunpack.c.l.b16 %v395
      %v1177 = vunpack.c.l.b16 %v396
      %v1178 = vunpack.c.l.b16 %v397
      %v1179 = vunpack.c.l.b16 %v398
      %v1180 = vunpack.c.l.b16 %v399
      %v1181 = vunpack.c.l.b16 %v400
      %v1182 = vunpack.c.l.b16 %v401
      %v1183 = vunpack.c.l.b16 %v402
      %v1184 = vunpack.c.l.b16 %v403
      %v1185 = vunpack.c.l.b16 %v404
      %v1186 = vpack.c.b16 %v1155, %v1154
      %v1187 = vpack.c.b16 %v1157, %v1156
      %v1188 = vpack.c.b16 %v1159, %v1158
      %v1189 = vpack.c.b16 %v1161, %v1160
      %v1190 = vpack.c.b16 %v1163, %v1162
      %v1191 = vpack.c.b16 %v1165, %v1164
      %v1192 = vpack.c.b16 %v1167, %v1166
      %v1193 = vpack.c.b16 %v1169, %v1168
      %v1194 = vpack.c.b16 %v1171, %v1170
      %v1195 = vpack.c.b16 %v1173, %v1172
      %v1196 = vpack.c.b16 %v1175, %v1174
      %v1197 = vpack.c.b16 %v1177, %v1176
      %v1198 = vpack.c.b16 %v1179, %v1178
      %v1199 = vpack.c.b16 %v1181, %v1180
      %v1200 = vpack.c.b16 %v1183, %v1182
      %v1201 = vpack.c.b16 %v1185, %v1184
      %v1203 = vsel %vm528, %v1186, 0
      %v1206 = vsel %vm528, %v1187, 0
      %v1209 = vsel %vm528, %v1188, 0
      %v1212 = vsel %vm528, %v1189, 0
      %v1215 = vsel %vm528, %v1190, 0
      %v1218 = vsel %vm528, %v1191, 0
      %v1221 = vsel %vm528, %v1192, 0
      %v1224 = vsel %vm528, %v1193, 0
      %v1227 = vsel %vm528, %v1194, 0
      %v1230 = vsel %vm528, %v1195, 0
      %v1233 = vsel %vm528, %v1196, 0
      %v1236 = vsel %vm528, %v1197, 0
      %v1239 = vsel %vm528, %v1198, 0
      %v1242 = vsel %vm528, %v1199, 0
      %v1245 = vsel %vm528, %v1200, 0
      %v1248 = vsel %vm528, %v1201, 0
      %v1251 = vsel %vm577, %v1121, 0
      %1253 = vmatprep.subr.bf16.mxu0 0
      %1254 = vmatpush1.bf16.msra.mxu0 0
      %1255 = vmatprep.subr.bf16.mxu0 0
      %1256 = vmatpush1.bf16.msra.mxu0 0
      %1257 = vmatprep.subr.bf16.mxu0 0
      %1258 = vmatpush1.bf16.msra.mxu0 0
      %1259 = vmatprep.subr.bf16.mxu0 0
      %1260 = vmatpush1.bf16.msra.mxu0 0
      %1261 = vmatprep.subr.bf16.mxu0 0
      %1262 = vmatpush1.bf16.msra.mxu0 0
      %1263 = vmatprep.subr.bf16.mxu0 0
      %1264 = vmatpush1.bf16.msra.mxu0 0
      %1265 = vmatprep.subr.bf16.mxu0 0
      %1266 = vmatpush1.bf16.msra.mxu0 0
      %1267 = vmatprep.subr.bf16.mxu0 0
      %1268 = vmatpush1.bf16.msra.mxu0 %v1251
      %1269 = vmatprep.subr.bf16.mxu0 0
      %1270 = vmatpush2.bf16.msra.mxu0 0
      %1271 = vmatprep.subr.bf16.mxu0 0
      %1272 = vmatpush2.bf16.msra.mxu0 0
      %1273 = vmatprep.subr.bf16.mxu0 0
      %1274 = vmatpush2.bf16.msra.mxu0 0
      %1275 = vmatprep.subr.bf16.mxu0 0
      %1276 = vmatpush2.bf16.msra.mxu0 0
      %1277 = vmatprep.subr.bf16.mxu0 0
      %1278 = vmatpush2.bf16.msra.mxu0 0
      %1279 = vmatprep.subr.bf16.mxu0 0
      %1280 = vmatpush2.bf16.msra.mxu0 0
      %1281 = vmatprep.subr.bf16.mxu0 0
      %1282 = vmatpush2.bf16.msra.mxu0 0
      %1283 = vmatprep.subr.bf16.mxu0 0
      %1284 = vmatpush2.bf16.msra.mxu0 0
      %1285 = vmatprep.mubr.bf16.mxu0 0
      %1286 = vmatmul.mubr.bf16.gmra.mxu0 %v1203
      %v1287 = vpop.f32.mrf.mxu0
      %v1288 = vadd.f32 0.0, %v1287
      %v1289 = vpop.f32.mrf.mxu0
      %v1290 = vpop.f32.mrf.mxu0
      %v1291 = vadd.f32 0.0, %v1290
      %v1292 = vpop.f32.mrf.mxu0
      %1293 = vmatprep.mubr.bf16.mxu0 0
      %1294 = vmatmul.mubr.bf16.gmra.mxu0 %v1206
      %v1295 = vpop.f32.mrf.mxu0
      %v1296 = vadd.f32 0.0, %v1295
      %v1297 = vpop.f32.mrf.mxu0
      %v1298 = vpop.f32.mrf.mxu0
      %v1299 = vadd.f32 0.0, %v1298
      %v1300 = vpop.f32.mrf.mxu0
      %1301 = vmatprep.mubr.bf16.mxu0 0
      %1302 = vmatmul.mubr.bf16.gmra.mxu0 %v1209
      %v1303 = vpop.f32.mrf.mxu0
      %v1304 = vadd.f32 0.0, %v1303
      %v1305 = vpop.f32.mrf.mxu0
      %v1306 = vpop.f32.mrf.mxu0
      %v1307 = vadd.f32 0.0, %v1306
      %v1308 = vpop.f32.mrf.mxu0
      %1309 = vmatprep.mubr.bf16.mxu0 0
      %1310 = vmatmul.mubr.bf16.gmra.mxu0 %v1212
      %v1311 = vpop.f32.mrf.mxu0
      %v1312 = vadd.f32 0.0, %v1311
      %v1313 = vpop.f32.mrf.mxu0
      %v1314 = vpop.f32.mrf.mxu0
      %v1315 = vadd.f32 0.0, %v1314
      %v1316 = vpop.f32.mrf.mxu0
      %1317 = vmatprep.mubr.bf16.mxu0 0
      %1318 = vmatmul.mubr.bf16.gmra.mxu0 %v1215
      %v1319 = vpop.f32.mrf.mxu0
      %v1320 = vadd.f32 0.0, %v1319
      %v1321 = vpop.f32.mrf.mxu0
      %v1322 = vpop.f32.mrf.mxu0
      %v1323 = vadd.f32 0.0, %v1322
      %v1324 = vpop.f32.mrf.mxu0
      %1325 = vmatprep.mubr.bf16.mxu0 0
      %1326 = vmatmul.mubr.bf16.gmra.mxu0 %v1218
      %v1327 = vpop.f32.mrf.mxu0
      %v1328 = vadd.f32 0.0, %v1327
      %v1329 = vpop.f32.mrf.mxu0
      %v1330 = vpop.f32.mrf.mxu0
      %v1331 = vadd.f32 0.0, %v1330
      %v1332 = vpop.f32.mrf.mxu0
      %1333 = vmatprep.mubr.bf16.mxu0 0
      %1334 = vmatmul.mubr.bf16.gmra.mxu0 %v1221
      %v1335 = vpop.f32.mrf.mxu0
      %v1336 = vadd.f32 0.0, %v1335
      %v1337 = vpop.f32.mrf.mxu0
      %v1338 = vpop.f32.mrf.mxu0
      %v1339 = vadd.f32 0.0, %v1338
      %v1340 = vpop.f32.mrf.mxu0
      %1341 = vmatprep.mubr.bf16.mxu0 0
      %1342 = vmatmul.mubr.bf16.gmra.mxu0 %v1224
      %v1343 = vpop.f32.mrf.mxu0
      %v1344 = vadd.f32 0.0, %v1343
      %v1345 = vpop.f32.mrf.mxu0
      %v1346 = vpop.f32.mrf.mxu0
      %v1347 = vadd.f32 0.0, %v1346
      %v1348 = vpop.f32.mrf.mxu0
      %1349 = vmatprep.mubr.bf16.mxu0 0
      %1350 = vmatmul.mubr.bf16.gmra.mxu0 %v1227
      %v1351 = vpop.f32.mrf.mxu0
      %v1352 = vadd.f32 0.0, %v1351
      %v1353 = vpop.f32.mrf.mxu0
      %v1354 = vpop.f32.mrf.mxu0
      %v1355 = vadd.f32 0.0, %v1354
      %v1356 = vpop.f32.mrf.mxu0
      %1357 = vmatprep.mubr.bf16.mxu0 0
      %1358 = vmatmul.mubr.bf16.gmra.mxu0 %v1230
      %v1359 = vpop.f32.mrf.mxu0
      %v1360 = vadd.f32 0.0, %v1359
      %v1361 = vpop.f32.mrf.mxu0
      %v1362 = vpop.f32.mrf.mxu0
      %v1363 = vadd.f32 0.0, %v1362
      %v1364 = vpop.f32.mrf.mxu0
      %1365 = vmatprep.mubr.bf16.mxu0 0
      %1366 = vmatmul.mubr.bf16.gmra.mxu0 %v1233
      %v1367 = vpop.f32.mrf.mxu0
      %v1368 = vadd.f32 0.0, %v1367
      %v1369 = vpop.f32.mrf.mxu0
      %v1370 = vpop.f32.mrf.mxu0
      %v1371 = vadd.f32 0.0, %v1370
      %v1372 = vpop.f32.mrf.mxu0
      %1373 = vmatprep.mubr.bf16.mxu0 0
      %1374 = vmatmul.mubr.bf16.gmra.mxu0 %v1236
      %v1375 = vpop.f32.mrf.mxu0
      %v1376 = vadd.f32 0.0, %v1375
      %v1377 = vpop.f32.mrf.mxu0
      %v1378 = vpop.f32.mrf.mxu0
      %v1379 = vadd.f32 0.0, %v1378
      %v1380 = vpop.f32.mrf.mxu0
      %1381 = vmatprep.mubr.bf16.mxu0 0
      %1382 = vmatmul.mubr.bf16.gmra.mxu0 %v1239
      %v1383 = vpop.f32.mrf.mxu0
      %v1384 = vadd.f32 0.0, %v1383
      %v1385 = vpop.f32.mrf.mxu0
      %v1386 = vpop.f32.mrf.mxu0
      %v1387 = vadd.f32 0.0, %v1386
      %v1388 = vpop.f32.mrf.mxu0
      %1389 = vmatprep.mubr.bf16.mxu0 0
      %1390 = vmatmul.mubr.bf16.gmra.mxu0 %v1242
      %v1391 = vpop.f32.mrf.mxu0
      %v1392 = vadd.f32 0.0, %v1391
      %v1393 = vpop.f32.mrf.mxu0
      %v1394 = vpop.f32.mrf.mxu0
      %v1395 = vadd.f32 0.0, %v1394
      %v1396 = vpop.f32.mrf.mxu0
      %1397 = vmatprep.mubr.bf16.mxu0 0
      %1398 = vmatmul.mubr.bf16.gmra.mxu0 %v1245
      %v1399 = vpop.f32.mrf.mxu0
      %v1400 = vadd.f32 0.0, %v1399
      %v1401 = vpop.f32.mrf.mxu0
      %v1402 = vpop.f32.mrf.mxu0
      %v1403 = vadd.f32 0.0, %v1402
      %v1404 = vpop.f32.mrf.mxu0
      %1405 = vmatprep.mubr.bf16.mxu0 0
      %1406 = vmatmul.mubr.bf16.gmra.mxu0 %v1248
      %v1407 = vpop.f32.mrf.mxu0
      %v1408 = vadd.f32 0.0, %v1407
      %v1409 = vpop.f32.mrf.mxu0
      %v1410 = vpop.f32.mrf.mxu0
      %v1411 = vadd.f32 0.0, %v1410
      %v1412 = vpop.f32.mrf.mxu0
      %1413 = vdwg.mxu0
      %v1414 = vadd.f32 %v1088, %v1288
      %v1415 = vadd.f32 %v1089, %v1291
      %v1416 = vadd.f32 %v1090, %v1296
      %v1417 = vadd.f32 %v1091, %v1299
      %v1418 = vadd.f32 %v1092, %v1304
      %v1419 = vadd.f32 %v1093, %v1307
      %v1420 = vadd.f32 %v1094, %v1312
      %v1421 = vadd.f32 %v1095, %v1315
      %v1422 = vadd.f32 %v1096, %v1320
      %v1423 = vadd.f32 %v1097, %v1323
      %v1424 = vadd.f32 %v1098, %v1328
      %v1425 = vadd.f32 %v1099, %v1331
      %v1426 = vadd.f32 %v1100, %v1336
      %v1427 = vadd.f32 %v1101, %v1339
      %v1428 = vadd.f32 %v1102, %v1344
      %v1429 = vadd.f32 %v1103, %v1347
      %v1430 = vadd.f32 %v1104, %v1352
      %v1431 = vadd.f32 %v1105, %v1355
      %v1432 = vadd.f32 %v1106, %v1360
      %v1433 = vadd.f32 %v1107, %v1363
      %v1434 = vadd.f32 %v1108, %v1368
      %v1435 = vadd.f32 %v1109, %v1371
      %v1436 = vadd.f32 %v1110, %v1376
      %v1437 = vadd.f32 %v1111, %v1379
      %v1438 = vadd.f32 %v1112, %v1384
      %v1439 = vadd.f32 %v1113, %v1387
      %v1440 = vadd.f32 %v1114, %v1392
      %v1441 = vadd.f32 %v1115, %v1395
      %v1442 = vadd.f32 %v1116, %v1400
      %v1443 = vadd.f32 %v1117, %v1403
      %v1444 = vadd.f32 %v1118, %v1408
      %v1445 = vadd.f32 %v1119, %v1411
      %s1446 = scalar_lea.vmem %s3, 8
      %v1447 = vld [vmem:[%s1446] sm:$0x3]
      %v1450 = vunpack.c.l.b16 %v405
      %v1451 = vunpack.c.l.b16 %v406
      %v1452 = vpack.c.b16 %v1451, %v1450
      %v1454 = vsel %vm528, %v1452, 0
      %v1457 = vsel %vm577, %v1447, 0
      %1459 = vmatprep.subr.bf16.mxu0 0
      %1460 = vmatpush1.bf16.msra.mxu0 0
      %1461 = vmatprep.subr.bf16.mxu0 0
      %1462 = vmatpush1.bf16.msra.mxu0 0
      %1463 = vmatprep.subr.bf16.mxu0 0
      %1464 = vmatpush1.bf16.msra.mxu0 0
      %1465 = vmatprep.subr.bf16.mxu0 0
      %1466 = vmatpush1.bf16.msra.mxu0 0
      %1467 = vmatprep.subr.bf16.mxu0 0
      %1468 = vmatpush1.bf16.msra.mxu0 0
      %1469 = vmatprep.subr.bf16.mxu0 0
      %1470 = vmatpush1.bf16.msra.mxu0 0
      %1471 = vmatprep.subr.bf16.mxu0 0
      %1472 = vmatpush1.bf16.msra.mxu0 0
      %1473 = vmatprep.subr.bf16.mxu0 0
      %1474 = vmatpush1.bf16.msra.mxu0 %v1457
      %1475 = vmatprep.subr.bf16.mxu0 0
      %1476 = vmatpush2.bf16.msra.mxu0 0
      %1477 = vmatprep.subr.bf16.mxu0 0
      %1478 = vmatpush2.bf16.msra.mxu0 0
      %1479 = vmatprep.subr.bf16.mxu0 0
      %1480 = vmatpush2.bf16.msra.mxu0 0
      %1481 = vmatprep.subr.bf16.mxu0 0
      %1482 = vmatpush2.bf16.msra.mxu0 0
      %1483 = vmatprep.subr.bf16.mxu0 0
      %1484 = vmatpush2.bf16.msra.mxu0 0
      %1485 = vmatprep.subr.bf16.mxu0 0
      %1486 = vmatpush2.bf16.msra.mxu0 0
      %1487 = vmatprep.subr.bf16.mxu0 0
      %1488 = vmatpush2.bf16.msra.mxu0 0
      %1489 = vmatprep.subr.bf16.mxu0 0
      %1490 = vmatpush2.bf16.msra.mxu0 0
      %1491 = vmatprep.mubr.bf16.mxu0 0
      %1492 = vmatmul.mubr.bf16.gmra.mxu0 %v1206
      %v1493 = vpop.f32.mrf.mxu0
      %v1494 = vadd.f32 0.0, %v1493
      %v1495 = vpop.f32.mrf.mxu0
      %v1496 = vpop.f32.mrf.mxu0
      %v1497 = vadd.f32 0.0, %v1496
      %v1498 = vpop.f32.mrf.mxu0
      %1499 = vmatprep.mubr.bf16.mxu0 0
      %1500 = vmatmul.mubr.bf16.gmra.mxu0 %v1209
      %v1501 = vpop.f32.mrf.mxu0
      %v1502 = vadd.f32 0.0, %v1501
      %v1503 = vpop.f32.mrf.mxu0
      %v1504 = vpop.f32.mrf.mxu0
      %v1505 = vadd.f32 0.0, %v1504
      %v1506 = vpop.f32.mrf.mxu0
      %1507 = vmatprep.mubr.bf16.mxu0 0
      %1508 = vmatmul.mubr.bf16.gmra.mxu0 %v1212
      %v1509 = vpop.f32.mrf.mxu0
      %v1510 = vadd.f32 0.0, %v1509
      %v1511 = vpop.f32.mrf.mxu0
      %v1512 = vpop.f32.mrf.mxu0
      %v1513 = vadd.f32 0.0, %v1512
      %v1514 = vpop.f32.mrf.mxu0
      %1515 = vmatprep.mubr.bf16.mxu0 0
      %1516 = vmatmul.mubr.bf16.gmra.mxu0 %v1215
      %v1517 = vpop.f32.mrf.mxu0
      %v1518 = vadd.f32 0.0, %v1517
      %v1519 = vpop.f32.mrf.mxu0
      %v1520 = vpop.f32.mrf.mxu0
      %v1521 = vadd.f32 0.0, %v1520
      %v1522 = vpop.f32.mrf.mxu0
      %1523 = vmatprep.mubr.bf16.mxu0 0
      %1524 = vmatmul.mubr.bf16.gmra.mxu0 %v1218
      %v1525 = vpop.f32.mrf.mxu0
      %v1526 = vadd.f32 0.0, %v1525
      %v1527 = vpop.f32.mrf.mxu0
      %v1528 = vpop.f32.mrf.mxu0
      %v1529 = vadd.f32 0.0, %v1528
      %v1530 = vpop.f32.mrf.mxu0
      %1531 = vmatprep.mubr.bf16.mxu0 0
      %1532 = vmatmul.mubr.bf16.gmra.mxu0 %v1221
      %v1533 = vpop.f32.mrf.mxu0
      %v1534 = vadd.f32 0.0, %v1533
      %v1535 = vpop.f32.mrf.mxu0
      %v1536 = vpop.f32.mrf.mxu0
      %v1537 = vadd.f32 0.0, %v1536
      %v1538 = vpop.f32.mrf.mxu0
      %1539 = vmatprep.mubr.bf16.mxu0 0
      %1540 = vmatmul.mubr.bf16.gmra.mxu0 %v1224
      %v1541 = vpop.f32.mrf.mxu0
      %v1542 = vadd.f32 0.0, %v1541
      %v1543 = vpop.f32.mrf.mxu0
      %v1544 = vpop.f32.mrf.mxu0
      %v1545 = vadd.f32 0.0, %v1544
      %v1546 = vpop.f32.mrf.mxu0
      %1547 = vmatprep.mubr.bf16.mxu0 0
      %1548 = vmatmul.mubr.bf16.gmra.mxu0 %v1227
      %v1549 = vpop.f32.mrf.mxu0
      %v1550 = vadd.f32 0.0, %v1549
      %v1551 = vpop.f32.mrf.mxu0
      %v1552 = vpop.f32.mrf.mxu0
      %v1553 = vadd.f32 0.0, %v1552
      %v1554 = vpop.f32.mrf.mxu0
      %1555 = vmatprep.mubr.bf16.mxu0 0
      %1556 = vmatmul.mubr.bf16.gmra.mxu0 %v1230
      %v1557 = vpop.f32.mrf.mxu0
      %v1558 = vadd.f32 0.0, %v1557
      %v1559 = vpop.f32.mrf.mxu0
      %v1560 = vpop.f32.mrf.mxu0
      %v1561 = vadd.f32 0.0, %v1560
      %v1562 = vpop.f32.mrf.mxu0
      %1563 = vmatprep.mubr.bf16.mxu0 0
      %1564 = vmatmul.mubr.bf16.gmra.mxu0 %v1233
      %v1565 = vpop.f32.mrf.mxu0
      %v1566 = vadd.f32 0.0, %v1565
      %v1567 = vpop.f32.mrf.mxu0
      %v1568 = vpop.f32.mrf.mxu0
      %v1569 = vadd.f32 0.0, %v1568
      %v1570 = vpop.f32.mrf.mxu0
      %1571 = vmatprep.mubr.bf16.mxu0 0
      %1572 = vmatmul.mubr.bf16.gmra.mxu0 %v1236
      %v1573 = vpop.f32.mrf.mxu0
      %v1574 = vadd.f32 0.0, %v1573
      %v1575 = vpop.f32.mrf.mxu0
      %v1576 = vpop.f32.mrf.mxu0
      %v1577 = vadd.f32 0.0, %v1576
      %v1578 = vpop.f32.mrf.mxu0
      %1579 = vmatprep.mubr.bf16.mxu0 0
      %1580 = vmatmul.mubr.bf16.gmra.mxu0 %v1239
      %v1581 = vpop.f32.mrf.mxu0
      %v1582 = vadd.f32 0.0, %v1581
      %v1583 = vpop.f32.mrf.mxu0
      %v1584 = vpop.f32.mrf.mxu0
      %v1585 = vadd.f32 0.0, %v1584
      %v1586 = vpop.f32.mrf.mxu0
      %1587 = vmatprep.mubr.bf16.mxu0 0
      %1588 = vmatmul.mubr.bf16.gmra.mxu0 %v1242
      %v1589 = vpop.f32.mrf.mxu0
      %v1590 = vadd.f32 0.0, %v1589
      %v1591 = vpop.f32.mrf.mxu0
      %v1592 = vpop.f32.mrf.mxu0
      %v1593 = vadd.f32 0.0, %v1592
      %v1594 = vpop.f32.mrf.mxu0
      %1595 = vmatprep.mubr.bf16.mxu0 0
      %1596 = vmatmul.mubr.bf16.gmra.mxu0 %v1245
      %v1597 = vpop.f32.mrf.mxu0
      %v1598 = vadd.f32 0.0, %v1597
      %v1599 = vpop.f32.mrf.mxu0
      %v1600 = vpop.f32.mrf.mxu0
      %v1601 = vadd.f32 0.0, %v1600
      %v1602 = vpop.f32.mrf.mxu0
      %1603 = vmatprep.mubr.bf16.mxu0 0
      %1604 = vmatmul.mubr.bf16.gmra.mxu0 %v1248
      %v1605 = vpop.f32.mrf.mxu0
      %v1606 = vadd.f32 0.0, %v1605
      %v1607 = vpop.f32.mrf.mxu0
      %v1608 = vpop.f32.mrf.mxu0
      %v1609 = vadd.f32 0.0, %v1608
      %v1610 = vpop.f32.mrf.mxu0
      %1611 = vmatprep.mubr.bf16.mxu0 0
      %1612 = vmatmul.mubr.bf16.gmra.mxu0 %v1454
      %v1613 = vpop.f32.mrf.mxu0
      %v1614 = vadd.f32 0.0, %v1613
      %v1615 = vpop.f32.mrf.mxu0
      %v1616 = vpop.f32.mrf.mxu0
      %v1617 = vadd.f32 0.0, %v1616
      %v1618 = vpop.f32.mrf.mxu0
      %1619 = vdwg.mxu0
      %v1620 = vadd.f32 %v1414, %v1494
      %v1621 = vadd.f32 %v1415, %v1497
      %v1622 = vadd.f32 %v1416, %v1502
      %v1623 = vadd.f32 %v1417, %v1505
      %v1624 = vadd.f32 %v1418, %v1510
      %v1625 = vadd.f32 %v1419, %v1513
      %v1626 = vadd.f32 %v1420, %v1518
      %v1627 = vadd.f32 %v1421, %v1521
      %v1628 = vadd.f32 %v1422, %v1526
      %v1629 = vadd.f32 %v1423, %v1529
      %v1630 = vadd.f32 %v1424, %v1534
      %v1631 = vadd.f32 %v1425, %v1537
      %v1632 = vadd.f32 %v1426, %v1542
      %v1633 = vadd.f32 %v1427, %v1545
      %v1634 = vadd.f32 %v1428, %v1550
      %v1635 = vadd.f32 %v1429, %v1553
      %v1636 = vadd.f32 %v1430, %v1558
      %v1637 = vadd.f32 %v1431, %v1561
      %v1638 = vadd.f32 %v1432, %v1566
      %v1639 = vadd.f32 %v1433, %v1569
      %v1640 = vadd.f32 %v1434, %v1574
      %v1641 = vadd.f32 %v1435, %v1577
      %v1642 = vadd.f32 %v1436, %v1582
      %v1643 = vadd.f32 %v1437, %v1585
      %v1644 = vadd.f32 %v1438, %v1590
      %v1645 = vadd.f32 %v1439, %v1593
      %v1646 = vadd.f32 %v1440, %v1598
      %v1647 = vadd.f32 %v1441, %v1601
      %v1648 = vadd.f32 %v1442, %v1606
      %v1649 = vadd.f32 %v1443, %v1609
      %v1650 = vadd.f32 %v1444, %v1614
      %v1651 = vadd.f32 %v1445, %v1617
      %s1652 = scalar_lea.vmem %s3, 14
      %v1653 = vld [vmem:[%s1652] sm:$0x3]
      %v1656 = vunpack.c.l.b16 %v407
      %v1657 = vunpack.c.l.b16 %v408
      %v1658 = vpack.c.b16 %v1657, %v1656
      %v1660 = vsel %vm528, %v1658, 0
      %v1663 = vsel %vm577, %v1653, 0
      %1665 = vmatprep.subr.bf16.mxu0 0
      %1666 = vmatpush1.bf16.msra.mxu0 0
      %1667 = vmatprep.subr.bf16.mxu0 0
      %1668 = vmatpush1.bf16.msra.mxu0 0
      %1669 = vmatprep.subr.bf16.mxu0 0
      %1670 = vmatpush1.bf16.msra.mxu0 0
      %1671 = vmatprep.subr.bf16.mxu0 0
      %1672 = vmatpush1.bf16.msra.mxu0 0
      %1673 = vmatprep.subr.bf16.mxu0 0
      %1674 = vmatpush1.bf16.msra.mxu0 0
      %1675 = vmatprep.subr.bf16.mxu0 0
      %1676 = vmatpush1.bf16.msra.mxu0 0
      %1677 = vmatprep.subr.bf16.mxu0 0
      %1678 = vmatpush1.bf16.msra.mxu0 0
      %1679 = vmatprep.subr.bf16.mxu0 0
      %1680 = vmatpush1.bf16.msra.mxu0 %v1663
      %1681 = vmatprep.subr.bf16.mxu0 0
      %1682 = vmatpush2.bf16.msra.mxu0 0
      %1683 = vmatprep.subr.bf16.mxu0 0
      %1684 = vmatpush2.bf16.msra.mxu0 0
      %1685 = vmatprep.subr.bf16.mxu0 0
      %1686 = vmatpush2.bf16.msra.mxu0 0
      %1687 = vmatprep.subr.bf16.mxu0 0
      %1688 = vmatpush2.bf16.msra.mxu0 0
      %1689 = vmatprep.subr.bf16.mxu0 0
      %1690 = vmatpush2.bf16.msra.mxu0 0
      %1691 = vmatprep.subr.bf16.mxu0 0
      %1692 = vmatpush2.bf16.msra.mxu0 0
      %1693 = vmatprep.subr.bf16.mxu0 0
      %1694 = vmatpush2.bf16.msra.mxu0 0
      %1695 = vmatprep.subr.bf16.mxu0 0
      %1696 = vmatpush2.bf16.msra.mxu0 0
      %1697 = vmatprep.mubr.bf16.mxu0 0
      %1698 = vmatmul.mubr.bf16.gmra.mxu0 %v1209
      %v1699 = vpop.f32.mrf.mxu0
      %v1700 = vadd.f32 0.0, %v1699
      %v1701 = vpop.f32.mrf.mxu0
      %v1702 = vpop.f32.mrf.mxu0
      %v1703 = vadd.f32 0.0, %v1702
      %v1704 = vpop.f32.mrf.mxu0
      %1705 = vmatprep.mubr.bf16.mxu0 0
      %1706 = vmatmul.mubr.bf16.gmra.mxu0 %v1212
      %v1707 = vpop.f32.mrf.mxu0
      %v1708 = vadd.f32 0.0, %v1707
      %v1709 = vpop.f32.mrf.mxu0
      %v1710 = vpop.f32.mrf.mxu0
      %v1711 = vadd.f32 0.0, %v1710
      %v1712 = vpop.f32.mrf.mxu0
      %1713 = vmatprep.mubr.bf16.mxu0 0
      %1714 = vmatmul.mubr.bf16.gmra.mxu0 %v1215
      %v1715 = vpop.f32.mrf.mxu0
      %v1716 = vadd.f32 0.0, %v1715
      %v1717 = vpop.f32.mrf.mxu0
      %v1718 = vpop.f32.mrf.mxu0
      %v1719 = vadd.f32 0.0, %v1718
      %v1720 = vpop.f32.mrf.mxu0
      %1721 = vmatprep.mubr.bf16.mxu0 0
      %1722 = vmatmul.mubr.bf16.gmra.mxu0 %v1218
      %v1723 = vpop.f32.mrf.mxu0
      %v1724 = vadd.f32 0.0, %v1723
      %v1725 = vpop.f32.mrf.mxu0
      %v1726 = vpop.f32.mrf.mxu0
      %v1727 = vadd.f32 0.0, %v1726
      %v1728 = vpop.f32.mrf.mxu0
      %1729 = vmatprep.mubr.bf16.mxu0 0
      %1730 = vmatmul.mubr.bf16.gmra.mxu0 %v1221
      %v1731 = vpop.f32.mrf.mxu0
      %v1732 = vadd.f32 0.0, %v1731
      %v1733 = vpop.f32.mrf.mxu0
      %v1734 = vpop.f32.mrf.mxu0
      %v1735 = vadd.f32 0.0, %v1734
      %v1736 = vpop.f32.mrf.mxu0
      %1737 = vmatprep.mubr.bf16.mxu0 0
      %1738 = vmatmul.mubr.bf16.gmra.mxu0 %v1224
      %v1739 = vpop.f32.mrf.mxu0
      %v1740 = vadd.f32 0.0, %v1739
      %v1741 = vpop.f32.mrf.mxu0
      %v1742 = vpop.f32.mrf.mxu0
      %v1743 = vadd.f32 0.0, %v1742
      %v1744 = vpop.f32.mrf.mxu0
      %1745 = vmatprep.mubr.bf16.mxu0 0
      %1746 = vmatmul.mubr.bf16.gmra.mxu0 %v1227
      %v1747 = vpop.f32.mrf.mxu0
      %v1748 = vadd.f32 0.0, %v1747
      %v1749 = vpop.f32.mrf.mxu0
      %v1750 = vpop.f32.mrf.mxu0
      %v1751 = vadd.f32 0.0, %v1750
      %v1752 = vpop.f32.mrf.mxu0
      %1753 = vmatprep.mubr.bf16.mxu0 0
      %1754 = vmatmul.mubr.bf16.gmra.mxu0 %v1230
      %v1755 = vpop.f32.mrf.mxu0
      %v1756 = vadd.f32 0.0, %v1755
      %v1757 = vpop.f32.mrf.mxu0
      %v1758 = vpop.f32.mrf.mxu0
      %v1759 = vadd.f32 0.0, %v1758
      %v1760 = vpop.f32.mrf.mxu0
      %1761 = vmatprep.mubr.bf16.mxu0 0
      %1762 = vmatmul.mubr.bf16.gmra.mxu0 %v1233
      %v1763 = vpop.f32.mrf.mxu0
      %v1764 = vadd.f32 0.0, %v1763
      %v1765 = vpop.f32.mrf.mxu0
      %v1766 = vpop.f32.mrf.mxu0
      %v1767 = vadd.f32 0.0, %v1766
      %v1768 = vpop.f32.mrf.mxu0
      %1769 = vmatprep.mubr.bf16.mxu0 0
      %1770 = vmatmul.mubr.bf16.gmra.mxu0 %v1236
      %v1771 = vpop.f32.mrf.mxu0
      %v1772 = vadd.f32 0.0, %v1771
      %v1773 = vpop.f32.mrf.mxu0
      %v1774 = vpop.f32.mrf.mxu0
      %v1775 = vadd.f32 0.0, %v1774
      %v1776 = vpop.f32.mrf.mxu0
      %1777 = vmatprep.mubr.bf16.mxu0 0
      %1778 = vmatmul.mubr.bf16.gmra.mxu0 %v1239
      %v1779 = vpop.f32.mrf.mxu0
      %v1780 = vadd.f32 0.0, %v1779
      %v1781 = vpop.f32.mrf.mxu0
      %v1782 = vpop.f32.mrf.mxu0
      %v1783 = vadd.f32 0.0, %v1782
      %v1784 = vpop.f32.mrf.mxu0
      %1785 = vmatprep.mubr.bf16.mxu0 0
      %1786 = vmatmul.mubr.bf16.gmra.mxu0 %v1242
      %v1787 = vpop.f32.mrf.mxu0
      %v1788 = vadd.f32 0.0, %v1787
      %v1789 = vpop.f32.mrf.mxu0
      %v1790 = vpop.f32.mrf.mxu0
      %v1791 = vadd.f32 0.0, %v1790
      %v1792 = vpop.f32.mrf.mxu0
      %1793 = vmatprep.mubr.bf16.mxu0 0
      %1794 = vmatmul.mubr.bf16.gmra.mxu0 %v1245
      %v1795 = vpop.f32.mrf.mxu0
      %v1796 = vadd.f32 0.0, %v1795
      %v1797 = vpop.f32.mrf.mxu0
      %v1798 = vpop.f32.mrf.mxu0
      %v1799 = vadd.f32 0.0, %v1798
      %v1800 = vpop.f32.mrf.mxu0
      %1801 = vmatprep.mubr.bf16.mxu0 0
      %1802 = vmatmul.mubr.bf16.gmra.mxu0 %v1248
      %v1803 = vpop.f32.mrf.mxu0
      %v1804 = vadd.f32 0.0, %v1803
      %v1805 = vpop.f32.mrf.mxu0
      %v1806 = vpop.f32.mrf.mxu0
      %v1807 = vadd.f32 0.0, %v1806
      %v1808 = vpop.f32.mrf.mxu0
      %1809 = vmatprep.mubr.bf16.mxu0 0
      %1810 = vmatmul.mubr.bf16.gmra.mxu0 %v1454
      %v1811 = vpop.f32.mrf.mxu0
      %v1812 = vadd.f32 0.0, %v1811
      %v1813 = vpop.f32.mrf.mxu0
      %v1814 = vpop.f32.mrf.mxu0
      %v1815 = vadd.f32 0.0, %v1814
      %v1816 = vpop.f32.mrf.mxu0
      %1817 = vmatprep.mubr.bf16.mxu0 0
      %1818 = vmatmul.mubr.bf16.gmra.mxu0 %v1660
      %v1819 = vpop.f32.mrf.mxu0
      %v1820 = vadd.f32 0.0, %v1819
      %v1821 = vpop.f32.mrf.mxu0
      %v1822 = vpop.f32.mrf.mxu0
      %v1823 = vadd.f32 0.0, %v1822
      %v1824 = vpop.f32.mrf.mxu0
      %1825 = vdwg.mxu0
      %v1826 = vadd.f32 %v1620, %v1700
      %v1827 = vadd.f32 %v1621, %v1703
      %v1828 = vadd.f32 %v1622, %v1708
      %v1829 = vadd.f32 %v1623, %v1711
      %v1830 = vadd.f32 %v1624, %v1716
      %v1831 = vadd.f32 %v1625, %v1719
      %v1832 = vadd.f32 %v1626, %v1724
      %v1833 = vadd.f32 %v1627, %v1727
      %v1834 = vadd.f32 %v1628, %v1732
      %v1835 = vadd.f32 %v1629, %v1735
      %v1836 = vadd.f32 %v1630, %v1740
      %v1837 = vadd.f32 %v1631, %v1743
      %v1838 = vadd.f32 %v1632, %v1748
      %v1839 = vadd.f32 %v1633, %v1751
      %v1840 = vadd.f32 %v1634, %v1756
      %v1841 = vadd.f32 %v1635, %v1759
      %v1842 = vadd.f32 %v1636, %v1764
      %v1843 = vadd.f32 %v1637, %v1767
      %v1844 = vadd.f32 %v1638, %v1772
      %v1845 = vadd.f32 %v1639, %v1775
      %v1846 = vadd.f32 %v1640, %v1780
      %v1847 = vadd.f32 %v1641, %v1783
      %v1848 = vadd.f32 %v1642, %v1788
      %v1849 = vadd.f32 %v1643, %v1791
      %v1850 = vadd.f32 %v1644, %v1796
      %v1851 = vadd.f32 %v1645, %v1799
      %v1852 = vadd.f32 %v1646, %v1804
      %v1853 = vadd.f32 %v1647, %v1807
      %v1854 = vadd.f32 %v1648, %v1812
      %v1855 = vadd.f32 %v1649, %v1815
      %v1856 = vadd.f32 %v1650, %v1820
      %v1857 = vadd.f32 %v1651, %v1823
      %s1858 = scalar_lea.vmem %s3, 4
      %v1859 = vld [vmem:[%s1858] sm:$0x3]
      %v1892 = vunpack.c.l.b16 %v409
      %v1893 = vunpack.c.l.b16 %v410
      %v1894 = vunpack.c.l.b16 %v411
      %v1895 = vunpack.c.l.b16 %v412
      %v1896 = vunpack.c.l.b16 %v413
      %v1897 = vunpack.c.l.b16 %v414
      %v1898 = vunpack.c.l.b16 %v415
      %v1899 = vunpack.c.l.b16 %v416
      %v1900 = vunpack.c.l.b16 %v417
      %v1901 = vunpack.c.l.b16 %v418
      %v1902 = vunpack.c.l.b16 %v419
      %v1903 = vunpack.c.l.b16 %v420
      %v1904 = vunpack.c.l.b16 %v421
      %v1905 = vunpack.c.l.b16 %v422
      %v1906 = vunpack.c.l.b16 %v423
      %v1907 = vunpack.c.l.b16 %v424
      %v1908 = vunpack.c.l.b16 %v425
      %v1909 = vunpack.c.l.b16 %v426
      %v1910 = vunpack.c.l.b16 %v427
      %v1911 = vunpack.c.l.b16 %v428
      %v1912 = vunpack.c.l.b16 %v429
      %v1913 = vunpack.c.l.b16 %v430
      %v1914 = vunpack.c.l.b16 %v431
      %v1915 = vunpack.c.l.b16 %v432
      %v1916 = vunpack.c.l.b16 %v433
      %v1917 = vunpack.c.l.b16 %v434
      %v1918 = vunpack.c.l.b16 %v435
      %v1919 = vunpack.c.l.b16 %v436
      %v1920 = vunpack.c.l.b16 %v437
      %v1921 = vunpack.c.l.b16 %v438
      %v1922 = vunpack.c.l.b16 %v439
      %v1923 = vunpack.c.l.b16 %v440
      %v1924 = vpack.c.b16 %v1893, %v1892
      %v1925 = vpack.c.b16 %v1895, %v1894
      %v1926 = vpack.c.b16 %v1897, %v1896
      %v1927 = vpack.c.b16 %v1899, %v1898
      %v1928 = vpack.c.b16 %v1901, %v1900
      %v1929 = vpack.c.b16 %v1903, %v1902
      %v1930 = vpack.c.b16 %v1905, %v1904
      %v1931 = vpack.c.b16 %v1907, %v1906
      %v1932 = vpack.c.b16 %v1909, %v1908
      %v1933 = vpack.c.b16 %v1911, %v1910
      %v1934 = vpack.c.b16 %v1913, %v1912
      %v1935 = vpack.c.b16 %v1915, %v1914
      %v1936 = vpack.c.b16 %v1917, %v1916
      %v1937 = vpack.c.b16 %v1919, %v1918
      %v1938 = vpack.c.b16 %v1921, %v1920
      %v1939 = vpack.c.b16 %v1923, %v1922
      %v1941 = vsel %vm528, %v1924, 0
      %v1944 = vsel %vm528, %v1925, 0
      %v1947 = vsel %vm528, %v1926, 0
      %v1950 = vsel %vm528, %v1927, 0
      %v1953 = vsel %vm528, %v1928, 0
      %v1956 = vsel %vm528, %v1929, 0
      %v1959 = vsel %vm528, %v1930, 0
      %v1962 = vsel %vm528, %v1931, 0
      %v1965 = vsel %vm528, %v1932, 0
      %v1968 = vsel %vm528, %v1933, 0
      %v1971 = vsel %vm528, %v1934, 0
      %v1974 = vsel %vm528, %v1935, 0
      %v1977 = vsel %vm528, %v1936, 0
      %v1980 = vsel %vm528, %v1937, 0
      %v1983 = vsel %vm528, %v1938, 0
      %v1986 = vsel %vm528, %v1939, 0
      %v1989 = vsel %vm577, %v1859, 0
      %1991 = vmatprep.subr.bf16.mxu0 0
      %1992 = vmatpush1.bf16.msra.mxu0 0
      %1993 = vmatprep.subr.bf16.mxu0 0
      %1994 = vmatpush1.bf16.msra.mxu0 0
      %1995 = vmatprep.subr.bf16.mxu0 0
      %1996 = vmatpush1.bf16.msra.mxu0 0
      %1997 = vmatprep.subr.bf16.mxu0 0
      %1998 = vmatpush1.bf16.msra.mxu0 0
      %1999 = vmatprep.subr.bf16.mxu0 0
      %2000 = vmatpush1.bf16.msra.mxu0 0
      %2001 = vmatprep.subr.bf16.mxu0 0
      %2002 = vmatpush1.bf16.msra.mxu0 0
      %2003 = vmatprep.subr.bf16.mxu0 0
      %2004 = vmatpush1.bf16.msra.mxu0 0
      %2005 = vmatprep.subr.bf16.mxu0 0
      %2006 = vmatpush1.bf16.msra.mxu0 %v1989
      %2007 = vmatprep.subr.bf16.mxu0 0
      %2008 = vmatpush2.bf16.msra.mxu0 0
      %2009 = vmatprep.subr.bf16.mxu0 0
      %2010 = vmatpush2.bf16.msra.mxu0 0
      %2011 = vmatprep.subr.bf16.mxu0 0
      %2012 = vmatpush2.bf16.msra.mxu0 0
      %2013 = vmatprep.subr.bf16.mxu0 0
      %2014 = vmatpush2.bf16.msra.mxu0 0
      %2015 = vmatprep.subr.bf16.mxu0 0
      %2016 = vmatpush2.bf16.msra.mxu0 0
      %2017 = vmatprep.subr.bf16.mxu0 0
      %2018 = vmatpush2.bf16.msra.mxu0 0
      %2019 = vmatprep.subr.bf16.mxu0 0
      %2020 = vmatpush2.bf16.msra.mxu0 0
      %2021 = vmatprep.subr.bf16.mxu0 0
      %2022 = vmatpush2.bf16.msra.mxu0 0
      %2023 = vmatprep.mubr.bf16.mxu0 0
      %2024 = vmatmul.mubr.bf16.gmra.mxu0 %v1941
      %v2025 = vpop.f32.mrf.mxu0
      %v2026 = vadd.f32 0.0, %v2025
      %v2027 = vpop.f32.mrf.mxu0
      %v2028 = vpop.f32.mrf.mxu0
      %v2029 = vadd.f32 0.0, %v2028
      %v2030 = vpop.f32.mrf.mxu0
      %2031 = vmatprep.mubr.bf16.mxu0 0
      %2032 = vmatmul.mubr.bf16.gmra.mxu0 %v1944
      %v2033 = vpop.f32.mrf.mxu0
      %v2034 = vadd.f32 0.0, %v2033
      %v2035 = vpop.f32.mrf.mxu0
      %v2036 = vpop.f32.mrf.mxu0
      %v2037 = vadd.f32 0.0, %v2036
      %v2038 = vpop.f32.mrf.mxu0
      %2039 = vmatprep.mubr.bf16.mxu0 0
      %2040 = vmatmul.mubr.bf16.gmra.mxu0 %v1947
      %v2041 = vpop.f32.mrf.mxu0
      %v2042 = vadd.f32 0.0, %v2041
      %v2043 = vpop.f32.mrf.mxu0
      %v2044 = vpop.f32.mrf.mxu0
      %v2045 = vadd.f32 0.0, %v2044
      %v2046 = vpop.f32.mrf.mxu0
      %2047 = vmatprep.mubr.bf16.mxu0 0
      %2048 = vmatmul.mubr.bf16.gmra.mxu0 %v1950
      %v2049 = vpop.f32.mrf.mxu0
      %v2050 = vadd.f32 0.0, %v2049
      %v2051 = vpop.f32.mrf.mxu0
      %v2052 = vpop.f32.mrf.mxu0
      %v2053 = vadd.f32 0.0, %v2052
      %v2054 = vpop.f32.mrf.mxu0
      %2055 = vmatprep.mubr.bf16.mxu0 0
      %2056 = vmatmul.mubr.bf16.gmra.mxu0 %v1953
      %v2057 = vpop.f32.mrf.mxu0
      %v2058 = vadd.f32 0.0, %v2057
      %v2059 = vpop.f32.mrf.mxu0
      %v2060 = vpop.f32.mrf.mxu0
      %v2061 = vadd.f32 0.0, %v2060
      %v2062 = vpop.f32.mrf.mxu0
      %2063 = vmatprep.mubr.bf16.mxu0 0
      %2064 = vmatmul.mubr.bf16.gmra.mxu0 %v1956
      %v2065 = vpop.f32.mrf.mxu0
      %v2066 = vadd.f32 0.0, %v2065
      %v2067 = vpop.f32.mrf.mxu0
      %v2068 = vpop.f32.mrf.mxu0
      %v2069 = vadd.f32 0.0, %v2068
      %v2070 = vpop.f32.mrf.mxu0
      %2071 = vmatprep.mubr.bf16.mxu0 0
      %2072 = vmatmul.mubr.bf16.gmra.mxu0 %v1959
      %v2073 = vpop.f32.mrf.mxu0
      %v2074 = vadd.f32 0.0, %v2073
      %v2075 = vpop.f32.mrf.mxu0
      %v2076 = vpop.f32.mrf.mxu0
      %v2077 = vadd.f32 0.0, %v2076
      %v2078 = vpop.f32.mrf.mxu0
      %2079 = vmatprep.mubr.bf16.mxu0 0
      %2080 = vmatmul.mubr.bf16.gmra.mxu0 %v1962
      %v2081 = vpop.f32.mrf.mxu0
      %v2082 = vadd.f32 0.0, %v2081
      %v2083 = vpop.f32.mrf.mxu0
      %v2084 = vpop.f32.mrf.mxu0
      %v2085 = vadd.f32 0.0, %v2084
      %v2086 = vpop.f32.mrf.mxu0
      %2087 = vmatprep.mubr.bf16.mxu0 0
      %2088 = vmatmul.mubr.bf16.gmra.mxu0 %v1965
      %v2089 = vpop.f32.mrf.mxu0
      %v2090 = vadd.f32 0.0, %v2089
      %v2091 = vpop.f32.mrf.mxu0
      %v2092 = vpop.f32.mrf.mxu0
      %v2093 = vadd.f32 0.0, %v2092
      %v2094 = vpop.f32.mrf.mxu0
      %2095 = vmatprep.mubr.bf16.mxu0 0
      %2096 = vmatmul.mubr.bf16.gmra.mxu0 %v1968
      %v2097 = vpop.f32.mrf.mxu0
      %v2098 = vadd.f32 0.0, %v2097
      %v2099 = vpop.f32.mrf.mxu0
      %v2100 = vpop.f32.mrf.mxu0
      %v2101 = vadd.f32 0.0, %v2100
      %v2102 = vpop.f32.mrf.mxu0
      %2103 = vmatprep.mubr.bf16.mxu0 0
      %2104 = vmatmul.mubr.bf16.gmra.mxu0 %v1971
      %v2105 = vpop.f32.mrf.mxu0
      %v2106 = vadd.f32 0.0, %v2105
      %v2107 = vpop.f32.mrf.mxu0
      %v2108 = vpop.f32.mrf.mxu0
      %v2109 = vadd.f32 0.0, %v2108
      %v2110 = vpop.f32.mrf.mxu0
      %2111 = vmatprep.mubr.bf16.mxu0 0
      %2112 = vmatmul.mubr.bf16.gmra.mxu0 %v1974
      %v2113 = vpop.f32.mrf.mxu0
      %v2114 = vadd.f32 0.0, %v2113
      %v2115 = vpop.f32.mrf.mxu0
      %v2116 = vpop.f32.mrf.mxu0
      %v2117 = vadd.f32 0.0, %v2116
      %v2118 = vpop.f32.mrf.mxu0
      %2119 = vmatprep.mubr.bf16.mxu0 0
      %2120 = vmatmul.mubr.bf16.gmra.mxu0 %v1977
      %v2121 = vpop.f32.mrf.mxu0
      %v2122 = vadd.f32 0.0, %v2121
      %v2123 = vpop.f32.mrf.mxu0
      %v2124 = vpop.f32.mrf.mxu0
      %v2125 = vadd.f32 0.0, %v2124
      %v2126 = vpop.f32.mrf.mxu0
      %2127 = vmatprep.mubr.bf16.mxu0 0
      %2128 = vmatmul.mubr.bf16.gmra.mxu0 %v1980
      %v2129 = vpop.f32.mrf.mxu0
      %v2130 = vadd.f32 0.0, %v2129
      %v2131 = vpop.f32.mrf.mxu0
      %v2132 = vpop.f32.mrf.mxu0
      %v2133 = vadd.f32 0.0, %v2132
      %v2134 = vpop.f32.mrf.mxu0
      %2135 = vmatprep.mubr.bf16.mxu0 0
      %2136 = vmatmul.mubr.bf16.gmra.mxu0 %v1983
      %v2137 = vpop.f32.mrf.mxu0
      %v2138 = vadd.f32 0.0, %v2137
      %v2139 = vpop.f32.mrf.mxu0
      %v2140 = vpop.f32.mrf.mxu0
      %v2141 = vadd.f32 0.0, %v2140
      %v2142 = vpop.f32.mrf.mxu0
      %2143 = vmatprep.mubr.bf16.mxu0 0
      %2144 = vmatmul.mubr.bf16.gmra.mxu0 %v1986
      %v2145 = vpop.f32.mrf.mxu0
      %v2146 = vadd.f32 0.0, %v2145
      %v2147 = vpop.f32.mrf.mxu0
      %v2148 = vpop.f32.mrf.mxu0
      %v2149 = vadd.f32 0.0, %v2148
      %v2150 = vpop.f32.mrf.mxu0
      %2151 = vdwg.mxu0
      %v2152 = vadd.f32 %v1826, %v2026
      %v2153 = vadd.f32 %v1827, %v2029
      %v2154 = vadd.f32 %v1828, %v2034
      %v2155 = vadd.f32 %v1829, %v2037
      %v2156 = vadd.f32 %v1830, %v2042
      %v2157 = vadd.f32 %v1831, %v2045
      %v2158 = vadd.f32 %v1832, %v2050
      %v2159 = vadd.f32 %v1833, %v2053
      %v2160 = vadd.f32 %v1834, %v2058
      %v2161 = vadd.f32 %v1835, %v2061
      %v2162 = vadd.f32 %v1836, %v2066
      %v2163 = vadd.f32 %v1837, %v2069
      %v2164 = vadd.f32 %v1838, %v2074
      %v2165 = vadd.f32 %v1839, %v2077
      %v2166 = vadd.f32 %v1840, %v2082
      %v2167 = vadd.f32 %v1841, %v2085
      %v2168 = vadd.f32 %v1842, %v2090
      %v2169 = vadd.f32 %v1843, %v2093
      %v2170 = vadd.f32 %v1844, %v2098
      %v2171 = vadd.f32 %v1845, %v2101
      %v2172 = vadd.f32 %v1846, %v2106
      %v2173 = vadd.f32 %v1847, %v2109
      %v2174 = vadd.f32 %v1848, %v2114
      %v2175 = vadd.f32 %v1849, %v2117
      %v2176 = vadd.f32 %v1850, %v2122
      %v2177 = vadd.f32 %v1851, %v2125
      %v2178 = vadd.f32 %v1852, %v2130
      %v2179 = vadd.f32 %v1853, %v2133
      %v2180 = vadd.f32 %v1854, %v2138
      %v2181 = vadd.f32 %v1855, %v2141
      %v2182 = vadd.f32 %v1856, %v2146
      %v2183 = vadd.f32 %v1857, %v2149
      %s2184 = scalar_lea.vmem %s3, 10
      %v2185 = vld [vmem:[%s2184] sm:$0x3]
      %v2188 = vunpack.c.l.b16 %v441
      %v2189 = vunpack.c.l.b16 %v442
      %v2190 = vpack.c.b16 %v2189, %v2188
      %v2192 = vsel %vm528, %v2190, 0
      %v2195 = vsel %vm577, %v2185, 0
      %2197 = vmatprep.subr.bf16.mxu0 0
      %2198 = vmatpush1.bf16.msra.mxu0 0
      %2199 = vmatprep.subr.bf16.mxu0 0
      %2200 = vmatpush1.bf16.msra.mxu0 0
      %2201 = vmatprep.subr.bf16.mxu0 0
      %2202 = vmatpush1.bf16.msra.mxu0 0
      %2203 = vmatprep.subr.bf16.mxu0 0
      %2204 = vmatpush1.bf16.msra.mxu0 0
      %2205 = vmatprep.subr.bf16.mxu0 0
      %2206 = vmatpush1.bf16.msra.mxu0 0
      %2207 = vmatprep.subr.bf16.mxu0 0
      %2208 = vmatpush1.bf16.msra.mxu0 0
      %2209 = vmatprep.subr.bf16.mxu0 0
      %2210 = vmatpush1.bf16.msra.mxu0 0
      %2211 = vmatprep.subr.bf16.mxu0 0
      %2212 = vmatpush1.bf16.msra.mxu0 %v2195
      %2213 = vmatprep.subr.bf16.mxu0 0
      %2214 = vmatpush2.bf16.msra.mxu0 0
      %2215 = vmatprep.subr.bf16.mxu0 0
      %2216 = vmatpush2.bf16.msra.mxu0 0
      %2217 = vmatprep.subr.bf16.mxu0 0
      %2218 = vmatpush2.bf16.msra.mxu0 0
      %2219 = vmatprep.subr.bf16.mxu0 0
      %2220 = vmatpush2.bf16.msra.mxu0 0
      %2221 = vmatprep.subr.bf16.mxu0 0
      %2222 = vmatpush2.bf16.msra.mxu0 0
      %2223 = vmatprep.subr.bf16.mxu0 0
      %2224 = vmatpush2.bf16.msra.mxu0 0
      %2225 = vmatprep.subr.bf16.mxu0 0
      %2226 = vmatpush2.bf16.msra.mxu0 0
      %2227 = vmatprep.subr.bf16.mxu0 0
      %2228 = vmatpush2.bf16.msra.mxu0 0
      %2229 = vmatprep.mubr.bf16.mxu0 0
      %2230 = vmatmul.mubr.bf16.gmra.mxu0 %v1944
      %v2231 = vpop.f32.mrf.mxu0
      %v2232 = vadd.f32 0.0, %v2231
      %v2233 = vpop.f32.mrf.mxu0
      %v2234 = vpop.f32.mrf.mxu0
      %v2235 = vadd.f32 0.0, %v2234
      %v2236 = vpop.f32.mrf.mxu0
      %2237 = vmatprep.mubr.bf16.mxu0 0
      %2238 = vmatmul.mubr.bf16.gmra.mxu0 %v1947
      %v2239 = vpop.f32.mrf.mxu0
      %v2240 = vadd.f32 0.0, %v2239
      %v2241 = vpop.f32.mrf.mxu0
      %v2242 = vpop.f32.mrf.mxu0
      %v2243 = vadd.f32 0.0, %v2242
      %v2244 = vpop.f32.mrf.mxu0
      %2245 = vmatprep.mubr.bf16.mxu0 0
      %2246 = vmatmul.mubr.bf16.gmra.mxu0 %v1950
      %v2247 = vpop.f32.mrf.mxu0
      %v2248 = vadd.f32 0.0, %v2247
      %v2249 = vpop.f32.mrf.mxu0
      %v2250 = vpop.f32.mrf.mxu0
      %v2251 = vadd.f32 0.0, %v2250
      %v2252 = vpop.f32.mrf.mxu0
      %2253 = vmatprep.mubr.bf16.mxu0 0
      %2254 = vmatmul.mubr.bf16.gmra.mxu0 %v1953
      %v2255 = vpop.f32.mrf.mxu0
      %v2256 = vadd.f32 0.0, %v2255
      %v2257 = vpop.f32.mrf.mxu0
      %v2258 = vpop.f32.mrf.mxu0
      %v2259 = vadd.f32 0.0, %v2258
      %v2260 = vpop.f32.mrf.mxu0
      %2261 = vmatprep.mubr.bf16.mxu0 0
      %2262 = vmatmul.mubr.bf16.gmra.mxu0 %v1956
      %v2263 = vpop.f32.mrf.mxu0
      %v2264 = vadd.f32 0.0, %v2263
      %v2265 = vpop.f32.mrf.mxu0
      %v2266 = vpop.f32.mrf.mxu0
      %v2267 = vadd.f32 0.0, %v2266
      %v2268 = vpop.f32.mrf.mxu0
      %2269 = vmatprep.mubr.bf16.mxu0 0
      %2270 = vmatmul.mubr.bf16.gmra.mxu0 %v1959
      %v2271 = vpop.f32.mrf.mxu0
      %v2272 = vadd.f32 0.0, %v2271
      %v2273 = vpop.f32.mrf.mxu0
      %v2274 = vpop.f32.mrf.mxu0
      %v2275 = vadd.f32 0.0, %v2274
      %v2276 = vpop.f32.mrf.mxu0
      %2277 = vmatprep.mubr.bf16.mxu0 0
      %2278 = vmatmul.mubr.bf16.gmra.mxu0 %v1962
      %v2279 = vpop.f32.mrf.mxu0
      %v2280 = vadd.f32 0.0, %v2279
      %v2281 = vpop.f32.mrf.mxu0
      %v2282 = vpop.f32.mrf.mxu0
      %v2283 = vadd.f32 0.0, %v2282
      %v2284 = vpop.f32.mrf.mxu0
      %2285 = vmatprep.mubr.bf16.mxu0 0
      %2286 = vmatmul.mubr.bf16.gmra.mxu0 %v1965
      %v2287 = vpop.f32.mrf.mxu0
      %v2288 = vadd.f32 0.0, %v2287
      %v2289 = vpop.f32.mrf.mxu0
      %v2290 = vpop.f32.mrf.mxu0
      %v2291 = vadd.f32 0.0, %v2290
      %v2292 = vpop.f32.mrf.mxu0
      %2293 = vmatprep.mubr.bf16.mxu0 0
      %2294 = vmatmul.mubr.bf16.gmra.mxu0 %v1968
      %v2295 = vpop.f32.mrf.mxu0
      %v2296 = vadd.f32 0.0, %v2295
      %v2297 = vpop.f32.mrf.mxu0
      %v2298 = vpop.f32.mrf.mxu0
      %v2299 = vadd.f32 0.0, %v2298
      %v2300 = vpop.f32.mrf.mxu0
      %2301 = vmatprep.mubr.bf16.mxu0 0
      %2302 = vmatmul.mubr.bf16.gmra.mxu0 %v1971
      %v2303 = vpop.f32.mrf.mxu0
      %v2304 = vadd.f32 0.0, %v2303
      %v2305 = vpop.f32.mrf.mxu0
      %v2306 = vpop.f32.mrf.mxu0
      %v2307 = vadd.f32 0.0, %v2306
      %v2308 = vpop.f32.mrf.mxu0
      %2309 = vmatprep.mubr.bf16.mxu0 0
      %2310 = vmatmul.mubr.bf16.gmra.mxu0 %v1974
      %v2311 = vpop.f32.mrf.mxu0
      %v2312 = vadd.f32 0.0, %v2311
      %v2313 = vpop.f32.mrf.mxu0
      %v2314 = vpop.f32.mrf.mxu0
      %v2315 = vadd.f32 0.0, %v2314
      %v2316 = vpop.f32.mrf.mxu0
      %2317 = vmatprep.mubr.bf16.mxu0 0
      %2318 = vmatmul.mubr.bf16.gmra.mxu0 %v1977
      %v2319 = vpop.f32.mrf.mxu0
      %v2320 = vadd.f32 0.0, %v2319
      %v2321 = vpop.f32.mrf.mxu0
      %v2322 = vpop.f32.mrf.mxu0
      %v2323 = vadd.f32 0.0, %v2322
      %v2324 = vpop.f32.mrf.mxu0
      %2325 = vmatprep.mubr.bf16.mxu0 0
      %2326 = vmatmul.mubr.bf16.gmra.mxu0 %v1980
      %v2327 = vpop.f32.mrf.mxu0
      %v2328 = vadd.f32 0.0, %v2327
      %v2329 = vpop.f32.mrf.mxu0
      %v2330 = vpop.f32.mrf.mxu0
      %v2331 = vadd.f32 0.0, %v2330
      %v2332 = vpop.f32.mrf.mxu0
      %2333 = vmatprep.mubr.bf16.mxu0 0
      %2334 = vmatmul.mubr.bf16.gmra.mxu0 %v1983
      %v2335 = vpop.f32.mrf.mxu0
      %v2336 = vadd.f32 0.0, %v2335
      %v2337 = vpop.f32.mrf.mxu0
      %v2338 = vpop.f32.mrf.mxu0
      %v2339 = vadd.f32 0.0, %v2338
      %v2340 = vpop.f32.mrf.mxu0
      %2341 = vmatprep.mubr.bf16.mxu0 0
      %2342 = vmatmul.mubr.bf16.gmra.mxu0 %v1986
      %v2343 = vpop.f32.mrf.mxu0
      %v2344 = vadd.f32 0.0, %v2343
      %v2345 = vpop.f32.mrf.mxu0
      %v2346 = vpop.f32.mrf.mxu0
      %v2347 = vadd.f32 0.0, %v2346
      %v2348 = vpop.f32.mrf.mxu0
      %2349 = vmatprep.mubr.bf16.mxu0 0
      %2350 = vmatmul.mubr.bf16.gmra.mxu0 %v2192
      %v2351 = vpop.f32.mrf.mxu0
      %v2352 = vadd.f32 0.0, %v2351
      %v2353 = vpop.f32.mrf.mxu0
      %v2354 = vpop.f32.mrf.mxu0
      %v2355 = vadd.f32 0.0, %v2354
      %v2356 = vpop.f32.mrf.mxu0
      %2357 = vdwg.mxu0
      %v2358 = vadd.f32 %v2152, %v2232
      %v2359 = vadd.f32 %v2153, %v2235
      %v2360 = vadd.f32 %v2154, %v2240
      %v2361 = vadd.f32 %v2155, %v2243
      %v2362 = vadd.f32 %v2156, %v2248
      %v2363 = vadd.f32 %v2157, %v2251
      %v2364 = vadd.f32 %v2158, %v2256
      %v2365 = vadd.f32 %v2159, %v2259
      %v2366 = vadd.f32 %v2160, %v2264
      %v2367 = vadd.f32 %v2161, %v2267
      %v2368 = vadd.f32 %v2162, %v2272
      %v2369 = vadd.f32 %v2163, %v2275
      %v2370 = vadd.f32 %v2164, %v2280
      %v2371 = vadd.f32 %v2165, %v2283
      %v2372 = vadd.f32 %v2166, %v2288
      %v2373 = vadd.f32 %v2167, %v2291
      %v2374 = vadd.f32 %v2168, %v2296
      %v2375 = vadd.f32 %v2169, %v2299
      %v2376 = vadd.f32 %v2170, %v2304
      %v2377 = vadd.f32 %v2171, %v2307
      %v2378 = vadd.f32 %v2172, %v2312
      %v2379 = vadd.f32 %v2173, %v2315
      %v2380 = vadd.f32 %v2174, %v2320
      %v2381 = vadd.f32 %v2175, %v2323
      %v2382 = vadd.f32 %v2176, %v2328
      %v2383 = vadd.f32 %v2177, %v2331
      %v2384 = vadd.f32 %v2178, %v2336
      %v2385 = vadd.f32 %v2179, %v2339
      %v2386 = vadd.f32 %v2180, %v2344
      %v2387 = vadd.f32 %v2181, %v2347
      %v2388 = vadd.f32 %v2182, %v2352
      %v2389 = vadd.f32 %v2183, %v2355
      %s2390 = scalar_lea.vmem %s3, 16
      %v2391 = vld [vmem:[%s2390] sm:$0x3]
      %v2394 = vunpack.c.l.b16 %v443
      %v2395 = vunpack.c.l.b16 %v444
      %v2396 = vpack.c.b16 %v2395, %v2394
      %v2398 = vsel %vm528, %v2396, 0
      %v2401 = vsel %vm577, %v2391, 0
      %2403 = vmatprep.subr.bf16.mxu0 0
      %2404 = vmatpush1.bf16.msra.mxu0 0
      %2405 = vmatprep.subr.bf16.mxu0 0
      %2406 = vmatpush1.bf16.msra.mxu0 0
      %2407 = vmatprep.subr.bf16.mxu0 0
      %2408 = vmatpush1.bf16.msra.mxu0 0
      %2409 = vmatprep.subr.bf16.mxu0 0
      %2410 = vmatpush1.bf16.msra.mxu0 0
      %2411 = vmatprep.subr.bf16.mxu0 0
      %2412 = vmatpush1.bf16.msra.mxu0 0
      %2413 = vmatprep.subr.bf16.mxu0 0
      %2414 = vmatpush1.bf16.msra.mxu0 0
      %2415 = vmatprep.subr.bf16.mxu0 0
      %2416 = vmatpush1.bf16.msra.mxu0 0
      %2417 = vmatprep.subr.bf16.mxu0 0
      %2418 = vmatpush1.bf16.msra.mxu0 %v2401
      %2419 = vmatprep.subr.bf16.mxu0 0
      %2420 = vmatpush2.bf16.msra.mxu0 0
      %2421 = vmatprep.subr.bf16.mxu0 0
      %2422 = vmatpush2.bf16.msra.mxu0 0
      %2423 = vmatprep.subr.bf16.mxu0 0
      %2424 = vmatpush2.bf16.msra.mxu0 0
      %2425 = vmatprep.subr.bf16.mxu0 0
      %2426 = vmatpush2.bf16.msra.mxu0 0
      %2427 = vmatprep.subr.bf16.mxu0 0
      %2428 = vmatpush2.bf16.msra.mxu0 0
      %2429 = vmatprep.subr.bf16.mxu0 0
      %2430 = vmatpush2.bf16.msra.mxu0 0
      %2431 = vmatprep.subr.bf16.mxu0 0
      %2432 = vmatpush2.bf16.msra.mxu0 0
      %2433 = vmatprep.subr.bf16.mxu0 0
      %2434 = vmatpush2.bf16.msra.mxu0 0
      %2435 = vmatprep.mubr.bf16.mxu0 0
      %2436 = vmatmul.mubr.bf16.gmra.mxu0 %v1947
      %v2437 = vpop.f32.mrf.mxu0
      %v2438 = vadd.f32 0.0, %v2437
      %v2439 = vpop.f32.mrf.mxu0
      %v2440 = vpop.f32.mrf.mxu0
      %v2441 = vadd.f32 0.0, %v2440
      %v2442 = vpop.f32.mrf.mxu0
      %2443 = vmatprep.mubr.bf16.mxu0 0
      %2444 = vmatmul.mubr.bf16.gmra.mxu0 %v1950
      %v2445 = vpop.f32.mrf.mxu0
      %v2446 = vadd.f32 0.0, %v2445
      %v2447 = vpop.f32.mrf.mxu0
      %v2448 = vpop.f32.mrf.mxu0
      %v2449 = vadd.f32 0.0, %v2448
      %v2450 = vpop.f32.mrf.mxu0
      %2451 = vmatprep.mubr.bf16.mxu0 0
      %2452 = vmatmul.mubr.bf16.gmra.mxu0 %v1953
      %v2453 = vpop.f32.mrf.mxu0
      %v2454 = vadd.f32 0.0, %v2453
      %v2455 = vpop.f32.mrf.mxu0
      %v2456 = vpop.f32.mrf.mxu0
      %v2457 = vadd.f32 0.0, %v2456
      %v2458 = vpop.f32.mrf.mxu0
      %2459 = vmatprep.mubr.bf16.mxu0 0
      %2460 = vmatmul.mubr.bf16.gmra.mxu0 %v1956
      %v2461 = vpop.f32.mrf.mxu0
      %v2462 = vadd.f32 0.0, %v2461
      %v2463 = vpop.f32.mrf.mxu0
      %v2464 = vpop.f32.mrf.mxu0
      %v2465 = vadd.f32 0.0, %v2464
      %v2466 = vpop.f32.mrf.mxu0
      %2467 = vmatprep.mubr.bf16.mxu0 0
      %2468 = vmatmul.mubr.bf16.gmra.mxu0 %v1959
      %v2469 = vpop.f32.mrf.mxu0
      %v2470 = vadd.f32 0.0, %v2469
      %v2471 = vpop.f32.mrf.mxu0
      %v2472 = vpop.f32.mrf.mxu0
      %v2473 = vadd.f32 0.0, %v2472
      %v2474 = vpop.f32.mrf.mxu0
      %2475 = vmatprep.mubr.bf16.mxu0 0
      %2476 = vmatmul.mubr.bf16.gmra.mxu0 %v1962
      %v2477 = vpop.f32.mrf.mxu0
      %v2478 = vadd.f32 0.0, %v2477
      %v2479 = vpop.f32.mrf.mxu0
      %v2480 = vpop.f32.mrf.mxu0
      %v2481 = vadd.f32 0.0, %v2480
      %v2482 = vpop.f32.mrf.mxu0
      %2483 = vmatprep.mubr.bf16.mxu0 0
      %2484 = vmatmul.mubr.bf16.gmra.mxu0 %v1965
      %v2485 = vpop.f32.mrf.mxu0
      %v2486 = vadd.f32 0.0, %v2485
      %v2487 = vpop.f32.mrf.mxu0
      %v2488 = vpop.f32.mrf.mxu0
      %v2489 = vadd.f32 0.0, %v2488
      %v2490 = vpop.f32.mrf.mxu0
      %2491 = vmatprep.mubr.bf16.mxu0 0
      %2492 = vmatmul.mubr.bf16.gmra.mxu0 %v1968
      %v2493 = vpop.f32.mrf.mxu0
      %v2494 = vadd.f32 0.0, %v2493
      %v2495 = vpop.f32.mrf.mxu0
      %v2496 = vpop.f32.mrf.mxu0
      %v2497 = vadd.f32 0.0, %v2496
      %v2498 = vpop.f32.mrf.mxu0
      %2499 = vmatprep.mubr.bf16.mxu0 0
      %2500 = vmatmul.mubr.bf16.gmra.mxu0 %v1971
      %v2501 = vpop.f32.mrf.mxu0
      %v2502 = vadd.f32 0.0, %v2501
      %v2503 = vpop.f32.mrf.mxu0
      %v2504 = vpop.f32.mrf.mxu0
      %v2505 = vadd.f32 0.0, %v2504
      %v2506 = vpop.f32.mrf.mxu0
      %2507 = vmatprep.mubr.bf16.mxu0 0
      %2508 = vmatmul.mubr.bf16.gmra.mxu0 %v1974
      %v2509 = vpop.f32.mrf.mxu0
      %v2510 = vadd.f32 0.0, %v2509
      %v2511 = vpop.f32.mrf.mxu0
      %v2512 = vpop.f32.mrf.mxu0
      %v2513 = vadd.f32 0.0, %v2512
      %v2514 = vpop.f32.mrf.mxu0
      %2515 = vmatprep.mubr.bf16.mxu0 0
      %2516 = vmatmul.mubr.bf16.gmra.mxu0 %v1977
      %v2517 = vpop.f32.mrf.mxu0
      %v2518 = vadd.f32 0.0, %v2517
      %v2519 = vpop.f32.mrf.mxu0
      %v2520 = vpop.f32.mrf.mxu0
      %v2521 = vadd.f32 0.0, %v2520
      %v2522 = vpop.f32.mrf.mxu0
      %2523 = vmatprep.mubr.bf16.mxu0 0
      %2524 = vmatmul.mubr.bf16.gmra.mxu0 %v1980
      %v2525 = vpop.f32.mrf.mxu0
      %v2526 = vadd.f32 0.0, %v2525
      %v2527 = vpop.f32.mrf.mxu0
      %v2528 = vpop.f32.mrf.mxu0
      %v2529 = vadd.f32 0.0, %v2528
      %v2530 = vpop.f32.mrf.mxu0
      %2531 = vmatprep.mubr.bf16.mxu0 0
      %2532 = vmatmul.mubr.bf16.gmra.mxu0 %v1983
      %v2533 = vpop.f32.mrf.mxu0
      %v2534 = vadd.f32 0.0, %v2533
      %v2535 = vpop.f32.mrf.mxu0
      %v2536 = vpop.f32.mrf.mxu0
      %v2537 = vadd.f32 0.0, %v2536
      %v2538 = vpop.f32.mrf.mxu0
      %2539 = vmatprep.mubr.bf16.mxu0 0
      %2540 = vmatmul.mubr.bf16.gmra.mxu0 %v1986
      %v2541 = vpop.f32.mrf.mxu0
      %v2542 = vadd.f32 0.0, %v2541
      %v2543 = vpop.f32.mrf.mxu0
      %v2544 = vpop.f32.mrf.mxu0
      %v2545 = vadd.f32 0.0, %v2544
      %v2546 = vpop.f32.mrf.mxu0
      %2547 = vmatprep.mubr.bf16.mxu0 0
      %2548 = vmatmul.mubr.bf16.gmra.mxu0 %v2192
      %v2549 = vpop.f32.mrf.mxu0
      %v2550 = vadd.f32 0.0, %v2549
      %v2551 = vpop.f32.mrf.mxu0
      %v2552 = vpop.f32.mrf.mxu0
      %v2553 = vadd.f32 0.0, %v2552
      %v2554 = vpop.f32.mrf.mxu0
      %2555 = vmatprep.mubr.bf16.mxu0 0
      %2556 = vmatmul.mubr.bf16.gmra.mxu0 %v2398
      %v2557 = vpop.f32.mrf.mxu0
      %v2558 = vadd.f32 0.0, %v2557
      %v2559 = vpop.f32.mrf.mxu0
      %v2560 = vpop.f32.mrf.mxu0
      %v2561 = vadd.f32 0.0, %v2560
      %v2562 = vpop.f32.mrf.mxu0
      %2563 = vdwg.mxu0
      %v2564 = vadd.f32 %v2358, %v2438
      %v2565 = vadd.f32 %v2359, %v2441
      %v2566 = vadd.f32 %v2360, %v2446
      %v2567 = vadd.f32 %v2361, %v2449
      %v2568 = vadd.f32 %v2362, %v2454
      %v2569 = vadd.f32 %v2363, %v2457
      %v2570 = vadd.f32 %v2364, %v2462
      %v2571 = vadd.f32 %v2365, %v2465
      %v2572 = vadd.f32 %v2366, %v2470
      %v2573 = vadd.f32 %v2367, %v2473
      %v2574 = vadd.f32 %v2368, %v2478
      %v2575 = vadd.f32 %v2369, %v2481
      %v2576 = vadd.f32 %v2370, %v2486
      %v2577 = vadd.f32 %v2371, %v2489
      %v2578 = vadd.f32 %v2372, %v2494
      %v2579 = vadd.f32 %v2373, %v2497
      %v2580 = vadd.f32 %v2374, %v2502
      %v2581 = vadd.f32 %v2375, %v2505
      %v2582 = vadd.f32 %v2376, %v2510
      %v2583 = vadd.f32 %v2377, %v2513
      %v2584 = vadd.f32 %v2378, %v2518
      %v2585 = vadd.f32 %v2379, %v2521
      %v2586 = vadd.f32 %v2380, %v2526
      %v2587 = vadd.f32 %v2381, %v2529
      %v2588 = vadd.f32 %v2382, %v2534
      %v2589 = vadd.f32 %v2383, %v2537
      %v2590 = vadd.f32 %v2384, %v2542
      %v2591 = vadd.f32 %v2385, %v2545
      %v2592 = vadd.f32 %v2386, %v2550
      %v2593 = vadd.f32 %v2387, %v2553
      %v2594 = vadd.f32 %v2388, %v2558
      %v2595 = vadd.f32 %v2389, %v2561
      %v2596 = vld [vmem:[%s4] sm:$0x1]
      %v2598 = vlaneseq
      %v2599 = vshrl.u32 %v2598, 7
      %v2600 = vsub.s32 0, %v2599
      %v2601 = vrot.slane %v2596, %v2600
      %v2603 = vadd.f32 %v2564, %v2601
      %v2604 = vadd.f32 %v2565, %v2601
      %v2605 = vadd.f32 %v2566, %v2601
      %v2606 = vadd.f32 %v2567, %v2601
      %v2607 = vadd.f32 %v2568, %v2601
      %v2608 = vadd.f32 %v2569, %v2601
      %v2609 = vadd.f32 %v2570, %v2601
      %v2610 = vadd.f32 %v2571, %v2601
      %v2611 = vadd.f32 %v2572, %v2601
      %v2612 = vadd.f32 %v2573, %v2601
      %v2613 = vadd.f32 %v2574, %v2601
      %v2614 = vadd.f32 %v2575, %v2601
      %v2615 = vadd.f32 %v2576, %v2601
      %v2616 = vadd.f32 %v2577, %v2601
      %v2617 = vadd.f32 %v2578, %v2601
      %v2618 = vadd.f32 %v2579, %v2601
      %v2619 = vadd.f32 %v2580, %v2601
      %v2620 = vadd.f32 %v2581, %v2601
      %v2621 = vadd.f32 %v2582, %v2601
      %v2622 = vadd.f32 %v2583, %v2601
      %v2623 = vadd.f32 %v2584, %v2601
      %v2624 = vadd.f32 %v2585, %v2601
      %v2625 = vadd.f32 %v2586, %v2601
      %v2626 = vadd.f32 %v2587, %v2601
      %v2627 = vadd.f32 %v2588, %v2601
      %v2628 = vadd.f32 %v2589, %v2601
      %v2629 = vadd.f32 %v2590, %v2601
      %v2630 = vadd.f32 %v2591, %v2601
      %v2631 = vadd.f32 %v2592, %v2601
      %v2632 = vadd.f32 %v2593, %v2601
      %v2633 = vadd.f32 %v2594, %v2601
      %v2634 = vadd.f32 %v2595, %v2601
      %2635 = vst.msk [vmem:[%s329] sm:$0xff] %vm528, %v2603
      %2636 = vst.msk [vmem:[%s329 + $0x8] sm:$0xff] %vm528, %v2604
      %2637 = vst.msk [vmem:[%s329 + $0x10] sm:$0xff] %vm528, %v2605
      %2638 = vst.msk [vmem:[%s329 + $0x18] sm:$0xff] %vm528, %v2606
      %2639 = vst.msk [vmem:[%s329 + $0x20] sm:$0xff] %vm528, %v2607
      %2640 = vst.msk [vmem:[%s329 + $0x28] sm:$0xff] %vm528, %v2608
      %2641 = vst.msk [vmem:[%s329 + $0x30] sm:$0xff] %vm528, %v2609
      %2642 = vst.msk [vmem:[%s329 + $0x38] sm:$0xff] %vm528, %v2610
      %2643 = vst.msk [vmem:[%s329 + $0x40] sm:$0xff] %vm528, %v2611
      %2644 = vst.msk [vmem:[%s329 + $0x48] sm:$0xff] %vm528, %v2612
      %2645 = vst.msk [vmem:[%s329 + $0x50] sm:$0xff] %vm528, %v2613
      %2646 = vst.msk [vmem:[%s329 + $0x58] sm:$0xff] %vm528, %v2614
      %2647 = vst.msk [vmem:[%s329 + $0x60] sm:$0xff] %vm528, %v2615
      %2648 = vst.msk [vmem:[%s329 + $0x68] sm:$0xff] %vm528, %v2616
      %2649 = vst.msk [vmem:[%s329 + $0x70] sm:$0xff] %vm528, %v2617
      %2650 = vst.msk [vmem:[%s329 + $0x78] sm:$0xff] %vm528, %v2618
      %2651 = vst.msk [vmem:[%s329 + $0x80] sm:$0xff] %vm528, %v2619
      %2652 = vst.msk [vmem:[%s329 + $0x88] sm:$0xff] %vm528, %v2620
      %2653 = vst.msk [vmem:[%s329 + $0x90] sm:$0xff] %vm528, %v2621
      %2654 = vst.msk [vmem:[%s329 + $0x98] sm:$0xff] %vm528, %v2622
      %2655 = vst.msk [vmem:[%s329 + $0xa0] sm:$0xff] %vm528, %v2623
      %2656 = vst.msk [vmem:[%s329 + $0xa8] sm:$0xff] %vm528, %v2624
      %2657 = vst.msk [vmem:[%s329 + $0xb0] sm:$0xff] %vm528, %v2625
      %2658 = vst.msk [vmem:[%s329 + $0xb8] sm:$0xff] %vm528, %v2626
      %2659 = vst.msk [vmem:[%s329 + $0xc0] sm:$0xff] %vm528, %v2627
      %2660 = vst.msk [vmem:[%s329 + $0xc8] sm:$0xff] %vm528, %v2628
      %2661 = vst.msk [vmem:[%s329 + $0xd0] sm:$0xff] %vm528, %v2629
      %2662 = vst.msk [vmem:[%s329 + $0xd8] sm:$0xff] %vm528, %v2630
      %2663 = vst.msk [vmem:[%s329 + $0xe0] sm:$0xff] %vm528, %v2631
      %2664 = vst.msk [vmem:[%s329 + $0xe8] sm:$0xff] %vm528, %v2632
      %2665 = vst.msk [vmem:[%s329 + $0xf0] sm:$0xff] %vm528, %v2633
      %2666 = vst.msk [vmem:[%s329 + $0xf8] sm:$0xff] %vm528, %v2634
      %v2667 = vsel %vm528, %v2603, 0.0
      %v2668 = vsel %vm528, %v2604, 0.0
      %v2669 = vadd.f32 %v2667, %v2668
      %v2670 = vsel %vm528, %v2605, 0.0
      %v2671 = vadd.f32 %v2669, %v2670
      %v2672 = vsel %vm528, %v2606, 0.0
      %v2673 = vadd.f32 %v2671, %v2672
      %v2674 = vsel %vm528, %v2607, 0.0
      %v2675 = vadd.f32 %v2673, %v2674
      %v2676 = vsel %vm528, %v2608, 0.0
      %v2677 = vadd.f32 %v2675, %v2676
      %v2678 = vsel %vm528, %v2609, 0.0
      %v2679 = vadd.f32 %v2677, %v2678
      %v2680 = vsel %vm528, %v2610, 0.0
      %v2681 = vadd.f32 %v2679, %v2680
      %v2682 = vsel %vm528, %v2611, 0.0
      %v2683 = vadd.f32 %v2681, %v2682
      %v2684 = vsel %vm528, %v2612, 0.0
      %v2685 = vadd.f32 %v2683, %v2684
      %v2686 = vsel %vm528, %v2613, 0.0
      %v2687 = vadd.f32 %v2685, %v2686
      %v2688 = vsel %vm528, %v2614, 0.0
      %v2689 = vadd.f32 %v2687, %v2688
      %v2690 = vsel %vm528, %v2615, 0.0
      %v2691 = vadd.f32 %v2689, %v2690
      %v2692 = vsel %vm528, %v2616, 0.0
      %v2693 = vadd.f32 %v2691, %v2692
      %v2694 = vsel %vm528, %v2617, 0.0
      %v2695 = vadd.f32 %v2693, %v2694
      %v2696 = vsel %vm528, %v2618, 0.0
      %v2697 = vadd.f32 %v2695, %v2696
      %v2698 = vsel %vm528, %v2619, 0.0
      %v2699 = vadd.f32 %v2697, %v2698
      %v2700 = vsel %vm528, %v2620, 0.0
      %v2701 = vadd.f32 %v2699, %v2700
      %v2702 = vsel %vm528, %v2621, 0.0
      %v2703 = vadd.f32 %v2701, %v2702
      %v2704 = vsel %vm528, %v2622, 0.0
      %v2705 = vadd.f32 %v2703, %v2704
      %v2706 = vsel %vm528, %v2623, 0.0
      %v2707 = vadd.f32 %v2705, %v2706
      %v2708 = vsel %vm528, %v2624, 0.0
      %v2709 = vadd.f32 %v2707, %v2708
      %v2710 = vsel %vm528, %v2625, 0.0
      %v2711 = vadd.f32 %v2709, %v2710
      %v2712 = vsel %vm528, %v2626, 0.0
      %v2713 = vadd.f32 %v2711, %v2712
      %v2714 = vsel %vm528, %v2627, 0.0
      %v2715 = vadd.f32 %v2713, %v2714
      %v2716 = vsel %vm528, %v2628, 0.0
      %v2717 = vadd.f32 %v2715, %v2716
      %v2718 = vsel %vm528, %v2629, 0.0
      %v2719 = vadd.f32 %v2717, %v2718
      %v2720 = vsel %vm528, %v2630, 0.0
      %v2721 = vadd.f32 %v2719, %v2720
      %v2722 = vsel %vm528, %v2631, 0.0
      %v2723 = vadd.f32 %v2721, %v2722
      %v2724 = vsel %vm528, %v2632, 0.0
      %v2725 = vadd.f32 %v2723, %v2724
      %v2726 = vsel %vm528, %v2633, 0.0
      %v2727 = vadd.f32 %v2725, %v2726
      %v2728 = vsel %vm528, %v2634, 0.0
      %v2729 = vadd.f32 %v2727, %v2728
      %v2730 = vrot.slane %v2729, 4
      %v2731 = vadd.f32 %v2729, %v2730
      %v2732 = vrot.slane %v2731, 2
      %v2733 = vadd.f32 %v2731, %v2732
      %v2734 = vrot.slane %v2733, 1
      %v2735 = vadd.f32 %v2733, %v2734
      %vm2736 = vcmask 24576
      %2737 = vst.msk [vmem:[%s332] sm:$0x1] %vm2736, %v2735
      %v2738 = vmul.f32 %v2603, %v2603
      %v2739 = vmul.f32 %v2604, %v2604
      %v2740 = vmul.f32 %v2605, %v2605
      %v2741 = vmul.f32 %v2606, %v2606
      %v2742 = vmul.f32 %v2607, %v2607
      %v2743 = vmul.f32 %v2608, %v2608
      %v2744 = vmul.f32 %v2609, %v2609
      %v2745 = vmul.f32 %v2610, %v2610
      %v2746 = vmul.f32 %v2611, %v2611
      %v2747 = vmul.f32 %v2612, %v2612
      %v2748 = vmul.f32 %v2613, %v2613
      %v2749 = vmul.f32 %v2614, %v2614
      %v2750 = vmul.f32 %v2615, %v2615
      %v2751 = vmul.f32 %v2616, %v2616
      %v2752 = vmul.f32 %v2617, %v2617
      %v2753 = vmul.f32 %v2618, %v2618
      %v2754 = vmul.f32 %v2619, %v2619
      %v2755 = vmul.f32 %v2620, %v2620
      %v2756 = vmul.f32 %v2621, %v2621
      %v2757 = vmul.f32 %v2622, %v2622
      %v2758 = vmul.f32 %v2623, %v2623
      %v2759 = vmul.f32 %v2624, %v2624
      %v2760 = vmul.f32 %v2625, %v2625
      %v2761 = vmul.f32 %v2626, %v2626
      %v2762 = vmul.f32 %v2627, %v2627
      %v2763 = vmul.f32 %v2628, %v2628
      %v2764 = vmul.f32 %v2629, %v2629
      %v2765 = vmul.f32 %v2630, %v2630
      %v2766 = vmul.f32 %v2631, %v2631
      %v2767 = vmul.f32 %v2632, %v2632
      %v2768 = vmul.f32 %v2633, %v2633
      %v2769 = vmul.f32 %v2634, %v2634
      %v2770 = vsel %vm528, %v2738, 0.0
      %v2771 = vsel %vm528, %v2739, 0.0
      %v2772 = vadd.f32 %v2770, %v2771
      %v2773 = vsel %vm528, %v2740, 0.0
      %v2774 = vadd.f32 %v2772, %v2773
      %v2775 = vsel %vm528, %v2741, 0.0
      %v2776 = vadd.f32 %v2774, %v2775
      %v2777 = vsel %vm528, %v2742, 0.0
      %v2778 = vadd.f32 %v2776, %v2777
      %v2779 = vsel %vm528, %v2743, 0.0
      %v2780 = vadd.f32 %v2778, %v2779
      %v2781 = vsel %vm528, %v2744, 0.0
      %v2782 = vadd.f32 %v2780, %v2781
      %v2783 = vsel %vm528, %v2745, 0.0
      %v2784 = vadd.f32 %v2782, %v2783
      %v2785 = vsel %vm528, %v2746, 0.0
      %v2786 = vadd.f32 %v2784, %v2785
      %v2787 = vsel %vm528, %v2747, 0.0
      %v2788 = vadd.f32 %v2786, %v2787
      %v2789 = vsel %vm528, %v2748, 0.0
      %v2790 = vadd.f32 %v2788, %v2789
      %v2791 = vsel %vm528, %v2749, 0.0
      %v2792 = vadd.f32 %v2790, %v2791
      %v2793 = vsel %vm528, %v2750, 0.0
      %v2794 = vadd.f32 %v2792, %v2793
      %v2795 = vsel %vm528, %v2751, 0.0
      %v2796 = vadd.f32 %v2794, %v2795
      %v2797 = vsel %vm528, %v2752, 0.0
      %v2798 = vadd.f32 %v2796, %v2797
      %v2799 = vsel %vm528, %v2753, 0.0
      %v2800 = vadd.f32 %v2798, %v2799
      %v2801 = vsel %vm528, %v2754, 0.0
      %v2802 = vadd.f32 %v2800, %v2801
      %v2803 = vsel %vm528, %v2755, 0.0
      %v2804 = vadd.f32 %v2802, %v2803
      %v2805 = vsel %vm528, %v2756, 0.0
      %v2806 = vadd.f32 %v2804, %v2805
      %v2807 = vsel %vm528, %v2757, 0.0
      %v2808 = vadd.f32 %v2806, %v2807
      %v2809 = vsel %vm528, %v2758, 0.0
      %v2810 = vadd.f32 %v2808, %v2809
      %v2811 = vsel %vm528, %v2759, 0.0
      %v2812 = vadd.f32 %v2810, %v2811
      %v2813 = vsel %vm528, %v2760, 0.0
      %v2814 = vadd.f32 %v2812, %v2813
      %v2815 = vsel %vm528, %v2761, 0.0
      %v2816 = vadd.f32 %v2814, %v2815
      %v2817 = vsel %vm528, %v2762, 0.0
      %v2818 = vadd.f32 %v2816, %v2817
      %v2819 = vsel %vm528, %v2763, 0.0
      %v2820 = vadd.f32 %v2818, %v2819
      %v2821 = vsel %vm528, %v2764, 0.0
      %v2822 = vadd.f32 %v2820, %v2821
      %v2823 = vsel %vm528, %v2765, 0.0
      %v2824 = vadd.f32 %v2822, %v2823
      %v2825 = vsel %vm528, %v2766, 0.0
      %v2826 = vadd.f32 %v2824, %v2825
      %v2827 = vsel %vm528, %v2767, 0.0
      %v2828 = vadd.f32 %v2826, %v2827
      %v2829 = vsel %vm528, %v2768, 0.0
      %v2830 = vadd.f32 %v2828, %v2829
      %v2831 = vsel %vm528, %v2769, 0.0
      %v2832 = vadd.f32 %v2830, %v2831
      %v2833 = vrot.slane %v2832, 4
      %v2834 = vadd.f32 %v2832, %v2833
      %v2835 = vrot.slane %v2834, 2
      %v2836 = vadd.f32 %v2834, %v2835
      %v2837 = vrot.slane %v2836, 1
      %v2838 = vadd.f32 %v2836, %v2837
      %2839 = vst.msk [vmem:[%s335] sm:$0x1] %vm2736, %v2838
      %p2840 = scmp.lt.s32.totalorder %s19, 1
      %s2841 = scalar_select %p2840, %s19, 1
      %s2842 = smul.addr %s2841, 32
      %s2843 = smul.addr %s2842, 8
      %s2844 = scalar_lea.vmem %s5, %s2843
      %p2845 = scmp.lt.s32.totalorder %s19, 1
      %s2846 = scalar_select %p2845, %s19, 1
      %s2847 = scalar_lea.vmem %s6, %s2846
      %p2848 = scmp.lt.s32.totalorder %s19, 1
      %s2849 = scalar_select %p2848, %s19, 1
      %s2850 = scalar_lea.vmem %s7, %s2849
      // Predicated region
      $region41: #{transformer_up_forward.11} parent=39 // pred_check
        %p2851 = pneg %p157
      $region42: #{transformer_up_forward.11} parent=39 // pred_check_branch
        %2853 = sbr.rel (%p2851) target = $region44
      $region43: #{transformer_up_forward.11} parent=39 // pred_region
        _
      $region44: #{transformer_up_forward.11} parent=39 // pred_fallthru
        _
      // Predicated region
      $region45: #{transformer_up_forward.11} parent=39 // pred_check
        %p2854 = pneg %p183
      $region46: #{transformer_up_forward.11} parent=39 // pred_check_branch
        %2856 = sbr.rel (%p2854) target = $region48
      $region47: #{transformer_up_forward.11} parent=39 // pred_region
        _
      $region48: #{transformer_up_forward.11} parent=39 // pred_fallthru
        _
      // Predicated region
      $region49: #{transformer_up_forward.11} parent=39 // pred_check
        %p2857 = pneg %p209
      $region50: #{transformer_up_forward.11} parent=39 // pred_check_branch
        %2859 = sbr.rel (%p2857) target = $region52
      $region51: #{transformer_up_forward.11} parent=39 // pred_region
        _
      $region52: #{transformer_up_forward.11} parent=39 // pred_fallthru
        _
    $region40: #{transformer_up_forward.11} parent=5 // pred_fallthru
      _
    %p2860 = scmp.le.s32.totalorder 2, %s14
    // Predicated region
    $region53: #{transformer_up_forward.11} parent=5 // pred_check
      %p2861 = pneg %p2860
    $region54: #{transformer_up_forward.11} parent=5 // pred_check_branch
      %2863 = sbr.rel (%p2861) target = $region56
    $region55: #{transformer_up_forward.11} parent=5 // pred_region
      %s2864 = ssub.s32 %s14, 2
      // Predicated region
      $region57: #{transformer_up_forward.11} parent=55 // pred_check
        %p2865 = pneg %p163
      $region58: #{transformer_up_forward.11} parent=55 // pred_check_branch
        %2867 = sbr.rel (%p2865) target = $region60
      $region59: #{transformer_up_forward.11} parent=55 // pred_region
        %p2868 = scmp.lt.s32.totalorder %s20, 1
        %s2869 = scalar_select %p2868, %s20, 1
        %s2870 = smul.addr %s2869, 32
        %s2871 = smul.addr %s2870, 8
        %s2872 = scalar_lea.vmem %s5, %s2871
      $region60: #{transformer_up_forward.11} parent=55 // pred_fallthru
        _
      // Predicated region
      $region61: #{transformer_up_forward.11} parent=55 // pred_check
        %p2873 = pneg %p189
      $region62: #{transformer_up_forward.11} parent=55 // pred_check_branch
        %2875 = sbr.rel (%p2873) target = $region64
      $region63: #{transformer_up_forward.11} parent=55 // pred_region
        %p2876 = scmp.lt.s32.totalorder %s20, 1
        %s2877 = scalar_select %p2876, %s20, 1
        %s2878 = scalar_lea.vmem %s6, %s2877
      $region64: #{transformer_up_forward.11} parent=55 // pred_fallthru
        _
      // Predicated region
      $region65: #{transformer_up_forward.11} parent=55 // pred_check
        %p2879 = pneg %p215
      $region66: #{transformer_up_forward.11} parent=55 // pred_check_branch
        %2881 = sbr.rel (%p2879) target = $region68
      $region67: #{transformer_up_forward.11} parent=55 // pred_region
        %p2882 = scmp.lt.s32.totalorder %s20, 1
        %s2883 = scalar_select %p2882, %s20, 1
        %s2884 = scalar_lea.vmem %s7, %s2883
      $region68: #{transformer_up_forward.11} parent=55 // pred_fallthru
        _
    $region56: #{transformer_up_forward.11} parent=5 // pred_fallthru
      _
  $region6: #{transformer_up_forward.11} parent=0 // loop_footer
    %s18 = sadd.s32 1, %s14
  $region7: #{transformer_up_forward.11} parent=0 // loop_footer_branch
    %13 = sbr.rel target = $region3
  $region8: #{transformer_up_forward.11} parent=0 // loop_exit
    _

</llo_original>
